<compile_context>
chip_gen: v7x
topology: tpu7x:2x2x1
jax: 0.10.0
libtpu: 0.0.40
codegen_flags: <defaults>
</compile_context>

<pallas_src>
import functools

import jax
import jax.numpy as jnp
from jax.experimental import pallas as pl
from jax.experimental.pallas import tpu as pltpu

EPS = 1e-5                      # nn.InstanceNorm1d default eps
_VMEM_LIMIT = 64 * 1024 * 1024  # explicit scoped-VMEM budget (<= physical on all chips)


def _cpad(c):
    """Pad a channel count up to a multiple of 128 (lane-dense)."""
    return ((c + 127) // 128) * 128


# ------------------------------------------------------------------ helpers ---

def _instance_norm(y, n):
    """Single-pass InstanceNorm over axis 0 of an f32 (n, C) tile."""
    s = jnp.sum(y, axis=0, keepdims=True)
    ss = jnp.sum(y * y, axis=0, keepdims=True)
    mu = s * (1.0 / n)
    var = jnp.maximum(ss * (1.0 / n) - mu * mu, 0.0)
    return (y - mu) * jax.lax.rsqrt(var + EPS)


def _reflect_rows(x, p):
    """ReflectionPad1d(p) along axis 0 of an (L, C) tile (built in-kernel)."""
    L = x.shape[0]
    top = [x[i:i + 1, :] for i in range(p, 0, -1)]          # x[p], ..., x[1]
    bot = [x[L - 1 - i:L - i, :] for i in range(1, p + 1)]   # x[L-2], ..., x[L-1-p]
    return jnp.concatenate(top + [x] + bot, axis=0)


# ------------------------------------------------------------------ kernels ---

def _conv_reflect_kernel(x_ref, w_ref, b_ref, o_ref, *, K, do_norm, do_relu):
    """ReflectionPad1d((K-1)//2) + Conv1d(k=K, s=1) + bias (+IN) (+ReLU), one batch row.

    x_ref: (L, Cin) bf16   w_ref: (K, Cin, Cout) bf16   b_ref: (1, Cout) f32
    o_ref: (L, Cout)
    """
    L, Cout = o_ref.shape
    P = (K - 1) // 2
    xp = _reflect_rows(x_ref[...], P)                        # (L + 2P, Cin)
    acc = jnp.zeros((L, Cout), jnp.float32)
    for k in range(K):
        acc = acc + jnp.dot(xp[k:k + L, :], w_ref[k],
                            preferred_element_type=jnp.float32)
    y = acc + b_ref[...]
    if do_norm:
        y = _instance_norm(y, L)
    if do_relu:
        y = jnp.maximum(y, 0.0)
    o_ref[...] = y.astype(o_ref.dtype)


def _conv_down2_kernel(x_ref, w_ref, b_ref, o_ref, *, cin):
    """Conv1d(k=3, s=2, p=1) + IN + ReLU on a phase-major (Lout, 2*cin) tile.

    Phase-major row m holds [x[2m] | x[2m+1]] so every tap is a contiguous,
    lane-aligned slice.  out[o] = w0@x[2o-1] + w1@x[2o] + w2@x[2o+1].
    """
    Lout, Cout = o_ref.shape
    x_even = x_ref[:, 0:cin]                                 # x[2m]
    x_odd = x_ref[:, cin:2 * cin]                            # x[2m+1]
    zero = jnp.zeros((1, cin), x_odd.dtype)
    x_m1 = jnp.concatenate([zero, x_odd[0:Lout - 1, :]], axis=0)   # x[2m-1], pad=1
    acc = jnp.dot(x_m1, w_ref[0], preferred_element_type=jnp.float32)
    acc = acc + jnp.dot(x_even, w_ref[1], preferred_element_type=jnp.float32)
    acc = acc + jnp.dot(x_odd, w_ref[2], preferred_element_type=jnp.float32)
    y = _instance_norm(acc + b_ref[...], Lout)
    o_ref[...] = jnp.maximum(y, 0.0).astype(o_ref.dtype)


def _resnet_stack_kernel(x_ref, w1_ref, b1_ref, w2_ref, b2_ref, o_ref):
    """One grid step = one ResnetBlock of one batch row.

    Grid is (B, n_blocks); the output block index is constant across the block
    axis, so the activation stays resident in the output VMEM buffer across all
    blocks (single HBM read/write per batch row for the whole stack).
    """
    L, C = o_ref.shape
    r = pl.program_id(1)

    @pl.when(r == 0)
    def _():
        o_ref[...] = x_ref[...]

    x = o_ref[...]                                           # (L, C) bf16
    xp = _reflect_rows(x, 1)
    acc = jnp.zeros((L, C), jnp.float32)
    for k in range(3):
        acc = acc + jnp.dot(xp[k:k + L, :], w1_ref[k],
                            preferred_element_type=jnp.float32)
    h = jnp.maximum(_instance_norm(acc + b1_ref[...], L), 0.0)
    hp = _reflect_rows(h.astype(jnp.bfloat16), 1)
    acc2 = jnp.zeros((L, C), jnp.float32)
    for k in range(3):
        acc2 = acc2 + jnp.dot(hp[k:k + L, :], w2_ref[k],
                              preferred_element_type=jnp.float32)
    y = _instance_norm(acc2 + b2_ref[...], L)
    o_ref[...] = (x.astype(jnp.float32) + y).astype(o_ref.dtype)


def _upsample_kernel(x_ref, w_ref, b_ref, o_ref):
    """Polyphase ConvTranspose1d(k=3, s=2, p=1, op=1) + InstanceNorm + ReLU.

    x_ref: (L, Cin) bf16
    w_ref: (3, Cin, Cout) bf16 = [even-phase, odd@x[m], odd@x[m+1]]
    o_ref: (L, 2*Cout) -- even stream in lanes [0:Cout), odd stream in [Cout:2Cout)
    """
    L = o_ref.shape[0]
    Cout = o_ref.shape[1] // 2
    x0 = x_ref[...]
    x1 = jnp.concatenate([x0[1:, :], jnp.zeros((1, x0.shape[1]), x0.dtype)], axis=0)
    b = b_ref[...]
    y_e = jnp.dot(x0, w_ref[0], preferred_element_type=jnp.float32) + b
    y_o = (jnp.dot(x0, w_ref[1], preferred_element_type=jnp.float32)
           + jnp.dot(x1, w_ref[2], preferred_element_type=jnp.float32) + b)
    # InstanceNorm over the full upsampled length 2L (both phases share stats).
    n = 2.0 * L
    s = jnp.sum(y_e, axis=0, keepdims=True) + jnp.sum(y_o, axis=0, keepdims=True)
    ss = (jnp.sum(y_e * y_e, axis=0, keepdims=True)
          + jnp.sum(y_o * y_o, axis=0, keepdims=True))
    mu = s / n
    var = jnp.maximum(ss / n - mu * mu, 0.0)
    inv = jax.lax.rsqrt(var + EPS)
    y_e = jnp.maximum((y_e - mu) * inv, 0.0)
    y_o = jnp.maximum((y_o - mu) * inv, 0.0)
    o_ref[:, 0:Cout] = y_e.astype(o_ref.dtype)
    o_ref[:, Cout:] = y_o.astype(o_ref.dtype)


# -------------------------------------------------------------- layer calls ---

def conv_reflect_layer(x, w, b, *, do_norm, do_relu):
    """ReflectionPad + Conv1d(k, s=1) (+IN) (+ReLU). x: (B, L, Cin_pad) bf16."""
    B, L, Cin = x.shape
    K, _, Cout = w.shape
    kernel = functools.partial(_conv_reflect_kernel, K=K,
                               do_norm=do_norm, do_relu=do_relu)
    return pl.pallas_call(
        kernel,
        out_shape=jax.ShapeDtypeStruct((B, L, Cout), jnp.bfloat16),
        grid=(B,),
        in_specs=[
            pl.BlockSpec((None, L, Cin), lambda i: (i, 0, 0)),
            pl.BlockSpec((K, Cin, Cout), lambda i: (0, 0, 0)),
            pl.BlockSpec((1, Cout), lambda i: (0, 0)),
        ],
        out_specs=pl.BlockSpec((None, L, Cout), lambda i: (i, 0, 0)),
        compiler_params=pltpu.CompilerParams(
            dimension_semantics=("parallel",),
            vmem_limit_bytes=_VMEM_LIMIT),
    )(x, w, b)


def conv_down2_layer(x, w, b):
    """Conv1d(k=3, s=2, p=1) + IN + ReLU via a free phase-major reshape."""
    B, L, Cin = x.shape
    _, _, Cout = w.shape
    assert L % 2 == 0
    Lout = L // 2
    x_pm = x.reshape(B, Lout, 2 * Cin)                       # free contiguous reshape
    kernel = functools.partial(_conv_down2_kernel, cin=Cin)
    return pl.pallas_call(
        kernel,
        out_shape=jax.ShapeDtypeStruct((B, Lout, Cout), jnp.bfloat16),
        grid=(B,),
        in_specs=[
            pl.BlockSpec((None, Lout, 2 * Cin), lambda i: (i, 0, 0)),
            pl.BlockSpec((3, Cin, Cout), lambda i: (0, 0, 0)),
            pl.BlockSpec((1, Cout), lambda i: (0, 0)),
        ],
        out_specs=pl.BlockSpec((None, Lout, Cout), lambda i: (i, 0, 0)),
        compiler_params=pltpu.CompilerParams(
            dimension_semantics=("parallel",),
            vmem_limit_bytes=_VMEM_LIMIT),
    )(x_pm, w, b)


def resnet_stack(x, w1, b1, w2, b2):
    """All n_blocks ResnetBlocks in ONE pallas_call; grid (B, n_blocks)."""
    B, L, C = x.shape
    R = w1.shape[0]
    return pl.pallas_call(
        _resnet_stack_kernel,
        out_shape=jax.ShapeDtypeStruct((B, L, C), jnp.bfloat16),
        grid=(B, R),
        in_specs=[
            pl.BlockSpec((None, L, C), lambda b, r: (b, 0, 0)),
            pl.BlockSpec((None, 3, C, C), lambda b, r: (r, 0, 0, 0)),
            pl.BlockSpec((None, 1, C), lambda b, r: (r, 0, 0)),
            pl.BlockSpec((None, 3, C, C), lambda b, r: (r, 0, 0, 0)),
            pl.BlockSpec((None, 1, C), lambda b, r: (r, 0, 0)),
        ],
        out_specs=pl.BlockSpec((None, L, C), lambda b, r: (b, 0, 0)),
        compiler_params=pltpu.CompilerParams(
            dimension_semantics=("parallel", "arbitrary"),
            vmem_limit_bytes=_VMEM_LIMIT),
    )(x, w1, b1, w2, b2)


def upsample_layer(x, w_ph, b):
    """Polyphase ConvTranspose1d(k=3, s=2, p=1, op=1) + IN + ReLU."""
    B, L, Cin = x.shape
    _, _, Cout = w_ph.shape
    out = pl.pallas_call(
        _upsample_kernel,
        out_shape=jax.ShapeDtypeStruct((B, L, 2 * Cout), jnp.bfloat16),
        grid=(B,),
        in_specs=[
            pl.BlockSpec((None, L, Cin), lambda i: (i, 0, 0)),
            pl.BlockSpec((3, Cin, Cout), lambda i: (0, 0, 0)),
            pl.BlockSpec((1, Cout), lambda i: (0, 0)),
        ],
        out_specs=pl.BlockSpec((None, L, 2 * Cout), lambda i: (i, 0, 0)),
        compiler_params=pltpu.CompilerParams(
            dimension_semantics=("parallel",),
            vmem_limit_bytes=_VMEM_LIMIT),
    )(x, w_ph, b)
    # Interleave even/odd streams: (B, L, 2*Cout) -> (B, 2L, Cout). Free reshape.
    return out.reshape(B, L, 2, Cout).reshape(B, 2 * L, Cout)


# ------------------------------------------------------- parameter handling ---

def _prep_conv(w, b):
    """PyTorch Conv1d weight (Cout, Cin, K) -> (K, Cin_pad, Cout_pad) bf16."""
    cout, cin, _ = w.shape
    wk = jnp.transpose(w, (2, 1, 0))
    wk = jnp.pad(wk, ((0, 0), (0, _cpad(cin) - cin), (0, _cpad(cout) - cout)))
    bk = jnp.pad(b, (0, _cpad(cout) - cout)).reshape(1, -1).astype(jnp.float32)
    return wk.astype(jnp.bfloat16), bk


def _prep_deconv(w, b):
    """PyTorch ConvTranspose1d weight (Cin, Cout, K=3) -> polyphase (3, Cin_pad, Cout_pad).
    Phases: even <- w[:,:,1]; odd <- w[:,:,2] @ x[m] + w[:,:,0] @ x[m+1]."""
    cin, cout, K = w.shape
    assert K == 3
    wp = jnp.stack([w[:, :, 1], w[:, :, 2], w[:, :, 0]], axis=0)
    wp = jnp.pad(wp, ((0, 0), (0, _cpad(cin) - cin), (0, _cpad(cout) - cout)))
    bk = jnp.pad(b, (0, _cpad(cout) - cout)).reshape(1, -1).astype(jnp.float32)
    return wp.astype(jnp.bfloat16), bk


def prepare_params(params, *, n_blocks):
    """One-time layout conversion (PyTorch layouts -> lane-dense bf16 kernels)."""
    idx = 0
    head = _prep_conv(*params[idx]); idx += 1
    downs = []
    for _ in range(2):
        downs.append(_prep_conv(*params[idx])); idx += 1
    rw1, rb1, rw2, rb2 = [], [], [], []
    for _ in range(n_blocks):
        w1, b1 = _prep_conv(*params[idx]); idx += 1
        w2, b2 = _prep_conv(*params[idx]); idx += 1
        rw1.append(w1); rb1.append(b1); rw2.append(w2); rb2.append(b2)
    res = None
    if n_blocks > 0:
        res = (jnp.stack(rw1), jnp.stack(rb1), jnp.stack(rw2), jnp.stack(rb2))
    ups = []
    for _ in range(2):
        ups.append(_prep_deconv(*params[idx])); idx += 1
    tail = _prep_conv(*params[idx]); idx += 1
    return dict(head=head, downs=downs, res=res, ups=ups, tail=tail)


def init_params(key, input_nc, ngf, n_blocks):
    """Deterministic synthetic parameters, in PyTorch layouts, in application order."""
    n_layers = 6 + 2 * n_blocks
    keys = iter(jax.random.split(key, n_layers))

    def conv_p(k, w_shape, cout):
        kw, kb = jax.random.split(k)
        w = jax.random.normal(kw, w_shape, jnp.float32) * 0.1
        b = jax.random.normal(kb, (cout,), jnp.float32) * 0.1
        return (w, b)

    params = []
    params.append(conv_p(next(keys), (ngf, input_nc, 7), ngf))            # head
    for i in range(2):                                                    # down
        mult = 2 ** i
        params.append(conv_p(next(keys), (ngf * mult * 2, ngf * mult, 3),
                             ngf * mult * 2))
    mult = 4
    for _ in range(n_blocks):                                             # resnet
        params.append(conv_p(next(keys), (ngf * mult, ngf * mult, 3), ngf * mult))
        params.append(conv_p(next(keys), (ngf * mult, ngf * mult, 3), ngf * mult))
    for i in range(2):                                                    # up
        mult = 2 ** (2 - i)
        # ConvTranspose1d weight layout: (C_in, C_out, K)
        params.append(conv_p(next(keys), (ngf * mult, ngf * mult // 2, 3),
                             ngf * mult // 2))
    params.append(conv_p(next(keys), (2, ngf, 7), 2))                     # tail
    return params


# ---------------------------------------------------------------- generator ---

def generator_forward(prepped, x_ncl):
    B, cin0, L = x_ncl.shape

    # NCL -> channels-last, pad channels to a lane-dense width, bf16 activations.
    x = jnp.transpose(x_ncl, (0, 2, 1))
    x = jnp.pad(x, ((0, 0), (0, 0), (0, _cpad(cin0) - cin0))).astype(jnp.bfloat16)

    # head: ReflectionPad1d(3) -> Conv1d(k=7) -> InstanceNorm -> ReLU (pad in-kernel)
    w, b = prepped["head"]
    x = conv_reflect_layer(x, w, b, do_norm=True, do_relu=True)

    # downsampling x2: Conv1d(k=3, s=2, p=1) -> InstanceNorm -> ReLU
    for (w, b) in prepped["downs"]:
        x = conv_down2_layer(x, w, b)

    # resnet blocks: one fused pallas_call for the whole stack
    if prepped["res"] is not None:
        w1, b1, w2, b2 = prepped["res"]
        x = resnet_stack(x, w1, b1, w2, b2)

    # upsampling x2: polyphase ConvTranspose1d(k=3, s=2, p=1, op=1) -> IN -> ReLU
    for (wp, b) in prepped["ups"]:
        x = upsample_layer(x, wp, b)

    # tail: ReflectionPad1d(3) -> Conv1d(ngf -> 2, k=7)   (no norm, no relu)
    w, b = prepped["tail"]
    x = conv_reflect_layer(x, w, b, do_norm=False, do_relu=False)

    # slice padded channels back to the true 2, back to NCL, f32 at the boundary.
    x = x[:, :, :2].astype(jnp.float32)
    return jnp.transpose(x, (0, 2, 1))


# -------------------------------------------------------------------- main ---

if __name__ == "__main__":
    key = jax.random.PRNGKey(0)
    kx, kp = jax.random.split(key)

    B, input_nc, L = 2, 4, 16          # L must be a multiple of 4 (two stride-2 stages)
    ngf, n_blocks = 8, 2               # small synthetic config (module default: 64 / 9)

    x = jax.random.normal(kx, (B, input_nc, L), jnp.float32)
    params = init_params(kp, input_nc, ngf, n_blocks)
    prepped = prepare_params(params, n_blocks=n_blocks)

    fwd = jax.jit(generator_forward)
    out = jax.block_until_ready(fwd(prepped, x))

    assert out.shape == (B, 2, L), out.shape
    assert jnp.all(jnp.isfinite(out))
    print("KERNEL_OK")
</pallas_src>

<mosaic_0001>
module attributes {stable_mosaic.version = 11 : i64} {
  func.func @_conv_reflect_kernel(%arg0: i32, %arg1: memref<1x16x128xbf16, #tpu.memory_space<vmem>>, %arg2: memref<7x128x128xbf16, #tpu.memory_space<vmem>>, %arg3: memref<1x128xf32, #tpu.memory_space<vmem>>, %arg4: memref<1x16x128xbf16, #tpu.memory_space<vmem>>) attributes {dimension_semantics = [#tpu.dimension_semantics<parallel>], iteration_bounds = array<i64: 2>, scalar_prefetch = 0 : i64, scratch_operands = 0 : i64, tpu.core_type = #tpu.core_type<tc>, window_params = [{transform_indices = @transform_0, window_bounds = array<i64: 1, 16, 128>}, {pipeline_mode = #tpu.pipeline_mode<synchronous>, transform_indices = @transform_1, window_bounds = array<i64: 7, 128, 128>}, {pipeline_mode = #tpu.pipeline_mode<synchronous>, transform_indices = @transform_2, window_bounds = array<i64: 1, 128>}, {transform_indices = @transform_3, window_bounds = array<i64: 1, 16, 128>}]} {
    %c0 = arith.constant 0 : index
    %c0_0 = arith.constant 0 : index
    %c0_1 = arith.constant 0 : index
    %0 = vector.load %arg1[%c0, %c0_0, %c0_1] : memref<1x16x128xbf16, #tpu.memory_space<vmem>>, vector<1x16x128xbf16>
    %1 = vector.shape_cast %0 : vector<1x16x128xbf16> to vector<16x128xbf16>
    %2 = vector.extract_strided_slice %1 {offsets = [3, 0], sizes = [1, 128], strides = [1, 1]} : vector<16x128xbf16> to vector<1x128xbf16>
    %3 = vector.extract_strided_slice %1 {offsets = [2, 0], sizes = [1, 128], strides = [1, 1]} : vector<16x128xbf16> to vector<1x128xbf16>
    %4 = vector.extract_strided_slice %1 {offsets = [1, 0], sizes = [1, 128], strides = [1, 1]} : vector<16x128xbf16> to vector<1x128xbf16>
    %5 = vector.extract_strided_slice %1 {offsets = [14, 0], sizes = [1, 128], strides = [1, 1]} : vector<16x128xbf16> to vector<1x128xbf16>
    %6 = vector.extract_strided_slice %1 {offsets = [13, 0], sizes = [1, 128], strides = [1, 1]} : vector<16x128xbf16> to vector<1x128xbf16>
    %7 = vector.extract_strided_slice %1 {offsets = [12, 0], sizes = [1, 128], strides = [1, 1]} : vector<16x128xbf16> to vector<1x128xbf16>
    %8 = tpu.concatenate %2, %3, %4, %1, %5, %6, %7 in 0 : vector<1x128xbf16>, vector<1x128xbf16>, vector<1x128xbf16>, vector<16x128xbf16>, vector<1x128xbf16>, vector<1x128xbf16>, vector<1x128xbf16> -> vector<22x128xbf16>
    %cst = arith.constant 0.000000e+00 : f32
    %9 = vector.broadcast %cst : f32 to vector<16x128xf32>
    %10 = vector.extract_strided_slice %8 {offsets = [0, 0], sizes = [16, 128], strides = [1, 1]} : vector<22x128xbf16> to vector<16x128xbf16>
    %c0_2 = arith.constant 0 : index
    %c0_3 = arith.constant 0 : index
    %c0_4 = arith.constant 0 : index
    %11 = vector.load %arg2[%c0_2, %c0_3, %c0_4] : memref<7x128x128xbf16, #tpu.memory_space<vmem>>, vector<1x128x128xbf16>
    %12 = vector.shape_cast %11 : vector<1x128x128xbf16> to vector<128x128xbf16>
    %cst_5 = arith.constant dense<0.000000e+00> : vector<16x128xf32>
    %13 = tpu.matmul %10, %12, %cst_5 {dimension_numbers = #tpu.dot_dimension_numbers<[1], [0], [0], [1], [0, 0, 1, 1], [], []>} : vector<16x128xbf16>, vector<128x128xbf16>, vector<16x128xf32> -> vector<16x128xf32>
    %14 = arith.addf %9, %13 : vector<16x128xf32>
    %15 = vector.extract_strided_slice %8 {offsets = [1, 0], sizes = [16, 128], strides = [1, 1]} : vector<22x128xbf16> to vector<16x128xbf16>
    %c1 = arith.constant 1 : index
    %c0_6 = arith.constant 0 : index
    %c0_7 = arith.constant 0 : index
    %16 = vector.load %arg2[%c1, %c0_6, %c0_7] : memref<7x128x128xbf16, #tpu.memory_space<vmem>>, vector<1x128x128xbf16>
    %17 = vector.shape_cast %16 : vector<1x128x128xbf16> to vector<128x128xbf16>
    %cst_8 = arith.constant dense<0.000000e+00> : vector<16x128xf32>
    %18 = tpu.matmul %15, %17, %cst_8 {dimension_numbers = #tpu.dot_dimension_numbers<[1], [0], [0], [1], [0, 0, 1, 1], [], []>} : vector<16x128xbf16>, vector<128x128xbf16>, vector<16x128xf32> -> vector<16x128xf32>
    %19 = arith.addf %14, %18 : vector<16x128xf32>
    %20 = vector.extract_strided_slice %8 {offsets = [2, 0], sizes = [16, 128], strides = [1, 1]} : vector<22x128xbf16> to vector<16x128xbf16>
    %c2 = arith.constant 2 : index
    %c0_9 = arith.constant 0 : index
    %c0_10 = arith.constant 0 : index
    %21 = vector.load %arg2[%c2, %c0_9, %c0_10] : memref<7x128x128xbf16, #tpu.memory_space<vmem>>, vector<1x128x128xbf16>
    %22 = vector.shape_cast %21 : vector<1x128x128xbf16> to vector<128x128xbf16>
    %cst_11 = arith.constant dense<0.000000e+00> : vector<16x128xf32>
    %23 = tpu.matmul %20, %22, %cst_11 {dimension_numbers = #tpu.dot_dimension_numbers<[1], [0], [0], [1], [0, 0, 1, 1], [], []>} : vector<16x128xbf16>, vector<128x128xbf16>, vector<16x128xf32> -> vector<16x128xf32>
    %24 = arith.addf %19, %23 : vector<16x128xf32>
    %25 = vector.extract_strided_slice %8 {offsets = [3, 0], sizes = [16, 128], strides = [1, 1]} : vector<22x128xbf16> to vector<16x128xbf16>
    %c3 = arith.constant 3 : index
    %c0_12 = arith.constant 0 : index
    %c0_13 = arith.constant 0 : index
    %26 = vector.load %arg2[%c3, %c0_12, %c0_13] : memref<7x128x128xbf16, #tpu.memory_space<vmem>>, vector<1x128x128xbf16>
    %27 = vector.shape_cast %26 : vector<1x128x128xbf16> to vector<128x128xbf16>
    %cst_14 = arith.constant dense<0.000000e+00> : vector<16x128xf32>
    %28 = tpu.matmul %25, %27, %cst_14 {dimension_numbers = #tpu.dot_dimension_numbers<[1], [0], [0], [1], [0, 0, 1, 1], [], []>} : vector<16x128xbf16>, vector<128x128xbf16>, vector<16x128xf32> -> vector<16x128xf32>
    %29 = arith.addf %24, %28 : vector<16x128xf32>
    %30 = vector.extract_strided_slice %8 {offsets = [4, 0], sizes = [16, 128], strides = [1, 1]} : vector<22x128xbf16> to vector<16x128xbf16>
    %c4 = arith.constant 4 : index
    %c0_15 = arith.constant 0 : index
    %c0_16 = arith.constant 0 : index
    %31 = vector.load %arg2[%c4, %c0_15, %c0_16] : memref<7x128x128xbf16, #tpu.memory_space<vmem>>, vector<1x128x128xbf16>
    %32 = vector.shape_cast %31 : vector<1x128x128xbf16> to vector<128x128xbf16>
    %cst_17 = arith.constant dense<0.000000e+00> : vector<16x128xf32>
    %33 = tpu.matmul %30, %32, %cst_17 {dimension_numbers = #tpu.dot_dimension_numbers<[1], [0], [0], [1], [0, 0, 1, 1], [], []>} : vector<16x128xbf16>, vector<128x128xbf16>, vector<16x128xf32> -> vector<16x128xf32>
    %34 = arith.addf %29, %33 : vector<16x128xf32>
    %35 = vector.extract_strided_slice %8 {offsets = [5, 0], sizes = [16, 128], strides = [1, 1]} : vector<22x128xbf16> to vector<16x128xbf16>
    %c5 = arith.constant 5 : index
    %c0_18 = arith.constant 0 : index
    %c0_19 = arith.constant 0 : index
    %36 = vector.load %arg2[%c5, %c0_18, %c0_19] : memref<7x128x128xbf16, #tpu.memory_space<vmem>>, vector<1x128x128xbf16>
    %37 = vector.shape_cast %36 : vector<1x128x128xbf16> to vector<128x128xbf16>
    %cst_20 = arith.constant dense<0.000000e+00> : vector<16x128xf32>
    %38 = tpu.matmul %35, %37, %cst_20 {dimension_numbers = #tpu.dot_dimension_numbers<[1], [0], [0], [1], [0, 0, 1, 1], [], []>} : vector<16x128xbf16>, vector<128x128xbf16>, vector<16x128xf32> -> vector<16x128xf32>
    %39 = arith.addf %34, %38 : vector<16x128xf32>
    %40 = vector.extract_strided_slice %8 {offsets = [6, 0], sizes = [16, 128], strides = [1, 1]} : vector<22x128xbf16> to vector<16x128xbf16>
    %c6 = arith.constant 6 : index
    %c0_21 = arith.constant 0 : index
    %c0_22 = arith.constant 0 : index
    %41 = vector.load %arg2[%c6, %c0_21, %c0_22] : memref<7x128x128xbf16, #tpu.memory_space<vmem>>, vector<1x128x128xbf16>
    %42 = vector.shape_cast %41 : vector<1x128x128xbf16> to vector<128x128xbf16>
    %cst_23 = arith.constant dense<0.000000e+00> : vector<16x128xf32>
    %43 = tpu.matmul %40, %42, %cst_23 {dimension_numbers = #tpu.dot_dimension_numbers<[1], [0], [0], [1], [0, 0, 1, 1], [], []>} : vector<16x128xbf16>, vector<128x128xbf16>, vector<16x128xf32> -> vector<16x128xf32>
    %44 = arith.addf %39, %43 : vector<16x128xf32>
    %c0_24 = arith.constant 0 : index
    %c0_25 = arith.constant 0 : index
    %45 = vector.load %arg3[%c0_24, %c0_25] : memref<1x128xf32, #tpu.memory_space<vmem>>, vector<1x128xf32>
    %46 = vector.broadcast %45 : vector<1x128xf32> to vector<16x128xf32>
    %47 = arith.addf %44, %46 : vector<16x128xf32>
    %cst_26 = arith.constant dense<0.000000e+00> : vector<128xf32>
    %48 = vector.multi_reduction <add>, %47, %cst_26 [0] : vector<16x128xf32> to vector<128xf32>
    %49 = vector.shape_cast %48 : vector<128xf32> to vector<1x128xf32>
    %50 = arith.mulf %47, %47 : vector<16x128xf32>
    %cst_27 = arith.constant dense<0.000000e+00> : vector<128xf32>
    %51 = vector.multi_reduction <add>, %50, %cst_27 [0] : vector<16x128xf32> to vector<128xf32>
    %52 = vector.shape_cast %51 : vector<128xf32> to vector<1x128xf32>
    %cst_28 = arith.constant 6.250000e-02 : f32
    %53 = vector.broadcast %cst_28 : f32 to vector<1x128xf32>
    %54 = arith.mulf %49, %53 : vector<1x128xf32>
    %cst_29 = arith.constant 6.250000e-02 : f32
    %55 = vector.broadcast %cst_29 : f32 to vector<1x128xf32>
    %56 = arith.mulf %52, %55 : vector<1x128xf32>
    %57 = arith.mulf %54, %54 : vector<1x128xf32>
    %58 = arith.subf %56, %57 : vector<1x128xf32>
    %cst_30 = arith.constant 0.000000e+00 : f32
    %59 = vector.broadcast %cst_30 : f32 to vector<1x128xf32>
    %60 = arith.maximumf %58, %59 : vector<1x128xf32>
    %61 = vector.broadcast %54 : vector<1x128xf32> to vector<16x128xf32>
    %62 = arith.subf %47, %61 : vector<16x128xf32>
    %cst_31 = arith.constant 9.99999974E-6 : f32
    %63 = vector.broadcast %cst_31 : f32 to vector<1x128xf32>
    %64 = arith.addf %60, %63 : vector<1x128xf32>
    %65 = math.rsqrt %64 : vector<1x128xf32>
    %66 = vector.broadcast %65 : vector<1x128xf32> to vector<16x128xf32>
    %67 = arith.mulf %62, %66 : vector<16x128xf32>
    %cst_32 = arith.constant 0.000000e+00 : f32
    %68 = vector.broadcast %cst_32 : f32 to vector<16x128xf32>
    %69 = arith.maximumf %67, %68 : vector<16x128xf32>
    %70 = arith.truncf %69 : vector<16x128xf32> to vector<16x128xbf16>
    %c0_33 = arith.constant 0 : index
    %c0_34 = arith.constant 0 : index
    %c0_35 = arith.constant 0 : index
    %71 = vector.load %arg4[%c0_33, %c0_34, %c0_35] : memref<1x16x128xbf16, #tpu.memory_space<vmem>>, vector<1x16x128xbf16>
    %72 = vector.shape_cast %71 : vector<1x16x128xbf16> to vector<16x128xbf16>
    %73 = vector.shape_cast %70 : vector<16x128xbf16> to vector<1x16x128xbf16>
    tpu.vector_store %arg4[%c0_33, %c0_34, %c0_35], %73 {strides = array<i32>} : memref<1x16x128xbf16, #tpu.memory_space<vmem>>, vector<1x16x128xbf16>,
    return
  }
  func.func @transform_0(%arg0: i32) -> (i32, i32, i32) {
    %c0_i32 = arith.constant 0 : i32
    %c0_i32_0 = arith.constant 0 : i32
    %c0_i32_1 = arith.constant 0 : i32
    return %arg0, %c0_i32, %c0_i32_0 : i32, i32, i32
  }
  func.func @transform_1(%arg0: i32) -> (i32, i32, i32) {
    %c0_i32 = arith.constant 0 : i32
    %c0_i32_0 = arith.constant 0 : i32
    %c0_i32_1 = arith.constant 0 : i32
    %c0_i32_2 = arith.constant 0 : i32
    return %c0_i32, %c0_i32_0, %c0_i32_1 : i32, i32, i32
  }
  func.func @transform_2(%arg0: i32) -> (i32, i32) {
    %c0_i32 = arith.constant 0 : i32
    %c0_i32_0 = arith.constant 0 : i32
    %c0_i32_1 = arith.constant 0 : i32
    return %c0_i32, %c0_i32_0 : i32, i32
  }
  func.func @transform_3(%arg0: i32) -> (i32, i32, i32) {
    %c0_i32 = arith.constant 0 : i32
    %c0_i32_0 = arith.constant 0 : i32
    %c0_i32_1 = arith.constant 0 : i32
    return %arg0, %c0_i32, %c0_i32_0 : i32, i32, i32
  }
}

module attributes {stable_mosaic.version = 11 : i64} {
  func.func @_conv_down2_kernel(%arg0: i32, %arg1: memref<1x8x256xbf16, #tpu.memory_space<vmem>>, %arg2: memref<3x128x128xbf16, #tpu.memory_space<vmem>>, %arg3: memref<1x128xf32, #tpu.memory_space<vmem>>, %arg4: memref<1x8x128xbf16, #tpu.memory_space<vmem>>) attributes {dimension_semantics = [#tpu.dimension_semantics<parallel>], iteration_bounds = array<i64: 2>, scalar_prefetch = 0 : i64, scratch_operands = 0 : i64, tpu.core_type = #tpu.core_type<tc>, window_params = [{transform_indices = @transform_0, window_bounds = array<i64: 1, 8, 256>}, {pipeline_mode = #tpu.pipeline_mode<synchronous>, transform_indices = @transform_1, window_bounds = array<i64: 3, 128, 128>}, {pipeline_mode = #tpu.pipeline_mode<synchronous>, transform_indices = @transform_2, window_bounds = array<i64: 1, 128>}, {transform_indices = @transform_3, window_bounds = array<i64: 1, 8, 128>}]} {
    %c0 = arith.constant 0 : index
    %c0_0 = arith.constant 0 : index
    %c0_1 = arith.constant 0 : index
    %0 = vector.load %arg1[%c0, %c0_0, %c0_1] : memref<1x8x256xbf16, #tpu.memory_space<vmem>>, vector<1x8x128xbf16>
    %1 = vector.shape_cast %0 : vector<1x8x128xbf16> to vector<8x128xbf16>
    %c0_2 = arith.constant 0 : index
    %c0_3 = arith.constant 0 : index
    %c128 = arith.constant 128 : index
    %2 = vector.load %arg1[%c0_2, %c0_3, %c128] : memref<1x8x256xbf16, #tpu.memory_space<vmem>>, vector<1x8x128xbf16>
    %3 = vector.shape_cast %2 : vector<1x8x128xbf16> to vector<8x128xbf16>
    %cst = arith.constant 0.000000e+00 : bf16
    %4 = vector.broadcast %cst : bf16 to vector<1x128xbf16>
    %5 = vector.extract_strided_slice %3 {offsets = [0, 0], sizes = [7, 128], strides = [1, 1]} : vector<8x128xbf16> to vector<7x128xbf16>
    %6 = tpu.concatenate %4, %5 in 0 : vector<1x128xbf16>, vector<7x128xbf16> -> vector<8x128xbf16>
    %c0_4 = arith.constant 0 : index
    %c0_5 = arith.constant 0 : index
    %c0_6 = arith.constant 0 : index
    %7 = vector.load %arg2[%c0_4, %c0_5, %c0_6] : memref<3x128x128xbf16, #tpu.memory_space<vmem>>, vector<1x128x128xbf16>
    %8 = vector.shape_cast %7 : vector<1x128x128xbf16> to vector<128x128xbf16>
    %cst_7 = arith.constant dense<0.000000e+00> : vector<8x128xf32>
    %9 = tpu.matmul %6, %8, %cst_7 {dimension_numbers = #tpu.dot_dimension_numbers<[1], [0], [0], [1], [0, 0, 1, 1], [], []>} : vector<8x128xbf16>, vector<128x128xbf16>, vector<8x128xf32> -> vector<8x128xf32>
    %c1 = arith.constant 1 : index
    %c0_8 = arith.constant 0 : index
    %c0_9 = arith.constant 0 : index
    %10 = vector.load %arg2[%c1, %c0_8, %c0_9] : memref<3x128x128xbf16, #tpu.memory_space<vmem>>, vector<1x128x128xbf16>
    %11 = vector.shape_cast %10 : vector<1x128x128xbf16> to vector<128x128xbf16>
    %cst_10 = arith.constant dense<0.000000e+00> : vector<8x128xf32>
    %12 = tpu.matmul %1, %11, %cst_10 {dimension_numbers = #tpu.dot_dimension_numbers<[1], [0], [0], [1], [0, 0, 1, 1], [], []>} : vector<8x128xbf16>, vector<128x128xbf16>, vector<8x128xf32> -> vector<8x128xf32>
    %13 = arith.addf %9, %12 : vector<8x128xf32>
    %c2 = arith.constant 2 : index
    %c0_11 = arith.constant 0 : index
    %c0_12 = arith.constant 0 : index
    %14 = vector.load %arg2[%c2, %c0_11, %c0_12] : memref<3x128x128xbf16, #tpu.memory_space<vmem>>, vector<1x128x128xbf16>
    %15 = vector.shape_cast %14 : vector<1x128x128xbf16> to vector<128x128xbf16>
    %cst_13 = arith.constant dense<0.000000e+00> : vector<8x128xf32>
    %16 = tpu.matmul %3, %15, %cst_13 {dimension_numbers = #tpu.dot_dimension_numbers<[1], [0], [0], [1], [0, 0, 1, 1], [], []>} : vector<8x128xbf16>, vector<128x128xbf16>, vector<8x128xf32> -> vector<8x128xf32>
    %17 = arith.addf %13, %16 : vector<8x128xf32>
    %c0_14 = arith.constant 0 : index
    %c0_15 = arith.constant 0 : index
    %18 = vector.load %arg3[%c0_14, %c0_15] : memref<1x128xf32, #tpu.memory_space<vmem>>, vector<1x128xf32>
    %19 = vector.broadcast %18 : vector<1x128xf32> to vector<8x128xf32>
    %20 = arith.addf %17, %19 : vector<8x128xf32>
    %cst_16 = arith.constant dense<0.000000e+00> : vector<128xf32>
    %21 = vector.multi_reduction <add>, %20, %cst_16 [0] : vector<8x128xf32> to vector<128xf32>
    %22 = vector.shape_cast %21 : vector<128xf32> to vector<1x128xf32>
    %23 = arith.mulf %20, %20 : vector<8x128xf32>
    %cst_17 = arith.constant dense<0.000000e+00> : vector<128xf32>
    %24 = vector.multi_reduction <add>, %23, %cst_17 [0] : vector<8x128xf32> to vector<128xf32>
    %25 = vector.shape_cast %24 : vector<128xf32> to vector<1x128xf32>
    %cst_18 = arith.constant 1.250000e-01 : f32
    %26 = vector.broadcast %cst_18 : f32 to vector<1x128xf32>
    %27 = arith.mulf %22, %26 : vector<1x128xf32>
    %cst_19 = arith.constant 1.250000e-01 : f32
    %28 = vector.broadcast %cst_19 : f32 to vector<1x128xf32>
    %29 = arith.mulf %25, %28 : vector<1x128xf32>
    %30 = arith.mulf %27, %27 : vector<1x128xf32>
    %31 = arith.subf %29, %30 : vector<1x128xf32>
    %cst_20 = arith.constant 0.000000e+00 : f32
    %32 = vector.broadcast %cst_20 : f32 to vector<1x128xf32>
    %33 = arith.maximumf %31, %32 : vector<1x128xf32>
    %34 = vector.broadcast %27 : vector<1x128xf32> to vector<8x128xf32>
    %35 = arith.subf %20, %34 : vector<8x128xf32>
    %cst_21 = arith.constant 9.99999974E-6 : f32
    %36 = vector.broadcast %cst_21 : f32 to vector<1x128xf32>
    %37 = arith.addf %33, %36 : vector<1x128xf32>
    %38 = math.rsqrt %37 : vector<1x128xf32>
    %39 = vector.broadcast %38 : vector<1x128xf32> to vector<8x128xf32>
    %40 = arith.mulf %35, %39 : vector<8x128xf32>
    %cst_22 = arith.constant 0.000000e+00 : f32
    %41 = vector.broadcast %cst_22 : f32 to vector<8x128xf32>
    %42 = arith.maximumf %40, %41 : vector<8x128xf32>
    %43 = arith.truncf %42 : vector<8x128xf32> to vector<8x128xbf16>
    %c0_23 = arith.constant 0 : index
    %c0_24 = arith.constant 0 : index
    %c0_25 = arith.constant 0 : index
    %44 = vector.load %arg4[%c0_23, %c0_24, %c0_25] : memref<1x8x128xbf16, #tpu.memory_space<vmem>>, vector<1x8x128xbf16>
    %45 = vector.shape_cast %44 : vector<1x8x128xbf16> to vector<8x128xbf16>
    %46 = vector.shape_cast %43 : vector<8x128xbf16> to vector<1x8x128xbf16>
    tpu.vector_store %arg4[%c0_23, %c0_24, %c0_25], %46 {strides = array<i32>} : memref<1x8x128xbf16, #tpu.memory_space<vmem>>, vector<1x8x128xbf16>,
    return
  }
  func.func @transform_0(%arg0: i32) -> (i32, i32, i32) {
    %c0_i32 = arith.constant 0 : i32
    %c0_i32_0 = arith.constant 0 : i32
    %c0_i32_1 = arith.constant 0 : i32
    return %arg0, %c0_i32, %c0_i32_0 : i32, i32, i32
  }
  func.func @transform_1(%arg0: i32) -> (i32, i32, i32) {
    %c0_i32 = arith.constant 0 : i32
    %c0_i32_0 = arith.constant 0 : i32
    %c0_i32_1 = arith.constant 0 : i32
    %c0_i32_2 = arith.constant 0 : i32
    return %c0_i32, %c0_i32_0, %c0_i32_1 : i32, i32, i32
  }
  func.func @transform_2(%arg0: i32) -> (i32, i32) {
    %c0_i32 = arith.constant 0 : i32
    %c0_i32_0 = arith.constant 0 : i32
    %c0_i32_1 = arith.constant 0 : i32
    return %c0_i32, %c0_i32_0 : i32, i32
  }
  func.func @transform_3(%arg0: i32) -> (i32, i32, i32) {
    %c0_i32 = arith.constant 0 : i32
    %c0_i32_0 = arith.constant 0 : i32
    %c0_i32_1 = arith.constant 0 : i32
    return %arg0, %c0_i32, %c0_i32_0 : i32, i32, i32
  }
}

module attributes {stable_mosaic.version = 11 : i64} {
  func.func @_conv_down2_kernel(%arg0: i32, %arg1: memref<1x4x256xbf16, #tpu.memory_space<vmem>>, %arg2: memref<3x128x128xbf16, #tpu.memory_space<vmem>>, %arg3: memref<1x128xf32, #tpu.memory_space<vmem>>, %arg4: memref<1x4x128xbf16, #tpu.memory_space<vmem>>) attributes {dimension_semantics = [#tpu.dimension_semantics<parallel>], iteration_bounds = array<i64: 2>, scalar_prefetch = 0 : i64, scratch_operands = 0 : i64, tpu.core_type = #tpu.core_type<tc>, window_params = [{transform_indices = @transform_0, window_bounds = array<i64: 1, 4, 256>}, {pipeline_mode = #tpu.pipeline_mode<synchronous>, transform_indices = @transform_1, window_bounds = array<i64: 3, 128, 128>}, {pipeline_mode = #tpu.pipeline_mode<synchronous>, transform_indices = @transform_2, window_bounds = array<i64: 1, 128>}, {transform_indices = @transform_3, window_bounds = array<i64: 1, 4, 128>}]} {
    %c0 = arith.constant 0 : index
    %c0_0 = arith.constant 0 : index
    %c0_1 = arith.constant 0 : index
    %0 = vector.load %arg1[%c0, %c0_0, %c0_1] : memref<1x4x256xbf16, #tpu.memory_space<vmem>>, vector<1x4x128xbf16>
    %1 = vector.shape_cast %0 : vector<1x4x128xbf16> to vector<4x128xbf16>
    %c0_2 = arith.constant 0 : index
    %c0_3 = arith.constant 0 : index
    %c128 = arith.constant 128 : index
    %2 = vector.load %arg1[%c0_2, %c0_3, %c128] : memref<1x4x256xbf16, #tpu.memory_space<vmem>>, vector<1x4x128xbf16>
    %3 = vector.shape_cast %2 : vector<1x4x128xbf16> to vector<4x128xbf16>
    %cst = arith.constant 0.000000e+00 : bf16
    %4 = vector.broadcast %cst : bf16 to vector<1x128xbf16>
    %5 = vector.extract_strided_slice %3 {offsets = [0, 0], sizes = [3, 128], strides = [1, 1]} : vector<4x128xbf16> to vector<3x128xbf16>
    %6 = tpu.concatenate %4, %5 in 0 : vector<1x128xbf16>, vector<3x128xbf16> -> vector<4x128xbf16>
    %c0_4 = arith.constant 0 : index
    %c0_5 = arith.constant 0 : index
    %c0_6 = arith.constant 0 : index
    %7 = vector.load %arg2[%c0_4, %c0_5, %c0_6] : memref<3x128x128xbf16, #tpu.memory_space<vmem>>, vector<1x128x128xbf16>
    %8 = vector.shape_cast %7 : vector<1x128x128xbf16> to vector<128x128xbf16>
    %cst_7 = arith.constant dense<0.000000e+00> : vector<4x128xf32>
    %9 = tpu.matmul %6, %8, %cst_7 {dimension_numbers = #tpu.dot_dimension_numbers<[1], [0], [0], [1], [0, 0, 1, 1], [], []>} : vector<4x128xbf16>, vector<128x128xbf16>, vector<4x128xf32> -> vector<4x128xf32>
    %c1 = arith.constant 1 : index
    %c0_8 = arith.constant 0 : index
    %c0_9 = arith.constant 0 : index
    %10 = vector.load %arg2[%c1, %c0_8, %c0_9] : memref<3x128x128xbf16, #tpu.memory_space<vmem>>, vector<1x128x128xbf16>
    %11 = vector.shape_cast %10 : vector<1x128x128xbf16> to vector<128x128xbf16>
    %cst_10 = arith.constant dense<0.000000e+00> : vector<4x128xf32>
    %12 = tpu.matmul %1, %11, %cst_10 {dimension_numbers = #tpu.dot_dimension_numbers<[1], [0], [0], [1], [0, 0, 1, 1], [], []>} : vector<4x128xbf16>, vector<128x128xbf16>, vector<4x128xf32> -> vector<4x128xf32>
    %13 = arith.addf %9, %12 : vector<4x128xf32>
    %c2 = arith.constant 2 : index
    %c0_11 = arith.constant 0 : index
    %c0_12 = arith.constant 0 : index
    %14 = vector.load %arg2[%c2, %c0_11, %c0_12] : memref<3x128x128xbf16, #tpu.memory_space<vmem>>, vector<1x128x128xbf16>
    %15 = vector.shape_cast %14 : vector<1x128x128xbf16> to vector<128x128xbf16>
    %cst_13 = arith.constant dense<0.000000e+00> : vector<4x128xf32>
    %16 = tpu.matmul %3, %15, %cst_13 {dimension_numbers = #tpu.dot_dimension_numbers<[1], [0], [0], [1], [0, 0, 1, 1], [], []>} : vector<4x128xbf16>, vector<128x128xbf16>, vector<4x128xf32> -> vector<4x128xf32>
    %17 = arith.addf %13, %16 : vector<4x128xf32>
    %c0_14 = arith.constant 0 : index
    %c0_15 = arith.constant 0 : index
    %18 = vector.load %arg3[%c0_14, %c0_15] : memref<1x128xf32, #tpu.memory_space<vmem>>, vector<1x128xf32>
    %19 = vector.broadcast %18 : vector<1x128xf32> to vector<4x128xf32>
    %20 = arith.addf %17, %19 : vector<4x128xf32>
    %cst_16 = arith.constant dense<0.000000e+00> : vector<128xf32>
    %21 = vector.multi_reduction <add>, %20, %cst_16 [0] : vector<4x128xf32> to vector<128xf32>
    %22 = vector.shape_cast %21 : vector<128xf32> to vector<1x128xf32>
    %23 = arith.mulf %20, %20 : vector<4x128xf32>
    %cst_17 = arith.constant dense<0.000000e+00> : vector<128xf32>
    %24 = vector.multi_reduction <add>, %23, %cst_17 [0] : vector<4x128xf32> to vector<128xf32>
    %25 = vector.shape_cast %24 : vector<128xf32> to vector<1x128xf32>
    %cst_18 = arith.constant 2.500000e-01 : f32
    %26 = vector.broadcast %cst_18 : f32 to vector<1x128xf32>
    %27 = arith.mulf %22, %26 : vector<1x128xf32>
    %cst_19 = arith.constant 2.500000e-01 : f32
    %28 = vector.broadcast %cst_19 : f32 to vector<1x128xf32>
    %29 = arith.mulf %25, %28 : vector<1x128xf32>
    %30 = arith.mulf %27, %27 : vector<1x128xf32>
    %31 = arith.subf %29, %30 : vector<1x128xf32>
    %cst_20 = arith.constant 0.000000e+00 : f32
    %32 = vector.broadcast %cst_20 : f32 to vector<1x128xf32>
    %33 = arith.maximumf %31, %32 : vector<1x128xf32>
    %34 = vector.broadcast %27 : vector<1x128xf32> to vector<4x128xf32>
    %35 = arith.subf %20, %34 : vector<4x128xf32>
    %cst_21 = arith.constant 9.99999974E-6 : f32
    %36 = vector.broadcast %cst_21 : f32 to vector<1x128xf32>
    %37 = arith.addf %33, %36 : vector<1x128xf32>
    %38 = math.rsqrt %37 : vector<1x128xf32>
    %39 = vector.broadcast %38 : vector<1x128xf32> to vector<4x128xf32>
    %40 = arith.mulf %35, %39 : vector<4x128xf32>
    %cst_22 = arith.constant 0.000000e+00 : f32
    %41 = vector.broadcast %cst_22 : f32 to vector<4x128xf32>
    %42 = arith.maximumf %40, %41 : vector<4x128xf32>
    %43 = arith.truncf %42 : vector<4x128xf32> to vector<4x128xbf16>
    %c0_23 = arith.constant 0 : index
    %c0_24 = arith.constant 0 : index
    %c0_25 = arith.constant 0 : index
    %44 = vector.load %arg4[%c0_23, %c0_24, %c0_25] : memref<1x4x128xbf16, #tpu.memory_space<vmem>>, vector<1x4x128xbf16>
    %45 = vector.shape_cast %44 : vector<1x4x128xbf16> to vector<4x128xbf16>
    %46 = vector.shape_cast %43 : vector<4x128xbf16> to vector<1x4x128xbf16>
    tpu.vector_store %arg4[%c0_23, %c0_24, %c0_25], %46 {strides = array<i32>} : memref<1x4x128xbf16, #tpu.memory_space<vmem>>, vector<1x4x128xbf16>,
    return
  }
  func.func @transform_0(%arg0: i32) -> (i32, i32, i32) {
    %c0_i32 = arith.constant 0 : i32
    %c0_i32_0 = arith.constant 0 : i32
    %c0_i32_1 = arith.constant 0 : i32
    return %arg0, %c0_i32, %c0_i32_0 : i32, i32, i32
  }
  func.func @transform_1(%arg0: i32) -> (i32, i32, i32) {
    %c0_i32 = arith.constant 0 : i32
    %c0_i32_0 = arith.constant 0 : i32
    %c0_i32_1 = arith.constant 0 : i32
    %c0_i32_2 = arith.constant 0 : i32
    return %c0_i32, %c0_i32_0, %c0_i32_1 : i32, i32, i32
  }
  func.func @transform_2(%arg0: i32) -> (i32, i32) {
    %c0_i32 = arith.constant 0 : i32
    %c0_i32_0 = arith.constant 0 : i32
    %c0_i32_1 = arith.constant 0 : i32
    return %c0_i32, %c0_i32_0 : i32, i32
  }
  func.func @transform_3(%arg0: i32) -> (i32, i32, i32) {
    %c0_i32 = arith.constant 0 : i32
    %c0_i32_0 = arith.constant 0 : i32
    %c0_i32_1 = arith.constant 0 : i32
    return %arg0, %c0_i32, %c0_i32_0 : i32, i32, i32
  }
}

module attributes {stable_mosaic.version = 11 : i64} {
  func.func @_resnet_stack_kernel(%arg0: i32, %arg1: i32, %arg2: memref<1x4x128xbf16, #tpu.memory_space<vmem>>, %arg3: memref<1x3x128x128xbf16, #tpu.memory_space<vmem>>, %arg4: memref<1x1x128xf32, #tpu.memory_space<vmem>>, %arg5: memref<1x3x128x128xbf16, #tpu.memory_space<vmem>>, %arg6: memref<1x1x128xf32, #tpu.memory_space<vmem>>, %arg7: memref<1x4x128xbf16, #tpu.memory_space<vmem>>) attributes {dimension_semantics = [#tpu.dimension_semantics<parallel>, #tpu.dimension_semantics<arbitrary>], iteration_bounds = array<i64: 2, 2>, scalar_prefetch = 0 : i64, scratch_operands = 0 : i64, tpu.core_type = #tpu.core_type<tc>, window_params = [{transform_indices = @transform_0, window_bounds = array<i64: 1, 4, 128>}, {transform_indices = @transform_1, window_bounds = array<i64: 1, 3, 128, 128>}, {transform_indices = @transform_2, window_bounds = array<i64: 1, 1, 128>}, {transform_indices = @transform_3, window_bounds = array<i64: 1, 3, 128, 128>}, {transform_indices = @transform_4, window_bounds = array<i64: 1, 1, 128>}, {transform_indices = @transform_5, window_bounds = array<i64: 1, 4, 128>}]} {
    %c0_i32 = arith.constant 0 : i32
    %0 = arith.cmpi eq, %arg1, %c0_i32 : i32
    %1 = arith.extui %0 : i1 to i32
    %c0_i32_0 = arith.constant 0 : i32
    %2 = arith.cmpi ne, %1, %c0_i32_0 : i32
    scf.if %2 {
      %c0_54 = arith.constant 0 : index
      %c0_55 = arith.constant 0 : index
      %c0_56 = arith.constant 0 : index
      %100 = vector.load %arg2[%c0_54, %c0_55, %c0_56] : memref<1x4x128xbf16, #tpu.memory_space<vmem>>, vector<1x4x128xbf16>
      %101 = vector.shape_cast %100 : vector<1x4x128xbf16> to vector<4x128xbf16>
      %c0_57 = arith.constant 0 : index
      %c0_58 = arith.constant 0 : index
      %c0_59 = arith.constant 0 : index
      %102 = vector.load %arg7[%c0_57, %c0_58, %c0_59] : memref<1x4x128xbf16, #tpu.memory_space<vmem>>, vector<1x4x128xbf16>
      %103 = vector.shape_cast %102 : vector<1x4x128xbf16> to vector<4x128xbf16>
      %104 = vector.shape_cast %101 : vector<4x128xbf16> to vector<1x4x128xbf16>
      tpu.vector_store %arg7[%c0_57, %c0_58, %c0_59], %104 {strides = array<i32>} : memref<1x4x128xbf16, #tpu.memory_space<vmem>>, vector<1x4x128xbf16>,
    } else {
    }
    %c0 = arith.constant 0 : index
    %c0_1 = arith.constant 0 : index
    %c0_2 = arith.constant 0 : index
    %3 = vector.load %arg7[%c0, %c0_1, %c0_2] : memref<1x4x128xbf16, #tpu.memory_space<vmem>>, vector<1x4x128xbf16>
    %4 = vector.shape_cast %3 : vector<1x4x128xbf16> to vector<4x128xbf16>
    %5 = vector.extract_strided_slice %4 {offsets = [1, 0], sizes = [1, 128], strides = [1, 1]} : vector<4x128xbf16> to vector<1x128xbf16>
    %6 = vector.extract_strided_slice %4 {offsets = [2, 0], sizes = [1, 128], strides = [1, 1]} : vector<4x128xbf16> to vector<1x128xbf16>
    %7 = tpu.concatenate %5, %4, %6 in 0 : vector<1x128xbf16>, vector<4x128xbf16>, vector<1x128xbf16> -> vector<6x128xbf16>
    %cst = arith.constant 0.000000e+00 : f32
    %8 = vector.broadcast %cst : f32 to vector<4x128xf32>
    %9 = vector.extract_strided_slice %7 {offsets = [0, 0], sizes = [4, 128], strides = [1, 1]} : vector<6x128xbf16> to vector<4x128xbf16>
    %c0_3 = arith.constant 0 : index
    %c0_4 = arith.constant 0 : index
    %c0_5 = arith.constant 0 : index
    %c0_6 = arith.constant 0 : index
    %10 = vector.load %arg3[%c0_3, %c0_4, %c0_5, %c0_6] : memref<1x3x128x128xbf16, #tpu.memory_space<vmem>>, vector<1x1x128x128xbf16>
    %11 = vector.shape_cast %10 : vector<1x1x128x128xbf16> to vector<128x128xbf16>
    %cst_7 = arith.constant dense<0.000000e+00> : vector<4x128xf32>
    %12 = tpu.matmul %9, %11, %cst_7 {dimension_numbers = #tpu.dot_dimension_numbers<[1], [0], [0], [1], [0, 0, 1, 1], [], []>} : vector<4x128xbf16>, vector<128x128xbf16>, vector<4x128xf32> -> vector<4x128xf32>
    %13 = arith.addf %8, %12 : vector<4x128xf32>
    %14 = vector.extract_strided_slice %7 {offsets = [1, 0], sizes = [4, 128], strides = [1, 1]} : vector<6x128xbf16> to vector<4x128xbf16>
    %c0_8 = arith.constant 0 : index
    %c1 = arith.constant 1 : index
    %c0_9 = arith.constant 0 : index
    %c0_10 = arith.constant 0 : index
    %15 = vector.load %arg3[%c0_8, %c1, %c0_9, %c0_10] : memref<1x3x128x128xbf16, #tpu.memory_space<vmem>>, vector<1x1x128x128xbf16>
    %16 = vector.shape_cast %15 : vector<1x1x128x128xbf16> to vector<128x128xbf16>
    %cst_11 = arith.constant dense<0.000000e+00> : vector<4x128xf32>
    %17 = tpu.matmul %14, %16, %cst_11 {dimension_numbers = #tpu.dot_dimension_numbers<[1], [0], [0], [1], [0, 0, 1, 1], [], []>} : vector<4x128xbf16>, vector<128x128xbf16>, vector<4x128xf32> -> vector<4x128xf32>
    %18 = arith.addf %13, %17 : vector<4x128xf32>
    %19 = vector.extract_strided_slice %7 {offsets = [2, 0], sizes = [4, 128], strides = [1, 1]} : vector<6x128xbf16> to vector<4x128xbf16>
    %c0_12 = arith.constant 0 : index
    %c2 = arith.constant 2 : index
    %c0_13 = arith.constant 0 : index
    %c0_14 = arith.constant 0 : index
    %20 = vector.load %arg3[%c0_12, %c2, %c0_13, %c0_14] : memref<1x3x128x128xbf16, #tpu.memory_space<vmem>>, vector<1x1x128x128xbf16>
    %21 = vector.shape_cast %20 : vector<1x1x128x128xbf16> to vector<128x128xbf16>
    %cst_15 = arith.constant dense<0.000000e+00> : vector<4x128xf32>
    %22 = tpu.matmul %19, %21, %cst_15 {dimension_numbers = #tpu.dot_dimension_numbers<[1], [0], [0], [1], [0, 0, 1, 1], [], []>} : vector<4x128xbf16>, vector<128x128xbf16>, vector<4x128xf32> -> vector<4x128xf32>
    %23 = arith.addf %18, %22 : vector<4x128xf32>
    %c0_16 = arith.constant 0 : index
    %c0_17 = arith.constant 0 : index
    %c0_18 = arith.constant 0 : index
    %24 = vector.load %arg4[%c0_16, %c0_17, %c0_18] : memref<1x1x128xf32, #tpu.memory_space<vmem>>, vector<1x1x128xf32>
    %25 = vector.shape_cast %24 : vector<1x1x128xf32> to vector<1x128xf32>
    %26 = vector.broadcast %25 : vector<1x128xf32> to vector<4x128xf32>
    %27 = arith.addf %23, %26 : vector<4x128xf32>
    %cst_19 = arith.constant dense<0.000000e+00> : vector<128xf32>
    %28 = vector.multi_reduction <add>, %27, %cst_19 [0] : vector<4x128xf32> to vector<128xf32>
    %29 = vector.shape_cast %28 : vector<128xf32> to vector<1x128xf32>
    %30 = arith.mulf %27, %27 : vector<4x128xf32>
    %cst_20 = arith.constant dense<0.000000e+00> : vector<128xf32>
    %31 = vector.multi_reduction <add>, %30, %cst_20 [0] : vector<4x128xf32> to vector<128xf32>
    %32 = vector.shape_cast %31 : vector<128xf32> to vector<1x128xf32>
    %cst_21 = arith.constant 2.500000e-01 : f32
    %33 = vector.broadcast %cst_21 : f32 to vector<1x128xf32>
    %34 = arith.mulf %29, %33 : vector<1x128xf32>
    %cst_22 = arith.constant 2.500000e-01 : f32
    %35 = vector.broadcast %cst_22 : f32 to vector<1x128xf32>
    %36 = arith.mulf %32, %35 : vector<1x128xf32>
    %37 = arith.mulf %34, %34 : vector<1x128xf32>
    %38 = arith.subf %36, %37 : vector<1x128xf32>
    %cst_23 = arith.constant 0.000000e+00 : f32
    %39 = vector.broadcast %cst_23 : f32 to vector<1x128xf32>
    %40 = arith.maximumf %38, %39 : vector<1x128xf32>
    %41 = vector.broadcast %34 : vector<1x128xf32> to vector<4x128xf32>
    %42 = arith.subf %27, %41 : vector<4x128xf32>
    %cst_24 = arith.constant 9.99999974E-6 : f32
    %43 = vector.broadcast %cst_24 : f32 to vector<1x128xf32>
    %44 = arith.addf %40, %43 : vector<1x128xf32>
    %45 = math.rsqrt %44 : vector<1x128xf32>
    %46 = vector.broadcast %45 : vector<1x128xf32> to vector<4x128xf32>
    %47 = arith.mulf %42, %46 : vector<4x128xf32>
    %cst_25 = arith.constant 0.000000e+00 : f32
    %48 = vector.broadcast %cst_25 : f32 to vector<4x128xf32>
    %49 = arith.maximumf %47, %48 : vector<4x128xf32>
    %50 = arith.truncf %49 : vector<4x128xf32> to vector<4x128xbf16>
    %51 = vector.extract_strided_slice %50 {offsets = [1, 0], sizes = [1, 128], strides = [1, 1]} : vector<4x128xbf16> to vector<1x128xbf16>
    %52 = vector.extract_strided_slice %50 {offsets = [2, 0], sizes = [1, 128], strides = [1, 1]} : vector<4x128xbf16> to vector<1x128xbf16>
    %53 = tpu.concatenate %51, %50, %52 in 0 : vector<1x128xbf16>, vector<4x128xbf16>, vector<1x128xbf16> -> vector<6x128xbf16>
    %cst_26 = arith.constant 0.000000e+00 : f32
    %54 = vector.broadcast %cst_26 : f32 to vector<4x128xf32>
    %55 = vector.extract_strided_slice %53 {offsets = [0, 0], sizes = [4, 128], strides = [1, 1]} : vector<6x128xbf16> to vector<4x128xbf16>
    %c0_27 = arith.constant 0 : index
    %c0_28 = arith.constant 0 : index
    %c0_29 = arith.constant 0 : index
    %c0_30 = arith.constant 0 : index
    %56 = vector.load %arg5[%c0_27, %c0_28, %c0_29, %c0_30] : memref<1x3x128x128xbf16, #tpu.memory_space<vmem>>, vector<1x1x128x128xbf16>
    %57 = vector.shape_cast %56 : vector<1x1x128x128xbf16> to vector<128x128xbf16>
    %cst_31 = arith.constant dense<0.000000e+00> : vector<4x128xf32>
    %58 = tpu.matmul %55, %57, %cst_31 {dimension_numbers = #tpu.dot_dimension_numbers<[1], [0], [0], [1], [0, 0, 1, 1], [], []>} : vector<4x128xbf16>, vector<128x128xbf16>, vector<4x128xf32> -> vector<4x128xf32>
    %59 = arith.addf %54, %58 : vector<4x128xf32>
    %60 = vector.extract_strided_slice %53 {offsets = [1, 0], sizes = [4, 128], strides = [1, 1]} : vector<6x128xbf16> to vector<4x128xbf16>
    %c0_32 = arith.constant 0 : index
    %c1_33 = arith.constant 1 : index
    %c0_34 = arith.constant 0 : index
    %c0_35 = arith.constant 0 : index
    %61 = vector.load %arg5[%c0_32, %c1_33, %c0_34, %c0_35] : memref<1x3x128x128xbf16, #tpu.memory_space<vmem>>, vector<1x1x128x128xbf16>
    %62 = vector.shape_cast %61 : vector<1x1x128x128xbf16> to vector<128x128xbf16>
    %cst_36 = arith.constant dense<0.000000e+00> : vector<4x128xf32>
    %63 = tpu.matmul %60, %62, %cst_36 {dimension_numbers = #tpu.dot_dimension_numbers<[1], [0], [0], [1], [0, 0, 1, 1], [], []>} : vector<4x128xbf16>, vector<128x128xbf16>, vector<4x128xf32> -> vector<4x128xf32>
    %64 = arith.addf %59, %63 : vector<4x128xf32>
    %65 = vector.extract_strided_slice %53 {offsets = [2, 0], sizes = [4, 128], strides = [1, 1]} : vector<6x128xbf16> to vector<4x128xbf16>
    %c0_37 = arith.constant 0 : index
    %c2_38 = arith.constant 2 : index
    %c0_39 = arith.constant 0 : index
    %c0_40 = arith.constant 0 : index
    %66 = vector.load %arg5[%c0_37, %c2_38, %c0_39, %c0_40] : memref<1x3x128x128xbf16, #tpu.memory_space<vmem>>, vector<1x1x128x128xbf16>
    %67 = vector.shape_cast %66 : vector<1x1x128x128xbf16> to vector<128x128xbf16>
    %cst_41 = arith.constant dense<0.000000e+00> : vector<4x128xf32>
    %68 = tpu.matmul %65, %67, %cst_41 {dimension_numbers = #tpu.dot_dimension_numbers<[1], [0], [0], [1], [0, 0, 1, 1], [], []>} : vector<4x128xbf16>, vector<128x128xbf16>, vector<4x128xf32> -> vector<4x128xf32>
    %69 = arith.addf %64, %68 : vector<4x128xf32>
    %c0_42 = arith.constant 0 : index
    %c0_43 = arith.constant 0 : index
    %c0_44 = arith.constant 0 : index
    %70 = vector.load %arg6[%c0_42, %c0_43, %c0_44] : memref<1x1x128xf32, #tpu.memory_space<vmem>>, vector<1x1x128xf32>
    %71 = vector.shape_cast %70 : vector<1x1x128xf32> to vector<1x128xf32>
    %72 = vector.broadcast %71 : vector<1x128xf32> to vector<4x128xf32>
    %73 = arith.addf %69, %72 : vector<4x128xf32>
    %cst_45 = arith.constant dense<0.000000e+00> : vector<128xf32>
    %74 = vector.multi_reduction <add>, %73, %cst_45 [0] : vector<4x128xf32> to vector<128xf32>
    %75 = vector.shape_cast %74 : vector<128xf32> to vector<1x128xf32>
    %76 = arith.mulf %73, %73 : vector<4x128xf32>
    %cst_46 = arith.constant dense<0.000000e+00> : vector<128xf32>
    %77 = vector.multi_reduction <add>, %76, %cst_46 [0] : vector<4x128xf32> to vector<128xf32>
    %78 = vector.shape_cast %77 : vector<128xf32> to vector<1x128xf32>
    %cst_47 = arith.constant 2.500000e-01 : f32
    %79 = vector.broadcast %cst_47 : f32 to vector<1x128xf32>
    %80 = arith.mulf %75, %79 : vector<1x128xf32>
    %cst_48 = arith.constant 2.500000e-01 : f32
    %81 = vector.broadcast %cst_48 : f32 to vector<1x128xf32>
    %82 = arith.mulf %78, %81 : vector<1x128xf32>
    %83 = arith.mulf %80, %80 : vector<1x128xf32>
    %84 = arith.subf %82, %83 : vector<1x128xf32>
    %cst_49 = arith.constant 0.000000e+00 : f32
    %85 = vector.broadcast %cst_49 : f32 to vector<1x128xf32>
    %86 = arith.maximumf %84, %85 : vector<1x128xf32>
    %87 = vector.broadcast %80 : vector<1x128xf32> to vector<4x128xf32>
    %88 = arith.subf %73, %87 : vector<4x128xf32>
    %cst_50 = arith.constant 9.99999974E-6 : f32
    %89 = vector.broadcast %cst_50 : f32 to vector<1x128xf32>
    %90 = arith.addf %86, %89 : vector<1x128xf32>
    %91 = math.rsqrt %90 : vector<1x128xf32>
    %92 = vector.broadcast %91 : vector<1x128xf32> to vector<4x128xf32>
    %93 = arith.mulf %88, %92 : vector<4x128xf32>
    %94 = arith.extf %4 : vector<4x128xbf16> to vector<4x128xf32>
    %95 = arith.addf %94, %93 : vector<4x128xf32>
    %96 = arith.truncf %95 : vector<4x128xf32> to vector<4x128xbf16>
    %c0_51 = arith.constant 0 : index
    %c0_52 = arith.constant 0 : index
    %c0_53 = arith.constant 0 : index
    %97 = vector.load %arg7[%c0_51, %c0_52, %c0_53] : memref<1x4x128xbf16, #tpu.memory_space<vmem>>, vector<1x4x128xbf16>
    %98 = vector.shape_cast %97 : vector<1x4x128xbf16> to vector<4x128xbf16>
    %99 = vector.shape_cast %96 : vector<4x128xbf16> to vector<1x4x128xbf16>
    tpu.vector_store %arg7[%c0_51, %c0_52, %c0_53], %99 {strides = array<i32>} : memref<1x4x128xbf16, #tpu.memory_space<vmem>>, vector<1x4x128xbf16>,
    return
  }
  func.func @transform_0(%arg0: i32, %arg1: i32) -> (i32, i32, i32) {
    %c0_i32 = arith.constant 0 : i32
    %c0_i32_0 = arith.constant 0 : i32
    %c0_i32_1 = arith.constant 0 : i32
    return %arg0, %c0_i32, %c0_i32_0 : i32, i32, i32
  }
  func.func @transform_1(%arg0: i32, %arg1: i32) -> (i32, i32, i32, i32) {
    %c0_i32 = arith.constant 0 : i32
    %c0_i32_0 = arith.constant 0 : i32
    %c0_i32_1 = arith.constant 0 : i32
    %c0_i32_2 = arith.constant 0 : i32
    return %arg1, %c0_i32, %c0_i32_0, %c0_i32_1 : i32, i32, i32, i32
  }
  func.func @transform_2(%arg0: i32, %arg1: i32) -> (i32, i32, i32) {
    %c0_i32 = arith.constant 0 : i32
    %c0_i32_0 = arith.constant 0 : i32
    %c0_i32_1 = arith.constant 0 : i32
    return %arg1, %c0_i32, %c0_i32_0 : i32, i32, i32
  }
  func.func @transform_3(%arg0: i32, %arg1: i32) -> (i32, i32, i32, i32) {
    %c0_i32 = arith.constant 0 : i32
    %c0_i32_0 = arith.constant 0 : i32
    %c0_i32_1 = arith.constant 0 : i32
    %c0_i32_2 = arith.constant 0 : i32
    return %arg1, %c0_i32, %c0_i32_0, %c0_i32_1 : i32, i32, i32, i32
  }
  func.func @transform_4(%arg0: i32, %arg1: i32) -> (i32, i32, i32) {
    %c0_i32 = arith.constant 0 : i32
    %c0_i32_0 = arith.constant 0 : i32
    %c0_i32_1 = arith.constant 0 : i32
    return %arg1, %c0_i32, %c0_i32_0 : i32, i32, i32
  }
  func.func @transform_5(%arg0: i32, %arg1: i32) -> (i32, i32, i32) {
    %c0_i32 = arith.constant 0 : i32
    %c0_i32_0 = arith.constant 0 : i32
    %c0_i32_1 = arith.constant 0 : i32
    return %arg0, %c0_i32, %c0_i32_0 : i32, i32, i32
  }
}

module attributes {stable_mosaic.version = 11 : i64} {
  func.func @_upsample_kernel(%arg0: i32, %arg1: memref<1x8x128xbf16, #tpu.memory_space<vmem>>, %arg2: memref<3x128x128xbf16, #tpu.memory_space<vmem>>, %arg3: memref<1x128xf32, #tpu.memory_space<vmem>>, %arg4: memref<1x8x256xbf16, #tpu.memory_space<vmem>>) attributes {dimension_semantics = [#tpu.dimension_semantics<parallel>], iteration_bounds = array<i64: 2>, scalar_prefetch = 0 : i64, scratch_operands = 0 : i64, tpu.core_type = #tpu.core_type<tc>, window_params = [{transform_indices = @transform_0, window_bounds = array<i64: 1, 8, 128>}, {pipeline_mode = #tpu.pipeline_mode<synchronous>, transform_indices = @transform_1, window_bounds = array<i64: 3, 128, 128>}, {pipeline_mode = #tpu.pipeline_mode<synchronous>, transform_indices = @transform_2, window_bounds = array<i64: 1, 128>}, {transform_indices = @transform_3, window_bounds = array<i64: 1, 8, 256>}]} {
    %c0 = arith.constant 0 : index
    %c0_0 = arith.constant 0 : index
    %c0_1 = arith.constant 0 : index
    %0 = vector.load %arg1[%c0, %c0_0, %c0_1] : memref<1x8x128xbf16, #tpu.memory_space<vmem>>, vector<1x8x128xbf16>
    %1 = vector.shape_cast %0 : vector<1x8x128xbf16> to vector<8x128xbf16>
    %2 = vector.extract_strided_slice %1 {offsets = [1, 0], sizes = [7, 128], strides = [1, 1]} : vector<8x128xbf16> to vector<7x128xbf16>
    %cst = arith.constant 0.000000e+00 : bf16
    %3 = vector.broadcast %cst : bf16 to vector<1x128xbf16>
    %4 = tpu.concatenate %2, %3 in 0 : vector<7x128xbf16>, vector<1x128xbf16> -> vector<8x128xbf16>
    %c0_2 = arith.constant 0 : index
    %c0_3 = arith.constant 0 : index
    %5 = vector.load %arg3[%c0_2, %c0_3] : memref<1x128xf32, #tpu.memory_space<vmem>>, vector<1x128xf32>
    %c0_4 = arith.constant 0 : index
    %c0_5 = arith.constant 0 : index
    %c0_6 = arith.constant 0 : index
    %6 = vector.load %arg2[%c0_4, %c0_5, %c0_6] : memref<3x128x128xbf16, #tpu.memory_space<vmem>>, vector<1x128x128xbf16>
    %7 = vector.shape_cast %6 : vector<1x128x128xbf16> to vector<128x128xbf16>
    %cst_7 = arith.constant dense<0.000000e+00> : vector<8x128xf32>
    %8 = tpu.matmul %1, %7, %cst_7 {dimension_numbers = #tpu.dot_dimension_numbers<[1], [0], [0], [1], [0, 0, 1, 1], [], []>} : vector<8x128xbf16>, vector<128x128xbf16>, vector<8x128xf32> -> vector<8x128xf32>
    %9 = vector.broadcast %5 : vector<1x128xf32> to vector<8x128xf32>
    %10 = arith.addf %8, %9 : vector<8x128xf32>
    %c1 = arith.constant 1 : index
    %c0_8 = arith.constant 0 : index
    %c0_9 = arith.constant 0 : index
    %11 = vector.load %arg2[%c1, %c0_8, %c0_9] : memref<3x128x128xbf16, #tpu.memory_space<vmem>>, vector<1x128x128xbf16>
    %12 = vector.shape_cast %11 : vector<1x128x128xbf16> to vector<128x128xbf16>
    %cst_10 = arith.constant dense<0.000000e+00> : vector<8x128xf32>
    %13 = tpu.matmul %1, %12, %cst_10 {dimension_numbers = #tpu.dot_dimension_numbers<[1], [0], [0], [1], [0, 0, 1, 1], [], []>} : vector<8x128xbf16>, vector<128x128xbf16>, vector<8x128xf32> -> vector<8x128xf32>
    %c2 = arith.constant 2 : index
    %c0_11 = arith.constant 0 : index
    %c0_12 = arith.constant 0 : index
    %14 = vector.load %arg2[%c2, %c0_11, %c0_12] : memref<3x128x128xbf16, #tpu.memory_space<vmem>>, vector<1x128x128xbf16>
    %15 = vector.shape_cast %14 : vector<1x128x128xbf16> to vector<128x128xbf16>
    %cst_13 = arith.constant dense<0.000000e+00> : vector<8x128xf32>
    %16 = tpu.matmul %4, %15, %cst_13 {dimension_numbers = #tpu.dot_dimension_numbers<[1], [0], [0], [1], [0, 0, 1, 1], [], []>} : vector<8x128xbf16>, vector<128x128xbf16>, vector<8x128xf32> -> vector<8x128xf32>
    %17 = arith.addf %13, %16 : vector<8x128xf32>
    %18 = vector.broadcast %5 : vector<1x128xf32> to vector<8x128xf32>
    %19 = arith.addf %17, %18 : vector<8x128xf32>
    %cst_14 = arith.constant dense<0.000000e+00> : vector<128xf32>
    %20 = vector.multi_reduction <add>, %10, %cst_14 [0] : vector<8x128xf32> to vector<128xf32>
    %21 = vector.shape_cast %20 : vector<128xf32> to vector<1x128xf32>
    %cst_15 = arith.constant dense<0.000000e+00> : vector<128xf32>
    %22 = vector.multi_reduction <add>, %19, %cst_15 [0] : vector<8x128xf32> to vector<128xf32>
    %23 = vector.shape_cast %22 : vector<128xf32> to vector<1x128xf32>
    %24 = arith.addf %21, %23 : vector<1x128xf32>
    %25 = arith.mulf %10, %10 : vector<8x128xf32>
    %cst_16 = arith.constant dense<0.000000e+00> : vector<128xf32>
    %26 = vector.multi_reduction <add>, %25, %cst_16 [0] : vector<8x128xf32> to vector<128xf32>
    %27 = vector.shape_cast %26 : vector<128xf32> to vector<1x128xf32>
    %28 = arith.mulf %19, %19 : vector<8x128xf32>
    %cst_17 = arith.constant dense<0.000000e+00> : vector<128xf32>
    %29 = vector.multi_reduction <add>, %28, %cst_17 [0] : vector<8x128xf32> to vector<128xf32>
    %30 = vector.shape_cast %29 : vector<128xf32> to vector<1x128xf32>
    %31 = arith.addf %27, %30 : vector<1x128xf32>
    %cst_18 = arith.constant 1.600000e+01 : f32
    %32 = vector.broadcast %cst_18 : f32 to vector<1x128xf32>
    %33 = arith.divf %24, %32 : vector<1x128xf32>
    %cst_19 = arith.constant 1.600000e+01 : f32
    %34 = vector.broadcast %cst_19 : f32 to vector<1x128xf32>
    %35 = arith.divf %31, %34 : vector<1x128xf32>
    %36 = arith.mulf %33, %33 : vector<1x128xf32>
    %37 = arith.subf %35, %36 : vector<1x128xf32>
    %cst_20 = arith.constant 0.000000e+00 : f32
    %38 = vector.broadcast %cst_20 : f32 to vector<1x128xf32>
    %39 = arith.maximumf %37, %38 : vector<1x128xf32>
    %cst_21 = arith.constant 9.99999974E-6 : f32
    %40 = vector.broadcast %cst_21 : f32 to vector<1x128xf32>
    %41 = arith.addf %39, %40 : vector<1x128xf32>
    %42 = math.rsqrt %41 : vector<1x128xf32>
    %43 = vector.broadcast %33 : vector<1x128xf32> to vector<8x128xf32>
    %44 = arith.subf %10, %43 : vector<8x128xf32>
    %45 = vector.broadcast %42 : vector<1x128xf32> to vector<8x128xf32>
    %46 = arith.mulf %44, %45 : vector<8x128xf32>
    %cst_22 = arith.constant 0.000000e+00 : f32
    %47 = vector.broadcast %cst_22 : f32 to vector<8x128xf32>
    %48 = arith.maximumf %46, %47 : vector<8x128xf32>
    %49 = vector.broadcast %33 : vector<1x128xf32> to vector<8x128xf32>
    %50 = arith.subf %19, %49 : vector<8x128xf32>
    %51 = vector.broadcast %42 : vector<1x128xf32> to vector<8x128xf32>
    %52 = arith.mulf %50, %51 : vector<8x128xf32>
    %cst_23 = arith.constant 0.000000e+00 : f32
    %53 = vector.broadcast %cst_23 : f32 to vector<8x128xf32>
    %54 = arith.maximumf %52, %53 : vector<8x128xf32>
    %55 = arith.truncf %48 : vector<8x128xf32> to vector<8x128xbf16>
    %c0_24 = arith.constant 0 : index
    %c0_25 = arith.constant 0 : index
    %c0_26 = arith.constant 0 : index
    %56 = vector.load %arg4[%c0_24, %c0_25, %c0_26] : memref<1x8x256xbf16, #tpu.memory_space<vmem>>, vector<1x8x128xbf16>
    %57 = vector.shape_cast %56 : vector<1x8x128xbf16> to vector<8x128xbf16>
    %58 = vector.shape_cast %55 : vector<8x128xbf16> to vector<1x8x128xbf16>
    tpu.vector_store %arg4[%c0_24, %c0_25, %c0_26], %58 {strides = array<i32>} : memref<1x8x256xbf16, #tpu.memory_space<vmem>>, vector<1x8x128xbf16>,
    %59 = arith.truncf %54 : vector<8x128xf32> to vector<8x128xbf16>
    %c0_27 = arith.constant 0 : index
    %c0_28 = arith.constant 0 : index
    %c128 = arith.constant 128 : index
    %60 = vector.load %arg4[%c0_27, %c0_28, %c128] : memref<1x8x256xbf16, #tpu.memory_space<vmem>>, vector<1x8x128xbf16>
    %61 = vector.shape_cast %60 : vector<1x8x128xbf16> to vector<8x128xbf16>
    %62 = vector.shape_cast %59 : vector<8x128xbf16> to vector<1x8x128xbf16>
    tpu.vector_store %arg4[%c0_27, %c0_28, %c128], %62 {strides = array<i32>} : memref<1x8x256xbf16, #tpu.memory_space<vmem>>, vector<1x8x128xbf16>,
    return
  }
  func.func @transform_0(%arg0: i32) -> (i32, i32, i32) {
    %c0_i32 = arith.constant 0 : i32
    %c0_i32_0 = arith.constant 0 : i32
    %c0_i32_1 = arith.constant 0 : i32
    return %arg0, %c0_i32, %c0_i32_0 : i32, i32, i32
  }
  func.func @transform_1(%arg0: i32) -> (i32, i32, i32) {
    %c0_i32 = arith.constant 0 : i32
    %c0_i32_0 = arith.constant 0 : i32
    %c0_i32_1 = arith.constant 0 : i32
    %c0_i32_2 = arith.constant 0 : i32
    return %c0_i32, %c0_i32_0, %c0_i32_1 : i32, i32, i32
  }
  func.func @transform_2(%arg0: i32) -> (i32, i32) {
    %c0_i32 = arith.constant 0 : i32
    %c0_i32_0 = arith.constant 0 : i32
    %c0_i32_1 = arith.constant 0 : i32
    return %c0_i32, %c0_i32_0 : i32, i32
  }
  func.func @transform_3(%arg0: i32) -> (i32, i32, i32) {
    %c0_i32 = arith.constant 0 : i32
    %c0_i32_0 = arith.constant 0 : i32
    %c0_i32_1 = arith.constant 0 : i32
    return %arg0, %c0_i32, %c0_i32_0 : i32, i32, i32
  }
}

module attributes {stable_mosaic.version = 11 : i64} {
  func.func @_upsample_kernel(%arg0: i32, %arg1: memref<1x4x128xbf16, #tpu.memory_space<vmem>>, %arg2: memref<3x128x128xbf16, #tpu.memory_space<vmem>>, %arg3: memref<1x128xf32, #tpu.memory_space<vmem>>, %arg4: memref<1x4x256xbf16, #tpu.memory_space<vmem>>) attributes {dimension_semantics = [#tpu.dimension_semantics<parallel>], iteration_bounds = array<i64: 2>, scalar_prefetch = 0 : i64, scratch_operands = 0 : i64, tpu.core_type = #tpu.core_type<tc>, window_params = [{transform_indices = @transform_0, window_bounds = array<i64: 1, 4, 128>}, {pipeline_mode = #tpu.pipeline_mode<synchronous>, transform_indices = @transform_1, window_bounds = array<i64: 3, 128, 128>}, {pipeline_mode = #tpu.pipeline_mode<synchronous>, transform_indices = @transform_2, window_bounds = array<i64: 1, 128>}, {transform_indices = @transform_3, window_bounds = array<i64: 1, 4, 256>}]} {
    %c0 = arith.constant 0 : index
    %c0_0 = arith.constant 0 : index
    %c0_1 = arith.constant 0 : index
    %0 = vector.load %arg1[%c0, %c0_0, %c0_1] : memref<1x4x128xbf16, #tpu.memory_space<vmem>>, vector<1x4x128xbf16>
    %1 = vector.shape_cast %0 : vector<1x4x128xbf16> to vector<4x128xbf16>
    %2 = vector.extract_strided_slice %1 {offsets = [1, 0], sizes = [3, 128], strides = [1, 1]} : vector<4x128xbf16> to vector<3x128xbf16>
    %cst = arith.constant 0.000000e+00 : bf16
    %3 = vector.broadcast %cst : bf16 to vector<1x128xbf16>
    %4 = tpu.concatenate %2, %3 in 0 : vector<3x128xbf16>, vector<1x128xbf16> -> vector<4x128xbf16>
    %c0_2 = arith.constant 0 : index
    %c0_3 = arith.constant 0 : index
    %5 = vector.load %arg3[%c0_2, %c0_3] : memref<1x128xf32, #tpu.memory_space<vmem>>, vector<1x128xf32>
    %c0_4 = arith.constant 0 : index
    %c0_5 = arith.constant 0 : index
    %c0_6 = arith.constant 0 : index
    %6 = vector.load %arg2[%c0_4, %c0_5, %c0_6] : memref<3x128x128xbf16, #tpu.memory_space<vmem>>, vector<1x128x128xbf16>
    %7 = vector.shape_cast %6 : vector<1x128x128xbf16> to vector<128x128xbf16>
    %cst_7 = arith.constant dense<0.000000e+00> : vector<4x128xf32>
    %8 = tpu.matmul %1, %7, %cst_7 {dimension_numbers = #tpu.dot_dimension_numbers<[1], [0], [0], [1], [0, 0, 1, 1], [], []>} : vector<4x128xbf16>, vector<128x128xbf16>, vector<4x128xf32> -> vector<4x128xf32>
    %9 = vector.broadcast %5 : vector<1x128xf32> to vector<4x128xf32>
    %10 = arith.addf %8, %9 : vector<4x128xf32>
    %c1 = arith.constant 1 : index
    %c0_8 = arith.constant 0 : index
    %c0_9 = arith.constant 0 : index
    %11 = vector.load %arg2[%c1, %c0_8, %c0_9] : memref<3x128x128xbf16, #tpu.memory_space<vmem>>, vector<1x128x128xbf16>
    %12 = vector.shape_cast %11 : vector<1x128x128xbf16> to vector<128x128xbf16>
    %cst_10 = arith.constant dense<0.000000e+00> : vector<4x128xf32>
    %13 = tpu.matmul %1, %12, %cst_10 {dimension_numbers = #tpu.dot_dimension_numbers<[1], [0], [0], [1], [0, 0, 1, 1], [], []>} : vector<4x128xbf16>, vector<128x128xbf16>, vector<4x128xf32> -> vector<4x128xf32>
    %c2 = arith.constant 2 : index
    %c0_11 = arith.constant 0 : index
    %c0_12 = arith.constant 0 : index
    %14 = vector.load %arg2[%c2, %c0_11, %c0_12] : memref<3x128x128xbf16, #tpu.memory_space<vmem>>, vector<1x128x128xbf16>
    %15 = vector.shape_cast %14 : vector<1x128x128xbf16> to vector<128x128xbf16>
    %cst_13 = arith.constant dense<0.000000e+00> : vector<4x128xf32>
    %16 = tpu.matmul %4, %15, %cst_13 {dimension_numbers = #tpu.dot_dimension_numbers<[1], [0], [0], [1], [0, 0, 1, 1], [], []>} : vector<4x128xbf16>, vector<128x128xbf16>, vector<4x128xf32> -> vector<4x128xf32>
    %17 = arith.addf %13, %16 : vector<4x128xf32>
    %18 = vector.broadcast %5 : vector<1x128xf32> to vector<4x128xf32>
    %19 = arith.addf %17, %18 : vector<4x128xf32>
    %cst_14 = arith.constant dense<0.000000e+00> : vector<128xf32>
    %20 = vector.multi_reduction <add>, %10, %cst_14 [0] : vector<4x128xf32> to vector<128xf32>
    %21 = vector.shape_cast %20 : vector<128xf32> to vector<1x128xf32>
    %cst_15 = arith.constant dense<0.000000e+00> : vector<128xf32>
    %22 = vector.multi_reduction <add>, %19, %cst_15 [0] : vector<4x128xf32> to vector<128xf32>
    %23 = vector.shape_cast %22 : vector<128xf32> to vector<1x128xf32>
    %24 = arith.addf %21, %23 : vector<1x128xf32>
    %25 = arith.mulf %10, %10 : vector<4x128xf32>
    %cst_16 = arith.constant dense<0.000000e+00> : vector<128xf32>
    %26 = vector.multi_reduction <add>, %25, %cst_16 [0] : vector<4x128xf32> to vector<128xf32>
    %27 = vector.shape_cast %26 : vector<128xf32> to vector<1x128xf32>
    %28 = arith.mulf %19, %19 : vector<4x128xf32>
    %cst_17 = arith.constant dense<0.000000e+00> : vector<128xf32>
    %29 = vector.multi_reduction <add>, %28, %cst_17 [0] : vector<4x128xf32> to vector<128xf32>
    %30 = vector.shape_cast %29 : vector<128xf32> to vector<1x128xf32>
    %31 = arith.addf %27, %30 : vector<1x128xf32>
    %cst_18 = arith.constant 8.000000e+00 : f32
    %32 = vector.broadcast %cst_18 : f32 to vector<1x128xf32>
    %33 = arith.divf %24, %32 : vector<1x128xf32>
    %cst_19 = arith.constant 8.000000e+00 : f32
    %34 = vector.broadcast %cst_19 : f32 to vector<1x128xf32>
    %35 = arith.divf %31, %34 : vector<1x128xf32>
    %36 = arith.mulf %33, %33 : vector<1x128xf32>
    %37 = arith.subf %35, %36 : vector<1x128xf32>
    %cst_20 = arith.constant 0.000000e+00 : f32
    %38 = vector.broadcast %cst_20 : f32 to vector<1x128xf32>
    %39 = arith.maximumf %37, %38 : vector<1x128xf32>
    %cst_21 = arith.constant 9.99999974E-6 : f32
    %40 = vector.broadcast %cst_21 : f32 to vector<1x128xf32>
    %41 = arith.addf %39, %40 : vector<1x128xf32>
    %42 = math.rsqrt %41 : vector<1x128xf32>
    %43 = vector.broadcast %33 : vector<1x128xf32> to vector<4x128xf32>
    %44 = arith.subf %10, %43 : vector<4x128xf32>
    %45 = vector.broadcast %42 : vector<1x128xf32> to vector<4x128xf32>
    %46 = arith.mulf %44, %45 : vector<4x128xf32>
    %cst_22 = arith.constant 0.000000e+00 : f32
    %47 = vector.broadcast %cst_22 : f32 to vector<4x128xf32>
    %48 = arith.maximumf %46, %47 : vector<4x128xf32>
    %49 = vector.broadcast %33 : vector<1x128xf32> to vector<4x128xf32>
    %50 = arith.subf %19, %49 : vector<4x128xf32>
    %51 = vector.broadcast %42 : vector<1x128xf32> to vector<4x128xf32>
    %52 = arith.mulf %50, %51 : vector<4x128xf32>
    %cst_23 = arith.constant 0.000000e+00 : f32
    %53 = vector.broadcast %cst_23 : f32 to vector<4x128xf32>
    %54 = arith.maximumf %52, %53 : vector<4x128xf32>
    %55 = arith.truncf %48 : vector<4x128xf32> to vector<4x128xbf16>
    %c0_24 = arith.constant 0 : index
    %c0_25 = arith.constant 0 : index
    %c0_26 = arith.constant 0 : index
    %56 = vector.load %arg4[%c0_24, %c0_25, %c0_26] : memref<1x4x256xbf16, #tpu.memory_space<vmem>>, vector<1x4x128xbf16>
    %57 = vector.shape_cast %56 : vector<1x4x128xbf16> to vector<4x128xbf16>
    %58 = vector.shape_cast %55 : vector<4x128xbf16> to vector<1x4x128xbf16>
    tpu.vector_store %arg4[%c0_24, %c0_25, %c0_26], %58 {strides = array<i32>} : memref<1x4x256xbf16, #tpu.memory_space<vmem>>, vector<1x4x128xbf16>,
    %59 = arith.truncf %54 : vector<4x128xf32> to vector<4x128xbf16>
    %c0_27 = arith.constant 0 : index
    %c0_28 = arith.constant 0 : index
    %c128 = arith.constant 128 : index
    %60 = vector.load %arg4[%c0_27, %c0_28, %c128] : memref<1x4x256xbf16, #tpu.memory_space<vmem>>, vector<1x4x128xbf16>
    %61 = vector.shape_cast %60 : vector<1x4x128xbf16> to vector<4x128xbf16>
    %62 = vector.shape_cast %59 : vector<4x128xbf16> to vector<1x4x128xbf16>
    tpu.vector_store %arg4[%c0_27, %c0_28, %c128], %62 {strides = array<i32>} : memref<1x4x256xbf16, #tpu.memory_space<vmem>>, vector<1x4x128xbf16>,
    return
  }
  func.func @transform_0(%arg0: i32) -> (i32, i32, i32) {
    %c0_i32 = arith.constant 0 : i32
    %c0_i32_0 = arith.constant 0 : i32
    %c0_i32_1 = arith.constant 0 : i32
    return %arg0, %c0_i32, %c0_i32_0 : i32, i32, i32
  }
  func.func @transform_1(%arg0: i32) -> (i32, i32, i32) {
    %c0_i32 = arith.constant 0 : i32
    %c0_i32_0 = arith.constant 0 : i32
    %c0_i32_1 = arith.constant 0 : i32
    %c0_i32_2 = arith.constant 0 : i32
    return %c0_i32, %c0_i32_0, %c0_i32_1 : i32, i32, i32
  }
  func.func @transform_2(%arg0: i32) -> (i32, i32) {
    %c0_i32 = arith.constant 0 : i32
    %c0_i32_0 = arith.constant 0 : i32
    %c0_i32_1 = arith.constant 0 : i32
    return %c0_i32, %c0_i32_0 : i32, i32
  }
  func.func @transform_3(%arg0: i32) -> (i32, i32, i32) {
    %c0_i32 = arith.constant 0 : i32
    %c0_i32_0 = arith.constant 0 : i32
    %c0_i32_1 = arith.constant 0 : i32
    return %arg0, %c0_i32, %c0_i32_0 : i32, i32, i32
  }
}

module attributes {stable_mosaic.version = 11 : i64} {
  func.func @_conv_reflect_kernel(%arg0: i32, %arg1: memref<1x16x128xbf16, #tpu.memory_space<vmem>>, %arg2: memref<7x128x128xbf16, #tpu.memory_space<vmem>>, %arg3: memref<1x128xf32, #tpu.memory_space<vmem>>, %arg4: memref<1x16x128xbf16, #tpu.memory_space<vmem>>) attributes {dimension_semantics = [#tpu.dimension_semantics<parallel>], iteration_bounds = array<i64: 2>, scalar_prefetch = 0 : i64, scratch_operands = 0 : i64, tpu.core_type = #tpu.core_type<tc>, window_params = [{transform_indices = @transform_0, window_bounds = array<i64: 1, 16, 128>}, {pipeline_mode = #tpu.pipeline_mode<synchronous>, transform_indices = @transform_1, window_bounds = array<i64: 7, 128, 128>}, {pipeline_mode = #tpu.pipeline_mode<synchronous>, transform_indices = @transform_2, window_bounds = array<i64: 1, 128>}, {transform_indices = @transform_3, window_bounds = array<i64: 1, 16, 128>}]} {
    %c0 = arith.constant 0 : index
    %c0_0 = arith.constant 0 : index
    %c0_1 = arith.constant 0 : index
    %0 = vector.load %arg1[%c0, %c0_0, %c0_1] : memref<1x16x128xbf16, #tpu.memory_space<vmem>>, vector<1x16x128xbf16>
    %1 = vector.shape_cast %0 : vector<1x16x128xbf16> to vector<16x128xbf16>
    %2 = vector.extract_strided_slice %1 {offsets = [3, 0], sizes = [1, 128], strides = [1, 1]} : vector<16x128xbf16> to vector<1x128xbf16>
    %3 = vector.extract_strided_slice %1 {offsets = [2, 0], sizes = [1, 128], strides = [1, 1]} : vector<16x128xbf16> to vector<1x128xbf16>
    %4 = vector.extract_strided_slice %1 {offsets = [1, 0], sizes = [1, 128], strides = [1, 1]} : vector<16x128xbf16> to vector<1x128xbf16>
    %5 = vector.extract_strided_slice %1 {offsets = [14, 0], sizes = [1, 128], strides = [1, 1]} : vector<16x128xbf16> to vector<1x128xbf16>
    %6 = vector.extract_strided_slice %1 {offsets = [13, 0], sizes = [1, 128], strides = [1, 1]} : vector<16x128xbf16> to vector<1x128xbf16>
    %7 = vector.extract_strided_slice %1 {offsets = [12, 0], sizes = [1, 128], strides = [1, 1]} : vector<16x128xbf16> to vector<1x128xbf16>
    %8 = tpu.concatenate %2, %3, %4, %1, %5, %6, %7 in 0 : vector<1x128xbf16>, vector<1x128xbf16>, vector<1x128xbf16>, vector<16x128xbf16>, vector<1x128xbf16>, vector<1x128xbf16>, vector<1x128xbf16> -> vector<22x128xbf16>
    %cst = arith.constant 0.000000e+00 : f32
    %9 = vector.broadcast %cst : f32 to vector<16x128xf32>
    %10 = vector.extract_strided_slice %8 {offsets = [0, 0], sizes = [16, 128], strides = [1, 1]} : vector<22x128xbf16> to vector<16x128xbf16>
    %c0_2 = arith.constant 0 : index
    %c0_3 = arith.constant 0 : index
    %c0_4 = arith.constant 0 : index
    %11 = vector.load %arg2[%c0_2, %c0_3, %c0_4] : memref<7x128x128xbf16, #tpu.memory_space<vmem>>, vector<1x128x128xbf16>
    %12 = vector.shape_cast %11 : vector<1x128x128xbf16> to vector<128x128xbf16>
    %cst_5 = arith.constant dense<0.000000e+00> : vector<16x128xf32>
    %13 = tpu.matmul %10, %12, %cst_5 {dimension_numbers = #tpu.dot_dimension_numbers<[1], [0], [0], [1], [0, 0, 1, 1], [], []>} : vector<16x128xbf16>, vector<128x128xbf16>, vector<16x128xf32> -> vector<16x128xf32>
    %14 = arith.addf %9, %13 : vector<16x128xf32>
    %15 = vector.extract_strided_slice %8 {offsets = [1, 0], sizes = [16, 128], strides = [1, 1]} : vector<22x128xbf16> to vector<16x128xbf16>
    %c1 = arith.constant 1 : index
    %c0_6 = arith.constant 0 : index
    %c0_7 = arith.constant 0 : index
    %16 = vector.load %arg2[%c1, %c0_6, %c0_7] : memref<7x128x128xbf16, #tpu.memory_space<vmem>>, vector<1x128x128xbf16>
    %17 = vector.shape_cast %16 : vector<1x128x128xbf16> to vector<128x128xbf16>
    %cst_8 = arith.constant dense<0.000000e+00> : vector<16x128xf32>
    %18 = tpu.matmul %15, %17, %cst_8 {dimension_numbers = #tpu.dot_dimension_numbers<[1], [0], [0], [1], [0, 0, 1, 1], [], []>} : vector<16x128xbf16>, vector<128x128xbf16>, vector<16x128xf32> -> vector<16x128xf32>
    %19 = arith.addf %14, %18 : vector<16x128xf32>
    %20 = vector.extract_strided_slice %8 {offsets = [2, 0], sizes = [16, 128], strides = [1, 1]} : vector<22x128xbf16> to vector<16x128xbf16>
    %c2 = arith.constant 2 : index
    %c0_9 = arith.constant 0 : index
    %c0_10 = arith.constant 0 : index
    %21 = vector.load %arg2[%c2, %c0_9, %c0_10] : memref<7x128x128xbf16, #tpu.memory_space<vmem>>, vector<1x128x128xbf16>
    %22 = vector.shape_cast %21 : vector<1x128x128xbf16> to vector<128x128xbf16>
    %cst_11 = arith.constant dense<0.000000e+00> : vector<16x128xf32>
    %23 = tpu.matmul %20, %22, %cst_11 {dimension_numbers = #tpu.dot_dimension_numbers<[1], [0], [0], [1], [0, 0, 1, 1], [], []>} : vector<16x128xbf16>, vector<128x128xbf16>, vector<16x128xf32> -> vector<16x128xf32>
    %24 = arith.addf %19, %23 : vector<16x128xf32>
    %25 = vector.extract_strided_slice %8 {offsets = [3, 0], sizes = [16, 128], strides = [1, 1]} : vector<22x128xbf16> to vector<16x128xbf16>
    %c3 = arith.constant 3 : index
    %c0_12 = arith.constant 0 : index
    %c0_13 = arith.constant 0 : index
    %26 = vector.load %arg2[%c3, %c0_12, %c0_13] : memref<7x128x128xbf16, #tpu.memory_space<vmem>>, vector<1x128x128xbf16>
    %27 = vector.shape_cast %26 : vector<1x128x128xbf16> to vector<128x128xbf16>
    %cst_14 = arith.constant dense<0.000000e+00> : vector<16x128xf32>
    %28 = tpu.matmul %25, %27, %cst_14 {dimension_numbers = #tpu.dot_dimension_numbers<[1], [0], [0], [1], [0, 0, 1, 1], [], []>} : vector<16x128xbf16>, vector<128x128xbf16>, vector<16x128xf32> -> vector<16x128xf32>
    %29 = arith.addf %24, %28 : vector<16x128xf32>
    %30 = vector.extract_strided_slice %8 {offsets = [4, 0], sizes = [16, 128], strides = [1, 1]} : vector<22x128xbf16> to vector<16x128xbf16>
    %c4 = arith.constant 4 : index
    %c0_15 = arith.constant 0 : index
    %c0_16 = arith.constant 0 : index
    %31 = vector.load %arg2[%c4, %c0_15, %c0_16] : memref<7x128x128xbf16, #tpu.memory_space<vmem>>, vector<1x128x128xbf16>
    %32 = vector.shape_cast %31 : vector<1x128x128xbf16> to vector<128x128xbf16>
    %cst_17 = arith.constant dense<0.000000e+00> : vector<16x128xf32>
    %33 = tpu.matmul %30, %32, %cst_17 {dimension_numbers = #tpu.dot_dimension_numbers<[1], [0], [0], [1], [0, 0, 1, 1], [], []>} : vector<16x128xbf16>, vector<128x128xbf16>, vector<16x128xf32> -> vector<16x128xf32>
    %34 = arith.addf %29, %33 : vector<16x128xf32>
    %35 = vector.extract_strided_slice %8 {offsets = [5, 0], sizes = [16, 128], strides = [1, 1]} : vector<22x128xbf16> to vector<16x128xbf16>
    %c5 = arith.constant 5 : index
    %c0_18 = arith.constant 0 : index
    %c0_19 = arith.constant 0 : index
    %36 = vector.load %arg2[%c5, %c0_18, %c0_19] : memref<7x128x128xbf16, #tpu.memory_space<vmem>>, vector<1x128x128xbf16>
    %37 = vector.shape_cast %36 : vector<1x128x128xbf16> to vector<128x128xbf16>
    %cst_20 = arith.constant dense<0.000000e+00> : vector<16x128xf32>
    %38 = tpu.matmul %35, %37, %cst_20 {dimension_numbers = #tpu.dot_dimension_numbers<[1], [0], [0], [1], [0, 0, 1, 1], [], []>} : vector<16x128xbf16>, vector<128x128xbf16>, vector<16x128xf32> -> vector<16x128xf32>
    %39 = arith.addf %34, %38 : vector<16x128xf32>
    %40 = vector.extract_strided_slice %8 {offsets = [6, 0], sizes = [16, 128], strides = [1, 1]} : vector<22x128xbf16> to vector<16x128xbf16>
    %c6 = arith.constant 6 : index
    %c0_21 = arith.constant 0 : index
    %c0_22 = arith.constant 0 : index
    %41 = vector.load %arg2[%c6, %c0_21, %c0_22] : memref<7x128x128xbf16, #tpu.memory_space<vmem>>, vector<1x128x128xbf16>
    %42 = vector.shape_cast %41 : vector<1x128x128xbf16> to vector<128x128xbf16>
    %cst_23 = arith.constant dense<0.000000e+00> : vector<16x128xf32>
    %43 = tpu.matmul %40, %42, %cst_23 {dimension_numbers = #tpu.dot_dimension_numbers<[1], [0], [0], [1], [0, 0, 1, 1], [], []>} : vector<16x128xbf16>, vector<128x128xbf16>, vector<16x128xf32> -> vector<16x128xf32>
    %44 = arith.addf %39, %43 : vector<16x128xf32>
    %c0_24 = arith.constant 0 : index
    %c0_25 = arith.constant 0 : index
    %45 = vector.load %arg3[%c0_24, %c0_25] : memref<1x128xf32, #tpu.memory_space<vmem>>, vector<1x128xf32>
    %46 = vector.broadcast %45 : vector<1x128xf32> to vector<16x128xf32>
    %47 = arith.addf %44, %46 : vector<16x128xf32>
    %48 = arith.truncf %47 : vector<16x128xf32> to vector<16x128xbf16>
    %c0_26 = arith.constant 0 : index
    %c0_27 = arith.constant 0 : index
    %c0_28 = arith.constant 0 : index
    %49 = vector.load %arg4[%c0_26, %c0_27, %c0_28] : memref<1x16x128xbf16, #tpu.memory_space<vmem>>, vector<1x16x128xbf16>
    %50 = vector.shape_cast %49 : vector<1x16x128xbf16> to vector<16x128xbf16>
    %51 = vector.shape_cast %48 : vector<16x128xbf16> to vector<1x16x128xbf16>
    tpu.vector_store %arg4[%c0_26, %c0_27, %c0_28], %51 {strides = array<i32>} : memref<1x16x128xbf16, #tpu.memory_space<vmem>>, vector<1x16x128xbf16>,
    return
  }
  func.func @transform_0(%arg0: i32) -> (i32, i32, i32) {
    %c0_i32 = arith.constant 0 : i32
    %c0_i32_0 = arith.constant 0 : i32
    %c0_i32_1 = arith.constant 0 : i32
    return %arg0, %c0_i32, %c0_i32_0 : i32, i32, i32
  }
  func.func @transform_1(%arg0: i32) -> (i32, i32, i32) {
    %c0_i32 = arith.constant 0 : i32
    %c0_i32_0 = arith.constant 0 : i32
    %c0_i32_1 = arith.constant 0 : i32
    %c0_i32_2 = arith.constant 0 : i32
    return %c0_i32, %c0_i32_0, %c0_i32_1 : i32, i32, i32
  }
  func.func @transform_2(%arg0: i32) -> (i32, i32) {
    %c0_i32 = arith.constant 0 : i32
    %c0_i32_0 = arith.constant 0 : i32
    %c0_i32_1 = arith.constant 0 : i32
    return %c0_i32, %c0_i32_0 : i32, i32
  }
  func.func @transform_3(%arg0: i32) -> (i32, i32, i32) {
    %c0_i32 = arith.constant 0 : i32
    %c0_i32_0 = arith.constant 0 : i32
    %c0_i32_1 = arith.constant 0 : i32
    return %arg0, %c0_i32, %c0_i32_0 : i32, i32, i32
  }
}

</mosaic_0001>

<llo_original>
// kernel: generator_forward.9
$region0: #{generator_forward.9}
  #allocation0 [shape = 'u32[]', space=smem, size = 0x4, offset = 0x4, fixed_abs, tag = 'smem constant byte address 0x4 - core index']
  #allocation1 [shape = 'u32[144,128]{1,0:T(1,128)}', space=vmem, size = 0x12000, scoped, tag = 'internal scratch']
  %s0 = inlined_call_operand.hbm [shape: bf16[2,4,256], index: 0, kind: input, shape index: {}]
  %s1 = inlined_call_operand.hbm [shape: bf16[3,128,128], index: 1, kind: input, shape index: {}]
  %s2 = inlined_call_operand.hbm [shape: f32[1,128], index: 2, kind: input, shape index: {}]
  %s3 = inlined_call_operand.hbm [shape: bf16[2,4,128], index: 3, kind: output, shape index: {}]
  %s4 = sld [smem:[#allocation0]]
  $region57: #{generator_forward.9} parent=0
    _
  %s6 = ssub.s32 1, %s4
  %s7 = scalar_select 0, %s6, %s4
  $region1: #{generator_forward.9} parent=0
    #allocation2 [shape = 'u8[4096]{0}', space=vmem, size = 0x1000, scoped, tag = 'input window, operand 0']
    #allocation3 [shape = 's32[2]{0}', space=sflag, size = 0x8, scoped, tag = 'scoped memory for generator_forward.9']
    #allocation4 [shape = 's32[2]{0}', space=sflag, size = 0x8, scoped, tag = 'scoped memory for generator_forward.9']
    #allocation5 [shape = 'u8[98304]{0}', space=vmem, size = 0x18000, scoped, tag = 'input window, operand 1, single buffered']
    #allocation6 [shape = 's32[1]{0}', space=sflag, size = 0x4, scoped, tag = 'scoped memory for generator_forward.9']
    #allocation7 [shape = 'u8[512]{0}', space=vmem, size = 0x400, scoped, tag = 'input window, operand 2, single buffered']
    #allocation8 [shape = 'u8[2048]{0}', space=vmem, size = 0x800, scoped, tag = 'output window, operand 0']
    %8 = vsyncpa [#allocation3], 0
    %s9 = scalar_lea.sflag [#allocation3], 1
    %10 = vsyncpa %s9, 0
    %11 = vsyncpa [#allocation6], 0
    %12 = vsyncpa [#allocation4], 0
    %s13 = scalar_lea.sflag [#allocation4], 1
    %14 = vsyncpa %s13, 0
    loop: start=0, step=1, limit=4
    $region2: #{generator_forward.9} parent=1 // loop_pre_header
      _
    $region3: #{generator_forward.9} parent=1 // loop_header
      %s16 = sphi 0, %s20
      %p17 = scmp.ge.s32.totalorder %s16, 4
      %s26 = sphi 0, %s28
      %s29 = sphi 0, %s26
      %s30 = sphi 0, %s29
      %s46 = sphi 0, %s30
      %s50 = sphi 0, %s50
      %s52 = sphi 0, %s50
      %s53 = sphi 0, %s52
      %s67 = sphi 0, %s53
      %s71 = sphi 0, %s71
      %s73 = sphi 0, %s71
      %s74 = sphi 0, %s73
      %s88 = sphi 0, %s74
      %s94 = sphi 0, %s96
      %s97 = sphi 0, %s94
      %s98 = sphi 0, %s97
      %s114 = sphi 0, %s98
    $region4: #{generator_forward.9} parent=1 // loop_header_branch
      %19 = sbr.rel (%p17) target = $region8
    $region5: #{generator_forward.9} parent=1 // loop_body
      %s21 = ssub.s32 %s16, 1
      %s22 = ssub.s32 %s16, 2
      %s23 = sadd.s32 %s16, 1
      %s24 = ssub.s32 %s16, %s23
      %p25 = scmp.eq.s32.totalorder %s24, 0
      %s27 = sadd.s32 %s26, 1
      %s28 = scalar_select %p25, %s26, %s27
      %p31 = pneg %p25
      %p32 = scmp.eq.s32.totalorder %s16, 1
      %p33 = por %p31, %p32
      %p34 = scmp.ne.s32.totalorder %s26, %s29
      %p35 = scmp.eq.s32.totalorder %s16, 0
      %p36 = por %p34, %p35
      %p37 = scmp.ne.s32.totalorder %s26, %s29
      %p38 = scmp.eq.s32.totalorder %s21, 1
      %p39 = por %p37, %p38
      %p40 = scmp.ne.s32.totalorder %s29, %s30
      %p41 = scmp.eq.s32.totalorder %s21, 0
      %p42 = por %p40, %p41
      %p43 = scmp.ne.s32.totalorder %s29, %s30
      %p44 = scmp.eq.s32.totalorder %s22, 1
      %p45 = por %p43, %p44
      %p47 = scmp.ne.s32.totalorder %s30, %s46
      %p48 = scmp.eq.s32.totalorder %s22, 0
      %p49 = por %p47, %p48
      %s51 = sadd.s32 %s50, 1
      %p54 = scmp.eq.s32.totalorder %s16, 1
      %p55 = scmp.ne.s32.totalorder %s50, %s52
      %p56 = scmp.eq.s32.totalorder %s16, 0
      %p57 = por %p55, %p56
      %p58 = scmp.ne.s32.totalorder %s50, %s52
      %p59 = scmp.eq.s32.totalorder %s21, 1
      %p60 = por %p58, %p59
      %p61 = scmp.ne.s32.totalorder %s52, %s53
      %p62 = scmp.eq.s32.totalorder %s21, 0
      %p63 = por %p61, %p62
      %p64 = scmp.ne.s32.totalorder %s52, %s53
      %p65 = scmp.eq.s32.totalorder %s22, 1
      %p66 = por %p64, %p65
      %p68 = scmp.ne.s32.totalorder %s53, %s67
      %p69 = scmp.eq.s32.totalorder %s22, 0
      %p70 = por %p68, %p69
      %s72 = sadd.s32 %s71, 1
      %p75 = scmp.eq.s32.totalorder %s16, 1
      %p76 = scmp.ne.s32.totalorder %s71, %s73
      %p77 = scmp.eq.s32.totalorder %s16, 0
      %p78 = por %p76, %p77
      %p79 = scmp.ne.s32.totalorder %s71, %s73
      %p80 = scmp.eq.s32.totalorder %s21, 1
      %p81 = por %p79, %p80
      %p82 = scmp.ne.s32.totalorder %s73, %s74
      %p83 = scmp.eq.s32.totalorder %s21, 0
      %p84 = por %p82, %p83
      %p85 = scmp.ne.s32.totalorder %s73, %s74
      %p86 = scmp.eq.s32.totalorder %s22, 1
      %p87 = por %p85, %p86
      %p89 = scmp.ne.s32.totalorder %s74, %s88
      %p90 = scmp.eq.s32.totalorder %s22, 0
      %p91 = por %p89, %p90
      %s92 = ssub.s32 %s16, %s23
      %p93 = scmp.eq.s32.totalorder %s92, 0
      %s95 = sadd.s32 %s94, 1
      %s96 = scalar_select %p93, %s94, %s95
      %p99 = pneg %p93
      %p100 = scmp.eq.s32.totalorder %s16, 1
      %p101 = por %p99, %p100
      %p102 = scmp.ne.s32.totalorder %s94, %s97
      %p103 = scmp.eq.s32.totalorder %s16, 0
      %p104 = por %p102, %p103
      %p105 = scmp.ne.s32.totalorder %s94, %s97
      %p106 = scmp.eq.s32.totalorder %s21, 1
      %p107 = por %p105, %p106
      %p108 = scmp.ne.s32.totalorder %s97, %s98
      %p109 = scmp.eq.s32.totalorder %s21, 0
      %p110 = por %p108, %p109
      %p111 = scmp.ne.s32.totalorder %s97, %s98
      %p112 = scmp.eq.s32.totalorder %s22, 1
      %p113 = por %p111, %p112
      %p115 = scmp.ne.s32.totalorder %s98, %s114
      %p116 = scmp.eq.s32.totalorder %s22, 0
      %p117 = por %p115, %p116
      %p118 = scmp.le.s32.totalorder 1, %s16
      %p119 = scmp.lt.s32.totalorder %s16, 3
      %p120 = pnand %p118, %p119
      %p121 = pneg %p120
      // Predicated region
      $region9: #{generator_forward.9} parent=5 // pred_check
        _
      $region10: #{generator_forward.9} parent=5 // pred_check_branch
        %123 = sbr.rel (%p120) target = $region12
      $region11: #{generator_forward.9} parent=5 // pred_region
        %s124 = ssub.s32 %s16, 1
        // Predicated region
        $region13: #{generator_forward.9} parent=11 // pred_check
          %p125 = pneg %p63
        $region14: #{generator_forward.9} parent=11 // pred_check_branch
          %127 = sbr.rel (%p125) target = $region16
        $region15: #{generator_forward.9} parent=11 // pred_region
          %s129 = ssub.s32 3072, 3072
          %130 = vsyncadd [#allocation6], %s129
          %s131 = sshll.u32 [#allocation5], 4
          %s132 = int_to_ptr.vmem [resolvable:$true] %s131
          %137 = dma.hbm_to_vmem [thread:$0]  %s1, 3072, %s132, [#allocation6], 64, 64, 4
        $region16: #{generator_forward.9} parent=11 // pred_fallthru
          _
        // Predicated region
        $region17: #{generator_forward.9} parent=11 // pred_check
          %p138 = pneg %p84
        $region18: #{generator_forward.9} parent=11 // pred_check_branch
          %140 = sbr.rel (%p138) target = $region20
        $region19: #{generator_forward.9} parent=11 // pred_region
          %s142 = ssub.s32 16, 16
          %143 = vsyncadd [#allocation6], %s142
          %s145 = sshll.u32 [#allocation7], 4
          %s146 = int_to_ptr.vmem [resolvable:$true] %s145
          %148 = dma.hbm_to_vmem [thread:$0]  %s2, 16, %s146, [#allocation6]
        $region20: #{generator_forward.9} parent=11 // pred_fallthru
          _
      $region12: #{generator_forward.9} parent=5 // pred_fallthru
        _
      %p149 = scmp.lt.s32.totalorder %s16, 2
      // Predicated region
      $region21: #{generator_forward.9} parent=5 // pred_check
        %p150 = pneg %p149
      $region22: #{generator_forward.9} parent=5 // pred_check_branch
        %152 = sbr.rel (%p150) target = $region24
      $region23: #{generator_forward.9} parent=5 // pred_region
        // Predicated region
        $region25: #{generator_forward.9} parent=23 // pred_check
          %p153 = pneg %p36
        $region26: #{generator_forward.9} parent=23 // pred_check_branch
          %155 = sbr.rel (%p153) target = $region28
        $region27: #{generator_forward.9} parent=23 // pred_region
          %s156 = sand.u32 %s26, 1
          %s157 = scalar_lea.sflag [#allocation3], %s156
          %s158 = sand.u32 %s26, 1
          %s159 = smul.addr %s158, 4
          %s160 = scalar_lea.vmem [#allocation2], %s159
          %s162 = ssub.s32 64, 64
          %163 = vsyncadd %s157, %s162
          %s164 = smul.addr %s16, 2
          %s165 = smul.addr %s164, 32
          %s166 = scalar_lea.hbm %s0, %s165
          %s168 = sshll.u32 %s160, 4
          %s169 = int_to_ptr.vmem [resolvable:$true] %s168
          %171 = dma.hbm_to_vmem [thread:$0]  %s166, 64, %s169, %s157
        $region28: #{generator_forward.9} parent=23 // pred_fallthru
          _
      $region24: #{generator_forward.9} parent=5 // pred_fallthru
        _
      %p172 = scmp.le.s32.totalorder 1, %s16
      %p173 = scmp.lt.s32.totalorder %s16, 3
      %p174 = pnand %p172, %p173
      %p175 = pneg %p174
      // Predicated region
      $region29: #{generator_forward.9} parent=5 // pred_check
        _
      $region30: #{generator_forward.9} parent=5 // pred_check_branch
        %177 = sbr.rel (%p174) target = $region32
      $region31: #{generator_forward.9} parent=5 // pred_region
        %s178 = ssub.s32 %s16, 1
        %s179 = sand.u32 %s29, 1
        %s180 = scalar_lea.sflag [#allocation3], %s179
        %s181 = sand.u32 %s29, 1
        %s182 = smul.addr %s181, 4
        %s183 = scalar_lea.vmem [#allocation2], %s182
        // Predicated region
        $region33: #{generator_forward.9} parent=31 // pred_check
          %p184 = pneg %p42
        $region34: #{generator_forward.9} parent=31 // pred_check_branch
          %186 = sbr.rel (%p184) target = $region36
        $region35: #{generator_forward.9} parent=31 // pred_region
          %187 = dma.done %s180, 64
        $region36: #{generator_forward.9} parent=31 // pred_fallthru
          _
        // Predicated region
        $region37: #{generator_forward.9} parent=31 // pred_check
          %p188 = pneg %p63
        $region38: #{generator_forward.9} parent=31 // pred_check_branch
          %190 = sbr.rel (%p188) target = $region40
        $region39: #{generator_forward.9} parent=31 // pred_region
          %191 = dma.done [#allocation6], 3072
        $region40: #{generator_forward.9} parent=31 // pred_fallthru
          _
        // Predicated region
        $region41: #{generator_forward.9} parent=31 // pred_check
          %p192 = pneg %p84
        $region42: #{generator_forward.9} parent=31 // pred_check_branch
          %194 = sbr.rel (%p192) target = $region44
        $region43: #{generator_forward.9} parent=31 // pred_region
          %195 = dma.done [#allocation6], 16
        $region44: #{generator_forward.9} parent=31 // pred_fallthru
          _
        %s196 = sand.u32 %s29, 1
        %s197 = scalar_lea.sflag [#allocation3], %s196
        %s198 = sand.u32 %s29, 1
        %s199 = smul.addr %s198, 4
        %s200 = scalar_lea.vmem [#allocation2], %s199
        %p201 = pneg %p42
        %p202 = pneg %p39
        %p203 = pneg %p63
        %p204 = pneg %p60
        %p205 = pneg %p84
        %p206 = pneg %p81
        %p207 = pneg %p110
        %p208 = pneg %p107
        %s209 = sand.u32 %s97, 1
        %s210 = scalar_lea.sflag [#allocation4], %s209
        %s211 = sand.u32 %s97, 1
        %s212 = smul.addr %s211, 2
        %s213 = scalar_lea.vmem [#allocation8], %s212
        %v215 = vld [vmem:[%s183] sm:$0x3]
        %v216 = vld [vmem:[%s183 + $0x2] sm:$0x3]
        %v219 = vunpack.c.l.s4 1983009808
        %v220 = vunpack.c.0.s8 %v219
        %v221 = vlaneseq
        %v222 = vshrl.u32 %v221, 7
        %v223 = vsub.s32 %v220, %v222
        %v224 = vrot.slane %v216, %v223
        %v226 = vshrl.u32 %v224, 16
        %v228 = vrot.slane %v226, 7
        %v229 = vshll.u32 %v224, 16
        %v231 = vor.u32 %v228, %v229
        %vm233 = vcmask 1040384
        %vm234 = vsmask.f32 256
        %vm235 = vmand %vm233, %vm234
        %v236 = vsel %vm235, 0, %v231
        %v237 = vld [vmem:[#allocation5] sm:$0xf]
        %v238 = vld [vmem:[#allocation5 + $0x4] sm:$0xf]
        %v239 = vld [vmem:[#allocation5 + $0x8] sm:$0xf]
        %v240 = vld [vmem:[#allocation5 + $0xc] sm:$0xf]
        %v241 = vld [vmem:[#allocation5 + $0x10] sm:$0xf]
        %v242 = vld [vmem:[#allocation5 + $0x14] sm:$0xf]
        %v243 = vld [vmem:[#allocation5 + $0x18] sm:$0xf]
        %v244 = vld [vmem:[#allocation5 + $0x1c] sm:$0xf]
        %v245 = vld [vmem:[#allocation5 + $0x20] sm:$0xf]
        %v246 = vld [vmem:[#allocation5 + $0x24] sm:$0xf]
        %v247 = vld [vmem:[#allocation5 + $0x28] sm:$0xf]
        %v248 = vld [vmem:[#allocation5 + $0x2c] sm:$0xf]
        %v249 = vld [vmem:[#allocation5 + $0x30] sm:$0xf]
        %v250 = vld [vmem:[#allocation5 + $0x34] sm:$0xf]
        %v251 = vld [vmem:[#allocation5 + $0x38] sm:$0xf]
        %v252 = vld [vmem:[#allocation5 + $0x3c] sm:$0xf]
        %s253 = scalar_lea.vmem [#allocation5], 64
        %v254 = vld [vmem:[%s253] sm:$0xf]
        %v255 = vld [vmem:[%s253 + $0x4] sm:$0xf]
        %v256 = vld [vmem:[%s253 + $0x8] sm:$0xf]
        %v257 = vld [vmem:[%s253 + $0xc] sm:$0xf]
        %v258 = vld [vmem:[%s253 + $0x10] sm:$0xf]
        %v259 = vld [vmem:[%s253 + $0x14] sm:$0xf]
        %v260 = vld [vmem:[%s253 + $0x18] sm:$0xf]
        %v261 = vld [vmem:[%s253 + $0x1c] sm:$0xf]
        %v262 = vld [vmem:[%s253 + $0x20] sm:$0xf]
        %v263 = vld [vmem:[%s253 + $0x24] sm:$0xf]
        %v264 = vld [vmem:[%s253 + $0x28] sm:$0xf]
        %v265 = vld [vmem:[%s253 + $0x2c] sm:$0xf]
        %v266 = vld [vmem:[%s253 + $0x30] sm:$0xf]
        %v267 = vld [vmem:[%s253 + $0x34] sm:$0xf]
        %v268 = vld [vmem:[%s253 + $0x38] sm:$0xf]
        %v269 = vld [vmem:[%s253 + $0x3c] sm:$0xf]
        %v286 = vunpack.c.l.b16 %v254
        %v287 = vunpack.c.l.b16 %v255
        %v288 = vunpack.c.l.b16 %v256
        %v289 = vunpack.c.l.b16 %v257
        %v290 = vunpack.c.l.b16 %v258
        %v291 = vunpack.c.l.b16 %v259
        %v292 = vunpack.c.l.b16 %v260
        %v293 = vunpack.c.l.b16 %v261
        %v294 = vunpack.c.l.b16 %v262
        %v295 = vunpack.c.l.b16 %v263
        %v296 = vunpack.c.l.b16 %v264
        %v297 = vunpack.c.l.b16 %v265
        %v298 = vunpack.c.l.b16 %v266
        %v299 = vunpack.c.l.b16 %v267
        %v300 = vunpack.c.l.b16 %v268
        %v301 = vunpack.c.l.b16 %v269
        %v302 = vpack.c.b16 %v287, %v286
        %v303 = vpack.c.b16 %v289, %v288
        %v304 = vpack.c.b16 %v291, %v290
        %v305 = vpack.c.b16 %v293, %v292
        %v306 = vpack.c.b16 %v295, %v294
        %v307 = vpack.c.b16 %v297, %v296
        %v308 = vpack.c.b16 %v299, %v298
        %v309 = vpack.c.b16 %v301, %v300
        %318 = vmatprep.subr.bf16.mxu0 0
        %319 = vmatpush1.bf16.msra.mxu0 %v302
        %320 = vmatprep.subr.bf16.mxu0 0
        %321 = vmatpush1.bf16.msra.mxu0 %v303
        %322 = vmatprep.subr.bf16.mxu0 0
        %323 = vmatpush1.bf16.msra.mxu0 %v304
        %324 = vmatprep.subr.bf16.mxu0 0
        %325 = vmatpush1.bf16.msra.mxu0 %v305
        %326 = vmatprep.subr.bf16.mxu0 0
        %327 = vmatpush1.bf16.msra.mxu0 %v306
        %328 = vmatprep.subr.bf16.mxu0 0
        %329 = vmatpush1.bf16.msra.mxu0 %v307
        %330 = vmatprep.subr.bf16.mxu0 0
        %331 = vmatpush1.bf16.msra.mxu0 %v308
        %332 = vmatprep.subr.bf16.mxu0 0
        %333 = vmatpush1.bf16.msra.mxu0 %v309
        %334 = vmatprep.subr.bf16.mxu0 0
        %335 = vmatpush1.bf16.msra.mxu0 0
        %336 = vmatprep.subr.bf16.mxu0 0
        %337 = vmatpush1.bf16.msra.mxu0 0
        %338 = vmatprep.subr.bf16.mxu0 0
        %339 = vmatpush1.bf16.msra.mxu0 0
        %340 = vmatprep.subr.bf16.mxu0 0
        %341 = vmatpush1.bf16.msra.mxu0 0
        %342 = vmatprep.subr.bf16.mxu0 0
        %343 = vmatpush1.bf16.msra.mxu0 0
        %344 = vmatprep.subr.bf16.mxu0 0
        %345 = vmatpush1.bf16.msra.mxu0 0
        %346 = vmatprep.subr.bf16.mxu0 0
        %347 = vmatpush1.bf16.msra.mxu0 0
        %348 = vmatprep.subr.bf16.mxu0 0
        %349 = vmatpush1.bf16.msra.mxu0 0
        %350 = vmatprep.mubr.bf16.mxu0 0
        %351 = vmatmul.mubr.bf16.gmra.mrb[0].mxu0 %v215
        %v352 = vpop.f32.mrb[0].mxu0
        %v353 = vadd.f32 0.0, %v352
        %v354 = vpop.f32.mrb[0].mxu0
        %v355 = vpop.f32.mrb[0].mxu0
        %v356 = vpop.f32.mrb[0].mxu0
        %357 = vdwg.mxu0
        %v374 = vunpack.c.l.b16 %v237
        %v375 = vunpack.c.l.b16 %v238
        %v376 = vunpack.c.l.b16 %v239
        %v377 = vunpack.c.l.b16 %v240
        %v378 = vunpack.c.l.b16 %v241
        %v379 = vunpack.c.l.b16 %v242
        %v380 = vunpack.c.l.b16 %v243
        %v381 = vunpack.c.l.b16 %v244
        %v382 = vunpack.c.l.b16 %v245
        %v383 = vunpack.c.l.b16 %v246
        %v384 = vunpack.c.l.b16 %v247
        %v385 = vunpack.c.l.b16 %v248
        %v386 = vunpack.c.l.b16 %v249
        %v387 = vunpack.c.l.b16 %v250
        %v388 = vunpack.c.l.b16 %v251
        %v389 = vunpack.c.l.b16 %v252
        %v390 = vpack.c.b16 %v375, %v374
        %v391 = vpack.c.b16 %v377, %v376
        %v392 = vpack.c.b16 %v379, %v378
        %v393 = vpack.c.b16 %v381, %v380
        %v394 = vpack.c.b16 %v383, %v382
        %v395 = vpack.c.b16 %v385, %v384
        %v396 = vpack.c.b16 %v387, %v386
        %v397 = vpack.c.b16 %v389, %v388
        %406 = vmatprep.subr.bf16.mxu0 0
        %407 = vmatpush1.bf16.msra.mxu0 %v390
        %408 = vmatprep.subr.bf16.mxu0 0
        %409 = vmatpush1.bf16.msra.mxu0 %v391
        %410 = vmatprep.subr.bf16.mxu0 0
        %411 = vmatpush1.bf16.msra.mxu0 %v392
        %412 = vmatprep.subr.bf16.mxu0 0
        %413 = vmatpush1.bf16.msra.mxu0 %v393
        %414 = vmatprep.subr.bf16.mxu0 0
        %415 = vmatpush1.bf16.msra.mxu0 %v394
        %416 = vmatprep.subr.bf16.mxu0 0
        %417 = vmatpush1.bf16.msra.mxu0 %v395
        %418 = vmatprep.subr.bf16.mxu0 0
        %419 = vmatpush1.bf16.msra.mxu0 %v396
        %420 = vmatprep.subr.bf16.mxu0 0
        %421 = vmatpush1.bf16.msra.mxu0 %v397
        %422 = vmatprep.subr.bf16.mxu0 0
        %423 = vmatpush1.bf16.msra.mxu0 0
        %424 = vmatprep.subr.bf16.mxu0 0
        %425 = vmatpush1.bf16.msra.mxu0 0
        %426 = vmatprep.subr.bf16.mxu0 0
        %427 = vmatpush1.bf16.msra.mxu0 0
        %428 = vmatprep.subr.bf16.mxu0 0
        %429 = vmatpush1.bf16.msra.mxu0 0
        %430 = vmatprep.subr.bf16.mxu0 0
        %431 = vmatpush1.bf16.msra.mxu0 0
        %432 = vmatprep.subr.bf16.mxu0 0
        %433 = vmatpush1.bf16.msra.mxu0 0
        %434 = vmatprep.subr.bf16.mxu0 0
        %435 = vmatpush1.bf16.msra.mxu0 0
        %436 = vmatprep.subr.bf16.mxu0 0
        %437 = vmatpush1.bf16.msra.mxu0 0
        %438 = vmatprep.mubr.bf16.mxu0 0
        %439 = vmatmul.mubr.bf16.gmra.mrb[0].mxu0 %v236
        %v440 = vpop.f32.mrb[0].mxu0
        %v441 = vadd.f32 %v353, %v440
        %v442 = vpop.f32.mrb[0].mxu0
        %v443 = vpop.f32.mrb[0].mxu0
        %v444 = vpop.f32.mrb[0].mxu0
        %445 = vdwg.mxu0
        %s446 = scalar_lea.vmem [#allocation5], 128
        %v447 = vld [vmem:[%s446] sm:$0xf]
        %v448 = vld [vmem:[%s446 + $0x4] sm:$0xf]
        %v449 = vld [vmem:[%s446 + $0x8] sm:$0xf]
        %v450 = vld [vmem:[%s446 + $0xc] sm:$0xf]
        %v451 = vld [vmem:[%s446 + $0x10] sm:$0xf]
        %v452 = vld [vmem:[%s446 + $0x14] sm:$0xf]
        %v453 = vld [vmem:[%s446 + $0x18] sm:$0xf]
        %v454 = vld [vmem:[%s446 + $0x1c] sm:$0xf]
        %v455 = vld [vmem:[%s446 + $0x20] sm:$0xf]
        %v456 = vld [vmem:[%s446 + $0x24] sm:$0xf]
        %v457 = vld [vmem:[%s446 + $0x28] sm:$0xf]
        %v458 = vld [vmem:[%s446 + $0x2c] sm:$0xf]
        %v459 = vld [vmem:[%s446 + $0x30] sm:$0xf]
        %v460 = vld [vmem:[%s446 + $0x34] sm:$0xf]
        %v461 = vld [vmem:[%s446 + $0x38] sm:$0xf]
        %v462 = vld [vmem:[%s446 + $0x3c] sm:$0xf]
        %v479 = vunpack.c.l.b16 %v447
        %v480 = vunpack.c.l.b16 %v448
        %v481 = vunpack.c.l.b16 %v449
        %v482 = vunpack.c.l.b16 %v450
        %v483 = vunpack.c.l.b16 %v451
        %v484 = vunpack.c.l.b16 %v452
        %v485 = vunpack.c.l.b16 %v453
        %v486 = vunpack.c.l.b16 %v454
        %v487 = vunpack.c.l.b16 %v455
        %v488 = vunpack.c.l.b16 %v456
        %v489 = vunpack.c.l.b16 %v457
        %v490 = vunpack.c.l.b16 %v458
        %v491 = vunpack.c.l.b16 %v459
        %v492 = vunpack.c.l.b16 %v460
        %v493 = vunpack.c.l.b16 %v461
        %v494 = vunpack.c.l.b16 %v462
        %v495 = vpack.c.b16 %v480, %v479
        %v496 = vpack.c.b16 %v482, %v481
        %v497 = vpack.c.b16 %v484, %v483
        %v498 = vpack.c.b16 %v486, %v485
        %v499 = vpack.c.b16 %v488, %v487
        %v500 = vpack.c.b16 %v490, %v489
        %v501 = vpack.c.b16 %v492, %v491
        %v502 = vpack.c.b16 %v494, %v493
        %511 = vmatprep.subr.bf16.mxu0 0
        %512 = vmatpush1.bf16.msra.mxu0 %v495
        %513 = vmatprep.subr.bf16.mxu0 0
        %514 = vmatpush1.bf16.msra.mxu0 %v496
        %515 = vmatprep.subr.bf16.mxu0 0
        %516 = vmatpush1.bf16.msra.mxu0 %v497
        %517 = vmatprep.subr.bf16.mxu0 0
        %518 = vmatpush1.bf16.msra.mxu0 %v498
        %519 = vmatprep.subr.bf16.mxu0 0
        %520 = vmatpush1.bf16.msra.mxu0 %v499
        %521 = vmatprep.subr.bf16.mxu0 0
        %522 = vmatpush1.bf16.msra.mxu0 %v500
        %523 = vmatprep.subr.bf16.mxu0 0
        %524 = vmatpush1.bf16.msra.mxu0 %v501
        %525 = vmatprep.subr.bf16.mxu0 0
        %526 = vmatpush1.bf16.msra.mxu0 %v502
        %527 = vmatprep.subr.bf16.mxu0 0
        %528 = vmatpush1.bf16.msra.mxu0 0
        %529 = vmatprep.subr.bf16.mxu0 0
        %530 = vmatpush1.bf16.msra.mxu0 0
        %531 = vmatprep.subr.bf16.mxu0 0
        %532 = vmatpush1.bf16.msra.mxu0 0
        %533 = vmatprep.subr.bf16.mxu0 0
        %534 = vmatpush1.bf16.msra.mxu0 0
        %535 = vmatprep.subr.bf16.mxu0 0
        %536 = vmatpush1.bf16.msra.mxu0 0
        %537 = vmatprep.subr.bf16.mxu0 0
        %538 = vmatpush1.bf16.msra.mxu0 0
        %539 = vmatprep.subr.bf16.mxu0 0
        %540 = vmatpush1.bf16.msra.mxu0 0
        %541 = vmatprep.subr.bf16.mxu0 0
        %542 = vmatpush1.bf16.msra.mxu0 0
        %543 = vmatprep.mubr.bf16.mxu0 0
        %544 = vmatmul.mubr.bf16.gmra.mrb[0].mxu0 %v216
        %v545 = vpop.f32.mrb[0].mxu0
        %v546 = vadd.f32 0.0, %v545
        %v547 = vpop.f32.mrb[0].mxu0
        %v548 = vpop.f32.mrb[0].mxu0
        %v549 = vpop.f32.mrb[0].mxu0
        %550 = vdwg.mxu0
        %v551 = vadd.f32 %v441, %v546
        %v552 = vld [vmem:[#allocation7] sm:$0x1]
        %v554 = vlaneseq
        %v555 = vshrl.u32 %v554, 7
        %v556 = vsub.s32 0, %v555
        %v557 = vrot.slane %v552, %v556
        %v559 = vadd.f32 %v551, %v557
        %vm560 = vcmask 1043456
        %v561 = vsel %vm560, %v559, 0.0
        %v562 = vrot.slane %v561, 4
        %v563 = vadd.f32 %v561, %v562
        %v564 = vrot.slane %v563, 2
        %v565 = vadd.f32 %v563, %v564
        %v566 = vrot.slane %v565, 1
        %v567 = vadd.f32 %v565, %v566
        %v568 = vmul.f32 %v559, %v559
        %v569 = vsel %vm560, %v568, 0.0
        %v570 = vrot.slane %v569, 4
        %v571 = vadd.f32 %v569, %v570
        %v572 = vrot.slane %v571, 2
        %v573 = vadd.f32 %v571, %v572
        %v574 = vrot.slane %v573, 1
        %v575 = vadd.f32 %v573, %v574
        %v576 = vmul.f32 %v567, 0.25
        %v577 = vmul.f32 %v575, 0.25
        %v578 = vmul.f32 %v576, %v576
        %v579 = vsub.f32 %v577, %v578
        %v580 = vmax.f32 %v579, 0.0
        %v581 = vsub.f32 %v559, %v576
        %v582 = vadd.f32 %v580, 1e-05
        %v583 = vrsqrt.pop %v582
        %v584 = vmul.f32 %v581, %v583
        %v585 = vmax.f32 %v584, 0.0
        %v586 = vpack.c.bf16 %v585, %v585
        %587 = vst [vmem:[%s213] sm:$0x3] %v586
        %s588 = sand.u32 %s97, 1
        %s589 = scalar_lea.sflag [#allocation4], %s588
        %s590 = sand.u32 %s97, 1
        %s591 = smul.addr %s590, 2
        %s592 = scalar_lea.vmem [#allocation8], %s591
        // Predicated region
        $region45: #{generator_forward.9} parent=31 // pred_check
          %p593 = pneg %p107
        $region46: #{generator_forward.9} parent=31 // pred_check_branch
          %595 = sbr.rel (%p593) target = $region48
        $region47: #{generator_forward.9} parent=31 // pred_region
          %s597 = ssub.s32 32, 32
          %598 = vsyncadd %s589, %s597
          %s599 = smul.addr %s21, 32
          %s600 = scalar_lea.hbm %s3, %s599
          %s602 = sshll.u32 %s592, 4
          %s603 = int_to_ptr.vmem [resolvable:$true] %s602
          %605 = dma.vmem_to_hbm [thread:$0]  %s603, 32, %s600, %s589
        $region48: #{generator_forward.9} parent=31 // pred_fallthru
          _
      $region32: #{generator_forward.9} parent=5 // pred_fallthru
        _
      %p606 = scmp.le.s32.totalorder 2, %s16
      // Predicated region
      $region49: #{generator_forward.9} parent=5 // pred_check
        %p607 = pneg %p606
      $region50: #{generator_forward.9} parent=5 // pred_check_branch
        %609 = sbr.rel (%p607) target = $region52
      $region51: #{generator_forward.9} parent=5 // pred_region
        %s610 = ssub.s32 %s16, 2
        // Predicated region
        $region53: #{generator_forward.9} parent=51 // pred_check
          %p611 = pneg %p113
        $region54: #{generator_forward.9} parent=51 // pred_check_branch
          %613 = sbr.rel (%p611) target = $region56
        $region55: #{generator_forward.9} parent=51 // pred_region
          %s614 = sand.u32 %s98, 1
          %s615 = scalar_lea.sflag [#allocation4], %s614
          %s616 = sand.u32 %s98, 1
          %s617 = smul.addr %s616, 2
          %s618 = scalar_lea.vmem [#allocation8], %s617
          %619 = dma.done %s615, 32
        $region56: #{generator_forward.9} parent=51 // pred_fallthru
          _
      $region52: #{generator_forward.9} parent=5 // pred_fallthru
        _
    $region6: #{generator_forward.9} parent=1 // loop_footer
      %s20 = sadd.s32 1, %s16
    $region7: #{generator_forward.9} parent=1 // loop_footer_branch
      %15 = sbr.rel target = $region3
    $region8: #{generator_forward.9} parent=1 // loop_exit
      _
    %620 = vsyncpa [#allocation3], 1
    %s621 = scalar_lea.sflag [#allocation3], 1
    %622 = vsyncpa %s621, 1
    %623 = vsyncpa [#allocation6], 1
    %624 = vsyncpa [#allocation4], 1
    %s625 = scalar_lea.sflag [#allocation4], 1
    %626 = vsyncpa %s625, 1

// kernel: generator_forward.8
$region0: #{generator_forward.8}
  #allocation0 [shape = 'u32[]', space=smem, size = 0x4, offset = 0x4, fixed_abs, tag = 'smem constant byte address 0x4 - core index']
  #allocation1 [shape = 'u32[144,128]{1,0:T(1,128)}', space=vmem, size = 0x12000, scoped, tag = 'internal scratch']
  %s0 = inlined_call_operand.hbm [shape: bf16[2,8,256], index: 0, kind: input, shape index: {}]
  %s1 = inlined_call_operand.hbm [shape: bf16[3,128,128], index: 1, kind: input, shape index: {}]
  %s2 = inlined_call_operand.hbm [shape: f32[1,128], index: 2, kind: input, shape index: {}]
  %s3 = inlined_call_operand.hbm [shape: bf16[2,8,128], index: 3, kind: output, shape index: {}]
  %s4 = sld [smem:[#allocation0]]
  $region57: #{generator_forward.8} parent=0
    _
  %s6 = ssub.s32 1, %s4
  %s7 = scalar_select 0, %s6, %s4
  $region1: #{generator_forward.8} parent=0
    #allocation2 [shape = 'u8[8192]{0}', space=vmem, size = 0x2000, scoped, tag = 'input window, operand 0']
    #allocation3 [shape = 's32[2]{0}', space=sflag, size = 0x8, scoped, tag = 'scoped memory for generator_forward.8']
    #allocation4 [shape = 's32[2]{0}', space=sflag, size = 0x8, scoped, tag = 'scoped memory for generator_forward.8']
    #allocation5 [shape = 'u8[98304]{0}', space=vmem, size = 0x18000, scoped, tag = 'input window, operand 1, single buffered']
    #allocation6 [shape = 's32[1]{0}', space=sflag, size = 0x4, scoped, tag = 'scoped memory for generator_forward.8']
    #allocation7 [shape = 'u8[512]{0}', space=vmem, size = 0x400, scoped, tag = 'input window, operand 2, single buffered']
    #allocation8 [shape = 'u8[4096]{0}', space=vmem, size = 0x1000, scoped, tag = 'output window, operand 0']
    %8 = vsyncpa [#allocation3], 0
    %s9 = scalar_lea.sflag [#allocation3], 1
    %10 = vsyncpa %s9, 0
    %11 = vsyncpa [#allocation6], 0
    %12 = vsyncpa [#allocation4], 0
    %s13 = scalar_lea.sflag [#allocation4], 1
    %14 = vsyncpa %s13, 0
    loop: start=0, step=1, limit=4
    $region2: #{generator_forward.8} parent=1 // loop_pre_header
      _
    $region3: #{generator_forward.8} parent=1 // loop_header
      %s16 = sphi 0, %s20
      %p17 = scmp.ge.s32.totalorder %s16, 4
      %s26 = sphi 0, %s28
      %s29 = sphi 0, %s26
      %s30 = sphi 0, %s29
      %s46 = sphi 0, %s30
      %s50 = sphi 0, %s50
      %s52 = sphi 0, %s50
      %s53 = sphi 0, %s52
      %s67 = sphi 0, %s53
      %s71 = sphi 0, %s71
      %s73 = sphi 0, %s71
      %s74 = sphi 0, %s73
      %s88 = sphi 0, %s74
      %s94 = sphi 0, %s96
      %s97 = sphi 0, %s94
      %s98 = sphi 0, %s97
      %s114 = sphi 0, %s98
    $region4: #{generator_forward.8} parent=1 // loop_header_branch
      %19 = sbr.rel (%p17) target = $region8
    $region5: #{generator_forward.8} parent=1 // loop_body
      %s21 = ssub.s32 %s16, 1
      %s22 = ssub.s32 %s16, 2
      %s23 = sadd.s32 %s16, 1
      %s24 = ssub.s32 %s16, %s23
      %p25 = scmp.eq.s32.totalorder %s24, 0
      %s27 = sadd.s32 %s26, 1
      %s28 = scalar_select %p25, %s26, %s27
      %p31 = pneg %p25
      %p32 = scmp.eq.s32.totalorder %s16, 1
      %p33 = por %p31, %p32
      %p34 = scmp.ne.s32.totalorder %s26, %s29
      %p35 = scmp.eq.s32.totalorder %s16, 0
      %p36 = por %p34, %p35
      %p37 = scmp.ne.s32.totalorder %s26, %s29
      %p38 = scmp.eq.s32.totalorder %s21, 1
      %p39 = por %p37, %p38
      %p40 = scmp.ne.s32.totalorder %s29, %s30
      %p41 = scmp.eq.s32.totalorder %s21, 0
      %p42 = por %p40, %p41
      %p43 = scmp.ne.s32.totalorder %s29, %s30
      %p44 = scmp.eq.s32.totalorder %s22, 1
      %p45 = por %p43, %p44
      %p47 = scmp.ne.s32.totalorder %s30, %s46
      %p48 = scmp.eq.s32.totalorder %s22, 0
      %p49 = por %p47, %p48
      %s51 = sadd.s32 %s50, 1
      %p54 = scmp.eq.s32.totalorder %s16, 1
      %p55 = scmp.ne.s32.totalorder %s50, %s52
      %p56 = scmp.eq.s32.totalorder %s16, 0
      %p57 = por %p55, %p56
      %p58 = scmp.ne.s32.totalorder %s50, %s52
      %p59 = scmp.eq.s32.totalorder %s21, 1
      %p60 = por %p58, %p59
      %p61 = scmp.ne.s32.totalorder %s52, %s53
      %p62 = scmp.eq.s32.totalorder %s21, 0
      %p63 = por %p61, %p62
      %p64 = scmp.ne.s32.totalorder %s52, %s53
      %p65 = scmp.eq.s32.totalorder %s22, 1
      %p66 = por %p64, %p65
      %p68 = scmp.ne.s32.totalorder %s53, %s67
      %p69 = scmp.eq.s32.totalorder %s22, 0
      %p70 = por %p68, %p69
      %s72 = sadd.s32 %s71, 1
      %p75 = scmp.eq.s32.totalorder %s16, 1
      %p76 = scmp.ne.s32.totalorder %s71, %s73
      %p77 = scmp.eq.s32.totalorder %s16, 0
      %p78 = por %p76, %p77
      %p79 = scmp.ne.s32.totalorder %s71, %s73
      %p80 = scmp.eq.s32.totalorder %s21, 1
      %p81 = por %p79, %p80
      %p82 = scmp.ne.s32.totalorder %s73, %s74
      %p83 = scmp.eq.s32.totalorder %s21, 0
      %p84 = por %p82, %p83
      %p85 = scmp.ne.s32.totalorder %s73, %s74
      %p86 = scmp.eq.s32.totalorder %s22, 1
      %p87 = por %p85, %p86
      %p89 = scmp.ne.s32.totalorder %s74, %s88
      %p90 = scmp.eq.s32.totalorder %s22, 0
      %p91 = por %p89, %p90
      %s92 = ssub.s32 %s16, %s23
      %p93 = scmp.eq.s32.totalorder %s92, 0
      %s95 = sadd.s32 %s94, 1
      %s96 = scalar_select %p93, %s94, %s95
      %p99 = pneg %p93
      %p100 = scmp.eq.s32.totalorder %s16, 1
      %p101 = por %p99, %p100
      %p102 = scmp.ne.s32.totalorder %s94, %s97
      %p103 = scmp.eq.s32.totalorder %s16, 0
      %p104 = por %p102, %p103
      %p105 = scmp.ne.s32.totalorder %s94, %s97
      %p106 = scmp.eq.s32.totalorder %s21, 1
      %p107 = por %p105, %p106
      %p108 = scmp.ne.s32.totalorder %s97, %s98
      %p109 = scmp.eq.s32.totalorder %s21, 0
      %p110 = por %p108, %p109
      %p111 = scmp.ne.s32.totalorder %s97, %s98
      %p112 = scmp.eq.s32.totalorder %s22, 1
      %p113 = por %p111, %p112
      %p115 = scmp.ne.s32.totalorder %s98, %s114
      %p116 = scmp.eq.s32.totalorder %s22, 0
      %p117 = por %p115, %p116
      %p118 = scmp.le.s32.totalorder 1, %s16
      %p119 = scmp.lt.s32.totalorder %s16, 3
      %p120 = pnand %p118, %p119
      %p121 = pneg %p120
      // Predicated region
      $region9: #{generator_forward.8} parent=5 // pred_check
        _
      $region10: #{generator_forward.8} parent=5 // pred_check_branch
        %123 = sbr.rel (%p120) target = $region12
      $region11: #{generator_forward.8} parent=5 // pred_region
        %s124 = ssub.s32 %s16, 1
        // Predicated region
        $region13: #{generator_forward.8} parent=11 // pred_check
          %p125 = pneg %p63
        $region14: #{generator_forward.8} parent=11 // pred_check_branch
          %127 = sbr.rel (%p125) target = $region16
        $region15: #{generator_forward.8} parent=11 // pred_region
          %s129 = ssub.s32 3072, 3072
          %130 = vsyncadd [#allocation6], %s129
          %s131 = sshll.u32 [#allocation5], 4
          %s132 = int_to_ptr.vmem [resolvable:$true] %s131
          %137 = dma.hbm_to_vmem [thread:$0]  %s1, 3072, %s132, [#allocation6], 64, 64, 4
        $region16: #{generator_forward.8} parent=11 // pred_fallthru
          _
        // Predicated region
        $region17: #{generator_forward.8} parent=11 // pred_check
          %p138 = pneg %p84
        $region18: #{generator_forward.8} parent=11 // pred_check_branch
          %140 = sbr.rel (%p138) target = $region20
        $region19: #{generator_forward.8} parent=11 // pred_region
          %s142 = ssub.s32 16, 16
          %143 = vsyncadd [#allocation6], %s142
          %s145 = sshll.u32 [#allocation7], 4
          %s146 = int_to_ptr.vmem [resolvable:$true] %s145
          %148 = dma.hbm_to_vmem [thread:$0]  %s2, 16, %s146, [#allocation6]
        $region20: #{generator_forward.8} parent=11 // pred_fallthru
          _
      $region12: #{generator_forward.8} parent=5 // pred_fallthru
        _
      %p149 = scmp.lt.s32.totalorder %s16, 2
      // Predicated region
      $region21: #{generator_forward.8} parent=5 // pred_check
        %p150 = pneg %p149
      $region22: #{generator_forward.8} parent=5 // pred_check_branch
        %152 = sbr.rel (%p150) target = $region24
      $region23: #{generator_forward.8} parent=5 // pred_region
        // Predicated region
        $region25: #{generator_forward.8} parent=23 // pred_check
          %p153 = pneg %p36
        $region26: #{generator_forward.8} parent=23 // pred_check_branch
          %155 = sbr.rel (%p153) target = $region28
        $region27: #{generator_forward.8} parent=23 // pred_region
          %s156 = sand.u32 %s26, 1
          %s157 = scalar_lea.sflag [#allocation3], %s156
          %s158 = sand.u32 %s26, 1
          %s159 = smul.addr %s158, 8
          %s160 = scalar_lea.vmem [#allocation2], %s159
          %s162 = ssub.s32 128, 128
          %163 = vsyncadd %s157, %s162
          %s164 = smul.addr %s16, 2
          %s165 = smul.addr %s164, 64
          %s166 = scalar_lea.hbm %s0, %s165
          %s168 = sshll.u32 %s160, 4
          %s169 = int_to_ptr.vmem [resolvable:$true] %s168
          %171 = dma.hbm_to_vmem [thread:$0]  %s166, 128, %s169, %s157
        $region28: #{generator_forward.8} parent=23 // pred_fallthru
          _
      $region24: #{generator_forward.8} parent=5 // pred_fallthru
        _
      %p172 = scmp.le.s32.totalorder 1, %s16
      %p173 = scmp.lt.s32.totalorder %s16, 3
      %p174 = pnand %p172, %p173
      %p175 = pneg %p174
      // Predicated region
      $region29: #{generator_forward.8} parent=5 // pred_check
        _
      $region30: #{generator_forward.8} parent=5 // pred_check_branch
        %177 = sbr.rel (%p174) target = $region32
      $region31: #{generator_forward.8} parent=5 // pred_region
        %s178 = ssub.s32 %s16, 1
        %s179 = sand.u32 %s29, 1
        %s180 = scalar_lea.sflag [#allocation3], %s179
        %s181 = sand.u32 %s29, 1
        %s182 = smul.addr %s181, 8
        %s183 = scalar_lea.vmem [#allocation2], %s182
        // Predicated region
        $region33: #{generator_forward.8} parent=31 // pred_check
          %p184 = pneg %p42
        $region34: #{generator_forward.8} parent=31 // pred_check_branch
          %186 = sbr.rel (%p184) target = $region36
        $region35: #{generator_forward.8} parent=31 // pred_region
          %187 = dma.done %s180, 128
        $region36: #{generator_forward.8} parent=31 // pred_fallthru
          _
        // Predicated region
        $region37: #{generator_forward.8} parent=31 // pred_check
          %p188 = pneg %p63
        $region38: #{generator_forward.8} parent=31 // pred_check_branch
          %190 = sbr.rel (%p188) target = $region40
        $region39: #{generator_forward.8} parent=31 // pred_region
          %191 = dma.done [#allocation6], 3072
        $region40: #{generator_forward.8} parent=31 // pred_fallthru
          _
        // Predicated region
        $region41: #{generator_forward.8} parent=31 // pred_check
          %p192 = pneg %p84
        $region42: #{generator_forward.8} parent=31 // pred_check_branch
          %194 = sbr.rel (%p192) target = $region44
        $region43: #{generator_forward.8} parent=31 // pred_region
          %195 = dma.done [#allocation6], 16
        $region44: #{generator_forward.8} parent=31 // pred_fallthru
          _
        %s196 = sand.u32 %s29, 1
        %s197 = scalar_lea.sflag [#allocation3], %s196
        %s198 = sand.u32 %s29, 1
        %s199 = smul.addr %s198, 8
        %s200 = scalar_lea.vmem [#allocation2], %s199
        %p201 = pneg %p42
        %p202 = pneg %p39
        %p203 = pneg %p63
        %p204 = pneg %p60
        %p205 = pneg %p84
        %p206 = pneg %p81
        %p207 = pneg %p110
        %p208 = pneg %p107
        %s209 = sand.u32 %s97, 1
        %s210 = scalar_lea.sflag [#allocation4], %s209
        %s211 = sand.u32 %s97, 1
        %s212 = smul.addr %s211, 4
        %s213 = scalar_lea.vmem [#allocation8], %s212
        %v215 = vld [vmem:[%s183] sm:$0xf]
        %v216 = vld [vmem:[%s183 + $0x4] sm:$0xf]
        %v218 = vunpack.c.l.b16 %v216
        %v219 = vpack.c.b16 %v218, %v218
        %v221 = vshrl.u32 %v219, 16
        %v223 = vrot.slane %v221, 7
        %v224 = vshll.u32 %v219, 16
        %v226 = vor.u32 %v223, %v224
        %vm228 = vcmask 1040384
        %vm229 = vsmask.f32 256
        %vm230 = vmand %vm228, %vm229
        %v231 = vsel %vm230, 0, %v226
        %v232 = vld [vmem:[#allocation5] sm:$0xf]
        %v233 = vld [vmem:[#allocation5 + $0x4] sm:$0xf]
        %v234 = vld [vmem:[#allocation5 + $0x8] sm:$0xf]
        %v235 = vld [vmem:[#allocation5 + $0xc] sm:$0xf]
        %v236 = vld [vmem:[#allocation5 + $0x10] sm:$0xf]
        %v237 = vld [vmem:[#allocation5 + $0x14] sm:$0xf]
        %v238 = vld [vmem:[#allocation5 + $0x18] sm:$0xf]
        %v239 = vld [vmem:[#allocation5 + $0x1c] sm:$0xf]
        %v240 = vld [vmem:[#allocation5 + $0x20] sm:$0xf]
        %v241 = vld [vmem:[#allocation5 + $0x24] sm:$0xf]
        %v242 = vld [vmem:[#allocation5 + $0x28] sm:$0xf]
        %v243 = vld [vmem:[#allocation5 + $0x2c] sm:$0xf]
        %v244 = vld [vmem:[#allocation5 + $0x30] sm:$0xf]
        %v245 = vld [vmem:[#allocation5 + $0x34] sm:$0xf]
        %v246 = vld [vmem:[#allocation5 + $0x38] sm:$0xf]
        %v247 = vld [vmem:[#allocation5 + $0x3c] sm:$0xf]
        %s248 = scalar_lea.vmem [#allocation5], 64
        %v249 = vld [vmem:[%s248] sm:$0xf]
        %v250 = vld [vmem:[%s248 + $0x4] sm:$0xf]
        %v251 = vld [vmem:[%s248 + $0x8] sm:$0xf]
        %v252 = vld [vmem:[%s248 + $0xc] sm:$0xf]
        %v253 = vld [vmem:[%s248 + $0x10] sm:$0xf]
        %v254 = vld [vmem:[%s248 + $0x14] sm:$0xf]
        %v255 = vld [vmem:[%s248 + $0x18] sm:$0xf]
        %v256 = vld [vmem:[%s248 + $0x1c] sm:$0xf]
        %v257 = vld [vmem:[%s248 + $0x20] sm:$0xf]
        %v258 = vld [vmem:[%s248 + $0x24] sm:$0xf]
        %v259 = vld [vmem:[%s248 + $0x28] sm:$0xf]
        %v260 = vld [vmem:[%s248 + $0x2c] sm:$0xf]
        %v261 = vld [vmem:[%s248 + $0x30] sm:$0xf]
        %v262 = vld [vmem:[%s248 + $0x34] sm:$0xf]
        %v263 = vld [vmem:[%s248 + $0x38] sm:$0xf]
        %v264 = vld [vmem:[%s248 + $0x3c] sm:$0xf]
        %v281 = vunpack.c.l.b16 %v249
        %v282 = vunpack.c.l.b16 %v250
        %v283 = vunpack.c.l.b16 %v251
        %v284 = vunpack.c.l.b16 %v252
        %v285 = vunpack.c.l.b16 %v253
        %v286 = vunpack.c.l.b16 %v254
        %v287 = vunpack.c.l.b16 %v255
        %v288 = vunpack.c.l.b16 %v256
        %v289 = vunpack.c.l.b16 %v257
        %v290 = vunpack.c.l.b16 %v258
        %v291 = vunpack.c.l.b16 %v259
        %v292 = vunpack.c.l.b16 %v260
        %v293 = vunpack.c.l.b16 %v261
        %v294 = vunpack.c.l.b16 %v262
        %v295 = vunpack.c.l.b16 %v263
        %v296 = vunpack.c.l.b16 %v264
        %v297 = vpack.c.b16 %v282, %v281
        %v298 = vpack.c.b16 %v284, %v283
        %v299 = vpack.c.b16 %v286, %v285
        %v300 = vpack.c.b16 %v288, %v287
        %v301 = vpack.c.b16 %v290, %v289
        %v302 = vpack.c.b16 %v292, %v291
        %v303 = vpack.c.b16 %v294, %v293
        %v304 = vpack.c.b16 %v296, %v295
        %313 = vmatprep.subr.bf16.mxu0 0
        %314 = vmatpush1.bf16.msra.mxu0 %v297
        %315 = vmatprep.subr.bf16.mxu0 0
        %316 = vmatpush1.bf16.msra.mxu0 %v298
        %317 = vmatprep.subr.bf16.mxu0 0
        %318 = vmatpush1.bf16.msra.mxu0 %v299
        %319 = vmatprep.subr.bf16.mxu0 0
        %320 = vmatpush1.bf16.msra.mxu0 %v300
        %321 = vmatprep.subr.bf16.mxu0 0
        %322 = vmatpush1.bf16.msra.mxu0 %v301
        %323 = vmatprep.subr.bf16.mxu0 0
        %324 = vmatpush1.bf16.msra.mxu0 %v302
        %325 = vmatprep.subr.bf16.mxu0 0
        %326 = vmatpush1.bf16.msra.mxu0 %v303
        %327 = vmatprep.subr.bf16.mxu0 0
        %328 = vmatpush1.bf16.msra.mxu0 %v304
        %329 = vmatprep.subr.bf16.mxu0 0
        %330 = vmatpush1.bf16.msra.mxu0 0
        %331 = vmatprep.subr.bf16.mxu0 0
        %332 = vmatpush1.bf16.msra.mxu0 0
        %333 = vmatprep.subr.bf16.mxu0 0
        %334 = vmatpush1.bf16.msra.mxu0 0
        %335 = vmatprep.subr.bf16.mxu0 0
        %336 = vmatpush1.bf16.msra.mxu0 0
        %337 = vmatprep.subr.bf16.mxu0 0
        %338 = vmatpush1.bf16.msra.mxu0 0
        %339 = vmatprep.subr.bf16.mxu0 0
        %340 = vmatpush1.bf16.msra.mxu0 0
        %341 = vmatprep.subr.bf16.mxu0 0
        %342 = vmatpush1.bf16.msra.mxu0 0
        %343 = vmatprep.subr.bf16.mxu0 0
        %344 = vmatpush1.bf16.msra.mxu0 0
        %345 = vmatprep.mubr.bf16.mxu0 0
        %346 = vmatmul.mubr.bf16.gmra.mrb[0].mxu0 %v215
        %v347 = vpop.f32.mrb[0].mxu0
        %v348 = vadd.f32 0.0, %v347
        %v349 = vpop.f32.mrb[0].mxu0
        %v350 = vpop.f32.mrb[0].mxu0
        %v351 = vpop.f32.mrb[0].mxu0
        %352 = vdwg.mxu0
        %v369 = vunpack.c.l.b16 %v232
        %v370 = vunpack.c.l.b16 %v233
        %v371 = vunpack.c.l.b16 %v234
        %v372 = vunpack.c.l.b16 %v235
        %v373 = vunpack.c.l.b16 %v236
        %v374 = vunpack.c.l.b16 %v237
        %v375 = vunpack.c.l.b16 %v238
        %v376 = vunpack.c.l.b16 %v239
        %v377 = vunpack.c.l.b16 %v240
        %v378 = vunpack.c.l.b16 %v241
        %v379 = vunpack.c.l.b16 %v242
        %v380 = vunpack.c.l.b16 %v243
        %v381 = vunpack.c.l.b16 %v244
        %v382 = vunpack.c.l.b16 %v245
        %v383 = vunpack.c.l.b16 %v246
        %v384 = vunpack.c.l.b16 %v247
        %v385 = vpack.c.b16 %v370, %v369
        %v386 = vpack.c.b16 %v372, %v371
        %v387 = vpack.c.b16 %v374, %v373
        %v388 = vpack.c.b16 %v376, %v375
        %v389 = vpack.c.b16 %v378, %v377
        %v390 = vpack.c.b16 %v380, %v379
        %v391 = vpack.c.b16 %v382, %v381
        %v392 = vpack.c.b16 %v384, %v383
        %401 = vmatprep.subr.bf16.mxu0 0
        %402 = vmatpush1.bf16.msra.mxu0 %v385
        %403 = vmatprep.subr.bf16.mxu0 0
        %404 = vmatpush1.bf16.msra.mxu0 %v386
        %405 = vmatprep.subr.bf16.mxu0 0
        %406 = vmatpush1.bf16.msra.mxu0 %v387
        %407 = vmatprep.subr.bf16.mxu0 0
        %408 = vmatpush1.bf16.msra.mxu0 %v388
        %409 = vmatprep.subr.bf16.mxu0 0
        %410 = vmatpush1.bf16.msra.mxu0 %v389
        %411 = vmatprep.subr.bf16.mxu0 0
        %412 = vmatpush1.bf16.msra.mxu0 %v390
        %413 = vmatprep.subr.bf16.mxu0 0
        %414 = vmatpush1.bf16.msra.mxu0 %v391
        %415 = vmatprep.subr.bf16.mxu0 0
        %416 = vmatpush1.bf16.msra.mxu0 %v392
        %417 = vmatprep.subr.bf16.mxu0 0
        %418 = vmatpush1.bf16.msra.mxu0 0
        %419 = vmatprep.subr.bf16.mxu0 0
        %420 = vmatpush1.bf16.msra.mxu0 0
        %421 = vmatprep.subr.bf16.mxu0 0
        %422 = vmatpush1.bf16.msra.mxu0 0
        %423 = vmatprep.subr.bf16.mxu0 0
        %424 = vmatpush1.bf16.msra.mxu0 0
        %425 = vmatprep.subr.bf16.mxu0 0
        %426 = vmatpush1.bf16.msra.mxu0 0
        %427 = vmatprep.subr.bf16.mxu0 0
        %428 = vmatpush1.bf16.msra.mxu0 0
        %429 = vmatprep.subr.bf16.mxu0 0
        %430 = vmatpush1.bf16.msra.mxu0 0
        %431 = vmatprep.subr.bf16.mxu0 0
        %432 = vmatpush1.bf16.msra.mxu0 0
        %433 = vmatprep.mubr.bf16.mxu0 0
        %434 = vmatmul.mubr.bf16.gmra.mrb[0].mxu0 %v231
        %v435 = vpop.f32.mrb[0].mxu0
        %v436 = vadd.f32 %v348, %v435
        %v437 = vpop.f32.mrb[0].mxu0
        %v438 = vpop.f32.mrb[0].mxu0
        %v439 = vpop.f32.mrb[0].mxu0
        %440 = vdwg.mxu0
        %s441 = scalar_lea.vmem [#allocation5], 128
        %v442 = vld [vmem:[%s441] sm:$0xf]
        %v443 = vld [vmem:[%s441 + $0x4] sm:$0xf]
        %v444 = vld [vmem:[%s441 + $0x8] sm:$0xf]
        %v445 = vld [vmem:[%s441 + $0xc] sm:$0xf]
        %v446 = vld [vmem:[%s441 + $0x10] sm:$0xf]
        %v447 = vld [vmem:[%s441 + $0x14] sm:$0xf]
        %v448 = vld [vmem:[%s441 + $0x18] sm:$0xf]
        %v449 = vld [vmem:[%s441 + $0x1c] sm:$0xf]
        %v450 = vld [vmem:[%s441 + $0x20] sm:$0xf]
        %v451 = vld [vmem:[%s441 + $0x24] sm:$0xf]
        %v452 = vld [vmem:[%s441 + $0x28] sm:$0xf]
        %v453 = vld [vmem:[%s441 + $0x2c] sm:$0xf]
        %v454 = vld [vmem:[%s441 + $0x30] sm:$0xf]
        %v455 = vld [vmem:[%s441 + $0x34] sm:$0xf]
        %v456 = vld [vmem:[%s441 + $0x38] sm:$0xf]
        %v457 = vld [vmem:[%s441 + $0x3c] sm:$0xf]
        %v474 = vunpack.c.l.b16 %v442
        %v475 = vunpack.c.l.b16 %v443
        %v476 = vunpack.c.l.b16 %v444
        %v477 = vunpack.c.l.b16 %v445
        %v478 = vunpack.c.l.b16 %v446
        %v479 = vunpack.c.l.b16 %v447
        %v480 = vunpack.c.l.b16 %v448
        %v481 = vunpack.c.l.b16 %v449
        %v482 = vunpack.c.l.b16 %v450
        %v483 = vunpack.c.l.b16 %v451
        %v484 = vunpack.c.l.b16 %v452
        %v485 = vunpack.c.l.b16 %v453
        %v486 = vunpack.c.l.b16 %v454
        %v487 = vunpack.c.l.b16 %v455
        %v488 = vunpack.c.l.b16 %v456
        %v489 = vunpack.c.l.b16 %v457
        %v490 = vpack.c.b16 %v475, %v474
        %v491 = vpack.c.b16 %v477, %v476
        %v492 = vpack.c.b16 %v479, %v478
        %v493 = vpack.c.b16 %v481, %v480
        %v494 = vpack.c.b16 %v483, %v482
        %v495 = vpack.c.b16 %v485, %v484
        %v496 = vpack.c.b16 %v487, %v486
        %v497 = vpack.c.b16 %v489, %v488
        %506 = vmatprep.subr.bf16.mxu0 0
        %507 = vmatpush1.bf16.msra.mxu0 %v490
        %508 = vmatprep.subr.bf16.mxu0 0
        %509 = vmatpush1.bf16.msra.mxu0 %v491
        %510 = vmatprep.subr.bf16.mxu0 0
        %511 = vmatpush1.bf16.msra.mxu0 %v492
        %512 = vmatprep.subr.bf16.mxu0 0
        %513 = vmatpush1.bf16.msra.mxu0 %v493
        %514 = vmatprep.subr.bf16.mxu0 0
        %515 = vmatpush1.bf16.msra.mxu0 %v494
        %516 = vmatprep.subr.bf16.mxu0 0
        %517 = vmatpush1.bf16.msra.mxu0 %v495
        %518 = vmatprep.subr.bf16.mxu0 0
        %519 = vmatpush1.bf16.msra.mxu0 %v496
        %520 = vmatprep.subr.bf16.mxu0 0
        %521 = vmatpush1.bf16.msra.mxu0 %v497
        %522 = vmatprep.subr.bf16.mxu0 0
        %523 = vmatpush1.bf16.msra.mxu0 0
        %524 = vmatprep.subr.bf16.mxu0 0
        %525 = vmatpush1.bf16.msra.mxu0 0
        %526 = vmatprep.subr.bf16.mxu0 0
        %527 = vmatpush1.bf16.msra.mxu0 0
        %528 = vmatprep.subr.bf16.mxu0 0
        %529 = vmatpush1.bf16.msra.mxu0 0
        %530 = vmatprep.subr.bf16.mxu0 0
        %531 = vmatpush1.bf16.msra.mxu0 0
        %532 = vmatprep.subr.bf16.mxu0 0
        %533 = vmatpush1.bf16.msra.mxu0 0
        %534 = vmatprep.subr.bf16.mxu0 0
        %535 = vmatpush1.bf16.msra.mxu0 0
        %536 = vmatprep.subr.bf16.mxu0 0
        %537 = vmatpush1.bf16.msra.mxu0 0
        %538 = vmatprep.mubr.bf16.mxu0 0
        %539 = vmatmul.mubr.bf16.gmra.mrb[0].mxu0 %v216
        %v540 = vpop.f32.mrb[0].mxu0
        %v541 = vadd.f32 0.0, %v540
        %v542 = vpop.f32.mrb[0].mxu0
        %v543 = vpop.f32.mrb[0].mxu0
        %v544 = vpop.f32.mrb[0].mxu0
        %545 = vdwg.mxu0
        %v546 = vadd.f32 %v436, %v541
        %v547 = vld [vmem:[#allocation7] sm:$0x1]
        %v549 = vlaneseq
        %v550 = vshrl.u32 %v549, 7
        %v551 = vsub.s32 0, %v550
        %v552 = vrot.slane %v547, %v551
        %v554 = vadd.f32 %v546, %v552
        %v555 = vrot.slane %v554, 4
        %v556 = vadd.f32 %v554, %v555
        %v557 = vrot.slane %v556, 2
        %v558 = vadd.f32 %v556, %v557
        %v559 = vrot.slane %v558, 1
        %v560 = vadd.f32 %v558, %v559
        %v561 = vmul.f32 %v554, %v554
        %v562 = vrot.slane %v561, 4
        %v563 = vadd.f32 %v561, %v562
        %v564 = vrot.slane %v563, 2
        %v565 = vadd.f32 %v563, %v564
        %v566 = vrot.slane %v565, 1
        %v567 = vadd.f32 %v565, %v566
        %v568 = vmul.f32 %v560, 0.125
        %v569 = vmul.f32 %v567, 0.125
        %v570 = vmul.f32 %v568, %v568
        %v571 = vsub.f32 %v569, %v570
        %v572 = vmax.f32 %v571, 0.0
        %v573 = vsub.f32 %v554, %v568
        %v574 = vadd.f32 %v572, 1e-05
        %v575 = vrsqrt.pop %v574
        %v576 = vmul.f32 %v573, %v575
        %v577 = vmax.f32 %v576, 0.0
        %v578 = vpack.c.bf16 %v577, %v577
        %579 = vst [vmem:[%s213] sm:$0xf] %v578
        %s580 = sand.u32 %s97, 1
        %s581 = scalar_lea.sflag [#allocation4], %s580
        %s582 = sand.u32 %s97, 1
        %s583 = smul.addr %s582, 4
        %s584 = scalar_lea.vmem [#allocation8], %s583
        // Predicated region
        $region45: #{generator_forward.8} parent=31 // pred_check
          %p585 = pneg %p107
        $region46: #{generator_forward.8} parent=31 // pred_check_branch
          %587 = sbr.rel (%p585) target = $region48
        $region47: #{generator_forward.8} parent=31 // pred_region
          %s589 = ssub.s32 64, 64
          %590 = vsyncadd %s581, %s589
          %s591 = smul.addr %s21, 64
          %s592 = scalar_lea.hbm %s3, %s591
          %s594 = sshll.u32 %s584, 4
          %s595 = int_to_ptr.vmem [resolvable:$true] %s594
          %597 = dma.vmem_to_hbm [thread:$0]  %s595, 64, %s592, %s581
        $region48: #{generator_forward.8} parent=31 // pred_fallthru
          _
      $region32: #{generator_forward.8} parent=5 // pred_fallthru
        _
      %p598 = scmp.le.s32.totalorder 2, %s16
      // Predicated region
      $region49: #{generator_forward.8} parent=5 // pred_check
        %p599 = pneg %p598
      $region50: #{generator_forward.8} parent=5 // pred_check_branch
        %601 = sbr.rel (%p599) target = $region52
      $region51: #{generator_forward.8} parent=5 // pred_region
        %s602 = ssub.s32 %s16, 2
        // Predicated region
        $region53: #{generator_forward.8} parent=51 // pred_check
          %p603 = pneg %p113
        $region54: #{generator_forward.8} parent=51 // pred_check_branch
          %605 = sbr.rel (%p603) target = $region56
        $region55: #{generator_forward.8} parent=51 // pred_region
          %s606 = sand.u32 %s98, 1
          %s607 = scalar_lea.sflag [#allocation4], %s606
          %s608 = sand.u32 %s98, 1
          %s609 = smul.addr %s608, 4
          %s610 = scalar_lea.vmem [#allocation8], %s609
          %611 = dma.done %s607, 64
        $region56: #{generator_forward.8} parent=51 // pred_fallthru
          _
      $region52: #{generator_forward.8} parent=5 // pred_fallthru
        _
    $region6: #{generator_forward.8} parent=1 // loop_footer
      %s20 = sadd.s32 1, %s16
    $region7: #{generator_forward.8} parent=1 // loop_footer_branch
      %15 = sbr.rel target = $region3
    $region8: #{generator_forward.8} parent=1 // loop_exit
      _
    %612 = vsyncpa [#allocation3], 1
    %s613 = scalar_lea.sflag [#allocation3], 1
    %614 = vsyncpa %s613, 1
    %615 = vsyncpa [#allocation6], 1
    %616 = vsyncpa [#allocation4], 1
    %s617 = scalar_lea.sflag [#allocation4], 1
    %618 = vsyncpa %s617, 1

// kernel: generator_forward.7
$region0: #{generator_forward.7}
  #allocation0 [shape = 'u32[]', space=smem, size = 0x4, offset = 0x4, fixed_abs, tag = 'smem constant byte address 0x4 - core index']
  #allocation1 [shape = 'u32[144,128]{1,0:T(1,128)}', space=vmem, size = 0x12000, scoped, tag = 'internal scratch']
  %s0 = inlined_call_operand.hbm [shape: bf16[2,16,128], index: 0, kind: input, shape index: {}]
  %s1 = inlined_call_operand.hbm [shape: bf16[7,128,128], index: 1, kind: input, shape index: {}]
  %s2 = inlined_call_operand.hbm [shape: f32[1,128], index: 2, kind: input, shape index: {}]
  %s3 = inlined_call_operand.hbm [shape: bf16[2,16,128], index: 3, kind: output, shape index: {}]
  %s4 = sld [smem:[#allocation0]]
  $region57: #{generator_forward.7} parent=0
    _
  %s6 = ssub.s32 1, %s4
  %s7 = scalar_select 0, %s6, %s4
  $region1: #{generator_forward.7} parent=0
    #allocation2 [shape = 'u8[8192]{0}', space=vmem, size = 0x2000, scoped, tag = 'input window, operand 0']
    #allocation3 [shape = 's32[2]{0}', space=sflag, size = 0x8, scoped, tag = 'scoped memory for generator_forward.7']
    #allocation4 [shape = 's32[2]{0}', space=sflag, size = 0x8, scoped, tag = 'scoped memory for generator_forward.7']
    #allocation5 [shape = 'u8[229376]{0}', space=vmem, size = 0x38000, scoped, tag = 'input window, operand 1, single buffered']
    #allocation6 [shape = 's32[1]{0}', space=sflag, size = 0x4, scoped, tag = 'scoped memory for generator_forward.7']
    #allocation7 [shape = 'u8[512]{0}', space=vmem, size = 0x400, scoped, tag = 'input window, operand 2, single buffered']
    #allocation8 [shape = 'u8[8192]{0}', space=vmem, size = 0x2000, scoped, tag = 'output window, operand 0']
    %8 = vsyncpa [#allocation3], 0
    %s9 = scalar_lea.sflag [#allocation3], 1
    %10 = vsyncpa %s9, 0
    %11 = vsyncpa [#allocation6], 0
    %12 = vsyncpa [#allocation4], 0
    %s13 = scalar_lea.sflag [#allocation4], 1
    %14 = vsyncpa %s13, 0
    loop: start=0, step=1, limit=4
    $region2: #{generator_forward.7} parent=1 // loop_pre_header
      _
    $region3: #{generator_forward.7} parent=1 // loop_header
      %s16 = sphi 0, %s20
      %p17 = scmp.ge.s32.totalorder %s16, 4
      %s26 = sphi 0, %s28
      %s29 = sphi 0, %s26
      %s30 = sphi 0, %s29
      %s46 = sphi 0, %s30
      %s50 = sphi 0, %s50
      %s52 = sphi 0, %s50
      %s53 = sphi 0, %s52
      %s67 = sphi 0, %s53
      %s71 = sphi 0, %s71
      %s73 = sphi 0, %s71
      %s74 = sphi 0, %s73
      %s88 = sphi 0, %s74
      %s94 = sphi 0, %s96
      %s97 = sphi 0, %s94
      %s98 = sphi 0, %s97
      %s114 = sphi 0, %s98
    $region4: #{generator_forward.7} parent=1 // loop_header_branch
      %19 = sbr.rel (%p17) target = $region8
    $region5: #{generator_forward.7} parent=1 // loop_body
      %s21 = ssub.s32 %s16, 1
      %s22 = ssub.s32 %s16, 2
      %s23 = sadd.s32 %s16, 1
      %s24 = ssub.s32 %s16, %s23
      %p25 = scmp.eq.s32.totalorder %s24, 0
      %s27 = sadd.s32 %s26, 1
      %s28 = scalar_select %p25, %s26, %s27
      %p31 = pneg %p25
      %p32 = scmp.eq.s32.totalorder %s16, 1
      %p33 = por %p31, %p32
      %p34 = scmp.ne.s32.totalorder %s26, %s29
      %p35 = scmp.eq.s32.totalorder %s16, 0
      %p36 = por %p34, %p35
      %p37 = scmp.ne.s32.totalorder %s26, %s29
      %p38 = scmp.eq.s32.totalorder %s21, 1
      %p39 = por %p37, %p38
      %p40 = scmp.ne.s32.totalorder %s29, %s30
      %p41 = scmp.eq.s32.totalorder %s21, 0
      %p42 = por %p40, %p41
      %p43 = scmp.ne.s32.totalorder %s29, %s30
      %p44 = scmp.eq.s32.totalorder %s22, 1
      %p45 = por %p43, %p44
      %p47 = scmp.ne.s32.totalorder %s30, %s46
      %p48 = scmp.eq.s32.totalorder %s22, 0
      %p49 = por %p47, %p48
      %s51 = sadd.s32 %s50, 1
      %p54 = scmp.eq.s32.totalorder %s16, 1
      %p55 = scmp.ne.s32.totalorder %s50, %s52
      %p56 = scmp.eq.s32.totalorder %s16, 0
      %p57 = por %p55, %p56
      %p58 = scmp.ne.s32.totalorder %s50, %s52
      %p59 = scmp.eq.s32.totalorder %s21, 1
      %p60 = por %p58, %p59
      %p61 = scmp.ne.s32.totalorder %s52, %s53
      %p62 = scmp.eq.s32.totalorder %s21, 0
      %p63 = por %p61, %p62
      %p64 = scmp.ne.s32.totalorder %s52, %s53
      %p65 = scmp.eq.s32.totalorder %s22, 1
      %p66 = por %p64, %p65
      %p68 = scmp.ne.s32.totalorder %s53, %s67
      %p69 = scmp.eq.s32.totalorder %s22, 0
      %p70 = por %p68, %p69
      %s72 = sadd.s32 %s71, 1
      %p75 = scmp.eq.s32.totalorder %s16, 1
      %p76 = scmp.ne.s32.totalorder %s71, %s73
      %p77 = scmp.eq.s32.totalorder %s16, 0
      %p78 = por %p76, %p77
      %p79 = scmp.ne.s32.totalorder %s71, %s73
      %p80 = scmp.eq.s32.totalorder %s21, 1
      %p81 = por %p79, %p80
      %p82 = scmp.ne.s32.totalorder %s73, %s74
      %p83 = scmp.eq.s32.totalorder %s21, 0
      %p84 = por %p82, %p83
      %p85 = scmp.ne.s32.totalorder %s73, %s74
      %p86 = scmp.eq.s32.totalorder %s22, 1
      %p87 = por %p85, %p86
      %p89 = scmp.ne.s32.totalorder %s74, %s88
      %p90 = scmp.eq.s32.totalorder %s22, 0
      %p91 = por %p89, %p90
      %s92 = ssub.s32 %s16, %s23
      %p93 = scmp.eq.s32.totalorder %s92, 0
      %s95 = sadd.s32 %s94, 1
      %s96 = scalar_select %p93, %s94, %s95
      %p99 = pneg %p93
      %p100 = scmp.eq.s32.totalorder %s16, 1
      %p101 = por %p99, %p100
      %p102 = scmp.ne.s32.totalorder %s94, %s97
      %p103 = scmp.eq.s32.totalorder %s16, 0
      %p104 = por %p102, %p103
      %p105 = scmp.ne.s32.totalorder %s94, %s97
      %p106 = scmp.eq.s32.totalorder %s21, 1
      %p107 = por %p105, %p106
      %p108 = scmp.ne.s32.totalorder %s97, %s98
      %p109 = scmp.eq.s32.totalorder %s21, 0
      %p110 = por %p108, %p109
      %p111 = scmp.ne.s32.totalorder %s97, %s98
      %p112 = scmp.eq.s32.totalorder %s22, 1
      %p113 = por %p111, %p112
      %p115 = scmp.ne.s32.totalorder %s98, %s114
      %p116 = scmp.eq.s32.totalorder %s22, 0
      %p117 = por %p115, %p116
      %p118 = scmp.le.s32.totalorder 1, %s16
      %p119 = scmp.lt.s32.totalorder %s16, 3
      %p120 = pnand %p118, %p119
      %p121 = pneg %p120
      // Predicated region
      $region9: #{generator_forward.7} parent=5 // pred_check
        _
      $region10: #{generator_forward.7} parent=5 // pred_check_branch
        %123 = sbr.rel (%p120) target = $region12
      $region11: #{generator_forward.7} parent=5 // pred_region
        %s124 = ssub.s32 %s16, 1
        // Predicated region
        $region13: #{generator_forward.7} parent=11 // pred_check
          %p125 = pneg %p63
        $region14: #{generator_forward.7} parent=11 // pred_check_branch
          %127 = sbr.rel (%p125) target = $region16
        $region15: #{generator_forward.7} parent=11 // pred_region
          %s129 = ssub.s32 7168, 7168
          %130 = vsyncadd [#allocation6], %s129
          %s131 = sshll.u32 [#allocation5], 4
          %s132 = int_to_ptr.vmem [resolvable:$true] %s131
          %137 = dma.hbm_to_vmem [thread:$0]  %s1, 7168, %s132, [#allocation6], 64, 64, 4
        $region16: #{generator_forward.7} parent=11 // pred_fallthru
          _
        // Predicated region
        $region17: #{generator_forward.7} parent=11 // pred_check
          %p138 = pneg %p84
        $region18: #{generator_forward.7} parent=11 // pred_check_branch
          %140 = sbr.rel (%p138) target = $region20
        $region19: #{generator_forward.7} parent=11 // pred_region
          %s142 = ssub.s32 16, 16
          %143 = vsyncadd [#allocation6], %s142
          %s145 = sshll.u32 [#allocation7], 4
          %s146 = int_to_ptr.vmem [resolvable:$true] %s145
          %148 = dma.hbm_to_vmem [thread:$0]  %s2, 16, %s146, [#allocation6]
        $region20: #{generator_forward.7} parent=11 // pred_fallthru
          _
      $region12: #{generator_forward.7} parent=5 // pred_fallthru
        _
      %p149 = scmp.lt.s32.totalorder %s16, 2
      // Predicated region
      $region21: #{generator_forward.7} parent=5 // pred_check
        %p150 = pneg %p149
      $region22: #{generator_forward.7} parent=5 // pred_check_branch
        %152 = sbr.rel (%p150) target = $region24
      $region23: #{generator_forward.7} parent=5 // pred_region
        // Predicated region
        $region25: #{generator_forward.7} parent=23 // pred_check
          %p153 = pneg %p36
        $region26: #{generator_forward.7} parent=23 // pred_check_branch
          %155 = sbr.rel (%p153) target = $region28
        $region27: #{generator_forward.7} parent=23 // pred_region
          %s156 = sand.u32 %s26, 1
          %s157 = scalar_lea.sflag [#allocation3], %s156
          %s158 = sand.u32 %s26, 1
          %s159 = smul.addr %s158, 8
          %s160 = scalar_lea.vmem [#allocation2], %s159
          %s162 = ssub.s32 128, 128
          %163 = vsyncadd %s157, %s162
          %s164 = smul.addr %s16, 2
          %s165 = smul.addr %s164, 64
          %s166 = scalar_lea.hbm %s0, %s165
          %s167 = sshll.u32 %s160, 4
          %s168 = int_to_ptr.vmem [resolvable:$true] %s167
          %173 = dma.hbm_to_vmem [thread:$0]  %s166, 128, %s168, %s157, 64, 64, 4
        $region28: #{generator_forward.7} parent=23 // pred_fallthru
          _
      $region24: #{generator_forward.7} parent=5 // pred_fallthru
        _
      %p174 = scmp.le.s32.totalorder 1, %s16
      %p175 = scmp.lt.s32.totalorder %s16, 3
      %p176 = pnand %p174, %p175
      %p177 = pneg %p176
      // Predicated region
      $region29: #{generator_forward.7} parent=5 // pred_check
        _
      $region30: #{generator_forward.7} parent=5 // pred_check_branch
        %179 = sbr.rel (%p176) target = $region32
      $region31: #{generator_forward.7} parent=5 // pred_region
        %s180 = ssub.s32 %s16, 1
        %s181 = sand.u32 %s29, 1
        %s182 = scalar_lea.sflag [#allocation3], %s181
        %s183 = sand.u32 %s29, 1
        %s184 = smul.addr %s183, 8
        %s185 = scalar_lea.vmem [#allocation2], %s184
        // Predicated region
        $region33: #{generator_forward.7} parent=31 // pred_check
          %p186 = pneg %p42
        $region34: #{generator_forward.7} parent=31 // pred_check_branch
          %188 = sbr.rel (%p186) target = $region36
        $region35: #{generator_forward.7} parent=31 // pred_region
          %189 = dma.done %s182, 128
        $region36: #{generator_forward.7} parent=31 // pred_fallthru
          _
        // Predicated region
        $region37: #{generator_forward.7} parent=31 // pred_check
          %p190 = pneg %p63
        $region38: #{generator_forward.7} parent=31 // pred_check_branch
          %192 = sbr.rel (%p190) target = $region40
        $region39: #{generator_forward.7} parent=31 // pred_region
          %193 = dma.done [#allocation6], 7168
        $region40: #{generator_forward.7} parent=31 // pred_fallthru
          _
        // Predicated region
        $region41: #{generator_forward.7} parent=31 // pred_check
          %p194 = pneg %p84
        $region42: #{generator_forward.7} parent=31 // pred_check_branch
          %196 = sbr.rel (%p194) target = $region44
        $region43: #{generator_forward.7} parent=31 // pred_region
          %197 = dma.done [#allocation6], 16
        $region44: #{generator_forward.7} parent=31 // pred_fallthru
          _
        %s198 = sand.u32 %s29, 1
        %s199 = scalar_lea.sflag [#allocation3], %s198
        %s200 = sand.u32 %s29, 1
        %s201 = smul.addr %s200, 8
        %s202 = scalar_lea.vmem [#allocation2], %s201
        %p203 = pneg %p42
        %p204 = pneg %p39
        %p205 = pneg %p63
        %p206 = pneg %p60
        %p207 = pneg %p84
        %p208 = pneg %p81
        %p209 = pneg %p110
        %p210 = pneg %p107
        %s211 = sand.u32 %s97, 1
        %s212 = scalar_lea.sflag [#allocation4], %s211
        %s213 = sand.u32 %s97, 1
        %s214 = smul.addr %s213, 8
        %s215 = scalar_lea.vmem [#allocation8], %s214
        %v217 = vld [vmem:[%s185] sm:$0xf]
        %v218 = vld [vmem:[%s185 + $0x4] sm:$0xf]
        %v220 = vunpack.c.l.b16 %v217
        %v221 = vpack.c.b16 %v220, %v220
        %v223 = vshrl.u32 %v221, 16
        %v225 = vrot.slane %v223, 1
        %v227 = vshll.u32 %v221, 16
        %v229 = vrot.slane %v227, 1
        %v231 = vrot.slane %v223, 7
        %v233 = vunpack.c.l.b16 %v218
        %v234 = vpack.c.b16 %v233, %v220
        %v236 = vshrl.u32 %v234, 16
        %v238 = vrot.slane %v236, 6
        %v239 = vshll.u32 %v234, 16
        %v241 = vrot.slane %v239, 7
        %v242 = vor.u32 %v238, %v241
        %v244 = vpack.c.b16 %v233, %v233
        %v246 = vshll.u32 %v244, 16
        %v248 = vrot.slane %v246, 2
        %v250 = vshrl.u32 %v244, 16
        %vm253 = vcmask 1040384
        %vm254 = vsmask.f32 256
        %vm255 = vmand %vm253, %vm254
        %v256 = vsel %vm255, %v225, %v229
        %vm257 = vcmask 1040384
        %v260 = vsel %vm257, %v256, %v231
        %vm262 = vcmask 1041408
        %vm263 = vsmask.f32 1280
        %vm264 = vmand %vm262, %vm263
        %v265 = vsel %vm264, %v260, %v242
        %v266 = vsel %vm264, %v242, %v248
        %vm267 = vcmask 1041408
        %v270 = vsel %vm267, %v266, %v250
        %vm272 = vcmask 1042432
        %vm273 = vsmask.f32 2304
        %vm274 = vmand %vm272, %vm273
        %v275 = vsel %vm274, %v270, %v246
        %v276 = vld [vmem:[#allocation5] sm:$0xf]
        %v277 = vld [vmem:[#allocation5 + $0x4] sm:$0xf]
        %v278 = vld [vmem:[#allocation5 + $0x8] sm:$0xf]
        %v279 = vld [vmem:[#allocation5 + $0xc] sm:$0xf]
        %v280 = vld [vmem:[#allocation5 + $0x10] sm:$0xf]
        %v281 = vld [vmem:[#allocation5 + $0x14] sm:$0xf]
        %v282 = vld [vmem:[#allocation5 + $0x18] sm:$0xf]
        %v283 = vld [vmem:[#allocation5 + $0x1c] sm:$0xf]
        %v284 = vld [vmem:[#allocation5 + $0x20] sm:$0xf]
        %v285 = vld [vmem:[#allocation5 + $0x24] sm:$0xf]
        %v286 = vld [vmem:[#allocation5 + $0x28] sm:$0xf]
        %v287 = vld [vmem:[#allocation5 + $0x2c] sm:$0xf]
        %v288 = vld [vmem:[#allocation5 + $0x30] sm:$0xf]
        %v289 = vld [vmem:[#allocation5 + $0x34] sm:$0xf]
        %v290 = vld [vmem:[#allocation5 + $0x38] sm:$0xf]
        %v291 = vld [vmem:[#allocation5 + $0x3c] sm:$0xf]
        %s292 = scalar_lea.vmem [#allocation5], 64
        %v293 = vld [vmem:[%s292] sm:$0xf]
        %v294 = vld [vmem:[%s292 + $0x4] sm:$0xf]
        %v295 = vld [vmem:[%s292 + $0x8] sm:$0xf]
        %v296 = vld [vmem:[%s292 + $0xc] sm:$0xf]
        %v297 = vld [vmem:[%s292 + $0x10] sm:$0xf]
        %v298 = vld [vmem:[%s292 + $0x14] sm:$0xf]
        %v299 = vld [vmem:[%s292 + $0x18] sm:$0xf]
        %v300 = vld [vmem:[%s292 + $0x1c] sm:$0xf]
        %v301 = vld [vmem:[%s292 + $0x20] sm:$0xf]
        %v302 = vld [vmem:[%s292 + $0x24] sm:$0xf]
        %v303 = vld [vmem:[%s292 + $0x28] sm:$0xf]
        %v304 = vld [vmem:[%s292 + $0x2c] sm:$0xf]
        %v305 = vld [vmem:[%s292 + $0x30] sm:$0xf]
        %v306 = vld [vmem:[%s292 + $0x34] sm:$0xf]
        %v307 = vld [vmem:[%s292 + $0x38] sm:$0xf]
        %v308 = vld [vmem:[%s292 + $0x3c] sm:$0xf]
        %vm309 = vsmask.f32 7424
        %v311 = vshrl.u32 %v265, 16
        %v313 = vshll.u32 %v265, 16
        %v315 = vrot.slane %v313, 1
        %v316 = vor.u32 %v311, %v315
        %v318 = vshll.u32 %v275, 16
        %v320 = vrot.slane %v318, 1
        %v321 = vsel %vm309, %v316, %v320
        %v339 = vunpack.c.l.b16 %v293
        %v340 = vunpack.c.l.b16 %v294
        %v341 = vunpack.c.l.b16 %v295
        %v342 = vunpack.c.l.b16 %v296
        %v343 = vunpack.c.l.b16 %v297
        %v344 = vunpack.c.l.b16 %v298
        %v345 = vunpack.c.l.b16 %v299
        %v346 = vunpack.c.l.b16 %v300
        %v347 = vunpack.c.l.b16 %v301
        %v348 = vunpack.c.l.b16 %v302
        %v349 = vunpack.c.l.b16 %v303
        %v350 = vunpack.c.l.b16 %v304
        %v351 = vunpack.c.l.b16 %v305
        %v352 = vunpack.c.l.b16 %v306
        %v353 = vunpack.c.l.b16 %v307
        %v354 = vunpack.c.l.b16 %v308
        %v355 = vpack.c.b16 %v340, %v339
        %v356 = vpack.c.b16 %v342, %v341
        %v357 = vpack.c.b16 %v344, %v343
        %v358 = vpack.c.b16 %v346, %v345
        %v359 = vpack.c.b16 %v348, %v347
        %v360 = vpack.c.b16 %v350, %v349
        %v361 = vpack.c.b16 %v352, %v351
        %v362 = vpack.c.b16 %v354, %v353
        %371 = vmatprep.subr.bf16.mxu0 0
        %372 = vmatpush1.bf16.msra.mxu0 %v355
        %373 = vmatprep.subr.bf16.mxu0 0
        %374 = vmatpush1.bf16.msra.mxu0 %v356
        %375 = vmatprep.subr.bf16.mxu0 0
        %376 = vmatpush1.bf16.msra.mxu0 %v357
        %377 = vmatprep.subr.bf16.mxu0 0
        %378 = vmatpush1.bf16.msra.mxu0 %v358
        %379 = vmatprep.subr.bf16.mxu0 0
        %380 = vmatpush1.bf16.msra.mxu0 %v359
        %381 = vmatprep.subr.bf16.mxu0 0
        %382 = vmatpush1.bf16.msra.mxu0 %v360
        %383 = vmatprep.subr.bf16.mxu0 0
        %384 = vmatpush1.bf16.msra.mxu0 %v361
        %385 = vmatprep.subr.bf16.mxu0 0
        %386 = vmatpush1.bf16.msra.mxu0 %v362
        %387 = vmatprep.subr.bf16.mxu0 0
        %388 = vmatpush1.bf16.msra.mxu0 0
        %389 = vmatprep.subr.bf16.mxu0 0
        %390 = vmatpush1.bf16.msra.mxu0 0
        %391 = vmatprep.subr.bf16.mxu0 0
        %392 = vmatpush1.bf16.msra.mxu0 0
        %393 = vmatprep.subr.bf16.mxu0 0
        %394 = vmatpush1.bf16.msra.mxu0 0
        %395 = vmatprep.subr.bf16.mxu0 0
        %396 = vmatpush1.bf16.msra.mxu0 0
        %397 = vmatprep.subr.bf16.mxu0 0
        %398 = vmatpush1.bf16.msra.mxu0 0
        %399 = vmatprep.subr.bf16.mxu0 0
        %400 = vmatpush1.bf16.msra.mxu0 0
        %401 = vmatprep.subr.bf16.mxu0 0
        %402 = vmatpush1.bf16.msra.mxu0 0
        %403 = vmatprep.mubr.bf16.mxu0 0
        %404 = vmatmul.mubr.bf16.gmra.mrb[0].mxu0 %v321
        %v405 = vpop.f32.mrb[0].mxu0
        %v406 = vadd.f32 0.0, %v405
        %v407 = vpop.f32.mrb[0].mxu0
        %v408 = vpop.f32.mrb[0].mxu0
        %v409 = vadd.f32 0.0, %v408
        %v410 = vpop.f32.mrb[0].mxu0
        %411 = vdwg.mxu0
        %v428 = vunpack.c.l.b16 %v276
        %v429 = vunpack.c.l.b16 %v277
        %v430 = vunpack.c.l.b16 %v278
        %v431 = vunpack.c.l.b16 %v279
        %v432 = vunpack.c.l.b16 %v280
        %v433 = vunpack.c.l.b16 %v281
        %v434 = vunpack.c.l.b16 %v282
        %v435 = vunpack.c.l.b16 %v283
        %v436 = vunpack.c.l.b16 %v284
        %v437 = vunpack.c.l.b16 %v285
        %v438 = vunpack.c.l.b16 %v286
        %v439 = vunpack.c.l.b16 %v287
        %v440 = vunpack.c.l.b16 %v288
        %v441 = vunpack.c.l.b16 %v289
        %v442 = vunpack.c.l.b16 %v290
        %v443 = vunpack.c.l.b16 %v291
        %v444 = vpack.c.b16 %v429, %v428
        %v445 = vpack.c.b16 %v431, %v430
        %v446 = vpack.c.b16 %v433, %v432
        %v447 = vpack.c.b16 %v435, %v434
        %v448 = vpack.c.b16 %v437, %v436
        %v449 = vpack.c.b16 %v439, %v438
        %v450 = vpack.c.b16 %v441, %v440
        %v451 = vpack.c.b16 %v443, %v442
        %460 = vmatprep.subr.bf16.mxu0 0
        %461 = vmatpush1.bf16.msra.mxu0 %v444
        %462 = vmatprep.subr.bf16.mxu0 0
        %463 = vmatpush1.bf16.msra.mxu0 %v445
        %464 = vmatprep.subr.bf16.mxu0 0
        %465 = vmatpush1.bf16.msra.mxu0 %v446
        %466 = vmatprep.subr.bf16.mxu0 0
        %467 = vmatpush1.bf16.msra.mxu0 %v447
        %468 = vmatprep.subr.bf16.mxu0 0
        %469 = vmatpush1.bf16.msra.mxu0 %v448
        %470 = vmatprep.subr.bf16.mxu0 0
        %471 = vmatpush1.bf16.msra.mxu0 %v449
        %472 = vmatprep.subr.bf16.mxu0 0
        %473 = vmatpush1.bf16.msra.mxu0 %v450
        %474 = vmatprep.subr.bf16.mxu0 0
        %475 = vmatpush1.bf16.msra.mxu0 %v451
        %476 = vmatprep.subr.bf16.mxu0 0
        %477 = vmatpush1.bf16.msra.mxu0 0
        %478 = vmatprep.subr.bf16.mxu0 0
        %479 = vmatpush1.bf16.msra.mxu0 0
        %480 = vmatprep.subr.bf16.mxu0 0
        %481 = vmatpush1.bf16.msra.mxu0 0
        %482 = vmatprep.subr.bf16.mxu0 0
        %483 = vmatpush1.bf16.msra.mxu0 0
        %484 = vmatprep.subr.bf16.mxu0 0
        %485 = vmatpush1.bf16.msra.mxu0 0
        %486 = vmatprep.subr.bf16.mxu0 0
        %487 = vmatpush1.bf16.msra.mxu0 0
        %488 = vmatprep.subr.bf16.mxu0 0
        %489 = vmatpush1.bf16.msra.mxu0 0
        %490 = vmatprep.subr.bf16.mxu0 0
        %491 = vmatpush1.bf16.msra.mxu0 0
        %492 = vmatprep.mubr.bf16.mxu0 0
        %493 = vmatmul.mubr.bf16.gmra.mrb[0].mxu0 %v265
        %v494 = vpop.f32.mrb[0].mxu0
        %v495 = vadd.f32 %v406, %v494
        %v496 = vpop.f32.mrb[0].mxu0
        %v497 = vpop.f32.mrb[0].mxu0
        %v498 = vadd.f32 %v409, %v497
        %v499 = vpop.f32.mrb[0].mxu0
        %500 = vdwg.mxu0
        %s501 = scalar_lea.vmem [#allocation5], 128
        %v502 = vld [vmem:[%s501] sm:$0xf]
        %v503 = vld [vmem:[%s501 + $0x4] sm:$0xf]
        %v504 = vld [vmem:[%s501 + $0x8] sm:$0xf]
        %v505 = vld [vmem:[%s501 + $0xc] sm:$0xf]
        %v506 = vld [vmem:[%s501 + $0x10] sm:$0xf]
        %v507 = vld [vmem:[%s501 + $0x14] sm:$0xf]
        %v508 = vld [vmem:[%s501 + $0x18] sm:$0xf]
        %v509 = vld [vmem:[%s501 + $0x1c] sm:$0xf]
        %v510 = vld [vmem:[%s501 + $0x20] sm:$0xf]
        %v511 = vld [vmem:[%s501 + $0x24] sm:$0xf]
        %v512 = vld [vmem:[%s501 + $0x28] sm:$0xf]
        %v513 = vld [vmem:[%s501 + $0x2c] sm:$0xf]
        %v514 = vld [vmem:[%s501 + $0x30] sm:$0xf]
        %v515 = vld [vmem:[%s501 + $0x34] sm:$0xf]
        %v516 = vld [vmem:[%s501 + $0x38] sm:$0xf]
        %v517 = vld [vmem:[%s501 + $0x3c] sm:$0xf]
        %vm520 = vcmask 1046528
        %v521 = vrot.slane %v265, 1
        %v522 = vrot.slane %v275, 1
        %v523 = vsel %vm520, %v521, %v522
        %v541 = vunpack.c.l.b16 %v502
        %v542 = vunpack.c.l.b16 %v503
        %v543 = vunpack.c.l.b16 %v504
        %v544 = vunpack.c.l.b16 %v505
        %v545 = vunpack.c.l.b16 %v506
        %v546 = vunpack.c.l.b16 %v507
        %v547 = vunpack.c.l.b16 %v508
        %v548 = vunpack.c.l.b16 %v509
        %v549 = vunpack.c.l.b16 %v510
        %v550 = vunpack.c.l.b16 %v511
        %v551 = vunpack.c.l.b16 %v512
        %v552 = vunpack.c.l.b16 %v513
        %v553 = vunpack.c.l.b16 %v514
        %v554 = vunpack.c.l.b16 %v515
        %v555 = vunpack.c.l.b16 %v516
        %v556 = vunpack.c.l.b16 %v517
        %v557 = vpack.c.b16 %v542, %v541
        %v558 = vpack.c.b16 %v544, %v543
        %v559 = vpack.c.b16 %v546, %v545
        %v560 = vpack.c.b16 %v548, %v547
        %v561 = vpack.c.b16 %v550, %v549
        %v562 = vpack.c.b16 %v552, %v551
        %v563 = vpack.c.b16 %v554, %v553
        %v564 = vpack.c.b16 %v556, %v555
        %573 = vmatprep.subr.bf16.mxu0 0
        %574 = vmatpush1.bf16.msra.mxu0 %v557
        %575 = vmatprep.subr.bf16.mxu0 0
        %576 = vmatpush1.bf16.msra.mxu0 %v558
        %577 = vmatprep.subr.bf16.mxu0 0
        %578 = vmatpush1.bf16.msra.mxu0 %v559
        %579 = vmatprep.subr.bf16.mxu0 0
        %580 = vmatpush1.bf16.msra.mxu0 %v560
        %581 = vmatprep.subr.bf16.mxu0 0
        %582 = vmatpush1.bf16.msra.mxu0 %v561
        %583 = vmatprep.subr.bf16.mxu0 0
        %584 = vmatpush1.bf16.msra.mxu0 %v562
        %585 = vmatprep.subr.bf16.mxu0 0
        %586 = vmatpush1.bf16.msra.mxu0 %v563
        %587 = vmatprep.subr.bf16.mxu0 0
        %588 = vmatpush1.bf16.msra.mxu0 %v564
        %589 = vmatprep.subr.bf16.mxu0 0
        %590 = vmatpush1.bf16.msra.mxu0 0
        %591 = vmatprep.subr.bf16.mxu0 0
        %592 = vmatpush1.bf16.msra.mxu0 0
        %593 = vmatprep.subr.bf16.mxu0 0
        %594 = vmatpush1.bf16.msra.mxu0 0
        %595 = vmatprep.subr.bf16.mxu0 0
        %596 = vmatpush1.bf16.msra.mxu0 0
        %597 = vmatprep.subr.bf16.mxu0 0
        %598 = vmatpush1.bf16.msra.mxu0 0
        %599 = vmatprep.subr.bf16.mxu0 0
        %600 = vmatpush1.bf16.msra.mxu0 0
        %601 = vmatprep.subr.bf16.mxu0 0
        %602 = vmatpush1.bf16.msra.mxu0 0
        %603 = vmatprep.subr.bf16.mxu0 0
        %604 = vmatpush1.bf16.msra.mxu0 0
        %605 = vmatprep.mubr.bf16.mxu0 0
        %606 = vmatmul.mubr.bf16.gmra.mrb[0].mxu0 %v523
        %v607 = vpop.f32.mrb[0].mxu0
        %v608 = vadd.f32 0.0, %v607
        %v609 = vpop.f32.mrb[0].mxu0
        %v610 = vpop.f32.mrb[0].mxu0
        %v611 = vadd.f32 0.0, %v610
        %v612 = vpop.f32.mrb[0].mxu0
        %613 = vdwg.mxu0
        %v614 = vadd.f32 %v495, %v608
        %v615 = vadd.f32 %v498, %v611
        %s616 = scalar_lea.vmem [#allocation5], 192
        %v617 = vld [vmem:[%s616] sm:$0xf]
        %v618 = vld [vmem:[%s616 + $0x4] sm:$0xf]
        %v619 = vld [vmem:[%s616 + $0x8] sm:$0xf]
        %v620 = vld [vmem:[%s616 + $0xc] sm:$0xf]
        %v621 = vld [vmem:[%s616 + $0x10] sm:$0xf]
        %v622 = vld [vmem:[%s616 + $0x14] sm:$0xf]
        %v623 = vld [vmem:[%s616 + $0x18] sm:$0xf]
        %v624 = vld [vmem:[%s616 + $0x1c] sm:$0xf]
        %v625 = vld [vmem:[%s616 + $0x20] sm:$0xf]
        %v626 = vld [vmem:[%s616 + $0x24] sm:$0xf]
        %v627 = vld [vmem:[%s616 + $0x28] sm:$0xf]
        %v628 = vld [vmem:[%s616 + $0x2c] sm:$0xf]
        %v629 = vld [vmem:[%s616 + $0x30] sm:$0xf]
        %v630 = vld [vmem:[%s616 + $0x34] sm:$0xf]
        %v631 = vld [vmem:[%s616 + $0x38] sm:$0xf]
        %v632 = vld [vmem:[%s616 + $0x3c] sm:$0xf]
        %vm633 = vsmask.f32 6400
        %v634 = vrot.slane %v311, 1
        %v635 = vrot.slane %v313, 2
        %v636 = vor.u32 %v634, %v635
        %v637 = vshrl.u32 %v275, 16
        %v639 = vrot.slane %v637, 1
        %v640 = vrot.slane %v318, 2
        %v641 = vor.u32 %v639, %v640
        %v642 = vsel %vm633, %v636, %v641
        %v660 = vunpack.c.l.b16 %v617
        %v661 = vunpack.c.l.b16 %v618
        %v662 = vunpack.c.l.b16 %v619
        %v663 = vunpack.c.l.b16 %v620
        %v664 = vunpack.c.l.b16 %v621
        %v665 = vunpack.c.l.b16 %v622
        %v666 = vunpack.c.l.b16 %v623
        %v667 = vunpack.c.l.b16 %v624
        %v668 = vunpack.c.l.b16 %v625
        %v669 = vunpack.c.l.b16 %v626
        %v670 = vunpack.c.l.b16 %v627
        %v671 = vunpack.c.l.b16 %v628
        %v672 = vunpack.c.l.b16 %v629
        %v673 = vunpack.c.l.b16 %v630
        %v674 = vunpack.c.l.b16 %v631
        %v675 = vunpack.c.l.b16 %v632
        %v676 = vpack.c.b16 %v661, %v660
        %v677 = vpack.c.b16 %v663, %v662
        %v678 = vpack.c.b16 %v665, %v664
        %v679 = vpack.c.b16 %v667, %v666
        %v680 = vpack.c.b16 %v669, %v668
        %v681 = vpack.c.b16 %v671, %v670
        %v682 = vpack.c.b16 %v673, %v672
        %v683 = vpack.c.b16 %v675, %v674
        %692 = vmatprep.subr.bf16.mxu0 0
        %693 = vmatpush1.bf16.msra.mxu0 %v676
        %694 = vmatprep.subr.bf16.mxu0 0
        %695 = vmatpush1.bf16.msra.mxu0 %v677
        %696 = vmatprep.subr.bf16.mxu0 0
        %697 = vmatpush1.bf16.msra.mxu0 %v678
        %698 = vmatprep.subr.bf16.mxu0 0
        %699 = vmatpush1.bf16.msra.mxu0 %v679
        %700 = vmatprep.subr.bf16.mxu0 0
        %701 = vmatpush1.bf16.msra.mxu0 %v680
        %702 = vmatprep.subr.bf16.mxu0 0
        %703 = vmatpush1.bf16.msra.mxu0 %v681
        %704 = vmatprep.subr.bf16.mxu0 0
        %705 = vmatpush1.bf16.msra.mxu0 %v682
        %706 = vmatprep.subr.bf16.mxu0 0
        %707 = vmatpush1.bf16.msra.mxu0 %v683
        %708 = vmatprep.subr.bf16.mxu0 0
        %709 = vmatpush1.bf16.msra.mxu0 0
        %710 = vmatprep.subr.bf16.mxu0 0
        %711 = vmatpush1.bf16.msra.mxu0 0
        %712 = vmatprep.subr.bf16.mxu0 0
        %713 = vmatpush1.bf16.msra.mxu0 0
        %714 = vmatprep.subr.bf16.mxu0 0
        %715 = vmatpush1.bf16.msra.mxu0 0
        %716 = vmatprep.subr.bf16.mxu0 0
        %717 = vmatpush1.bf16.msra.mxu0 0
        %718 = vmatprep.subr.bf16.mxu0 0
        %719 = vmatpush1.bf16.msra.mxu0 0
        %720 = vmatprep.subr.bf16.mxu0 0
        %721 = vmatpush1.bf16.msra.mxu0 0
        %722 = vmatprep.subr.bf16.mxu0 0
        %723 = vmatpush1.bf16.msra.mxu0 0
        %724 = vmatprep.mubr.bf16.mxu0 0
        %725 = vmatmul.mubr.bf16.gmra.mrb[0].mxu0 %v642
        %v726 = vpop.f32.mrb[0].mxu0
        %v727 = vadd.f32 0.0, %v726
        %v728 = vpop.f32.mrb[0].mxu0
        %v729 = vpop.f32.mrb[0].mxu0
        %v730 = vadd.f32 0.0, %v729
        %v731 = vpop.f32.mrb[0].mxu0
        %732 = vdwg.mxu0
        %v733 = vadd.f32 %v614, %v727
        %v734 = vadd.f32 %v615, %v730
        %s735 = scalar_lea.vmem [#allocation5], 256
        %v736 = vld [vmem:[%s735] sm:$0xf]
        %v737 = vld [vmem:[%s735 + $0x4] sm:$0xf]
        %v738 = vld [vmem:[%s735 + $0x8] sm:$0xf]
        %v739 = vld [vmem:[%s735 + $0xc] sm:$0xf]
        %v740 = vld [vmem:[%s735 + $0x10] sm:$0xf]
        %v741 = vld [vmem:[%s735 + $0x14] sm:$0xf]
        %v742 = vld [vmem:[%s735 + $0x18] sm:$0xf]
        %v743 = vld [vmem:[%s735 + $0x1c] sm:$0xf]
        %v744 = vld [vmem:[%s735 + $0x20] sm:$0xf]
        %v745 = vld [vmem:[%s735 + $0x24] sm:$0xf]
        %v746 = vld [vmem:[%s735 + $0x28] sm:$0xf]
        %v747 = vld [vmem:[%s735 + $0x2c] sm:$0xf]
        %v748 = vld [vmem:[%s735 + $0x30] sm:$0xf]
        %v749 = vld [vmem:[%s735 + $0x34] sm:$0xf]
        %v750 = vld [vmem:[%s735 + $0x38] sm:$0xf]
        %v751 = vld [vmem:[%s735 + $0x3c] sm:$0xf]
        %vm752 = vcmask 1045504
        %v753 = vrot.slane %v265, 2
        %v754 = vrot.slane %v275, 2
        %v755 = vsel %vm752, %v753, %v754
        %v773 = vunpack.c.l.b16 %v736
        %v774 = vunpack.c.l.b16 %v737
        %v775 = vunpack.c.l.b16 %v738
        %v776 = vunpack.c.l.b16 %v739
        %v777 = vunpack.c.l.b16 %v740
        %v778 = vunpack.c.l.b16 %v741
        %v779 = vunpack.c.l.b16 %v742
        %v780 = vunpack.c.l.b16 %v743
        %v781 = vunpack.c.l.b16 %v744
        %v782 = vunpack.c.l.b16 %v745
        %v783 = vunpack.c.l.b16 %v746
        %v784 = vunpack.c.l.b16 %v747
        %v785 = vunpack.c.l.b16 %v748
        %v786 = vunpack.c.l.b16 %v749
        %v787 = vunpack.c.l.b16 %v750
        %v788 = vunpack.c.l.b16 %v751
        %v789 = vpack.c.b16 %v774, %v773
        %v790 = vpack.c.b16 %v776, %v775
        %v791 = vpack.c.b16 %v778, %v777
        %v792 = vpack.c.b16 %v780, %v779
        %v793 = vpack.c.b16 %v782, %v781
        %v794 = vpack.c.b16 %v784, %v783
        %v795 = vpack.c.b16 %v786, %v785
        %v796 = vpack.c.b16 %v788, %v787
        %805 = vmatprep.subr.bf16.mxu0 0
        %806 = vmatpush1.bf16.msra.mxu0 %v789
        %807 = vmatprep.subr.bf16.mxu0 0
        %808 = vmatpush1.bf16.msra.mxu0 %v790
        %809 = vmatprep.subr.bf16.mxu0 0
        %810 = vmatpush1.bf16.msra.mxu0 %v791
        %811 = vmatprep.subr.bf16.mxu0 0
        %812 = vmatpush1.bf16.msra.mxu0 %v792
        %813 = vmatprep.subr.bf16.mxu0 0
        %814 = vmatpush1.bf16.msra.mxu0 %v793
        %815 = vmatprep.subr.bf16.mxu0 0
        %816 = vmatpush1.bf16.msra.mxu0 %v794
        %817 = vmatprep.subr.bf16.mxu0 0
        %818 = vmatpush1.bf16.msra.mxu0 %v795
        %819 = vmatprep.subr.bf16.mxu0 0
        %820 = vmatpush1.bf16.msra.mxu0 %v796
        %821 = vmatprep.subr.bf16.mxu0 0
        %822 = vmatpush1.bf16.msra.mxu0 0
        %823 = vmatprep.subr.bf16.mxu0 0
        %824 = vmatpush1.bf16.msra.mxu0 0
        %825 = vmatprep.subr.bf16.mxu0 0
        %826 = vmatpush1.bf16.msra.mxu0 0
        %827 = vmatprep.subr.bf16.mxu0 0
        %828 = vmatpush1.bf16.msra.mxu0 0
        %829 = vmatprep.subr.bf16.mxu0 0
        %830 = vmatpush1.bf16.msra.mxu0 0
        %831 = vmatprep.subr.bf16.mxu0 0
        %832 = vmatpush1.bf16.msra.mxu0 0
        %833 = vmatprep.subr.bf16.mxu0 0
        %834 = vmatpush1.bf16.msra.mxu0 0
        %835 = vmatprep.subr.bf16.mxu0 0
        %836 = vmatpush1.bf16.msra.mxu0 0
        %837 = vmatprep.mubr.bf16.mxu0 0
        %838 = vmatmul.mubr.bf16.gmra.mrb[0].mxu0 %v755
        %v839 = vpop.f32.mrb[0].mxu0
        %v840 = vadd.f32 0.0, %v839
        %v841 = vpop.f32.mrb[0].mxu0
        %v842 = vpop.f32.mrb[0].mxu0
        %v843 = vadd.f32 0.0, %v842
        %v844 = vpop.f32.mrb[0].mxu0
        %845 = vdwg.mxu0
        %v846 = vadd.f32 %v733, %v840
        %v847 = vadd.f32 %v734, %v843
        %s848 = scalar_lea.vmem [#allocation5], 320
        %v849 = vld [vmem:[%s848] sm:$0xf]
        %v850 = vld [vmem:[%s848 + $0x4] sm:$0xf]
        %v851 = vld [vmem:[%s848 + $0x8] sm:$0xf]
        %v852 = vld [vmem:[%s848 + $0xc] sm:$0xf]
        %v853 = vld [vmem:[%s848 + $0x10] sm:$0xf]
        %v854 = vld [vmem:[%s848 + $0x14] sm:$0xf]
        %v855 = vld [vmem:[%s848 + $0x18] sm:$0xf]
        %v856 = vld [vmem:[%s848 + $0x1c] sm:$0xf]
        %v857 = vld [vmem:[%s848 + $0x20] sm:$0xf]
        %v858 = vld [vmem:[%s848 + $0x24] sm:$0xf]
        %v859 = vld [vmem:[%s848 + $0x28] sm:$0xf]
        %v860 = vld [vmem:[%s848 + $0x2c] sm:$0xf]
        %v861 = vld [vmem:[%s848 + $0x30] sm:$0xf]
        %v862 = vld [vmem:[%s848 + $0x34] sm:$0xf]
        %v863 = vld [vmem:[%s848 + $0x38] sm:$0xf]
        %v864 = vld [vmem:[%s848 + $0x3c] sm:$0xf]
        %vm865 = vsmask.f32 5376
        %v866 = vrot.slane %v311, 2
        %v867 = vrot.slane %v313, 3
        %v868 = vor.u32 %v866, %v867
        %v869 = vrot.slane %v637, 2
        %v870 = vrot.slane %v318, 3
        %v871 = vor.u32 %v869, %v870
        %v872 = vsel %vm865, %v868, %v871
        %v890 = vunpack.c.l.b16 %v849
        %v891 = vunpack.c.l.b16 %v850
        %v892 = vunpack.c.l.b16 %v851
        %v893 = vunpack.c.l.b16 %v852
        %v894 = vunpack.c.l.b16 %v853
        %v895 = vunpack.c.l.b16 %v854
        %v896 = vunpack.c.l.b16 %v855
        %v897 = vunpack.c.l.b16 %v856
        %v898 = vunpack.c.l.b16 %v857
        %v899 = vunpack.c.l.b16 %v858
        %v900 = vunpack.c.l.b16 %v859
        %v901 = vunpack.c.l.b16 %v860
        %v902 = vunpack.c.l.b16 %v861
        %v903 = vunpack.c.l.b16 %v862
        %v904 = vunpack.c.l.b16 %v863
        %v905 = vunpack.c.l.b16 %v864
        %v906 = vpack.c.b16 %v891, %v890
        %v907 = vpack.c.b16 %v893, %v892
        %v908 = vpack.c.b16 %v895, %v894
        %v909 = vpack.c.b16 %v897, %v896
        %v910 = vpack.c.b16 %v899, %v898
        %v911 = vpack.c.b16 %v901, %v900
        %v912 = vpack.c.b16 %v903, %v902
        %v913 = vpack.c.b16 %v905, %v904
        %922 = vmatprep.subr.bf16.mxu0 0
        %923 = vmatpush1.bf16.msra.mxu0 %v906
        %924 = vmatprep.subr.bf16.mxu0 0
        %925 = vmatpush1.bf16.msra.mxu0 %v907
        %926 = vmatprep.subr.bf16.mxu0 0
        %927 = vmatpush1.bf16.msra.mxu0 %v908
        %928 = vmatprep.subr.bf16.mxu0 0
        %929 = vmatpush1.bf16.msra.mxu0 %v909
        %930 = vmatprep.subr.bf16.mxu0 0
        %931 = vmatpush1.bf16.msra.mxu0 %v910
        %932 = vmatprep.subr.bf16.mxu0 0
        %933 = vmatpush1.bf16.msra.mxu0 %v911
        %934 = vmatprep.subr.bf16.mxu0 0
        %935 = vmatpush1.bf16.msra.mxu0 %v912
        %936 = vmatprep.subr.bf16.mxu0 0
        %937 = vmatpush1.bf16.msra.mxu0 %v913
        %938 = vmatprep.subr.bf16.mxu0 0
        %939 = vmatpush1.bf16.msra.mxu0 0
        %940 = vmatprep.subr.bf16.mxu0 0
        %941 = vmatpush1.bf16.msra.mxu0 0
        %942 = vmatprep.subr.bf16.mxu0 0
        %943 = vmatpush1.bf16.msra.mxu0 0
        %944 = vmatprep.subr.bf16.mxu0 0
        %945 = vmatpush1.bf16.msra.mxu0 0
        %946 = vmatprep.subr.bf16.mxu0 0
        %947 = vmatpush1.bf16.msra.mxu0 0
        %948 = vmatprep.subr.bf16.mxu0 0
        %949 = vmatpush1.bf16.msra.mxu0 0
        %950 = vmatprep.subr.bf16.mxu0 0
        %951 = vmatpush1.bf16.msra.mxu0 0
        %952 = vmatprep.subr.bf16.mxu0 0
        %953 = vmatpush1.bf16.msra.mxu0 0
        %954 = vmatprep.mubr.bf16.mxu0 0
        %955 = vmatmul.mubr.bf16.gmra.mrb[0].mxu0 %v872
        %v956 = vpop.f32.mrb[0].mxu0
        %v957 = vadd.f32 0.0, %v956
        %v958 = vpop.f32.mrb[0].mxu0
        %v959 = vpop.f32.mrb[0].mxu0
        %v960 = vadd.f32 0.0, %v959
        %v961 = vpop.f32.mrb[0].mxu0
        %962 = vdwg.mxu0
        %v963 = vadd.f32 %v846, %v957
        %v964 = vadd.f32 %v847, %v960
        %s965 = scalar_lea.vmem [#allocation5], 384
        %v966 = vld [vmem:[%s965] sm:$0xf]
        %v967 = vld [vmem:[%s965 + $0x4] sm:$0xf]
        %v968 = vld [vmem:[%s965 + $0x8] sm:$0xf]
        %v969 = vld [vmem:[%s965 + $0xc] sm:$0xf]
        %v970 = vld [vmem:[%s965 + $0x10] sm:$0xf]
        %v971 = vld [vmem:[%s965 + $0x14] sm:$0xf]
        %v972 = vld [vmem:[%s965 + $0x18] sm:$0xf]
        %v973 = vld [vmem:[%s965 + $0x1c] sm:$0xf]
        %v974 = vld [vmem:[%s965 + $0x20] sm:$0xf]
        %v975 = vld [vmem:[%s965 + $0x24] sm:$0xf]
        %v976 = vld [vmem:[%s965 + $0x28] sm:$0xf]
        %v977 = vld [vmem:[%s965 + $0x2c] sm:$0xf]
        %v978 = vld [vmem:[%s965 + $0x30] sm:$0xf]
        %v979 = vld [vmem:[%s965 + $0x34] sm:$0xf]
        %v980 = vld [vmem:[%s965 + $0x38] sm:$0xf]
        %v981 = vld [vmem:[%s965 + $0x3c] sm:$0xf]
        %vm982 = vcmask 1044480
        %v983 = vrot.slane %v265, 3
        %v984 = vrot.slane %v275, 3
        %v985 = vsel %vm982, %v983, %v984
        %v1003 = vunpack.c.l.b16 %v966
        %v1004 = vunpack.c.l.b16 %v967
        %v1005 = vunpack.c.l.b16 %v968
        %v1006 = vunpack.c.l.b16 %v969
        %v1007 = vunpack.c.l.b16 %v970
        %v1008 = vunpack.c.l.b16 %v971
        %v1009 = vunpack.c.l.b16 %v972
        %v1010 = vunpack.c.l.b16 %v973
        %v1011 = vunpack.c.l.b16 %v974
        %v1012 = vunpack.c.l.b16 %v975
        %v1013 = vunpack.c.l.b16 %v976
        %v1014 = vunpack.c.l.b16 %v977
        %v1015 = vunpack.c.l.b16 %v978
        %v1016 = vunpack.c.l.b16 %v979
        %v1017 = vunpack.c.l.b16 %v980
        %v1018 = vunpack.c.l.b16 %v981
        %v1019 = vpack.c.b16 %v1004, %v1003
        %v1020 = vpack.c.b16 %v1006, %v1005
        %v1021 = vpack.c.b16 %v1008, %v1007
        %v1022 = vpack.c.b16 %v1010, %v1009
        %v1023 = vpack.c.b16 %v1012, %v1011
        %v1024 = vpack.c.b16 %v1014, %v1013
        %v1025 = vpack.c.b16 %v1016, %v1015
        %v1026 = vpack.c.b16 %v1018, %v1017
        %1035 = vmatprep.subr.bf16.mxu0 0
        %1036 = vmatpush1.bf16.msra.mxu0 %v1019
        %1037 = vmatprep.subr.bf16.mxu0 0
        %1038 = vmatpush1.bf16.msra.mxu0 %v1020
        %1039 = vmatprep.subr.bf16.mxu0 0
        %1040 = vmatpush1.bf16.msra.mxu0 %v1021
        %1041 = vmatprep.subr.bf16.mxu0 0
        %1042 = vmatpush1.bf16.msra.mxu0 %v1022
        %1043 = vmatprep.subr.bf16.mxu0 0
        %1044 = vmatpush1.bf16.msra.mxu0 %v1023
        %1045 = vmatprep.subr.bf16.mxu0 0
        %1046 = vmatpush1.bf16.msra.mxu0 %v1024
        %1047 = vmatprep.subr.bf16.mxu0 0
        %1048 = vmatpush1.bf16.msra.mxu0 %v1025
        %1049 = vmatprep.subr.bf16.mxu0 0
        %1050 = vmatpush1.bf16.msra.mxu0 %v1026
        %1051 = vmatprep.subr.bf16.mxu0 0
        %1052 = vmatpush1.bf16.msra.mxu0 0
        %1053 = vmatprep.subr.bf16.mxu0 0
        %1054 = vmatpush1.bf16.msra.mxu0 0
        %1055 = vmatprep.subr.bf16.mxu0 0
        %1056 = vmatpush1.bf16.msra.mxu0 0
        %1057 = vmatprep.subr.bf16.mxu0 0
        %1058 = vmatpush1.bf16.msra.mxu0 0
        %1059 = vmatprep.subr.bf16.mxu0 0
        %1060 = vmatpush1.bf16.msra.mxu0 0
        %1061 = vmatprep.subr.bf16.mxu0 0
        %1062 = vmatpush1.bf16.msra.mxu0 0
        %1063 = vmatprep.subr.bf16.mxu0 0
        %1064 = vmatpush1.bf16.msra.mxu0 0
        %1065 = vmatprep.subr.bf16.mxu0 0
        %1066 = vmatpush1.bf16.msra.mxu0 0
        %1067 = vmatprep.mubr.bf16.mxu0 0
        %1068 = vmatmul.mubr.bf16.gmra.mrb[0].mxu0 %v985
        %v1069 = vpop.f32.mrb[0].mxu0
        %v1070 = vadd.f32 0.0, %v1069
        %v1071 = vpop.f32.mrb[0].mxu0
        %v1072 = vpop.f32.mrb[0].mxu0
        %v1073 = vadd.f32 0.0, %v1072
        %v1074 = vpop.f32.mrb[0].mxu0
        %1075 = vdwg.mxu0
        %v1076 = vadd.f32 %v963, %v1070
        %v1077 = vadd.f32 %v964, %v1073
        %v1078 = vld [vmem:[#allocation7] sm:$0x1]
        %v1080 = vlaneseq
        %v1081 = vshrl.u32 %v1080, 7
        %v1082 = vsub.s32 0, %v1081
        %v1083 = vrot.slane %v1078, %v1082
        %v1085 = vadd.f32 %v1076, %v1083
        %v1086 = vadd.f32 %v1077, %v1083
        %v1087 = vadd.f32 %v1085, %v1086
        %v1088 = vrot.slane %v1087, 4
        %v1089 = vadd.f32 %v1087, %v1088
        %v1090 = vrot.slane %v1089, 2
        %v1091 = vadd.f32 %v1089, %v1090
        %v1092 = vrot.slane %v1091, 1
        %v1093 = vadd.f32 %v1091, %v1092
        %v1094 = vmul.f32 %v1085, %v1085
        %v1095 = vmul.f32 %v1086, %v1086
        %v1096 = vadd.f32 %v1094, %v1095
        %v1097 = vrot.slane %v1096, 4
        %v1098 = vadd.f32 %v1096, %v1097
        %v1099 = vrot.slane %v1098, 2
        %v1100 = vadd.f32 %v1098, %v1099
        %v1101 = vrot.slane %v1100, 1
        %v1102 = vadd.f32 %v1100, %v1101
        %v1103 = vmul.f32 %v1093, 0.0625
        %v1104 = vmul.f32 %v1102, 0.0625
        %v1105 = vmul.f32 %v1103, %v1103
        %v1106 = vsub.f32 %v1104, %v1105
        %v1107 = vmax.f32 %v1106, 0.0
        %v1108 = vsub.f32 %v1085, %v1103
        %v1109 = vsub.f32 %v1086, %v1103
        %v1110 = vadd.f32 %v1107, 1e-05
        %v1111 = vrsqrt.pop %v1110
        %v1112 = vmul.f32 %v1108, %v1111
        %v1113 = vmul.f32 %v1109, %v1111
        %v1114 = vmax.f32 %v1112, 0.0
        %v1115 = vmax.f32 %v1113, 0.0
        %v1116 = vpack.c.bf16 %v1115, %v1114
        %v1118 = vunpack.c.l.b16 %v1116
        %v1119 = vunpack.c.h.b16 %v1116
        %v1120 = vpack.c.b16 %v1118, %v1118
        %v1121 = vpack.c.b16 %v1119, %v1119
        %1124 = vst [vmem:[%s215] sm:$0xf] %v1120
        %1125 = vst [vmem:[%s215 + $0x4] sm:$0xf] %v1121
        %s1126 = sand.u32 %s97, 1
        %s1127 = scalar_lea.sflag [#allocation4], %s1126
        %s1128 = sand.u32 %s97, 1
        %s1129 = smul.addr %s1128, 8
        %s1130 = scalar_lea.vmem [#allocation8], %s1129
        // Predicated region
        $region45: #{generator_forward.7} parent=31 // pred_check
          %p1131 = pneg %p107
        $region46: #{generator_forward.7} parent=31 // pred_check_branch
          %1133 = sbr.rel (%p1131) target = $region48
        $region47: #{generator_forward.7} parent=31 // pred_region
          %s1135 = ssub.s32 128, 128
          %1136 = vsyncadd %s1127, %s1135
          %s1137 = smul.addr %s21, 2
          %s1138 = smul.addr %s1137, 64
          %s1139 = scalar_lea.hbm %s3, %s1138
          %s1140 = sshll.u32 %s1130, 4
          %s1141 = int_to_ptr.vmem [resolvable:$true] %s1140
          %1146 = dma.vmem_to_hbm [thread:$0]  %s1141, 128, %s1139, %s1127, 64, 64, 4
        $region48: #{generator_forward.7} parent=31 // pred_fallthru
          _
      $region32: #{generator_forward.7} parent=5 // pred_fallthru
        _
      %p1147 = scmp.le.s32.totalorder 2, %s16
      // Predicated region
      $region49: #{generator_forward.7} parent=5 // pred_check
        %p1148 = pneg %p1147
      $region50: #{generator_forward.7} parent=5 // pred_check_branch
        %1150 = sbr.rel (%p1148) target = $region52
      $region51: #{generator_forward.7} parent=5 // pred_region
        %s1151 = ssub.s32 %s16, 2
        // Predicated region
        $region53: #{generator_forward.7} parent=51 // pred_check
          %p1152 = pneg %p113
        $region54: #{generator_forward.7} parent=51 // pred_check_branch
          %1154 = sbr.rel (%p1152) target = $region56
        $region55: #{generator_forward.7} parent=51 // pred_region
          %s1155 = sand.u32 %s98, 1
          %s1156 = scalar_lea.sflag [#allocation4], %s1155
          %s1157 = sand.u32 %s98, 1
          %s1158 = smul.addr %s1157, 8
          %s1159 = scalar_lea.vmem [#allocation8], %s1158
          %1160 = dma.done %s1156, 128
        $region56: #{generator_forward.7} parent=51 // pred_fallthru
          _
      $region52: #{generator_forward.7} parent=5 // pred_fallthru
        _
    $region6: #{generator_forward.7} parent=1 // loop_footer
      %s20 = sadd.s32 1, %s16
    $region7: #{generator_forward.7} parent=1 // loop_footer_branch
      %15 = sbr.rel target = $region3
    $region8: #{generator_forward.7} parent=1 // loop_exit
      _
    %1161 = vsyncpa [#allocation3], 1
    %s1162 = scalar_lea.sflag [#allocation3], 1
    %1163 = vsyncpa %s1162, 1
    %1164 = vsyncpa [#allocation6], 1
    %1165 = vsyncpa [#allocation4], 1
    %s1166 = scalar_lea.sflag [#allocation4], 1
    %1167 = vsyncpa %s1166, 1

// kernel: generator_forward.10
$region0: #{generator_forward.10}
  #allocation0 [shape = 'u32[]', space=smem, size = 0x4, offset = 0x4, fixed_abs, tag = 'smem constant byte address 0x4 - core index']
  #allocation1 [shape = 'u32[144,128]{1,0:T(1,128)}', space=vmem, size = 0x12000, scoped, tag = 'internal scratch']
  %s0 = inlined_call_operand.hbm [shape: bf16[2,4,128], index: 0, kind: input, shape index: {}]
  %s1 = inlined_call_operand.hbm [shape: bf16[2,3,128,128], index: 1, kind: input, shape index: {}]
  %s2 = inlined_call_operand.hbm [shape: f32[2,1,128], index: 2, kind: input, shape index: {}]
  %s3 = inlined_call_operand.hbm [shape: bf16[2,3,128,128], index: 3, kind: input, shape index: {}]
  %s4 = inlined_call_operand.hbm [shape: f32[2,1,128], index: 4, kind: input, shape index: {}]
  %s5 = inlined_call_operand.hbm [shape: bf16[2,4,128], index: 5, kind: output, shape index: {}]
  %s6 = sld [smem:[#allocation0]]
  $region77: #{generator_forward.10} parent=0
    _
  %s8 = ssub.s32 1, %s6
  %s9 = scalar_select 0, %s8, %s6
  $region1: #{generator_forward.10} parent=0
    #allocation2 [shape = 'u8[2048]{0}', space=vmem, size = 0x800, scoped, tag = 'input window, operand 0']
    #allocation3 [shape = 's32[2]{0}', space=sflag, size = 0x8, scoped, tag = 'scoped memory for generator_forward.10']
    #allocation4 [shape = 's32[2]{0}', space=sflag, size = 0x8, scoped, tag = 'scoped memory for generator_forward.10']
    #allocation5 [shape = 'u8[196608]{0}', space=vmem, size = 0x30000, scoped, tag = 'input window, operand 1']
    #allocation6 [shape = 's32[2]{0}', space=sflag, size = 0x8, scoped, tag = 'scoped memory for generator_forward.10']
    #allocation7 [shape = 'u8[1024]{0}', space=vmem, size = 0x400, scoped, tag = 'input window, operand 2']
    #allocation8 [shape = 'u8[196608]{0}', space=vmem, size = 0x30000, scoped, tag = 'input window, operand 3']
    #allocation9 [shape = 's32[2]{0}', space=sflag, size = 0x8, scoped, tag = 'scoped memory for generator_forward.10']
    #allocation10 [shape = 'u8[1024]{0}', space=vmem, size = 0x400, scoped, tag = 'input window, operand 4']
    #allocation11 [shape = 'u8[2048]{0}', space=vmem, size = 0x800, scoped, tag = 'output window, operand 0']
    %10 = vsyncpa [#allocation3], 0
    %s11 = scalar_lea.sflag [#allocation3], 1
    %12 = vsyncpa %s11, 0
    %13 = vsyncpa [#allocation6], 0
    %s14 = scalar_lea.sflag [#allocation6], 1
    %15 = vsyncpa %s14, 0
    %16 = vsyncpa [#allocation9], 0
    %s17 = scalar_lea.sflag [#allocation9], 1
    %18 = vsyncpa %s17, 0
    %19 = vsyncpa [#allocation4], 0
    %s20 = scalar_lea.sflag [#allocation4], 1
    %21 = vsyncpa %s20, 0
    loop: start=0, step=1, limit=6
    $region2: #{generator_forward.10} parent=1 // loop_pre_header
      _
    $region3: #{generator_forward.10} parent=1 // loop_header
      %s23 = sphi 0, %s27
      %p24 = scmp.ge.s32.totalorder %s23, 6
      %s30 = sphi 0, %s42
      %s31 = sphi 0, %s38
      %s32 = sphi 0, %s30
      %s33 = sphi 0, %s31
      %s34 = sphi 0, %s32
      %s35 = sphi 0, %s33
      %s45 = sphi 0, %s47
      %s48 = sphi 0, %s45
      %s49 = sphi 0, %s48
      %s65 = sphi 0, %s49
      %s71 = sphi 0, %s73
      %s74 = sphi 0, %s71
      %s75 = sphi 0, %s74
      %s91 = sphi 0, %s75
      %s97 = sphi 0, %s99
      %s100 = sphi 0, %s97
      %s101 = sphi 0, %s100
      %s117 = sphi 0, %s101
      %s123 = sphi 0, %s125
      %s126 = sphi 0, %s123
      %s127 = sphi 0, %s126
      %s143 = sphi 0, %s127
      %s149 = sphi 0, %s151
      %s152 = sphi 0, %s149
      %s153 = sphi 0, %s152
      %s169 = sphi 0, %s153
      %s175 = sphi 0, %s177
      %s178 = sphi 0, %s175
      %s179 = sphi 0, %s178
      %s195 = sphi 0, %s179
    $region4: #{generator_forward.10} parent=1 // loop_header_branch
      %26 = sbr.rel (%p24) target = $region8
    $region5: #{generator_forward.10} parent=1 // loop_body
      %s28 = ssub.s32 %s23, 1
      %s29 = ssub.s32 %s23, 2
      %s36 = sadd.s32 1, %s31
      %p37 = scmp.ge.s32.totalorder %s36, 2
      %s38 = scalar_select %p37, 0, %s36
      %s39 = sadd.s32 1, %s30
      %s40 = scalar_select %p37, %s39, %s30
      %p41 = scmp.ge.s32.totalorder %s40, 2
      %s42 = scalar_select %p41, 0, %s40
      %s43 = ssub.s32 %s30, %s42
      %p44 = scmp.eq.s32.totalorder %s43, 0
      %s46 = sadd.s32 %s45, 1
      %s47 = scalar_select %p44, %s45, %s46
      %p50 = pneg %p44
      %p51 = scmp.eq.s32.totalorder %s23, 3
      %p52 = por %p50, %p51
      %p53 = scmp.ne.s32.totalorder %s45, %s48
      %p54 = scmp.eq.s32.totalorder %s23, 0
      %p55 = por %p53, %p54
      %p56 = scmp.ne.s32.totalorder %s45, %s48
      %p57 = scmp.eq.s32.totalorder %s28, 3
      %p58 = por %p56, %p57
      %p59 = scmp.ne.s32.totalorder %s48, %s49
      %p60 = scmp.eq.s32.totalorder %s28, 0
      %p61 = por %p59, %p60
      %p62 = scmp.ne.s32.totalorder %s48, %s49
      %p63 = scmp.eq.s32.totalorder %s29, 3
      %p64 = por %p62, %p63
      %p66 = scmp.ne.s32.totalorder %s49, %s65
      %p67 = scmp.eq.s32.totalorder %s29, 0
      %p68 = por %p66, %p67
      %s69 = ssub.s32 %s31, %s38
      %p70 = scmp.eq.s32.totalorder %s69, 0
      %s72 = sadd.s32 %s71, 1
      %s73 = scalar_select %p70, %s71, %s72
      %p76 = pneg %p70
      %p77 = scmp.eq.s32.totalorder %s23, 3
      %p78 = por %p76, %p77
      %p79 = scmp.ne.s32.totalorder %s71, %s74
      %p80 = scmp.eq.s32.totalorder %s23, 0
      %p81 = por %p79, %p80
      %p82 = scmp.ne.s32.totalorder %s71, %s74
      %p83 = scmp.eq.s32.totalorder %s28, 3
      %p84 = por %p82, %p83
      %p85 = scmp.ne.s32.totalorder %s74, %s75
      %p86 = scmp.eq.s32.totalorder %s28, 0
      %p87 = por %p85, %p86
      %p88 = scmp.ne.s32.totalorder %s74, %s75
      %p89 = scmp.eq.s32.totalorder %s29, 3
      %p90 = por %p88, %p89
      %p92 = scmp.ne.s32.totalorder %s75, %s91
      %p93 = scmp.eq.s32.totalorder %s29, 0
      %p94 = por %p92, %p93
      %s95 = ssub.s32 %s31, %s38
      %p96 = scmp.eq.s32.totalorder %s95, 0
      %s98 = sadd.s32 %s97, 1
      %s99 = scalar_select %p96, %s97, %s98
      %p102 = pneg %p96
      %p103 = scmp.eq.s32.totalorder %s23, 3
      %p104 = por %p102, %p103
      %p105 = scmp.ne.s32.totalorder %s97, %s100
      %p106 = scmp.eq.s32.totalorder %s23, 0
      %p107 = por %p105, %p106
      %p108 = scmp.ne.s32.totalorder %s97, %s100
      %p109 = scmp.eq.s32.totalorder %s28, 3
      %p110 = por %p108, %p109
      %p111 = scmp.ne.s32.totalorder %s100, %s101
      %p112 = scmp.eq.s32.totalorder %s28, 0
      %p113 = por %p111, %p112
      %p114 = scmp.ne.s32.totalorder %s100, %s101
      %p115 = scmp.eq.s32.totalorder %s29, 3
      %p116 = por %p114, %p115
      %p118 = scmp.ne.s32.totalorder %s101, %s117
      %p119 = scmp.eq.s32.totalorder %s29, 0
      %p120 = por %p118, %p119
      %s121 = ssub.s32 %s31, %s38
      %p122 = scmp.eq.s32.totalorder %s121, 0
      %s124 = sadd.s32 %s123, 1
      %s125 = scalar_select %p122, %s123, %s124
      %p128 = pneg %p122
      %p129 = scmp.eq.s32.totalorder %s23, 3
      %p130 = por %p128, %p129
      %p131 = scmp.ne.s32.totalorder %s123, %s126
      %p132 = scmp.eq.s32.totalorder %s23, 0
      %p133 = por %p131, %p132
      %p134 = scmp.ne.s32.totalorder %s123, %s126
      %p135 = scmp.eq.s32.totalorder %s28, 3
      %p136 = por %p134, %p135
      %p137 = scmp.ne.s32.totalorder %s126, %s127
      %p138 = scmp.eq.s32.totalorder %s28, 0
      %p139 = por %p137, %p138
      %p140 = scmp.ne.s32.totalorder %s126, %s127
      %p141 = scmp.eq.s32.totalorder %s29, 3
      %p142 = por %p140, %p141
      %p144 = scmp.ne.s32.totalorder %s127, %s143
      %p145 = scmp.eq.s32.totalorder %s29, 0
      %p146 = por %p144, %p145
      %s147 = ssub.s32 %s31, %s38
      %p148 = scmp.eq.s32.totalorder %s147, 0
      %s150 = sadd.s32 %s149, 1
      %s151 = scalar_select %p148, %s149, %s150
      %p154 = pneg %p148
      %p155 = scmp.eq.s32.totalorder %s23, 3
      %p156 = por %p154, %p155
      %p157 = scmp.ne.s32.totalorder %s149, %s152
      %p158 = scmp.eq.s32.totalorder %s23, 0
      %p159 = por %p157, %p158
      %p160 = scmp.ne.s32.totalorder %s149, %s152
      %p161 = scmp.eq.s32.totalorder %s28, 3
      %p162 = por %p160, %p161
      %p163 = scmp.ne.s32.totalorder %s152, %s153
      %p164 = scmp.eq.s32.totalorder %s28, 0
      %p165 = por %p163, %p164
      %p166 = scmp.ne.s32.totalorder %s152, %s153
      %p167 = scmp.eq.s32.totalorder %s29, 3
      %p168 = por %p166, %p167
      %p170 = scmp.ne.s32.totalorder %s153, %s169
      %p171 = scmp.eq.s32.totalorder %s29, 0
      %p172 = por %p170, %p171
      %s173 = ssub.s32 %s30, %s42
      %p174 = scmp.eq.s32.totalorder %s173, 0
      %s176 = sadd.s32 %s175, 1
      %s177 = scalar_select %p174, %s175, %s176
      %p180 = pneg %p174
      %p181 = scmp.eq.s32.totalorder %s23, 3
      %p182 = por %p180, %p181
      %p183 = scmp.ne.s32.totalorder %s175, %s178
      %p184 = scmp.eq.s32.totalorder %s23, 0
      %p185 = por %p183, %p184
      %p186 = scmp.ne.s32.totalorder %s175, %s178
      %p187 = scmp.eq.s32.totalorder %s28, 3
      %p188 = por %p186, %p187
      %p189 = scmp.ne.s32.totalorder %s178, %s179
      %p190 = scmp.eq.s32.totalorder %s28, 0
      %p191 = por %p189, %p190
      %p192 = scmp.ne.s32.totalorder %s178, %s179
      %p193 = scmp.eq.s32.totalorder %s29, 3
      %p194 = por %p192, %p193
      %p196 = scmp.ne.s32.totalorder %s179, %s195
      %p197 = scmp.eq.s32.totalorder %s29, 0
      %p198 = por %p196, %p197
      %p199 = scmp.le.s32.totalorder 1, %s23
      %p200 = scmp.lt.s32.totalorder %s23, 5
      %p201 = pnand %p199, %p200
      %p202 = pneg %p201
      // Predicated region
      $region9: #{generator_forward.10} parent=5 // pred_check
        _
      $region10: #{generator_forward.10} parent=5 // pred_check_branch
        %204 = sbr.rel (%p201) target = $region12
      $region11: #{generator_forward.10} parent=5 // pred_region
        %s205 = ssub.s32 %s23, 1
      $region12: #{generator_forward.10} parent=5 // pred_fallthru
        _
      %p206 = scmp.lt.s32.totalorder %s23, 4
      // Predicated region
      $region13: #{generator_forward.10} parent=5 // pred_check
        %p207 = pneg %p206
      $region14: #{generator_forward.10} parent=5 // pred_check_branch
        %209 = sbr.rel (%p207) target = $region16
      $region15: #{generator_forward.10} parent=5 // pred_region
        // Predicated region
        $region17: #{generator_forward.10} parent=15 // pred_check
          %p210 = pneg %p55
        $region18: #{generator_forward.10} parent=15 // pred_check_branch
          %212 = sbr.rel (%p210) target = $region20
        $region19: #{generator_forward.10} parent=15 // pred_region
          %s213 = sand.u32 %s45, 1
          %s214 = scalar_lea.sflag [#allocation3], %s213
          %s215 = sand.u32 %s45, 1
          %s216 = smul.addr %s215, 2
          %s217 = scalar_lea.vmem [#allocation2], %s216
          %s219 = ssub.s32 32, 32
          %220 = vsyncadd %s214, %s219
          %s221 = smul.addr %s30, 32
          %s222 = scalar_lea.hbm %s0, %s221
          %s224 = sshll.u32 %s217, 4
          %s225 = int_to_ptr.vmem [resolvable:$true] %s224
          %227 = dma.hbm_to_vmem [thread:$0]  %s222, 32, %s225, %s214
        $region20: #{generator_forward.10} parent=15 // pred_fallthru
          _
        // Predicated region
        $region21: #{generator_forward.10} parent=15 // pred_check
          %p228 = pneg %p81
        $region22: #{generator_forward.10} parent=15 // pred_check_branch
          %230 = sbr.rel (%p228) target = $region24
        $region23: #{generator_forward.10} parent=15 // pred_region
          %s231 = sand.u32 %s23, 1
          %s232 = scalar_lea.sflag [#allocation6], %s231
          %s233 = sand.u32 %s71, 1
          %s234 = smul.addr %s233, 192
          %s235 = scalar_lea.vmem [#allocation5], %s234
          %s237 = ssub.s32 3072, 3072
          %238 = vsyncadd %s232, %s237
          %s239 = smul.addr %s31, 48
          %s240 = smul.addr %s239, 64
          %s241 = scalar_lea.hbm %s1, %s240
          %s242 = sshll.u32 %s235, 4
          %s243 = int_to_ptr.vmem [resolvable:$true] %s242
          %248 = dma.hbm_to_vmem [thread:$0]  %s241, 3072, %s243, %s232, 64, 64, 4
        $region24: #{generator_forward.10} parent=15 // pred_fallthru
          _
        // Predicated region
        $region25: #{generator_forward.10} parent=15 // pred_check
          %p249 = pneg %p107
        $region26: #{generator_forward.10} parent=15 // pred_check_branch
          %251 = sbr.rel (%p249) target = $region28
        $region27: #{generator_forward.10} parent=15 // pred_region
          %s252 = sand.u32 %s23, 1
          %s253 = scalar_lea.sflag [#allocation6], %s252
          %s254 = sand.u32 %s97, 1
          %s255 = scalar_lea.vmem [#allocation7], %s254
          %s257 = ssub.s32 16, 16
          %258 = vsyncadd %s253, %s257
          %s259 = smul.addr %s31, 16
          %s260 = scalar_lea.hbm %s2, %s259
          %s262 = sshll.u32 %s255, 4
          %s263 = int_to_ptr.vmem [resolvable:$true] %s262
          %265 = dma.hbm_to_vmem [thread:$0]  %s260, 16, %s263, %s253
        $region28: #{generator_forward.10} parent=15 // pred_fallthru
          _
        // Predicated region
        $region29: #{generator_forward.10} parent=15 // pred_check
          %p266 = pneg %p133
        $region30: #{generator_forward.10} parent=15 // pred_check_branch
          %268 = sbr.rel (%p266) target = $region32
        $region31: #{generator_forward.10} parent=15 // pred_region
          %s269 = sand.u32 %s23, 1
          %s270 = scalar_lea.sflag [#allocation9], %s269
          %s271 = sand.u32 %s123, 1
          %s272 = smul.addr %s271, 192
          %s273 = scalar_lea.vmem [#allocation8], %s272
          %s275 = ssub.s32 3072, 3072
          %276 = vsyncadd %s270, %s275
          %s277 = smul.addr %s31, 48
          %s278 = smul.addr %s277, 64
          %s279 = scalar_lea.hbm %s3, %s278
          %s280 = sshll.u32 %s273, 4
          %s281 = int_to_ptr.vmem [resolvable:$true] %s280
          %286 = dma.hbm_to_vmem [thread:$0]  %s279, 3072, %s281, %s270, 64, 64, 4
        $region32: #{generator_forward.10} parent=15 // pred_fallthru
          _
        // Predicated region
        $region33: #{generator_forward.10} parent=15 // pred_check
          %p287 = pneg %p159
        $region34: #{generator_forward.10} parent=15 // pred_check_branch
          %289 = sbr.rel (%p287) target = $region36
        $region35: #{generator_forward.10} parent=15 // pred_region
          %s290 = sand.u32 %s23, 1
          %s291 = scalar_lea.sflag [#allocation9], %s290
          %s292 = sand.u32 %s149, 1
          %s293 = scalar_lea.vmem [#allocation10], %s292
          %s295 = ssub.s32 16, 16
          %296 = vsyncadd %s291, %s295
          %s297 = smul.addr %s31, 16
          %s298 = scalar_lea.hbm %s4, %s297
          %s300 = sshll.u32 %s293, 4
          %s301 = int_to_ptr.vmem [resolvable:$true] %s300
          %303 = dma.hbm_to_vmem [thread:$0]  %s298, 16, %s301, %s291
        $region36: #{generator_forward.10} parent=15 // pred_fallthru
          _
      $region16: #{generator_forward.10} parent=5 // pred_fallthru
        _
      %p304 = scmp.le.s32.totalorder 1, %s23
      %p305 = scmp.lt.s32.totalorder %s23, 5
      %p306 = pnand %p304, %p305
      %p307 = pneg %p306
      // Predicated region
      $region37: #{generator_forward.10} parent=5 // pred_check
        _
      $region38: #{generator_forward.10} parent=5 // pred_check_branch
        %309 = sbr.rel (%p306) target = $region40
      $region39: #{generator_forward.10} parent=5 // pred_region
        %s310 = ssub.s32 %s23, 1
        %s311 = sand.u32 %s48, 1
        %s312 = scalar_lea.sflag [#allocation3], %s311
        %s313 = sand.u32 %s48, 1
        %s314 = smul.addr %s313, 2
        %s315 = scalar_lea.vmem [#allocation2], %s314
        // Predicated region
        $region41: #{generator_forward.10} parent=39 // pred_check
          %p316 = pneg %p61
        $region42: #{generator_forward.10} parent=39 // pred_check_branch
          %318 = sbr.rel (%p316) target = $region44
        $region43: #{generator_forward.10} parent=39 // pred_region
          %319 = dma.done %s312, 32
        $region44: #{generator_forward.10} parent=39 // pred_fallthru
          _
        %s320 = sand.u32 %s28, 1
        %s321 = scalar_lea.sflag [#allocation6], %s320
        %s322 = sand.u32 %s74, 1
        %s323 = smul.addr %s322, 192
        %s324 = scalar_lea.vmem [#allocation5], %s323
        // Predicated region
        $region45: #{generator_forward.10} parent=39 // pred_check
          %p325 = pneg %p87
        $region46: #{generator_forward.10} parent=39 // pred_check_branch
          %327 = sbr.rel (%p325) target = $region48
        $region47: #{generator_forward.10} parent=39 // pred_region
          %328 = dma.done %s321, 3072
        $region48: #{generator_forward.10} parent=39 // pred_fallthru
          _
        %s329 = sand.u32 %s28, 1
        %s330 = scalar_lea.sflag [#allocation6], %s329
        %s331 = sand.u32 %s100, 1
        %s332 = scalar_lea.vmem [#allocation7], %s331
        // Predicated region
        $region49: #{generator_forward.10} parent=39 // pred_check
          %p333 = pneg %p113
        $region50: #{generator_forward.10} parent=39 // pred_check_branch
          %335 = sbr.rel (%p333) target = $region52
        $region51: #{generator_forward.10} parent=39 // pred_region
          %336 = dma.done %s330, 16
        $region52: #{generator_forward.10} parent=39 // pred_fallthru
          _
        %s337 = sand.u32 %s28, 1
        %s338 = scalar_lea.sflag [#allocation9], %s337
        %s339 = sand.u32 %s126, 1
        %s340 = smul.addr %s339, 192
        %s341 = scalar_lea.vmem [#allocation8], %s340
        // Predicated region
        $region53: #{generator_forward.10} parent=39 // pred_check
          %p342 = pneg %p139
        $region54: #{generator_forward.10} parent=39 // pred_check_branch
          %344 = sbr.rel (%p342) target = $region56
        $region55: #{generator_forward.10} parent=39 // pred_region
          %345 = dma.done %s338, 3072
        $region56: #{generator_forward.10} parent=39 // pred_fallthru
          _
        %s346 = sand.u32 %s28, 1
        %s347 = scalar_lea.sflag [#allocation9], %s346
        %s348 = sand.u32 %s152, 1
        %s349 = scalar_lea.vmem [#allocation10], %s348
        // Predicated region
        $region57: #{generator_forward.10} parent=39 // pred_check
          %p350 = pneg %p165
        $region58: #{generator_forward.10} parent=39 // pred_check_branch
          %352 = sbr.rel (%p350) target = $region60
        $region59: #{generator_forward.10} parent=39 // pred_region
          %353 = dma.done %s347, 16
        $region60: #{generator_forward.10} parent=39 // pred_fallthru
          _
        %s354 = sand.u32 %s48, 1
        %s355 = scalar_lea.sflag [#allocation3], %s354
        %s356 = sand.u32 %s48, 1
        %s357 = smul.addr %s356, 2
        %s358 = scalar_lea.vmem [#allocation2], %s357
        %p359 = pneg %p61
        %p360 = pneg %p58
        %s361 = sand.u32 %s28, 1
        %s362 = scalar_lea.sflag [#allocation6], %s361
        %s363 = sand.u32 %s74, 1
        %s364 = smul.addr %s363, 192
        %s365 = scalar_lea.vmem [#allocation5], %s364
        %p366 = pneg %p87
        %p367 = pneg %p84
        %s368 = sand.u32 %s28, 1
        %s369 = scalar_lea.sflag [#allocation6], %s368
        %s370 = sand.u32 %s100, 1
        %s371 = scalar_lea.vmem [#allocation7], %s370
        %p372 = pneg %p113
        %p373 = pneg %p110
        %s374 = sand.u32 %s28, 1
        %s375 = scalar_lea.sflag [#allocation9], %s374
        %s376 = sand.u32 %s126, 1
        %s377 = smul.addr %s376, 192
        %s378 = scalar_lea.vmem [#allocation8], %s377
        %p379 = pneg %p139
        %p380 = pneg %p136
        %s381 = sand.u32 %s28, 1
        %s382 = scalar_lea.sflag [#allocation9], %s381
        %s383 = sand.u32 %s152, 1
        %s384 = scalar_lea.vmem [#allocation10], %s383
        %p385 = pneg %p165
        %p386 = pneg %p162
        %p387 = pneg %p191
        %p388 = pneg %p188
        %s389 = sand.u32 %s178, 1
        %s390 = scalar_lea.sflag [#allocation4], %s389
        %s391 = sand.u32 %s178, 1
        %s392 = smul.addr %s391, 2
        %s393 = scalar_lea.vmem [#allocation11], %s392
        %p395 = scmp.eq.s32.totalorder %s33, 0
        // Predicated region
        $region61: #{generator_forward.10} parent=39 // pred_check
          %p396 = pneg %p395
        $region62: #{generator_forward.10} parent=39 // pred_check_branch
          %398 = sbr.rel (%p396) target = $region64
        $region63: #{generator_forward.10} parent=39 // pred_region
          %v399 = vld [vmem:[%s315] sm:$0x3]
          %400 = vst [vmem:[%s393] sm:$0x3] %v399
        $region64: #{generator_forward.10} parent=39 // pred_fallthru
          _
        %v401 = vld [vmem:[%s393] sm:$0x3]
        %v404 = vunpack.c.l.s4 1983009808
        %v405 = vunpack.c.0.s8 %v404
        %v406 = vlaneseq
        %v407 = vshrl.u32 %v406, 7
        %v408 = vsub.s32 %v405, %v407
        %v409 = vrot.slane %v401, %v408
        %v411 = vshrl.u32 %v409, 16
        %v414 = vrot.slane %v411, 7
        %v415 = vshll.u32 %v409, 16
        %v417 = vor.u32 %v414, %v415
        %v419 = vrot.slane %v415, 7
        %vm421 = vcmask 1040384
        %vm422 = vsmask.f32 256
        %vm423 = vmand %vm421, %vm422
        %v424 = vsel %vm423, %v411, %v417
        %vm425 = vcmask 1042432
        %vm426 = vsmask.f32 2304
        %vm427 = vmand %vm425, %vm426
        %v428 = vsel %vm427, %v424, %v419
        %v429 = vld [vmem:[%s324] sm:$0xf]
        %v430 = vld [vmem:[%s324 + $0x4] sm:$0xf]
        %v431 = vld [vmem:[%s324 + $0x8] sm:$0xf]
        %v432 = vld [vmem:[%s324 + $0xc] sm:$0xf]
        %v433 = vld [vmem:[%s324 + $0x10] sm:$0xf]
        %v434 = vld [vmem:[%s324 + $0x14] sm:$0xf]
        %v435 = vld [vmem:[%s324 + $0x18] sm:$0xf]
        %v436 = vld [vmem:[%s324 + $0x1c] sm:$0xf]
        %v437 = vld [vmem:[%s324 + $0x20] sm:$0xf]
        %v438 = vld [vmem:[%s324 + $0x24] sm:$0xf]
        %v439 = vld [vmem:[%s324 + $0x28] sm:$0xf]
        %v440 = vld [vmem:[%s324 + $0x2c] sm:$0xf]
        %v441 = vld [vmem:[%s324 + $0x30] sm:$0xf]
        %v442 = vld [vmem:[%s324 + $0x34] sm:$0xf]
        %v443 = vld [vmem:[%s324 + $0x38] sm:$0xf]
        %v444 = vld [vmem:[%s324 + $0x3c] sm:$0xf]
        %s445 = scalar_lea.vmem %s324, 64 [#allocation5]
        %v446 = vld [vmem:[%s445] sm:$0xf]
        %v447 = vld [vmem:[%s445 + $0x4] sm:$0xf]
        %v448 = vld [vmem:[%s445 + $0x8] sm:$0xf]
        %v449 = vld [vmem:[%s445 + $0xc] sm:$0xf]
        %v450 = vld [vmem:[%s445 + $0x10] sm:$0xf]
        %v451 = vld [vmem:[%s445 + $0x14] sm:$0xf]
        %v452 = vld [vmem:[%s445 + $0x18] sm:$0xf]
        %v453 = vld [vmem:[%s445 + $0x1c] sm:$0xf]
        %v454 = vld [vmem:[%s445 + $0x20] sm:$0xf]
        %v455 = vld [vmem:[%s445 + $0x24] sm:$0xf]
        %v456 = vld [vmem:[%s445 + $0x28] sm:$0xf]
        %v457 = vld [vmem:[%s445 + $0x2c] sm:$0xf]
        %v458 = vld [vmem:[%s445 + $0x30] sm:$0xf]
        %v459 = vld [vmem:[%s445 + $0x34] sm:$0xf]
        %v460 = vld [vmem:[%s445 + $0x38] sm:$0xf]
        %v461 = vld [vmem:[%s445 + $0x3c] sm:$0xf]
        %v463 = vshrl.u32 %v428, 16
        %v465 = vshll.u32 %v428, 16
        %v467 = vrot.slane %v465, 1
        %v468 = vor.u32 %v463, %v467
        %v486 = vunpack.c.l.b16 %v446
        %v487 = vunpack.c.l.b16 %v447
        %v488 = vunpack.c.l.b16 %v448
        %v489 = vunpack.c.l.b16 %v449
        %v490 = vunpack.c.l.b16 %v450
        %v491 = vunpack.c.l.b16 %v451
        %v492 = vunpack.c.l.b16 %v452
        %v493 = vunpack.c.l.b16 %v453
        %v494 = vunpack.c.l.b16 %v454
        %v495 = vunpack.c.l.b16 %v455
        %v496 = vunpack.c.l.b16 %v456
        %v497 = vunpack.c.l.b16 %v457
        %v498 = vunpack.c.l.b16 %v458
        %v499 = vunpack.c.l.b16 %v459
        %v500 = vunpack.c.l.b16 %v460
        %v501 = vunpack.c.l.b16 %v461
        %v502 = vpack.c.b16 %v487, %v486
        %v503 = vpack.c.b16 %v489, %v488
        %v504 = vpack.c.b16 %v491, %v490
        %v505 = vpack.c.b16 %v493, %v492
        %v506 = vpack.c.b16 %v495, %v494
        %v507 = vpack.c.b16 %v497, %v496
        %v508 = vpack.c.b16 %v499, %v498
        %v509 = vpack.c.b16 %v501, %v500
        %518 = vmatprep.subr.bf16.mxu0 0
        %519 = vmatpush1.bf16.msra.mxu0 %v502
        %520 = vmatprep.subr.bf16.mxu0 0
        %521 = vmatpush1.bf16.msra.mxu0 %v503
        %522 = vmatprep.subr.bf16.mxu0 0
        %523 = vmatpush1.bf16.msra.mxu0 %v504
        %524 = vmatprep.subr.bf16.mxu0 0
        %525 = vmatpush1.bf16.msra.mxu0 %v505
        %526 = vmatprep.subr.bf16.mxu0 0
        %527 = vmatpush1.bf16.msra.mxu0 %v506
        %528 = vmatprep.subr.bf16.mxu0 0
        %529 = vmatpush1.bf16.msra.mxu0 %v507
        %530 = vmatprep.subr.bf16.mxu0 0
        %531 = vmatpush1.bf16.msra.mxu0 %v508
        %532 = vmatprep.subr.bf16.mxu0 0
        %533 = vmatpush1.bf16.msra.mxu0 %v509
        %534 = vmatprep.subr.bf16.mxu0 0
        %535 = vmatpush1.bf16.msra.mxu0 0
        %536 = vmatprep.subr.bf16.mxu0 0
        %537 = vmatpush1.bf16.msra.mxu0 0
        %538 = vmatprep.subr.bf16.mxu0 0
        %539 = vmatpush1.bf16.msra.mxu0 0
        %540 = vmatprep.subr.bf16.mxu0 0
        %541 = vmatpush1.bf16.msra.mxu0 0
        %542 = vmatprep.subr.bf16.mxu0 0
        %543 = vmatpush1.bf16.msra.mxu0 0
        %544 = vmatprep.subr.bf16.mxu0 0
        %545 = vmatpush1.bf16.msra.mxu0 0
        %546 = vmatprep.subr.bf16.mxu0 0
        %547 = vmatpush1.bf16.msra.mxu0 0
        %548 = vmatprep.subr.bf16.mxu0 0
        %549 = vmatpush1.bf16.msra.mxu0 0
        %550 = vmatprep.mubr.bf16.mxu0 0
        %551 = vmatmul.mubr.bf16.gmra.mrb[0].mxu0 %v468
        %v552 = vpop.f32.mrb[0].mxu0
        %v553 = vadd.f32 0.0, %v552
        %v554 = vpop.f32.mrb[0].mxu0
        %v555 = vpop.f32.mrb[0].mxu0
        %v556 = vpop.f32.mrb[0].mxu0
        %557 = vdwg.mxu0
        %v574 = vunpack.c.l.b16 %v429
        %v575 = vunpack.c.l.b16 %v430
        %v576 = vunpack.c.l.b16 %v431
        %v577 = vunpack.c.l.b16 %v432
        %v578 = vunpack.c.l.b16 %v433
        %v579 = vunpack.c.l.b16 %v434
        %v580 = vunpack.c.l.b16 %v435
        %v581 = vunpack.c.l.b16 %v436
        %v582 = vunpack.c.l.b16 %v437
        %v583 = vunpack.c.l.b16 %v438
        %v584 = vunpack.c.l.b16 %v439
        %v585 = vunpack.c.l.b16 %v440
        %v586 = vunpack.c.l.b16 %v441
        %v587 = vunpack.c.l.b16 %v442
        %v588 = vunpack.c.l.b16 %v443
        %v589 = vunpack.c.l.b16 %v444
        %v590 = vpack.c.b16 %v575, %v574
        %v591 = vpack.c.b16 %v577, %v576
        %v592 = vpack.c.b16 %v579, %v578
        %v593 = vpack.c.b16 %v581, %v580
        %v594 = vpack.c.b16 %v583, %v582
        %v595 = vpack.c.b16 %v585, %v584
        %v596 = vpack.c.b16 %v587, %v586
        %v597 = vpack.c.b16 %v589, %v588
        %606 = vmatprep.subr.bf16.mxu0 0
        %607 = vmatpush1.bf16.msra.mxu0 %v590
        %608 = vmatprep.subr.bf16.mxu0 0
        %609 = vmatpush1.bf16.msra.mxu0 %v591
        %610 = vmatprep.subr.bf16.mxu0 0
        %611 = vmatpush1.bf16.msra.mxu0 %v592
        %612 = vmatprep.subr.bf16.mxu0 0
        %613 = vmatpush1.bf16.msra.mxu0 %v593
        %614 = vmatprep.subr.bf16.mxu0 0
        %615 = vmatpush1.bf16.msra.mxu0 %v594
        %616 = vmatprep.subr.bf16.mxu0 0
        %617 = vmatpush1.bf16.msra.mxu0 %v595
        %618 = vmatprep.subr.bf16.mxu0 0
        %619 = vmatpush1.bf16.msra.mxu0 %v596
        %620 = vmatprep.subr.bf16.mxu0 0
        %621 = vmatpush1.bf16.msra.mxu0 %v597
        %622 = vmatprep.subr.bf16.mxu0 0
        %623 = vmatpush1.bf16.msra.mxu0 0
        %624 = vmatprep.subr.bf16.mxu0 0
        %625 = vmatpush1.bf16.msra.mxu0 0
        %626 = vmatprep.subr.bf16.mxu0 0
        %627 = vmatpush1.bf16.msra.mxu0 0
        %628 = vmatprep.subr.bf16.mxu0 0
        %629 = vmatpush1.bf16.msra.mxu0 0
        %630 = vmatprep.subr.bf16.mxu0 0
        %631 = vmatpush1.bf16.msra.mxu0 0
        %632 = vmatprep.subr.bf16.mxu0 0
        %633 = vmatpush1.bf16.msra.mxu0 0
        %634 = vmatprep.subr.bf16.mxu0 0
        %635 = vmatpush1.bf16.msra.mxu0 0
        %636 = vmatprep.subr.bf16.mxu0 0
        %637 = vmatpush1.bf16.msra.mxu0 0
        %638 = vmatprep.mubr.bf16.mxu0 0
        %639 = vmatmul.mubr.bf16.gmra.mrb[0].mxu0 %v428
        %v640 = vpop.f32.mrb[0].mxu0
        %v641 = vadd.f32 %v553, %v640
        %v642 = vpop.f32.mrb[0].mxu0
        %v643 = vpop.f32.mrb[0].mxu0
        %v644 = vpop.f32.mrb[0].mxu0
        %645 = vdwg.mxu0
        %s646 = scalar_lea.vmem %s324, 128 [#allocation5]
        %v647 = vld [vmem:[%s646] sm:$0xf]
        %v648 = vld [vmem:[%s646 + $0x4] sm:$0xf]
        %v649 = vld [vmem:[%s646 + $0x8] sm:$0xf]
        %v650 = vld [vmem:[%s646 + $0xc] sm:$0xf]
        %v651 = vld [vmem:[%s646 + $0x10] sm:$0xf]
        %v652 = vld [vmem:[%s646 + $0x14] sm:$0xf]
        %v653 = vld [vmem:[%s646 + $0x18] sm:$0xf]
        %v654 = vld [vmem:[%s646 + $0x1c] sm:$0xf]
        %v655 = vld [vmem:[%s646 + $0x20] sm:$0xf]
        %v656 = vld [vmem:[%s646 + $0x24] sm:$0xf]
        %v657 = vld [vmem:[%s646 + $0x28] sm:$0xf]
        %v658 = vld [vmem:[%s646 + $0x2c] sm:$0xf]
        %v659 = vld [vmem:[%s646 + $0x30] sm:$0xf]
        %v660 = vld [vmem:[%s646 + $0x34] sm:$0xf]
        %v661 = vld [vmem:[%s646 + $0x38] sm:$0xf]
        %v662 = vld [vmem:[%s646 + $0x3c] sm:$0xf]
        %v664 = vrot.slane %v428, 1
        %v682 = vunpack.c.l.b16 %v647
        %v683 = vunpack.c.l.b16 %v648
        %v684 = vunpack.c.l.b16 %v649
        %v685 = vunpack.c.l.b16 %v650
        %v686 = vunpack.c.l.b16 %v651
        %v687 = vunpack.c.l.b16 %v652
        %v688 = vunpack.c.l.b16 %v653
        %v689 = vunpack.c.l.b16 %v654
        %v690 = vunpack.c.l.b16 %v655
        %v691 = vunpack.c.l.b16 %v656
        %v692 = vunpack.c.l.b16 %v657
        %v693 = vunpack.c.l.b16 %v658
        %v694 = vunpack.c.l.b16 %v659
        %v695 = vunpack.c.l.b16 %v660
        %v696 = vunpack.c.l.b16 %v661
        %v697 = vunpack.c.l.b16 %v662
        %v698 = vpack.c.b16 %v683, %v682
        %v699 = vpack.c.b16 %v685, %v684
        %v700 = vpack.c.b16 %v687, %v686
        %v701 = vpack.c.b16 %v689, %v688
        %v702 = vpack.c.b16 %v691, %v690
        %v703 = vpack.c.b16 %v693, %v692
        %v704 = vpack.c.b16 %v695, %v694
        %v705 = vpack.c.b16 %v697, %v696
        %714 = vmatprep.subr.bf16.mxu0 0
        %715 = vmatpush1.bf16.msra.mxu0 %v698
        %716 = vmatprep.subr.bf16.mxu0 0
        %717 = vmatpush1.bf16.msra.mxu0 %v699
        %718 = vmatprep.subr.bf16.mxu0 0
        %719 = vmatpush1.bf16.msra.mxu0 %v700
        %720 = vmatprep.subr.bf16.mxu0 0
        %721 = vmatpush1.bf16.msra.mxu0 %v701
        %722 = vmatprep.subr.bf16.mxu0 0
        %723 = vmatpush1.bf16.msra.mxu0 %v702
        %724 = vmatprep.subr.bf16.mxu0 0
        %725 = vmatpush1.bf16.msra.mxu0 %v703
        %726 = vmatprep.subr.bf16.mxu0 0
        %727 = vmatpush1.bf16.msra.mxu0 %v704
        %728 = vmatprep.subr.bf16.mxu0 0
        %729 = vmatpush1.bf16.msra.mxu0 %v705
        %730 = vmatprep.subr.bf16.mxu0 0
        %731 = vmatpush1.bf16.msra.mxu0 0
        %732 = vmatprep.subr.bf16.mxu0 0
        %733 = vmatpush1.bf16.msra.mxu0 0
        %734 = vmatprep.subr.bf16.mxu0 0
        %735 = vmatpush1.bf16.msra.mxu0 0
        %736 = vmatprep.subr.bf16.mxu0 0
        %737 = vmatpush1.bf16.msra.mxu0 0
        %738 = vmatprep.subr.bf16.mxu0 0
        %739 = vmatpush1.bf16.msra.mxu0 0
        %740 = vmatprep.subr.bf16.mxu0 0
        %741 = vmatpush1.bf16.msra.mxu0 0
        %742 = vmatprep.subr.bf16.mxu0 0
        %743 = vmatpush1.bf16.msra.mxu0 0
        %744 = vmatprep.subr.bf16.mxu0 0
        %745 = vmatpush1.bf16.msra.mxu0 0
        %746 = vmatprep.mubr.bf16.mxu0 0
        %747 = vmatmul.mubr.bf16.gmra.mrb[0].mxu0 %v664
        %v748 = vpop.f32.mrb[0].mxu0
        %v749 = vadd.f32 0.0, %v748
        %v750 = vpop.f32.mrb[0].mxu0
        %v751 = vpop.f32.mrb[0].mxu0
        %v752 = vpop.f32.mrb[0].mxu0
        %753 = vdwg.mxu0
        %v754 = vadd.f32 %v641, %v749
        %v755 = vld [vmem:[%s332] sm:$0x1]
        %v757 = vlaneseq
        %v758 = vshrl.u32 %v757, 7
        %v759 = vsub.s32 0, %v758
        %v760 = vrot.slane %v755, %v759
        %v762 = vadd.f32 %v754, %v760
        %vm763 = vcmask 1043456
        %v764 = vsel %vm763, %v762, 0.0
        %v765 = vrot.slane %v764, 4
        %v766 = vadd.f32 %v764, %v765
        %v767 = vrot.slane %v766, 2
        %v768 = vadd.f32 %v766, %v767
        %v769 = vrot.slane %v768, 1
        %v770 = vadd.f32 %v768, %v769
        %v771 = vmul.f32 %v762, %v762
        %v772 = vsel %vm763, %v771, 0.0
        %v773 = vrot.slane %v772, 4
        %v774 = vadd.f32 %v772, %v773
        %v775 = vrot.slane %v774, 2
        %v776 = vadd.f32 %v774, %v775
        %v777 = vrot.slane %v776, 1
        %v778 = vadd.f32 %v776, %v777
        %v779 = vmul.f32 %v770, 0.25
        %v780 = vmul.f32 %v778, 0.25
        %v781 = vmul.f32 %v779, %v779
        %v782 = vsub.f32 %v780, %v781
        %v783 = vmax.f32 %v782, 0.0
        %v784 = vsub.f32 %v762, %v779
        %v785 = vadd.f32 %v783, 1e-05
        %v786 = vrsqrt.pop %v785
        %v787 = vmul.f32 %v784, %v786
        %v788 = vmax.f32 %v787, 0.0
        %v789 = vpack.c.bf16 %v788, %v788
        %v791 = vshrl.u32 %v789, 16
        %v794 = vrot.slane %v791, 7
        %v795 = vshll.u32 %v789, 16
        %v797 = vor.u32 %v794, %v795
        %v799 = vrot.slane %v795, 7
        %v801 = vsel %vm423, %v791, %v797
        %v802 = vsel %vm427, %v801, %v799
        %v803 = vld [vmem:[%s341] sm:$0xf]
        %v804 = vld [vmem:[%s341 + $0x4] sm:$0xf]
        %v805 = vld [vmem:[%s341 + $0x8] sm:$0xf]
        %v806 = vld [vmem:[%s341 + $0xc] sm:$0xf]
        %v807 = vld [vmem:[%s341 + $0x10] sm:$0xf]
        %v808 = vld [vmem:[%s341 + $0x14] sm:$0xf]
        %v809 = vld [vmem:[%s341 + $0x18] sm:$0xf]
        %v810 = vld [vmem:[%s341 + $0x1c] sm:$0xf]
        %v811 = vld [vmem:[%s341 + $0x20] sm:$0xf]
        %v812 = vld [vmem:[%s341 + $0x24] sm:$0xf]
        %v813 = vld [vmem:[%s341 + $0x28] sm:$0xf]
        %v814 = vld [vmem:[%s341 + $0x2c] sm:$0xf]
        %v815 = vld [vmem:[%s341 + $0x30] sm:$0xf]
        %v816 = vld [vmem:[%s341 + $0x34] sm:$0xf]
        %v817 = vld [vmem:[%s341 + $0x38] sm:$0xf]
        %v818 = vld [vmem:[%s341 + $0x3c] sm:$0xf]
        %s819 = scalar_lea.vmem %s341, 64 [#allocation8]
        %v820 = vld [vmem:[%s819] sm:$0xf]
        %v821 = vld [vmem:[%s819 + $0x4] sm:$0xf]
        %v822 = vld [vmem:[%s819 + $0x8] sm:$0xf]
        %v823 = vld [vmem:[%s819 + $0xc] sm:$0xf]
        %v824 = vld [vmem:[%s819 + $0x10] sm:$0xf]
        %v825 = vld [vmem:[%s819 + $0x14] sm:$0xf]
        %v826 = vld [vmem:[%s819 + $0x18] sm:$0xf]
        %v827 = vld [vmem:[%s819 + $0x1c] sm:$0xf]
        %v828 = vld [vmem:[%s819 + $0x20] sm:$0xf]
        %v829 = vld [vmem:[%s819 + $0x24] sm:$0xf]
        %v830 = vld [vmem:[%s819 + $0x28] sm:$0xf]
        %v831 = vld [vmem:[%s819 + $0x2c] sm:$0xf]
        %v832 = vld [vmem:[%s819 + $0x30] sm:$0xf]
        %v833 = vld [vmem:[%s819 + $0x34] sm:$0xf]
        %v834 = vld [vmem:[%s819 + $0x38] sm:$0xf]
        %v835 = vld [vmem:[%s819 + $0x3c] sm:$0xf]
        %v837 = vshrl.u32 %v802, 16
        %v839 = vshll.u32 %v802, 16
        %v841 = vrot.slane %v839, 1
        %v842 = vor.u32 %v837, %v841
        %v860 = vunpack.c.l.b16 %v820
        %v861 = vunpack.c.l.b16 %v821
        %v862 = vunpack.c.l.b16 %v822
        %v863 = vunpack.c.l.b16 %v823
        %v864 = vunpack.c.l.b16 %v824
        %v865 = vunpack.c.l.b16 %v825
        %v866 = vunpack.c.l.b16 %v826
        %v867 = vunpack.c.l.b16 %v827
        %v868 = vunpack.c.l.b16 %v828
        %v869 = vunpack.c.l.b16 %v829
        %v870 = vunpack.c.l.b16 %v830
        %v871 = vunpack.c.l.b16 %v831
        %v872 = vunpack.c.l.b16 %v832
        %v873 = vunpack.c.l.b16 %v833
        %v874 = vunpack.c.l.b16 %v834
        %v875 = vunpack.c.l.b16 %v835
        %v876 = vpack.c.b16 %v861, %v860
        %v877 = vpack.c.b16 %v863, %v862
        %v878 = vpack.c.b16 %v865, %v864
        %v879 = vpack.c.b16 %v867, %v866
        %v880 = vpack.c.b16 %v869, %v868
        %v881 = vpack.c.b16 %v871, %v870
        %v882 = vpack.c.b16 %v873, %v872
        %v883 = vpack.c.b16 %v875, %v874
        %892 = vmatprep.subr.bf16.mxu0 0
        %893 = vmatpush1.bf16.msra.mxu0 %v876
        %894 = vmatprep.subr.bf16.mxu0 0
        %895 = vmatpush1.bf16.msra.mxu0 %v877
        %896 = vmatprep.subr.bf16.mxu0 0
        %897 = vmatpush1.bf16.msra.mxu0 %v878
        %898 = vmatprep.subr.bf16.mxu0 0
        %899 = vmatpush1.bf16.msra.mxu0 %v879
        %900 = vmatprep.subr.bf16.mxu0 0
        %901 = vmatpush1.bf16.msra.mxu0 %v880
        %902 = vmatprep.subr.bf16.mxu0 0
        %903 = vmatpush1.bf16.msra.mxu0 %v881
        %904 = vmatprep.subr.bf16.mxu0 0
        %905 = vmatpush1.bf16.msra.mxu0 %v882
        %906 = vmatprep.subr.bf16.mxu0 0
        %907 = vmatpush1.bf16.msra.mxu0 %v883
        %908 = vmatprep.subr.bf16.mxu0 0
        %909 = vmatpush1.bf16.msra.mxu0 0
        %910 = vmatprep.subr.bf16.mxu0 0
        %911 = vmatpush1.bf16.msra.mxu0 0
        %912 = vmatprep.subr.bf16.mxu0 0
        %913 = vmatpush1.bf16.msra.mxu0 0
        %914 = vmatprep.subr.bf16.mxu0 0
        %915 = vmatpush1.bf16.msra.mxu0 0
        %916 = vmatprep.subr.bf16.mxu0 0
        %917 = vmatpush1.bf16.msra.mxu0 0
        %918 = vmatprep.subr.bf16.mxu0 0
        %919 = vmatpush1.bf16.msra.mxu0 0
        %920 = vmatprep.subr.bf16.mxu0 0
        %921 = vmatpush1.bf16.msra.mxu0 0
        %922 = vmatprep.subr.bf16.mxu0 0
        %923 = vmatpush1.bf16.msra.mxu0 0
        %924 = vmatprep.mubr.bf16.mxu0 0
        %925 = vmatmul.mubr.bf16.gmra.mrb[0].mxu0 %v842
        %v926 = vpop.f32.mrb[0].mxu0
        %v927 = vadd.f32 0.0, %v926
        %v928 = vpop.f32.mrb[0].mxu0
        %v929 = vpop.f32.mrb[0].mxu0
        %v930 = vpop.f32.mrb[0].mxu0
        %931 = vdwg.mxu0
        %v948 = vunpack.c.l.b16 %v803
        %v949 = vunpack.c.l.b16 %v804
        %v950 = vunpack.c.l.b16 %v805
        %v951 = vunpack.c.l.b16 %v806
        %v952 = vunpack.c.l.b16 %v807
        %v953 = vunpack.c.l.b16 %v808
        %v954 = vunpack.c.l.b16 %v809
        %v955 = vunpack.c.l.b16 %v810
        %v956 = vunpack.c.l.b16 %v811
        %v957 = vunpack.c.l.b16 %v812
        %v958 = vunpack.c.l.b16 %v813
        %v959 = vunpack.c.l.b16 %v814
        %v960 = vunpack.c.l.b16 %v815
        %v961 = vunpack.c.l.b16 %v816
        %v962 = vunpack.c.l.b16 %v817
        %v963 = vunpack.c.l.b16 %v818
        %v964 = vpack.c.b16 %v949, %v948
        %v965 = vpack.c.b16 %v951, %v950
        %v966 = vpack.c.b16 %v953, %v952
        %v967 = vpack.c.b16 %v955, %v954
        %v968 = vpack.c.b16 %v957, %v956
        %v969 = vpack.c.b16 %v959, %v958
        %v970 = vpack.c.b16 %v961, %v960
        %v971 = vpack.c.b16 %v963, %v962
        %980 = vmatprep.subr.bf16.mxu0 0
        %981 = vmatpush1.bf16.msra.mxu0 %v964
        %982 = vmatprep.subr.bf16.mxu0 0
        %983 = vmatpush1.bf16.msra.mxu0 %v965
        %984 = vmatprep.subr.bf16.mxu0 0
        %985 = vmatpush1.bf16.msra.mxu0 %v966
        %986 = vmatprep.subr.bf16.mxu0 0
        %987 = vmatpush1.bf16.msra.mxu0 %v967
        %988 = vmatprep.subr.bf16.mxu0 0
        %989 = vmatpush1.bf16.msra.mxu0 %v968
        %990 = vmatprep.subr.bf16.mxu0 0
        %991 = vmatpush1.bf16.msra.mxu0 %v969
        %992 = vmatprep.subr.bf16.mxu0 0
        %993 = vmatpush1.bf16.msra.mxu0 %v970
        %994 = vmatprep.subr.bf16.mxu0 0
        %995 = vmatpush1.bf16.msra.mxu0 %v971
        %996 = vmatprep.subr.bf16.mxu0 0
        %997 = vmatpush1.bf16.msra.mxu0 0
        %998 = vmatprep.subr.bf16.mxu0 0
        %999 = vmatpush1.bf16.msra.mxu0 0
        %1000 = vmatprep.subr.bf16.mxu0 0
        %1001 = vmatpush1.bf16.msra.mxu0 0
        %1002 = vmatprep.subr.bf16.mxu0 0
        %1003 = vmatpush1.bf16.msra.mxu0 0
        %1004 = vmatprep.subr.bf16.mxu0 0
        %1005 = vmatpush1.bf16.msra.mxu0 0
        %1006 = vmatprep.subr.bf16.mxu0 0
        %1007 = vmatpush1.bf16.msra.mxu0 0
        %1008 = vmatprep.subr.bf16.mxu0 0
        %1009 = vmatpush1.bf16.msra.mxu0 0
        %1010 = vmatprep.subr.bf16.mxu0 0
        %1011 = vmatpush1.bf16.msra.mxu0 0
        %1012 = vmatprep.mubr.bf16.mxu0 0
        %1013 = vmatmul.mubr.bf16.gmra.mrb[0].mxu0 %v802
        %v1014 = vpop.f32.mrb[0].mxu0
        %v1015 = vadd.f32 %v927, %v1014
        %v1016 = vpop.f32.mrb[0].mxu0
        %v1017 = vpop.f32.mrb[0].mxu0
        %v1018 = vpop.f32.mrb[0].mxu0
        %1019 = vdwg.mxu0
        %s1020 = scalar_lea.vmem %s341, 128 [#allocation8]
        %v1021 = vld [vmem:[%s1020] sm:$0xf]
        %v1022 = vld [vmem:[%s1020 + $0x4] sm:$0xf]
        %v1023 = vld [vmem:[%s1020 + $0x8] sm:$0xf]
        %v1024 = vld [vmem:[%s1020 + $0xc] sm:$0xf]
        %v1025 = vld [vmem:[%s1020 + $0x10] sm:$0xf]
        %v1026 = vld [vmem:[%s1020 + $0x14] sm:$0xf]
        %v1027 = vld [vmem:[%s1020 + $0x18] sm:$0xf]
        %v1028 = vld [vmem:[%s1020 + $0x1c] sm:$0xf]
        %v1029 = vld [vmem:[%s1020 + $0x20] sm:$0xf]
        %v1030 = vld [vmem:[%s1020 + $0x24] sm:$0xf]
        %v1031 = vld [vmem:[%s1020 + $0x28] sm:$0xf]
        %v1032 = vld [vmem:[%s1020 + $0x2c] sm:$0xf]
        %v1033 = vld [vmem:[%s1020 + $0x30] sm:$0xf]
        %v1034 = vld [vmem:[%s1020 + $0x34] sm:$0xf]
        %v1035 = vld [vmem:[%s1020 + $0x38] sm:$0xf]
        %v1036 = vld [vmem:[%s1020 + $0x3c] sm:$0xf]
        %v1038 = vrot.slane %v802, 1
        %v1056 = vunpack.c.l.b16 %v1021
        %v1057 = vunpack.c.l.b16 %v1022
        %v1058 = vunpack.c.l.b16 %v1023
        %v1059 = vunpack.c.l.b16 %v1024
        %v1060 = vunpack.c.l.b16 %v1025
        %v1061 = vunpack.c.l.b16 %v1026
        %v1062 = vunpack.c.l.b16 %v1027
        %v1063 = vunpack.c.l.b16 %v1028
        %v1064 = vunpack.c.l.b16 %v1029
        %v1065 = vunpack.c.l.b16 %v1030
        %v1066 = vunpack.c.l.b16 %v1031
        %v1067 = vunpack.c.l.b16 %v1032
        %v1068 = vunpack.c.l.b16 %v1033
        %v1069 = vunpack.c.l.b16 %v1034
        %v1070 = vunpack.c.l.b16 %v1035
        %v1071 = vunpack.c.l.b16 %v1036
        %v1072 = vpack.c.b16 %v1057, %v1056
        %v1073 = vpack.c.b16 %v1059, %v1058
        %v1074 = vpack.c.b16 %v1061, %v1060
        %v1075 = vpack.c.b16 %v1063, %v1062
        %v1076 = vpack.c.b16 %v1065, %v1064
        %v1077 = vpack.c.b16 %v1067, %v1066
        %v1078 = vpack.c.b16 %v1069, %v1068
        %v1079 = vpack.c.b16 %v1071, %v1070
        %1088 = vmatprep.subr.bf16.mxu0 0
        %1089 = vmatpush1.bf16.msra.mxu0 %v1072
        %1090 = vmatprep.subr.bf16.mxu0 0
        %1091 = vmatpush1.bf16.msra.mxu0 %v1073
        %1092 = vmatprep.subr.bf16.mxu0 0
        %1093 = vmatpush1.bf16.msra.mxu0 %v1074
        %1094 = vmatprep.subr.bf16.mxu0 0
        %1095 = vmatpush1.bf16.msra.mxu0 %v1075
        %1096 = vmatprep.subr.bf16.mxu0 0
        %1097 = vmatpush1.bf16.msra.mxu0 %v1076
        %1098 = vmatprep.subr.bf16.mxu0 0
        %1099 = vmatpush1.bf16.msra.mxu0 %v1077
        %1100 = vmatprep.subr.bf16.mxu0 0
        %1101 = vmatpush1.bf16.msra.mxu0 %v1078
        %1102 = vmatprep.subr.bf16.mxu0 0
        %1103 = vmatpush1.bf16.msra.mxu0 %v1079
        %1104 = vmatprep.subr.bf16.mxu0 0
        %1105 = vmatpush1.bf16.msra.mxu0 0
        %1106 = vmatprep.subr.bf16.mxu0 0
        %1107 = vmatpush1.bf16.msra.mxu0 0
        %1108 = vmatprep.subr.bf16.mxu0 0
        %1109 = vmatpush1.bf16.msra.mxu0 0
        %1110 = vmatprep.subr.bf16.mxu0 0
        %1111 = vmatpush1.bf16.msra.mxu0 0
        %1112 = vmatprep.subr.bf16.mxu0 0
        %1113 = vmatpush1.bf16.msra.mxu0 0
        %1114 = vmatprep.subr.bf16.mxu0 0
        %1115 = vmatpush1.bf16.msra.mxu0 0
        %1116 = vmatprep.subr.bf16.mxu0 0
        %1117 = vmatpush1.bf16.msra.mxu0 0
        %1118 = vmatprep.subr.bf16.mxu0 0
        %1119 = vmatpush1.bf16.msra.mxu0 0
        %1120 = vmatprep.mubr.bf16.mxu0 0
        %1121 = vmatmul.mubr.bf16.gmra.mrb[0].mxu0 %v1038
        %v1122 = vpop.f32.mrb[0].mxu0
        %v1123 = vadd.f32 0.0, %v1122
        %v1124 = vpop.f32.mrb[0].mxu0
        %v1125 = vpop.f32.mrb[0].mxu0
        %v1126 = vpop.f32.mrb[0].mxu0
        %1127 = vdwg.mxu0
        %v1128 = vadd.f32 %v1015, %v1123
        %v1129 = vld [vmem:[%s349] sm:$0x1]
        %v1131 = vlaneseq
        %v1132 = vshrl.u32 %v1131, 7
        %v1133 = vsub.s32 0, %v1132
        %v1134 = vrot.slane %v1129, %v1133
        %v1136 = vadd.f32 %v1128, %v1134
        %v1137 = vsel %vm763, %v1136, 0.0
        %v1138 = vrot.slane %v1137, 4
        %v1139 = vadd.f32 %v1137, %v1138
        %v1140 = vrot.slane %v1139, 2
        %v1141 = vadd.f32 %v1139, %v1140
        %v1142 = vrot.slane %v1141, 1
        %v1143 = vadd.f32 %v1141, %v1142
        %v1144 = vmul.f32 %v1136, %v1136
        %v1145 = vsel %vm763, %v1144, 0.0
        %v1146 = vrot.slane %v1145, 4
        %v1147 = vadd.f32 %v1145, %v1146
        %v1148 = vrot.slane %v1147, 2
        %v1149 = vadd.f32 %v1147, %v1148
        %v1150 = vrot.slane %v1149, 1
        %v1151 = vadd.f32 %v1149, %v1150
        %v1152 = vmul.f32 %v1143, 0.25
        %v1153 = vmul.f32 %v1151, 0.25
        %v1154 = vmul.f32 %v1152, %v1152
        %v1155 = vsub.f32 %v1153, %v1154
        %v1156 = vmax.f32 %v1155, 0.0
        %v1157 = vsub.f32 %v1136, %v1152
        %v1158 = vadd.f32 %v1156, 1e-05
        %v1159 = vrsqrt.pop %v1158
        %v1160 = vmul.f32 %v1157, %v1159
        %v1161 = vunpack.c.l.bf16 %v401
        %v1162 = vadd.f32 %v1161, %v1160
        %v1163 = vpack.c.bf16 %v1162, %v1162
        %1164 = vst [vmem:[%s393] sm:$0x3] %v1163
        %s1165 = sand.u32 %s178, 1
        %s1166 = scalar_lea.sflag [#allocation4], %s1165
        %s1167 = sand.u32 %s178, 1
        %s1168 = smul.addr %s1167, 2
        %s1169 = scalar_lea.vmem [#allocation11], %s1168
        // Predicated region
        $region65: #{generator_forward.10} parent=39 // pred_check
          %p1170 = pneg %p188
        $region66: #{generator_forward.10} parent=39 // pred_check_branch
          %1172 = sbr.rel (%p1170) target = $region68
        $region67: #{generator_forward.10} parent=39 // pred_region
          %s1174 = ssub.s32 32, 32
          %1175 = vsyncadd %s1166, %s1174
          %s1176 = smul.addr %s32, 32
          %s1177 = scalar_lea.hbm %s5, %s1176
          %s1179 = sshll.u32 %s1169, 4
          %s1180 = int_to_ptr.vmem [resolvable:$true] %s1179
          %1182 = dma.vmem_to_hbm [thread:$0]  %s1180, 32, %s1177, %s1166
        $region68: #{generator_forward.10} parent=39 // pred_fallthru
          _
      $region40: #{generator_forward.10} parent=5 // pred_fallthru
        _
      %p1183 = scmp.le.s32.totalorder 2, %s23
      // Predicated region
      $region69: #{generator_forward.10} parent=5 // pred_check
        %p1184 = pneg %p1183
      $region70: #{generator_forward.10} parent=5 // pred_check_branch
        %1186 = sbr.rel (%p1184) target = $region72
      $region71: #{generator_forward.10} parent=5 // pred_region
        %s1187 = ssub.s32 %s23, 2
        // Predicated region
        $region73: #{generator_forward.10} parent=71 // pred_check
          %p1188 = pneg %p194
        $region74: #{generator_forward.10} parent=71 // pred_check_branch
          %1190 = sbr.rel (%p1188) target = $region76
        $region75: #{generator_forward.10} parent=71 // pred_region
          %s1191 = sand.u32 %s179, 1
          %s1192 = scalar_lea.sflag [#allocation4], %s1191
          %s1193 = sand.u32 %s179, 1
          %s1194 = smul.addr %s1193, 2
          %s1195 = scalar_lea.vmem [#allocation11], %s1194
          %1196 = dma.done %s1192, 32
        $region76: #{generator_forward.10} parent=71 // pred_fallthru
          _
      $region72: #{generator_forward.10} parent=5 // pred_fallthru
        _
    $region6: #{generator_forward.10} parent=1 // loop_footer
      %s27 = sadd.s32 1, %s23
    $region7: #{generator_forward.10} parent=1 // loop_footer_branch
      %22 = sbr.rel target = $region3
    $region8: #{generator_forward.10} parent=1 // loop_exit
      _
    %1197 = vsyncpa [#allocation3], 1
    %s1198 = scalar_lea.sflag [#allocation3], 1
    %1199 = vsyncpa %s1198, 1
    %1200 = vsyncpa [#allocation6], 1
    %s1201 = scalar_lea.sflag [#allocation6], 1
    %1202 = vsyncpa %s1201, 1
    %1203 = vsyncpa [#allocation9], 1
    %s1204 = scalar_lea.sflag [#allocation9], 1
    %1205 = vsyncpa %s1204, 1
    %1206 = vsyncpa [#allocation4], 1
    %s1207 = scalar_lea.sflag [#allocation4], 1
    %1208 = vsyncpa %s1207, 1

// kernel: generator_forward.12
$region0: #{generator_forward.12}
  #allocation0 [shape = 'u32[]', space=smem, size = 0x4, offset = 0x4, fixed_abs, tag = 'smem constant byte address 0x4 - core index']
  #allocation1 [shape = 'u32[144,128]{1,0:T(1,128)}', space=vmem, size = 0x12000, scoped, tag = 'internal scratch']
  %s0 = inlined_call_operand.hbm [shape: bf16[2,8,128], index: 0, kind: input, shape index: {}]
  %s1 = inlined_call_operand.hbm [shape: bf16[3,128,128], index: 1, kind: input, shape index: {}]
  %s2 = inlined_call_operand.hbm [shape: f32[1,128], index: 2, kind: input, shape index: {}]
  %s3 = inlined_call_operand.hbm [shape: bf16[2,8,256], index: 3, kind: output, shape index: {}]
  %s4 = sld [smem:[#allocation0]]
  $region57: #{generator_forward.12} parent=0
    _
  %s6 = ssub.s32 1, %s4
  %s7 = scalar_select 0, %s6, %s4
  $region1: #{generator_forward.12} parent=0
    #allocation2 [shape = 'u8[4096]{0}', space=vmem, size = 0x1000, scoped, tag = 'input window, operand 0']
    #allocation3 [shape = 's32[2]{0}', space=sflag, size = 0x8, scoped, tag = 'scoped memory for generator_forward.12']
    #allocation4 [shape = 's32[2]{0}', space=sflag, size = 0x8, scoped, tag = 'scoped memory for generator_forward.12']
    #allocation5 [shape = 'u8[98304]{0}', space=vmem, size = 0x18000, scoped, tag = 'input window, operand 1, single buffered']
    #allocation6 [shape = 's32[1]{0}', space=sflag, size = 0x4, scoped, tag = 'scoped memory for generator_forward.12']
    #allocation7 [shape = 'u8[512]{0}', space=vmem, size = 0x400, scoped, tag = 'input window, operand 2, single buffered']
    #allocation8 [shape = 'u8[8192]{0}', space=vmem, size = 0x2000, scoped, tag = 'output window, operand 0']
    %8 = vsyncpa [#allocation3], 0
    %s9 = scalar_lea.sflag [#allocation3], 1
    %10 = vsyncpa %s9, 0
    %11 = vsyncpa [#allocation6], 0
    %12 = vsyncpa [#allocation4], 0
    %s13 = scalar_lea.sflag [#allocation4], 1
    %14 = vsyncpa %s13, 0
    loop: start=0, step=1, limit=4
    $region2: #{generator_forward.12} parent=1 // loop_pre_header
      _
    $region3: #{generator_forward.12} parent=1 // loop_header
      %s16 = sphi 0, %s20
      %p17 = scmp.ge.s32.totalorder %s16, 4
      %s26 = sphi 0, %s28
      %s29 = sphi 0, %s26
      %s30 = sphi 0, %s29
      %s46 = sphi 0, %s30
      %s50 = sphi 0, %s50
      %s52 = sphi 0, %s50
      %s53 = sphi 0, %s52
      %s67 = sphi 0, %s53
      %s71 = sphi 0, %s71
      %s73 = sphi 0, %s71
      %s74 = sphi 0, %s73
      %s88 = sphi 0, %s74
      %s94 = sphi 0, %s96
      %s97 = sphi 0, %s94
      %s98 = sphi 0, %s97
      %s114 = sphi 0, %s98
    $region4: #{generator_forward.12} parent=1 // loop_header_branch
      %19 = sbr.rel (%p17) target = $region8
    $region5: #{generator_forward.12} parent=1 // loop_body
      %s21 = ssub.s32 %s16, 1
      %s22 = ssub.s32 %s16, 2
      %s23 = sadd.s32 %s16, 1
      %s24 = ssub.s32 %s16, %s23
      %p25 = scmp.eq.s32.totalorder %s24, 0
      %s27 = sadd.s32 %s26, 1
      %s28 = scalar_select %p25, %s26, %s27
      %p31 = pneg %p25
      %p32 = scmp.eq.s32.totalorder %s16, 1
      %p33 = por %p31, %p32
      %p34 = scmp.ne.s32.totalorder %s26, %s29
      %p35 = scmp.eq.s32.totalorder %s16, 0
      %p36 = por %p34, %p35
      %p37 = scmp.ne.s32.totalorder %s26, %s29
      %p38 = scmp.eq.s32.totalorder %s21, 1
      %p39 = por %p37, %p38
      %p40 = scmp.ne.s32.totalorder %s29, %s30
      %p41 = scmp.eq.s32.totalorder %s21, 0
      %p42 = por %p40, %p41
      %p43 = scmp.ne.s32.totalorder %s29, %s30
      %p44 = scmp.eq.s32.totalorder %s22, 1
      %p45 = por %p43, %p44
      %p47 = scmp.ne.s32.totalorder %s30, %s46
      %p48 = scmp.eq.s32.totalorder %s22, 0
      %p49 = por %p47, %p48
      %s51 = sadd.s32 %s50, 1
      %p54 = scmp.eq.s32.totalorder %s16, 1
      %p55 = scmp.ne.s32.totalorder %s50, %s52
      %p56 = scmp.eq.s32.totalorder %s16, 0
      %p57 = por %p55, %p56
      %p58 = scmp.ne.s32.totalorder %s50, %s52
      %p59 = scmp.eq.s32.totalorder %s21, 1
      %p60 = por %p58, %p59
      %p61 = scmp.ne.s32.totalorder %s52, %s53
      %p62 = scmp.eq.s32.totalorder %s21, 0
      %p63 = por %p61, %p62
      %p64 = scmp.ne.s32.totalorder %s52, %s53
      %p65 = scmp.eq.s32.totalorder %s22, 1
      %p66 = por %p64, %p65
      %p68 = scmp.ne.s32.totalorder %s53, %s67
      %p69 = scmp.eq.s32.totalorder %s22, 0
      %p70 = por %p68, %p69
      %s72 = sadd.s32 %s71, 1
      %p75 = scmp.eq.s32.totalorder %s16, 1
      %p76 = scmp.ne.s32.totalorder %s71, %s73
      %p77 = scmp.eq.s32.totalorder %s16, 0
      %p78 = por %p76, %p77
      %p79 = scmp.ne.s32.totalorder %s71, %s73
      %p80 = scmp.eq.s32.totalorder %s21, 1
      %p81 = por %p79, %p80
      %p82 = scmp.ne.s32.totalorder %s73, %s74
      %p83 = scmp.eq.s32.totalorder %s21, 0
      %p84 = por %p82, %p83
      %p85 = scmp.ne.s32.totalorder %s73, %s74
      %p86 = scmp.eq.s32.totalorder %s22, 1
      %p87 = por %p85, %p86
      %p89 = scmp.ne.s32.totalorder %s74, %s88
      %p90 = scmp.eq.s32.totalorder %s22, 0
      %p91 = por %p89, %p90
      %s92 = ssub.s32 %s16, %s23
      %p93 = scmp.eq.s32.totalorder %s92, 0
      %s95 = sadd.s32 %s94, 1
      %s96 = scalar_select %p93, %s94, %s95
      %p99 = pneg %p93
      %p100 = scmp.eq.s32.totalorder %s16, 1
      %p101 = por %p99, %p100
      %p102 = scmp.ne.s32.totalorder %s94, %s97
      %p103 = scmp.eq.s32.totalorder %s16, 0
      %p104 = por %p102, %p103
      %p105 = scmp.ne.s32.totalorder %s94, %s97
      %p106 = scmp.eq.s32.totalorder %s21, 1
      %p107 = por %p105, %p106
      %p108 = scmp.ne.s32.totalorder %s97, %s98
      %p109 = scmp.eq.s32.totalorder %s21, 0
      %p110 = por %p108, %p109
      %p111 = scmp.ne.s32.totalorder %s97, %s98
      %p112 = scmp.eq.s32.totalorder %s22, 1
      %p113 = por %p111, %p112
      %p115 = scmp.ne.s32.totalorder %s98, %s114
      %p116 = scmp.eq.s32.totalorder %s22, 0
      %p117 = por %p115, %p116
      %p118 = scmp.le.s32.totalorder 1, %s16
      %p119 = scmp.lt.s32.totalorder %s16, 3
      %p120 = pnand %p118, %p119
      %p121 = pneg %p120
      // Predicated region
      $region9: #{generator_forward.12} parent=5 // pred_check
        _
      $region10: #{generator_forward.12} parent=5 // pred_check_branch
        %123 = sbr.rel (%p120) target = $region12
      $region11: #{generator_forward.12} parent=5 // pred_region
        %s124 = ssub.s32 %s16, 1
        // Predicated region
        $region13: #{generator_forward.12} parent=11 // pred_check
          %p125 = pneg %p63
        $region14: #{generator_forward.12} parent=11 // pred_check_branch
          %127 = sbr.rel (%p125) target = $region16
        $region15: #{generator_forward.12} parent=11 // pred_region
          %s129 = ssub.s32 3072, 3072
          %130 = vsyncadd [#allocation6], %s129
          %s131 = sshll.u32 [#allocation5], 4
          %s132 = int_to_ptr.vmem [resolvable:$true] %s131
          %137 = dma.hbm_to_vmem [thread:$0]  %s1, 3072, %s132, [#allocation6], 64, 64, 4
        $region16: #{generator_forward.12} parent=11 // pred_fallthru
          _
        // Predicated region
        $region17: #{generator_forward.12} parent=11 // pred_check
          %p138 = pneg %p84
        $region18: #{generator_forward.12} parent=11 // pred_check_branch
          %140 = sbr.rel (%p138) target = $region20
        $region19: #{generator_forward.12} parent=11 // pred_region
          %s142 = ssub.s32 16, 16
          %143 = vsyncadd [#allocation6], %s142
          %s145 = sshll.u32 [#allocation7], 4
          %s146 = int_to_ptr.vmem [resolvable:$true] %s145
          %148 = dma.hbm_to_vmem [thread:$0]  %s2, 16, %s146, [#allocation6]
        $region20: #{generator_forward.12} parent=11 // pred_fallthru
          _
      $region12: #{generator_forward.12} parent=5 // pred_fallthru
        _
      %p149 = scmp.lt.s32.totalorder %s16, 2
      // Predicated region
      $region21: #{generator_forward.12} parent=5 // pred_check
        %p150 = pneg %p149
      $region22: #{generator_forward.12} parent=5 // pred_check_branch
        %152 = sbr.rel (%p150) target = $region24
      $region23: #{generator_forward.12} parent=5 // pred_region
        // Predicated region
        $region25: #{generator_forward.12} parent=23 // pred_check
          %p153 = pneg %p36
        $region26: #{generator_forward.12} parent=23 // pred_check_branch
          %155 = sbr.rel (%p153) target = $region28
        $region27: #{generator_forward.12} parent=23 // pred_region
          %s156 = sand.u32 %s26, 1
          %s157 = scalar_lea.sflag [#allocation3], %s156
          %s158 = sand.u32 %s26, 1
          %s159 = smul.addr %s158, 4
          %s160 = scalar_lea.vmem [#allocation2], %s159
          %s162 = ssub.s32 64, 64
          %163 = vsyncadd %s157, %s162
          %s164 = smul.addr %s16, 64
          %s165 = scalar_lea.hbm %s0, %s164
          %s167 = sshll.u32 %s160, 4
          %s168 = int_to_ptr.vmem [resolvable:$true] %s167
          %170 = dma.hbm_to_vmem [thread:$0]  %s165, 64, %s168, %s157
        $region28: #{generator_forward.12} parent=23 // pred_fallthru
          _
      $region24: #{generator_forward.12} parent=5 // pred_fallthru
        _
      %p171 = scmp.le.s32.totalorder 1, %s16
      %p172 = scmp.lt.s32.totalorder %s16, 3
      %p173 = pnand %p171, %p172
      %p174 = pneg %p173
      // Predicated region
      $region29: #{generator_forward.12} parent=5 // pred_check
        _
      $region30: #{generator_forward.12} parent=5 // pred_check_branch
        %176 = sbr.rel (%p173) target = $region32
      $region31: #{generator_forward.12} parent=5 // pred_region
        %s177 = ssub.s32 %s16, 1
        %s178 = sand.u32 %s29, 1
        %s179 = scalar_lea.sflag [#allocation3], %s178
        %s180 = sand.u32 %s29, 1
        %s181 = smul.addr %s180, 4
        %s182 = scalar_lea.vmem [#allocation2], %s181
        // Predicated region
        $region33: #{generator_forward.12} parent=31 // pred_check
          %p183 = pneg %p42
        $region34: #{generator_forward.12} parent=31 // pred_check_branch
          %185 = sbr.rel (%p183) target = $region36
        $region35: #{generator_forward.12} parent=31 // pred_region
          %186 = dma.done %s179, 64
        $region36: #{generator_forward.12} parent=31 // pred_fallthru
          _
        // Predicated region
        $region37: #{generator_forward.12} parent=31 // pred_check
          %p187 = pneg %p63
        $region38: #{generator_forward.12} parent=31 // pred_check_branch
          %189 = sbr.rel (%p187) target = $region40
        $region39: #{generator_forward.12} parent=31 // pred_region
          %190 = dma.done [#allocation6], 3072
        $region40: #{generator_forward.12} parent=31 // pred_fallthru
          _
        // Predicated region
        $region41: #{generator_forward.12} parent=31 // pred_check
          %p191 = pneg %p84
        $region42: #{generator_forward.12} parent=31 // pred_check_branch
          %193 = sbr.rel (%p191) target = $region44
        $region43: #{generator_forward.12} parent=31 // pred_region
          %194 = dma.done [#allocation6], 16
        $region44: #{generator_forward.12} parent=31 // pred_fallthru
          _
        %s195 = sand.u32 %s29, 1
        %s196 = scalar_lea.sflag [#allocation3], %s195
        %s197 = sand.u32 %s29, 1
        %s198 = smul.addr %s197, 4
        %s199 = scalar_lea.vmem [#allocation2], %s198
        %p200 = pneg %p42
        %p201 = pneg %p39
        %p202 = pneg %p63
        %p203 = pneg %p60
        %p204 = pneg %p84
        %p205 = pneg %p81
        %p206 = pneg %p110
        %p207 = pneg %p107
        %s208 = sand.u32 %s97, 1
        %s209 = scalar_lea.sflag [#allocation4], %s208
        %s210 = sand.u32 %s97, 1
        %s211 = smul.addr %s210, 8
        %s212 = scalar_lea.vmem [#allocation8], %s211
        %v214 = vld [vmem:[%s182] sm:$0xf]
        %v216 = vunpack.c.l.b16 %v214
        %v217 = vpack.c.b16 %v216, %v216
        %v219 = vshrl.u32 %v217, 16
        %v221 = vshll.u32 %v217, 16
        %v223 = vrot.slane %v221, 1
        %v224 = vor.u32 %v219, %v223
        %vm226 = vcmask 1043456
        %vm227 = vsmask.f32 3328
        %vm228 = vmand %vm226, %vm227
        %v229 = vsel %vm228, %v224, 0
        %v230 = vld [vmem:[#allocation7] sm:$0x1]
        %v231 = vld [vmem:[#allocation5] sm:$0xf]
        %v232 = vld [vmem:[#allocation5 + $0x4] sm:$0xf]
        %v233 = vld [vmem:[#allocation5 + $0x8] sm:$0xf]
        %v234 = vld [vmem:[#allocation5 + $0xc] sm:$0xf]
        %v235 = vld [vmem:[#allocation5 + $0x10] sm:$0xf]
        %v236 = vld [vmem:[#allocation5 + $0x14] sm:$0xf]
        %v237 = vld [vmem:[#allocation5 + $0x18] sm:$0xf]
        %v238 = vld [vmem:[#allocation5 + $0x1c] sm:$0xf]
        %v239 = vld [vmem:[#allocation5 + $0x20] sm:$0xf]
        %v240 = vld [vmem:[#allocation5 + $0x24] sm:$0xf]
        %v241 = vld [vmem:[#allocation5 + $0x28] sm:$0xf]
        %v242 = vld [vmem:[#allocation5 + $0x2c] sm:$0xf]
        %v243 = vld [vmem:[#allocation5 + $0x30] sm:$0xf]
        %v244 = vld [vmem:[#allocation5 + $0x34] sm:$0xf]
        %v245 = vld [vmem:[#allocation5 + $0x38] sm:$0xf]
        %v246 = vld [vmem:[#allocation5 + $0x3c] sm:$0xf]
        %v248 = vlaneseq
        %v249 = vshrl.u32 %v248, 7
        %v250 = vsub.s32 0, %v249
        %v251 = vrot.slane %v230, %v250
        %v269 = vunpack.c.l.b16 %v231
        %v270 = vunpack.c.l.b16 %v232
        %v271 = vunpack.c.l.b16 %v233
        %v272 = vunpack.c.l.b16 %v234
        %v273 = vunpack.c.l.b16 %v235
        %v274 = vunpack.c.l.b16 %v236
        %v275 = vunpack.c.l.b16 %v237
        %v276 = vunpack.c.l.b16 %v238
        %v277 = vunpack.c.l.b16 %v239
        %v278 = vunpack.c.l.b16 %v240
        %v279 = vunpack.c.l.b16 %v241
        %v280 = vunpack.c.l.b16 %v242
        %v281 = vunpack.c.l.b16 %v243
        %v282 = vunpack.c.l.b16 %v244
        %v283 = vunpack.c.l.b16 %v245
        %v284 = vunpack.c.l.b16 %v246
        %v285 = vpack.c.b16 %v270, %v269
        %v286 = vpack.c.b16 %v272, %v271
        %v287 = vpack.c.b16 %v274, %v273
        %v288 = vpack.c.b16 %v276, %v275
        %v289 = vpack.c.b16 %v278, %v277
        %v290 = vpack.c.b16 %v280, %v279
        %v291 = vpack.c.b16 %v282, %v281
        %v292 = vpack.c.b16 %v284, %v283
        %301 = vmatprep.subr.bf16.mxu0 0
        %302 = vmatpush1.bf16.msra.mxu0 %v285
        %303 = vmatprep.subr.bf16.mxu0 0
        %304 = vmatpush1.bf16.msra.mxu0 %v286
        %305 = vmatprep.subr.bf16.mxu0 0
        %306 = vmatpush1.bf16.msra.mxu0 %v287
        %307 = vmatprep.subr.bf16.mxu0 0
        %308 = vmatpush1.bf16.msra.mxu0 %v288
        %309 = vmatprep.subr.bf16.mxu0 0
        %310 = vmatpush1.bf16.msra.mxu0 %v289
        %311 = vmatprep.subr.bf16.mxu0 0
        %312 = vmatpush1.bf16.msra.mxu0 %v290
        %313 = vmatprep.subr.bf16.mxu0 0
        %314 = vmatpush1.bf16.msra.mxu0 %v291
        %315 = vmatprep.subr.bf16.mxu0 0
        %316 = vmatpush1.bf16.msra.mxu0 %v292
        %317 = vmatprep.subr.bf16.mxu0 0
        %318 = vmatpush1.bf16.msra.mxu0 0
        %319 = vmatprep.subr.bf16.mxu0 0
        %320 = vmatpush1.bf16.msra.mxu0 0
        %321 = vmatprep.subr.bf16.mxu0 0
        %322 = vmatpush1.bf16.msra.mxu0 0
        %323 = vmatprep.subr.bf16.mxu0 0
        %324 = vmatpush1.bf16.msra.mxu0 0
        %325 = vmatprep.subr.bf16.mxu0 0
        %326 = vmatpush1.bf16.msra.mxu0 0
        %327 = vmatprep.subr.bf16.mxu0 0
        %328 = vmatpush1.bf16.msra.mxu0 0
        %329 = vmatprep.subr.bf16.mxu0 0
        %330 = vmatpush1.bf16.msra.mxu0 0
        %331 = vmatprep.subr.bf16.mxu0 0
        %332 = vmatpush1.bf16.msra.mxu0 0
        %333 = vmatprep.mubr.bf16.mxu0 0
        %334 = vmatmul.mubr.bf16.gmra.mrb[0].mxu0 %v214
        %v335 = vpop.f32.mrb[0].mxu0
        %v336 = vadd.f32 %v251, %v335
        %v337 = vpop.f32.mrb[0].mxu0
        %v338 = vpop.f32.mrb[0].mxu0
        %v339 = vpop.f32.mrb[0].mxu0
        %340 = vdwg.mxu0
        %s341 = scalar_lea.vmem [#allocation5], 64
        %v342 = vld [vmem:[%s341] sm:$0xf]
        %v343 = vld [vmem:[%s341 + $0x4] sm:$0xf]
        %v344 = vld [vmem:[%s341 + $0x8] sm:$0xf]
        %v345 = vld [vmem:[%s341 + $0xc] sm:$0xf]
        %v346 = vld [vmem:[%s341 + $0x10] sm:$0xf]
        %v347 = vld [vmem:[%s341 + $0x14] sm:$0xf]
        %v348 = vld [vmem:[%s341 + $0x18] sm:$0xf]
        %v349 = vld [vmem:[%s341 + $0x1c] sm:$0xf]
        %v350 = vld [vmem:[%s341 + $0x20] sm:$0xf]
        %v351 = vld [vmem:[%s341 + $0x24] sm:$0xf]
        %v352 = vld [vmem:[%s341 + $0x28] sm:$0xf]
        %v353 = vld [vmem:[%s341 + $0x2c] sm:$0xf]
        %v354 = vld [vmem:[%s341 + $0x30] sm:$0xf]
        %v355 = vld [vmem:[%s341 + $0x34] sm:$0xf]
        %v356 = vld [vmem:[%s341 + $0x38] sm:$0xf]
        %v357 = vld [vmem:[%s341 + $0x3c] sm:$0xf]
        %s358 = scalar_lea.vmem [#allocation5], 128
        %v359 = vld [vmem:[%s358] sm:$0xf]
        %v360 = vld [vmem:[%s358 + $0x4] sm:$0xf]
        %v361 = vld [vmem:[%s358 + $0x8] sm:$0xf]
        %v362 = vld [vmem:[%s358 + $0xc] sm:$0xf]
        %v363 = vld [vmem:[%s358 + $0x10] sm:$0xf]
        %v364 = vld [vmem:[%s358 + $0x14] sm:$0xf]
        %v365 = vld [vmem:[%s358 + $0x18] sm:$0xf]
        %v366 = vld [vmem:[%s358 + $0x1c] sm:$0xf]
        %v367 = vld [vmem:[%s358 + $0x20] sm:$0xf]
        %v368 = vld [vmem:[%s358 + $0x24] sm:$0xf]
        %v369 = vld [vmem:[%s358 + $0x28] sm:$0xf]
        %v370 = vld [vmem:[%s358 + $0x2c] sm:$0xf]
        %v371 = vld [vmem:[%s358 + $0x30] sm:$0xf]
        %v372 = vld [vmem:[%s358 + $0x34] sm:$0xf]
        %v373 = vld [vmem:[%s358 + $0x38] sm:$0xf]
        %v374 = vld [vmem:[%s358 + $0x3c] sm:$0xf]
        %v391 = vunpack.c.l.b16 %v359
        %v392 = vunpack.c.l.b16 %v360
        %v393 = vunpack.c.l.b16 %v361
        %v394 = vunpack.c.l.b16 %v362
        %v395 = vunpack.c.l.b16 %v363
        %v396 = vunpack.c.l.b16 %v364
        %v397 = vunpack.c.l.b16 %v365
        %v398 = vunpack.c.l.b16 %v366
        %v399 = vunpack.c.l.b16 %v367
        %v400 = vunpack.c.l.b16 %v368
        %v401 = vunpack.c.l.b16 %v369
        %v402 = vunpack.c.l.b16 %v370
        %v403 = vunpack.c.l.b16 %v371
        %v404 = vunpack.c.l.b16 %v372
        %v405 = vunpack.c.l.b16 %v373
        %v406 = vunpack.c.l.b16 %v374
        %v407 = vpack.c.b16 %v392, %v391
        %v408 = vpack.c.b16 %v394, %v393
        %v409 = vpack.c.b16 %v396, %v395
        %v410 = vpack.c.b16 %v398, %v397
        %v411 = vpack.c.b16 %v400, %v399
        %v412 = vpack.c.b16 %v402, %v401
        %v413 = vpack.c.b16 %v404, %v403
        %v414 = vpack.c.b16 %v406, %v405
        %423 = vmatprep.subr.bf16.mxu0 0
        %424 = vmatpush1.bf16.msra.mxu0 %v407
        %425 = vmatprep.subr.bf16.mxu0 0
        %426 = vmatpush1.bf16.msra.mxu0 %v408
        %427 = vmatprep.subr.bf16.mxu0 0
        %428 = vmatpush1.bf16.msra.mxu0 %v409
        %429 = vmatprep.subr.bf16.mxu0 0
        %430 = vmatpush1.bf16.msra.mxu0 %v410
        %431 = vmatprep.subr.bf16.mxu0 0
        %432 = vmatpush1.bf16.msra.mxu0 %v411
        %433 = vmatprep.subr.bf16.mxu0 0
        %434 = vmatpush1.bf16.msra.mxu0 %v412
        %435 = vmatprep.subr.bf16.mxu0 0
        %436 = vmatpush1.bf16.msra.mxu0 %v413
        %437 = vmatprep.subr.bf16.mxu0 0
        %438 = vmatpush1.bf16.msra.mxu0 %v414
        %439 = vmatprep.subr.bf16.mxu0 0
        %440 = vmatpush1.bf16.msra.mxu0 0
        %441 = vmatprep.subr.bf16.mxu0 0
        %442 = vmatpush1.bf16.msra.mxu0 0
        %443 = vmatprep.subr.bf16.mxu0 0
        %444 = vmatpush1.bf16.msra.mxu0 0
        %445 = vmatprep.subr.bf16.mxu0 0
        %446 = vmatpush1.bf16.msra.mxu0 0
        %447 = vmatprep.subr.bf16.mxu0 0
        %448 = vmatpush1.bf16.msra.mxu0 0
        %449 = vmatprep.subr.bf16.mxu0 0
        %450 = vmatpush1.bf16.msra.mxu0 0
        %451 = vmatprep.subr.bf16.mxu0 0
        %452 = vmatpush1.bf16.msra.mxu0 0
        %453 = vmatprep.subr.bf16.mxu0 0
        %454 = vmatpush1.bf16.msra.mxu0 0
        %455 = vmatprep.mubr.bf16.mxu0 0
        %456 = vmatmul.mubr.bf16.gmra.mrb[0].mxu0 %v229
        %v457 = vpop.f32.mrb[0].mxu0
        %v458 = vadd.f32 0.0, %v457
        %v459 = vpop.f32.mrb[0].mxu0
        %v460 = vpop.f32.mrb[0].mxu0
        %v461 = vpop.f32.mrb[0].mxu0
        %462 = vdwg.mxu0
        %v479 = vunpack.c.l.b16 %v342
        %v480 = vunpack.c.l.b16 %v343
        %v481 = vunpack.c.l.b16 %v344
        %v482 = vunpack.c.l.b16 %v345
        %v483 = vunpack.c.l.b16 %v346
        %v484 = vunpack.c.l.b16 %v347
        %v485 = vunpack.c.l.b16 %v348
        %v486 = vunpack.c.l.b16 %v349
        %v487 = vunpack.c.l.b16 %v350
        %v488 = vunpack.c.l.b16 %v351
        %v489 = vunpack.c.l.b16 %v352
        %v490 = vunpack.c.l.b16 %v353
        %v491 = vunpack.c.l.b16 %v354
        %v492 = vunpack.c.l.b16 %v355
        %v493 = vunpack.c.l.b16 %v356
        %v494 = vunpack.c.l.b16 %v357
        %v495 = vpack.c.b16 %v480, %v479
        %v496 = vpack.c.b16 %v482, %v481
        %v497 = vpack.c.b16 %v484, %v483
        %v498 = vpack.c.b16 %v486, %v485
        %v499 = vpack.c.b16 %v488, %v487
        %v500 = vpack.c.b16 %v490, %v489
        %v501 = vpack.c.b16 %v492, %v491
        %v502 = vpack.c.b16 %v494, %v493
        %511 = vmatprep.subr.bf16.mxu0 0
        %512 = vmatpush1.bf16.msra.mxu0 %v495
        %513 = vmatprep.subr.bf16.mxu0 0
        %514 = vmatpush1.bf16.msra.mxu0 %v496
        %515 = vmatprep.subr.bf16.mxu0 0
        %516 = vmatpush1.bf16.msra.mxu0 %v497
        %517 = vmatprep.subr.bf16.mxu0 0
        %518 = vmatpush1.bf16.msra.mxu0 %v498
        %519 = vmatprep.subr.bf16.mxu0 0
        %520 = vmatpush1.bf16.msra.mxu0 %v499
        %521 = vmatprep.subr.bf16.mxu0 0
        %522 = vmatpush1.bf16.msra.mxu0 %v500
        %523 = vmatprep.subr.bf16.mxu0 0
        %524 = vmatpush1.bf16.msra.mxu0 %v501
        %525 = vmatprep.subr.bf16.mxu0 0
        %526 = vmatpush1.bf16.msra.mxu0 %v502
        %527 = vmatprep.subr.bf16.mxu0 0
        %528 = vmatpush1.bf16.msra.mxu0 0
        %529 = vmatprep.subr.bf16.mxu0 0
        %530 = vmatpush1.bf16.msra.mxu0 0
        %531 = vmatprep.subr.bf16.mxu0 0
        %532 = vmatpush1.bf16.msra.mxu0 0
        %533 = vmatprep.subr.bf16.mxu0 0
        %534 = vmatpush1.bf16.msra.mxu0 0
        %535 = vmatprep.subr.bf16.mxu0 0
        %536 = vmatpush1.bf16.msra.mxu0 0
        %537 = vmatprep.subr.bf16.mxu0 0
        %538 = vmatpush1.bf16.msra.mxu0 0
        %539 = vmatprep.subr.bf16.mxu0 0
        %540 = vmatpush1.bf16.msra.mxu0 0
        %541 = vmatprep.subr.bf16.mxu0 0
        %542 = vmatpush1.bf16.msra.mxu0 0
        %543 = vmatprep.mubr.bf16.mxu0 0
        %544 = vmatmul.mubr.bf16.gmra.mrb[0].mxu0 %v214
        %v545 = vpop.f32.mrb[0].mxu0
        %v546 = vadd.f32 %v458, %v545
        %v547 = vpop.f32.mrb[0].mxu0
        %v548 = vpop.f32.mrb[0].mxu0
        %v549 = vpop.f32.mrb[0].mxu0
        %550 = vdwg.mxu0
        %v551 = vadd.f32 %v546, %v251
        %v552 = vrot.slane %v336, 4
        %v553 = vadd.f32 %v336, %v552
        %v554 = vrot.slane %v553, 2
        %v555 = vadd.f32 %v553, %v554
        %v556 = vrot.slane %v555, 1
        %v557 = vadd.f32 %v555, %v556
        %v558 = vrot.slane %v551, 4
        %v559 = vadd.f32 %v551, %v558
        %v560 = vrot.slane %v559, 2
        %v561 = vadd.f32 %v559, %v560
        %v562 = vrot.slane %v561, 1
        %v563 = vadd.f32 %v561, %v562
        %v564 = vadd.f32 %v557, %v563
        %v565 = vmul.f32 %v336, %v336
        %v566 = vrot.slane %v565, 4
        %v567 = vadd.f32 %v565, %v566
        %v568 = vrot.slane %v567, 2
        %v569 = vadd.f32 %v567, %v568
        %v570 = vrot.slane %v569, 1
        %v571 = vadd.f32 %v569, %v570
        %v572 = vmul.f32 %v551, %v551
        %v573 = vrot.slane %v572, 4
        %v574 = vadd.f32 %v572, %v573
        %v575 = vrot.slane %v574, 2
        %v576 = vadd.f32 %v574, %v575
        %v577 = vrot.slane %v576, 1
        %v578 = vadd.f32 %v576, %v577
        %v579 = vadd.f32 %v571, %v578
        %v580 = vrcp.pop 16.0
        %v581 = vmul.f32 %v564, %v580
        %v582 = vmul.f32 %v579, %v580
        %v583 = vmul.f32 %v581, %v581
        %v584 = vsub.f32 %v582, %v583
        %v585 = vmax.f32 %v584, 0.0
        %v586 = vadd.f32 %v585, 1e-05
        %v587 = vrsqrt.pop %v586
        %v588 = vsub.f32 %v336, %v581
        %v589 = vmul.f32 %v588, %v587
        %v590 = vmax.f32 %v589, 0.0
        %v591 = vsub.f32 %v551, %v581
        %v592 = vmul.f32 %v591, %v587
        %v593 = vmax.f32 %v592, 0.0
        %v594 = vpack.c.bf16 %v590, %v590
        %595 = vst [vmem:[%s212] sm:$0xf] %v594
        %v596 = vpack.c.bf16 %v593, %v593
        %597 = vst [vmem:[%s212 + $0x4] sm:$0xf] %v596
        %s598 = sand.u32 %s97, 1
        %s599 = scalar_lea.sflag [#allocation4], %s598
        %s600 = sand.u32 %s97, 1
        %s601 = smul.addr %s600, 8
        %s602 = scalar_lea.vmem [#allocation8], %s601
        // Predicated region
        $region45: #{generator_forward.12} parent=31 // pred_check
          %p603 = pneg %p107
        $region46: #{generator_forward.12} parent=31 // pred_check_branch
          %605 = sbr.rel (%p603) target = $region48
        $region47: #{generator_forward.12} parent=31 // pred_region
          %s607 = ssub.s32 128, 128
          %608 = vsyncadd %s599, %s607
          %s609 = smul.addr %s21, 2
          %s610 = smul.addr %s609, 64
          %s611 = scalar_lea.hbm %s3, %s610
          %s613 = sshll.u32 %s602, 4
          %s614 = int_to_ptr.vmem [resolvable:$true] %s613
          %616 = dma.vmem_to_hbm [thread:$0]  %s614, 128, %s611, %s599
        $region48: #{generator_forward.12} parent=31 // pred_fallthru
          _
      $region32: #{generator_forward.12} parent=5 // pred_fallthru
        _
      %p617 = scmp.le.s32.totalorder 2, %s16
      // Predicated region
      $region49: #{generator_forward.12} parent=5 // pred_check
        %p618 = pneg %p617
      $region50: #{generator_forward.12} parent=5 // pred_check_branch
        %620 = sbr.rel (%p618) target = $region52
      $region51: #{generator_forward.12} parent=5 // pred_region
        %s621 = ssub.s32 %s16, 2
        // Predicated region
        $region53: #{generator_forward.12} parent=51 // pred_check
          %p622 = pneg %p113
        $region54: #{generator_forward.12} parent=51 // pred_check_branch
          %624 = sbr.rel (%p622) target = $region56
        $region55: #{generator_forward.12} parent=51 // pred_region
          %s625 = sand.u32 %s98, 1
          %s626 = scalar_lea.sflag [#allocation4], %s625
          %s627 = sand.u32 %s98, 1
          %s628 = smul.addr %s627, 8
          %s629 = scalar_lea.vmem [#allocation8], %s628
          %630 = dma.done %s626, 128
        $region56: #{generator_forward.12} parent=51 // pred_fallthru
          _
      $region52: #{generator_forward.12} parent=5 // pred_fallthru
        _
    $region6: #{generator_forward.12} parent=1 // loop_footer
      %s20 = sadd.s32 1, %s16
    $region7: #{generator_forward.12} parent=1 // loop_footer_branch
      %15 = sbr.rel target = $region3
    $region8: #{generator_forward.12} parent=1 // loop_exit
      _
    %631 = vsyncpa [#allocation3], 1
    %s632 = scalar_lea.sflag [#allocation3], 1
    %633 = vsyncpa %s632, 1
    %634 = vsyncpa [#allocation6], 1
    %635 = vsyncpa [#allocation4], 1
    %s636 = scalar_lea.sflag [#allocation4], 1
    %637 = vsyncpa %s636, 1

// kernel: generator_forward.11
$region0: #{generator_forward.11}
  #allocation0 [shape = 'u32[]', space=smem, size = 0x4, offset = 0x4, fixed_abs, tag = 'smem constant byte address 0x4 - core index']
  #allocation1 [shape = 'u32[144,128]{1,0:T(1,128)}', space=vmem, size = 0x12000, scoped, tag = 'internal scratch']
  %s0 = inlined_call_operand.hbm [shape: bf16[2,4,128], index: 0, kind: input, shape index: {}]
  %s1 = inlined_call_operand.hbm [shape: bf16[3,128,128], index: 1, kind: input, shape index: {}]
  %s2 = inlined_call_operand.hbm [shape: f32[1,128], index: 2, kind: input, shape index: {}]
  %s3 = inlined_call_operand.hbm [shape: bf16[2,4,256], index: 3, kind: output, shape index: {}]
  %s4 = sld [smem:[#allocation0]]
  $region57: #{generator_forward.11} parent=0
    _
  %s6 = ssub.s32 1, %s4
  %s7 = scalar_select 0, %s6, %s4
  $region1: #{generator_forward.11} parent=0
    #allocation2 [shape = 'u8[2048]{0}', space=vmem, size = 0x800, scoped, tag = 'input window, operand 0']
    #allocation3 [shape = 's32[2]{0}', space=sflag, size = 0x8, scoped, tag = 'scoped memory for generator_forward.11']
    #allocation4 [shape = 's32[2]{0}', space=sflag, size = 0x8, scoped, tag = 'scoped memory for generator_forward.11']
    #allocation5 [shape = 'u8[98304]{0}', space=vmem, size = 0x18000, scoped, tag = 'input window, operand 1, single buffered']
    #allocation6 [shape = 's32[1]{0}', space=sflag, size = 0x4, scoped, tag = 'scoped memory for generator_forward.11']
    #allocation7 [shape = 'u8[512]{0}', space=vmem, size = 0x400, scoped, tag = 'input window, operand 2, single buffered']
    #allocation8 [shape = 'u8[4096]{0}', space=vmem, size = 0x1000, scoped, tag = 'output window, operand 0']
    %8 = vsyncpa [#allocation3], 0
    %s9 = scalar_lea.sflag [#allocation3], 1
    %10 = vsyncpa %s9, 0
    %11 = vsyncpa [#allocation6], 0
    %12 = vsyncpa [#allocation4], 0
    %s13 = scalar_lea.sflag [#allocation4], 1
    %14 = vsyncpa %s13, 0
    loop: start=0, step=1, limit=4
    $region2: #{generator_forward.11} parent=1 // loop_pre_header
      _
    $region3: #{generator_forward.11} parent=1 // loop_header
      %s16 = sphi 0, %s20
      %p17 = scmp.ge.s32.totalorder %s16, 4
      %s26 = sphi 0, %s28
      %s29 = sphi 0, %s26
      %s30 = sphi 0, %s29
      %s46 = sphi 0, %s30
      %s50 = sphi 0, %s50
      %s52 = sphi 0, %s50
      %s53 = sphi 0, %s52
      %s67 = sphi 0, %s53
      %s71 = sphi 0, %s71
      %s73 = sphi 0, %s71
      %s74 = sphi 0, %s73
      %s88 = sphi 0, %s74
      %s94 = sphi 0, %s96
      %s97 = sphi 0, %s94
      %s98 = sphi 0, %s97
      %s114 = sphi 0, %s98
    $region4: #{generator_forward.11} parent=1 // loop_header_branch
      %19 = sbr.rel (%p17) target = $region8
    $region5: #{generator_forward.11} parent=1 // loop_body
      %s21 = ssub.s32 %s16, 1
      %s22 = ssub.s32 %s16, 2
      %s23 = sadd.s32 %s16, 1
      %s24 = ssub.s32 %s16, %s23
      %p25 = scmp.eq.s32.totalorder %s24, 0
      %s27 = sadd.s32 %s26, 1
      %s28 = scalar_select %p25, %s26, %s27
      %p31 = pneg %p25
      %p32 = scmp.eq.s32.totalorder %s16, 1
      %p33 = por %p31, %p32
      %p34 = scmp.ne.s32.totalorder %s26, %s29
      %p35 = scmp.eq.s32.totalorder %s16, 0
      %p36 = por %p34, %p35
      %p37 = scmp.ne.s32.totalorder %s26, %s29
      %p38 = scmp.eq.s32.totalorder %s21, 1
      %p39 = por %p37, %p38
      %p40 = scmp.ne.s32.totalorder %s29, %s30
      %p41 = scmp.eq.s32.totalorder %s21, 0
      %p42 = por %p40, %p41
      %p43 = scmp.ne.s32.totalorder %s29, %s30
      %p44 = scmp.eq.s32.totalorder %s22, 1
      %p45 = por %p43, %p44
      %p47 = scmp.ne.s32.totalorder %s30, %s46
      %p48 = scmp.eq.s32.totalorder %s22, 0
      %p49 = por %p47, %p48
      %s51 = sadd.s32 %s50, 1
      %p54 = scmp.eq.s32.totalorder %s16, 1
      %p55 = scmp.ne.s32.totalorder %s50, %s52
      %p56 = scmp.eq.s32.totalorder %s16, 0
      %p57 = por %p55, %p56
      %p58 = scmp.ne.s32.totalorder %s50, %s52
      %p59 = scmp.eq.s32.totalorder %s21, 1
      %p60 = por %p58, %p59
      %p61 = scmp.ne.s32.totalorder %s52, %s53
      %p62 = scmp.eq.s32.totalorder %s21, 0
      %p63 = por %p61, %p62
      %p64 = scmp.ne.s32.totalorder %s52, %s53
      %p65 = scmp.eq.s32.totalorder %s22, 1
      %p66 = por %p64, %p65
      %p68 = scmp.ne.s32.totalorder %s53, %s67
      %p69 = scmp.eq.s32.totalorder %s22, 0
      %p70 = por %p68, %p69
      %s72 = sadd.s32 %s71, 1
      %p75 = scmp.eq.s32.totalorder %s16, 1
      %p76 = scmp.ne.s32.totalorder %s71, %s73
      %p77 = scmp.eq.s32.totalorder %s16, 0
      %p78 = por %p76, %p77
      %p79 = scmp.ne.s32.totalorder %s71, %s73
      %p80 = scmp.eq.s32.totalorder %s21, 1
      %p81 = por %p79, %p80
      %p82 = scmp.ne.s32.totalorder %s73, %s74
      %p83 = scmp.eq.s32.totalorder %s21, 0
      %p84 = por %p82, %p83
      %p85 = scmp.ne.s32.totalorder %s73, %s74
      %p86 = scmp.eq.s32.totalorder %s22, 1
      %p87 = por %p85, %p86
      %p89 = scmp.ne.s32.totalorder %s74, %s88
      %p90 = scmp.eq.s32.totalorder %s22, 0
      %p91 = por %p89, %p90
      %s92 = ssub.s32 %s16, %s23
      %p93 = scmp.eq.s32.totalorder %s92, 0
      %s95 = sadd.s32 %s94, 1
      %s96 = scalar_select %p93, %s94, %s95
      %p99 = pneg %p93
      %p100 = scmp.eq.s32.totalorder %s16, 1
      %p101 = por %p99, %p100
      %p102 = scmp.ne.s32.totalorder %s94, %s97
      %p103 = scmp.eq.s32.totalorder %s16, 0
      %p104 = por %p102, %p103
      %p105 = scmp.ne.s32.totalorder %s94, %s97
      %p106 = scmp.eq.s32.totalorder %s21, 1
      %p107 = por %p105, %p106
      %p108 = scmp.ne.s32.totalorder %s97, %s98
      %p109 = scmp.eq.s32.totalorder %s21, 0
      %p110 = por %p108, %p109
      %p111 = scmp.ne.s32.totalorder %s97, %s98
      %p112 = scmp.eq.s32.totalorder %s22, 1
      %p113 = por %p111, %p112
      %p115 = scmp.ne.s32.totalorder %s98, %s114
      %p116 = scmp.eq.s32.totalorder %s22, 0
      %p117 = por %p115, %p116
      %p118 = scmp.le.s32.totalorder 1, %s16
      %p119 = scmp.lt.s32.totalorder %s16, 3
      %p120 = pnand %p118, %p119
      %p121 = pneg %p120
      // Predicated region
      $region9: #{generator_forward.11} parent=5 // pred_check
        _
      $region10: #{generator_forward.11} parent=5 // pred_check_branch
        %123 = sbr.rel (%p120) target = $region12
      $region11: #{generator_forward.11} parent=5 // pred_region
        %s124 = ssub.s32 %s16, 1
        // Predicated region
        $region13: #{generator_forward.11} parent=11 // pred_check
          %p125 = pneg %p63
        $region14: #{generator_forward.11} parent=11 // pred_check_branch
          %127 = sbr.rel (%p125) target = $region16
        $region15: #{generator_forward.11} parent=11 // pred_region
          %s129 = ssub.s32 3072, 3072
          %130 = vsyncadd [#allocation6], %s129
          %s131 = sshll.u32 [#allocation5], 4
          %s132 = int_to_ptr.vmem [resolvable:$true] %s131
          %137 = dma.hbm_to_vmem [thread:$0]  %s1, 3072, %s132, [#allocation6], 64, 64, 4
        $region16: #{generator_forward.11} parent=11 // pred_fallthru
          _
        // Predicated region
        $region17: #{generator_forward.11} parent=11 // pred_check
          %p138 = pneg %p84
        $region18: #{generator_forward.11} parent=11 // pred_check_branch
          %140 = sbr.rel (%p138) target = $region20
        $region19: #{generator_forward.11} parent=11 // pred_region
          %s142 = ssub.s32 16, 16
          %143 = vsyncadd [#allocation6], %s142
          %s145 = sshll.u32 [#allocation7], 4
          %s146 = int_to_ptr.vmem [resolvable:$true] %s145
          %148 = dma.hbm_to_vmem [thread:$0]  %s2, 16, %s146, [#allocation6]
        $region20: #{generator_forward.11} parent=11 // pred_fallthru
          _
      $region12: #{generator_forward.11} parent=5 // pred_fallthru
        _
      %p149 = scmp.lt.s32.totalorder %s16, 2
      // Predicated region
      $region21: #{generator_forward.11} parent=5 // pred_check
        %p150 = pneg %p149
      $region22: #{generator_forward.11} parent=5 // pred_check_branch
        %152 = sbr.rel (%p150) target = $region24
      $region23: #{generator_forward.11} parent=5 // pred_region
        // Predicated region
        $region25: #{generator_forward.11} parent=23 // pred_check
          %p153 = pneg %p36
        $region26: #{generator_forward.11} parent=23 // pred_check_branch
          %155 = sbr.rel (%p153) target = $region28
        $region27: #{generator_forward.11} parent=23 // pred_region
          %s156 = sand.u32 %s26, 1
          %s157 = scalar_lea.sflag [#allocation3], %s156
          %s158 = sand.u32 %s26, 1
          %s159 = smul.addr %s158, 2
          %s160 = scalar_lea.vmem [#allocation2], %s159
          %s162 = ssub.s32 32, 32
          %163 = vsyncadd %s157, %s162
          %s164 = smul.addr %s16, 32
          %s165 = scalar_lea.hbm %s0, %s164
          %s167 = sshll.u32 %s160, 4
          %s168 = int_to_ptr.vmem [resolvable:$true] %s167
          %170 = dma.hbm_to_vmem [thread:$0]  %s165, 32, %s168, %s157
        $region28: #{generator_forward.11} parent=23 // pred_fallthru
          _
      $region24: #{generator_forward.11} parent=5 // pred_fallthru
        _
      %p171 = scmp.le.s32.totalorder 1, %s16
      %p172 = scmp.lt.s32.totalorder %s16, 3
      %p173 = pnand %p171, %p172
      %p174 = pneg %p173
      // Predicated region
      $region29: #{generator_forward.11} parent=5 // pred_check
        _
      $region30: #{generator_forward.11} parent=5 // pred_check_branch
        %176 = sbr.rel (%p173) target = $region32
      $region31: #{generator_forward.11} parent=5 // pred_region
        %s177 = ssub.s32 %s16, 1
        %s178 = sand.u32 %s29, 1
        %s179 = scalar_lea.sflag [#allocation3], %s178
        %s180 = sand.u32 %s29, 1
        %s181 = smul.addr %s180, 2
        %s182 = scalar_lea.vmem [#allocation2], %s181
        // Predicated region
        $region33: #{generator_forward.11} parent=31 // pred_check
          %p183 = pneg %p42
        $region34: #{generator_forward.11} parent=31 // pred_check_branch
          %185 = sbr.rel (%p183) target = $region36
        $region35: #{generator_forward.11} parent=31 // pred_region
          %186 = dma.done %s179, 32
        $region36: #{generator_forward.11} parent=31 // pred_fallthru
          _
        // Predicated region
        $region37: #{generator_forward.11} parent=31 // pred_check
          %p187 = pneg %p63
        $region38: #{generator_forward.11} parent=31 // pred_check_branch
          %189 = sbr.rel (%p187) target = $region40
        $region39: #{generator_forward.11} parent=31 // pred_region
          %190 = dma.done [#allocation6], 3072
        $region40: #{generator_forward.11} parent=31 // pred_fallthru
          _
        // Predicated region
        $region41: #{generator_forward.11} parent=31 // pred_check
          %p191 = pneg %p84
        $region42: #{generator_forward.11} parent=31 // pred_check_branch
          %193 = sbr.rel (%p191) target = $region44
        $region43: #{generator_forward.11} parent=31 // pred_region
          %194 = dma.done [#allocation6], 16
        $region44: #{generator_forward.11} parent=31 // pred_fallthru
          _
        %s195 = sand.u32 %s29, 1
        %s196 = scalar_lea.sflag [#allocation3], %s195
        %s197 = sand.u32 %s29, 1
        %s198 = smul.addr %s197, 2
        %s199 = scalar_lea.vmem [#allocation2], %s198
        %p200 = pneg %p42
        %p201 = pneg %p39
        %p202 = pneg %p63
        %p203 = pneg %p60
        %p204 = pneg %p84
        %p205 = pneg %p81
        %p206 = pneg %p110
        %p207 = pneg %p107
        %s208 = sand.u32 %s97, 1
        %s209 = scalar_lea.sflag [#allocation4], %s208
        %s210 = sand.u32 %s97, 1
        %s211 = smul.addr %s210, 4
        %s212 = scalar_lea.vmem [#allocation8], %s211
        %v214 = vld [vmem:[%s182] sm:$0x3]
        %v217 = vunpack.c.l.s4 1983009808
        %v218 = vunpack.c.0.s8 %v217
        %v219 = vlaneseq
        %v220 = vshrl.u32 %v219, 7
        %v221 = vsub.s32 %v218, %v220
        %v222 = vrot.slane %v214, %v221
        %v224 = vshrl.u32 %v222, 16
        %v226 = vshll.u32 %v222, 16
        %v228 = vrot.slane %v226, 1
        %v229 = vor.u32 %v224, %v228
        %vm231 = vcmask 1041408
        %vm232 = vsmask.f32 1280
        %vm233 = vmand %vm231, %vm232
        %v234 = vsel %vm233, %v229, 0
        %v235 = vld [vmem:[#allocation7] sm:$0x1]
        %v236 = vld [vmem:[#allocation5] sm:$0xf]
        %v237 = vld [vmem:[#allocation5 + $0x4] sm:$0xf]
        %v238 = vld [vmem:[#allocation5 + $0x8] sm:$0xf]
        %v239 = vld [vmem:[#allocation5 + $0xc] sm:$0xf]
        %v240 = vld [vmem:[#allocation5 + $0x10] sm:$0xf]
        %v241 = vld [vmem:[#allocation5 + $0x14] sm:$0xf]
        %v242 = vld [vmem:[#allocation5 + $0x18] sm:$0xf]
        %v243 = vld [vmem:[#allocation5 + $0x1c] sm:$0xf]
        %v244 = vld [vmem:[#allocation5 + $0x20] sm:$0xf]
        %v245 = vld [vmem:[#allocation5 + $0x24] sm:$0xf]
        %v246 = vld [vmem:[#allocation5 + $0x28] sm:$0xf]
        %v247 = vld [vmem:[#allocation5 + $0x2c] sm:$0xf]
        %v248 = vld [vmem:[#allocation5 + $0x30] sm:$0xf]
        %v249 = vld [vmem:[#allocation5 + $0x34] sm:$0xf]
        %v250 = vld [vmem:[#allocation5 + $0x38] sm:$0xf]
        %v251 = vld [vmem:[#allocation5 + $0x3c] sm:$0xf]
        %v253 = vlaneseq
        %v254 = vshrl.u32 %v253, 7
        %v255 = vsub.s32 0, %v254
        %v256 = vrot.slane %v235, %v255
        %v274 = vunpack.c.l.b16 %v236
        %v275 = vunpack.c.l.b16 %v237
        %v276 = vunpack.c.l.b16 %v238
        %v277 = vunpack.c.l.b16 %v239
        %v278 = vunpack.c.l.b16 %v240
        %v279 = vunpack.c.l.b16 %v241
        %v280 = vunpack.c.l.b16 %v242
        %v281 = vunpack.c.l.b16 %v243
        %v282 = vunpack.c.l.b16 %v244
        %v283 = vunpack.c.l.b16 %v245
        %v284 = vunpack.c.l.b16 %v246
        %v285 = vunpack.c.l.b16 %v247
        %v286 = vunpack.c.l.b16 %v248
        %v287 = vunpack.c.l.b16 %v249
        %v288 = vunpack.c.l.b16 %v250
        %v289 = vunpack.c.l.b16 %v251
        %v290 = vpack.c.b16 %v275, %v274
        %v291 = vpack.c.b16 %v277, %v276
        %v292 = vpack.c.b16 %v279, %v278
        %v293 = vpack.c.b16 %v281, %v280
        %v294 = vpack.c.b16 %v283, %v282
        %v295 = vpack.c.b16 %v285, %v284
        %v296 = vpack.c.b16 %v287, %v286
        %v297 = vpack.c.b16 %v289, %v288
        %306 = vmatprep.subr.bf16.mxu0 0
        %307 = vmatpush1.bf16.msra.mxu0 %v290
        %308 = vmatprep.subr.bf16.mxu0 0
        %309 = vmatpush1.bf16.msra.mxu0 %v291
        %310 = vmatprep.subr.bf16.mxu0 0
        %311 = vmatpush1.bf16.msra.mxu0 %v292
        %312 = vmatprep.subr.bf16.mxu0 0
        %313 = vmatpush1.bf16.msra.mxu0 %v293
        %314 = vmatprep.subr.bf16.mxu0 0
        %315 = vmatpush1.bf16.msra.mxu0 %v294
        %316 = vmatprep.subr.bf16.mxu0 0
        %317 = vmatpush1.bf16.msra.mxu0 %v295
        %318 = vmatprep.subr.bf16.mxu0 0
        %319 = vmatpush1.bf16.msra.mxu0 %v296
        %320 = vmatprep.subr.bf16.mxu0 0
        %321 = vmatpush1.bf16.msra.mxu0 %v297
        %322 = vmatprep.subr.bf16.mxu0 0
        %323 = vmatpush1.bf16.msra.mxu0 0
        %324 = vmatprep.subr.bf16.mxu0 0
        %325 = vmatpush1.bf16.msra.mxu0 0
        %326 = vmatprep.subr.bf16.mxu0 0
        %327 = vmatpush1.bf16.msra.mxu0 0
        %328 = vmatprep.subr.bf16.mxu0 0
        %329 = vmatpush1.bf16.msra.mxu0 0
        %330 = vmatprep.subr.bf16.mxu0 0
        %331 = vmatpush1.bf16.msra.mxu0 0
        %332 = vmatprep.subr.bf16.mxu0 0
        %333 = vmatpush1.bf16.msra.mxu0 0
        %334 = vmatprep.subr.bf16.mxu0 0
        %335 = vmatpush1.bf16.msra.mxu0 0
        %336 = vmatprep.subr.bf16.mxu0 0
        %337 = vmatpush1.bf16.msra.mxu0 0
        %338 = vmatprep.mubr.bf16.mxu0 0
        %339 = vmatmul.mubr.bf16.gmra.mrb[0].mxu0 %v214
        %v340 = vpop.f32.mrb[0].mxu0
        %v341 = vadd.f32 %v256, %v340
        %v342 = vpop.f32.mrb[0].mxu0
        %v343 = vpop.f32.mrb[0].mxu0
        %v344 = vpop.f32.mrb[0].mxu0
        %345 = vdwg.mxu0
        %s346 = scalar_lea.vmem [#allocation5], 64
        %v347 = vld [vmem:[%s346] sm:$0xf]
        %v348 = vld [vmem:[%s346 + $0x4] sm:$0xf]
        %v349 = vld [vmem:[%s346 + $0x8] sm:$0xf]
        %v350 = vld [vmem:[%s346 + $0xc] sm:$0xf]
        %v351 = vld [vmem:[%s346 + $0x10] sm:$0xf]
        %v352 = vld [vmem:[%s346 + $0x14] sm:$0xf]
        %v353 = vld [vmem:[%s346 + $0x18] sm:$0xf]
        %v354 = vld [vmem:[%s346 + $0x1c] sm:$0xf]
        %v355 = vld [vmem:[%s346 + $0x20] sm:$0xf]
        %v356 = vld [vmem:[%s346 + $0x24] sm:$0xf]
        %v357 = vld [vmem:[%s346 + $0x28] sm:$0xf]
        %v358 = vld [vmem:[%s346 + $0x2c] sm:$0xf]
        %v359 = vld [vmem:[%s346 + $0x30] sm:$0xf]
        %v360 = vld [vmem:[%s346 + $0x34] sm:$0xf]
        %v361 = vld [vmem:[%s346 + $0x38] sm:$0xf]
        %v362 = vld [vmem:[%s346 + $0x3c] sm:$0xf]
        %s363 = scalar_lea.vmem [#allocation5], 128
        %v364 = vld [vmem:[%s363] sm:$0xf]
        %v365 = vld [vmem:[%s363 + $0x4] sm:$0xf]
        %v366 = vld [vmem:[%s363 + $0x8] sm:$0xf]
        %v367 = vld [vmem:[%s363 + $0xc] sm:$0xf]
        %v368 = vld [vmem:[%s363 + $0x10] sm:$0xf]
        %v369 = vld [vmem:[%s363 + $0x14] sm:$0xf]
        %v370 = vld [vmem:[%s363 + $0x18] sm:$0xf]
        %v371 = vld [vmem:[%s363 + $0x1c] sm:$0xf]
        %v372 = vld [vmem:[%s363 + $0x20] sm:$0xf]
        %v373 = vld [vmem:[%s363 + $0x24] sm:$0xf]
        %v374 = vld [vmem:[%s363 + $0x28] sm:$0xf]
        %v375 = vld [vmem:[%s363 + $0x2c] sm:$0xf]
        %v376 = vld [vmem:[%s363 + $0x30] sm:$0xf]
        %v377 = vld [vmem:[%s363 + $0x34] sm:$0xf]
        %v378 = vld [vmem:[%s363 + $0x38] sm:$0xf]
        %v379 = vld [vmem:[%s363 + $0x3c] sm:$0xf]
        %v396 = vunpack.c.l.b16 %v364
        %v397 = vunpack.c.l.b16 %v365
        %v398 = vunpack.c.l.b16 %v366
        %v399 = vunpack.c.l.b16 %v367
        %v400 = vunpack.c.l.b16 %v368
        %v401 = vunpack.c.l.b16 %v369
        %v402 = vunpack.c.l.b16 %v370
        %v403 = vunpack.c.l.b16 %v371
        %v404 = vunpack.c.l.b16 %v372
        %v405 = vunpack.c.l.b16 %v373
        %v406 = vunpack.c.l.b16 %v374
        %v407 = vunpack.c.l.b16 %v375
        %v408 = vunpack.c.l.b16 %v376
        %v409 = vunpack.c.l.b16 %v377
        %v410 = vunpack.c.l.b16 %v378
        %v411 = vunpack.c.l.b16 %v379
        %v412 = vpack.c.b16 %v397, %v396
        %v413 = vpack.c.b16 %v399, %v398
        %v414 = vpack.c.b16 %v401, %v400
        %v415 = vpack.c.b16 %v403, %v402
        %v416 = vpack.c.b16 %v405, %v404
        %v417 = vpack.c.b16 %v407, %v406
        %v418 = vpack.c.b16 %v409, %v408
        %v419 = vpack.c.b16 %v411, %v410
        %428 = vmatprep.subr.bf16.mxu0 0
        %429 = vmatpush1.bf16.msra.mxu0 %v412
        %430 = vmatprep.subr.bf16.mxu0 0
        %431 = vmatpush1.bf16.msra.mxu0 %v413
        %432 = vmatprep.subr.bf16.mxu0 0
        %433 = vmatpush1.bf16.msra.mxu0 %v414
        %434 = vmatprep.subr.bf16.mxu0 0
        %435 = vmatpush1.bf16.msra.mxu0 %v415
        %436 = vmatprep.subr.bf16.mxu0 0
        %437 = vmatpush1.bf16.msra.mxu0 %v416
        %438 = vmatprep.subr.bf16.mxu0 0
        %439 = vmatpush1.bf16.msra.mxu0 %v417
        %440 = vmatprep.subr.bf16.mxu0 0
        %441 = vmatpush1.bf16.msra.mxu0 %v418
        %442 = vmatprep.subr.bf16.mxu0 0
        %443 = vmatpush1.bf16.msra.mxu0 %v419
        %444 = vmatprep.subr.bf16.mxu0 0
        %445 = vmatpush1.bf16.msra.mxu0 0
        %446 = vmatprep.subr.bf16.mxu0 0
        %447 = vmatpush1.bf16.msra.mxu0 0
        %448 = vmatprep.subr.bf16.mxu0 0
        %449 = vmatpush1.bf16.msra.mxu0 0
        %450 = vmatprep.subr.bf16.mxu0 0
        %451 = vmatpush1.bf16.msra.mxu0 0
        %452 = vmatprep.subr.bf16.mxu0 0
        %453 = vmatpush1.bf16.msra.mxu0 0
        %454 = vmatprep.subr.bf16.mxu0 0
        %455 = vmatpush1.bf16.msra.mxu0 0
        %456 = vmatprep.subr.bf16.mxu0 0
        %457 = vmatpush1.bf16.msra.mxu0 0
        %458 = vmatprep.subr.bf16.mxu0 0
        %459 = vmatpush1.bf16.msra.mxu0 0
        %460 = vmatprep.mubr.bf16.mxu0 0
        %461 = vmatmul.mubr.bf16.gmra.mrb[0].mxu0 %v234
        %v462 = vpop.f32.mrb[0].mxu0
        %v463 = vadd.f32 0.0, %v462
        %v464 = vpop.f32.mrb[0].mxu0
        %v465 = vpop.f32.mrb[0].mxu0
        %v466 = vpop.f32.mrb[0].mxu0
        %467 = vdwg.mxu0
        %v484 = vunpack.c.l.b16 %v347
        %v485 = vunpack.c.l.b16 %v348
        %v486 = vunpack.c.l.b16 %v349
        %v487 = vunpack.c.l.b16 %v350
        %v488 = vunpack.c.l.b16 %v351
        %v489 = vunpack.c.l.b16 %v352
        %v490 = vunpack.c.l.b16 %v353
        %v491 = vunpack.c.l.b16 %v354
        %v492 = vunpack.c.l.b16 %v355
        %v493 = vunpack.c.l.b16 %v356
        %v494 = vunpack.c.l.b16 %v357
        %v495 = vunpack.c.l.b16 %v358
        %v496 = vunpack.c.l.b16 %v359
        %v497 = vunpack.c.l.b16 %v360
        %v498 = vunpack.c.l.b16 %v361
        %v499 = vunpack.c.l.b16 %v362
        %v500 = vpack.c.b16 %v485, %v484
        %v501 = vpack.c.b16 %v487, %v486
        %v502 = vpack.c.b16 %v489, %v488
        %v503 = vpack.c.b16 %v491, %v490
        %v504 = vpack.c.b16 %v493, %v492
        %v505 = vpack.c.b16 %v495, %v494
        %v506 = vpack.c.b16 %v497, %v496
        %v507 = vpack.c.b16 %v499, %v498
        %516 = vmatprep.subr.bf16.mxu0 0
        %517 = vmatpush1.bf16.msra.mxu0 %v500
        %518 = vmatprep.subr.bf16.mxu0 0
        %519 = vmatpush1.bf16.msra.mxu0 %v501
        %520 = vmatprep.subr.bf16.mxu0 0
        %521 = vmatpush1.bf16.msra.mxu0 %v502
        %522 = vmatprep.subr.bf16.mxu0 0
        %523 = vmatpush1.bf16.msra.mxu0 %v503
        %524 = vmatprep.subr.bf16.mxu0 0
        %525 = vmatpush1.bf16.msra.mxu0 %v504
        %526 = vmatprep.subr.bf16.mxu0 0
        %527 = vmatpush1.bf16.msra.mxu0 %v505
        %528 = vmatprep.subr.bf16.mxu0 0
        %529 = vmatpush1.bf16.msra.mxu0 %v506
        %530 = vmatprep.subr.bf16.mxu0 0
        %531 = vmatpush1.bf16.msra.mxu0 %v507
        %532 = vmatprep.subr.bf16.mxu0 0
        %533 = vmatpush1.bf16.msra.mxu0 0
        %534 = vmatprep.subr.bf16.mxu0 0
        %535 = vmatpush1.bf16.msra.mxu0 0
        %536 = vmatprep.subr.bf16.mxu0 0
        %537 = vmatpush1.bf16.msra.mxu0 0
        %538 = vmatprep.subr.bf16.mxu0 0
        %539 = vmatpush1.bf16.msra.mxu0 0
        %540 = vmatprep.subr.bf16.mxu0 0
        %541 = vmatpush1.bf16.msra.mxu0 0
        %542 = vmatprep.subr.bf16.mxu0 0
        %543 = vmatpush1.bf16.msra.mxu0 0
        %544 = vmatprep.subr.bf16.mxu0 0
        %545 = vmatpush1.bf16.msra.mxu0 0
        %546 = vmatprep.subr.bf16.mxu0 0
        %547 = vmatpush1.bf16.msra.mxu0 0
        %548 = vmatprep.mubr.bf16.mxu0 0
        %549 = vmatmul.mubr.bf16.gmra.mrb[0].mxu0 %v214
        %v550 = vpop.f32.mrb[0].mxu0
        %v551 = vadd.f32 %v463, %v550
        %v552 = vpop.f32.mrb[0].mxu0
        %v553 = vpop.f32.mrb[0].mxu0
        %v554 = vpop.f32.mrb[0].mxu0
        %555 = vdwg.mxu0
        %v556 = vadd.f32 %v551, %v256
        %vm557 = vcmask 1043456
        %v558 = vsel %vm557, %v341, 0.0
        %v559 = vrot.slane %v558, 4
        %v560 = vadd.f32 %v558, %v559
        %v561 = vrot.slane %v560, 2
        %v562 = vadd.f32 %v560, %v561
        %v563 = vrot.slane %v562, 1
        %v564 = vadd.f32 %v562, %v563
        %v565 = vsel %vm557, %v556, 0.0
        %v566 = vrot.slane %v565, 4
        %v567 = vadd.f32 %v565, %v566
        %v568 = vrot.slane %v567, 2
        %v569 = vadd.f32 %v567, %v568
        %v570 = vrot.slane %v569, 1
        %v571 = vadd.f32 %v569, %v570
        %v572 = vadd.f32 %v564, %v571
        %v573 = vmul.f32 %v341, %v341
        %v574 = vsel %vm557, %v573, 0.0
        %v575 = vrot.slane %v574, 4
        %v576 = vadd.f32 %v574, %v575
        %v577 = vrot.slane %v576, 2
        %v578 = vadd.f32 %v576, %v577
        %v579 = vrot.slane %v578, 1
        %v580 = vadd.f32 %v578, %v579
        %v581 = vmul.f32 %v556, %v556
        %v582 = vsel %vm557, %v581, 0.0
        %v583 = vrot.slane %v582, 4
        %v584 = vadd.f32 %v582, %v583
        %v585 = vrot.slane %v584, 2
        %v586 = vadd.f32 %v584, %v585
        %v587 = vrot.slane %v586, 1
        %v588 = vadd.f32 %v586, %v587
        %v589 = vadd.f32 %v580, %v588
        %v590 = vrcp.pop 8.0
        %v591 = vmul.f32 %v572, %v590
        %v592 = vmul.f32 %v589, %v590
        %v593 = vmul.f32 %v591, %v591
        %v594 = vsub.f32 %v592, %v593
        %v595 = vmax.f32 %v594, 0.0
        %v596 = vadd.f32 %v595, 1e-05
        %v597 = vrsqrt.pop %v596
        %v598 = vsub.f32 %v341, %v591
        %v599 = vmul.f32 %v598, %v597
        %v600 = vmax.f32 %v599, 0.0
        %v601 = vsub.f32 %v556, %v591
        %v602 = vmul.f32 %v601, %v597
        %v603 = vmax.f32 %v602, 0.0
        %v604 = vpack.c.bf16 %v600, %v600
        %605 = vst [vmem:[%s212] sm:$0x3] %v604
        %v606 = vpack.c.bf16 %v603, %v603
        %607 = vst [vmem:[%s212 + $0x2] sm:$0x3] %v606
        %s608 = sand.u32 %s97, 1
        %s609 = scalar_lea.sflag [#allocation4], %s608
        %s610 = sand.u32 %s97, 1
        %s611 = smul.addr %s610, 4
        %s612 = scalar_lea.vmem [#allocation8], %s611
        // Predicated region
        $region45: #{generator_forward.11} parent=31 // pred_check
          %p613 = pneg %p107
        $region46: #{generator_forward.11} parent=31 // pred_check_branch
          %615 = sbr.rel (%p613) target = $region48
        $region47: #{generator_forward.11} parent=31 // pred_region
          %s617 = ssub.s32 64, 64
          %618 = vsyncadd %s609, %s617
          %s619 = smul.addr %s21, 2
          %s620 = smul.addr %s619, 32
          %s621 = scalar_lea.hbm %s3, %s620
          %s623 = sshll.u32 %s612, 4
          %s624 = int_to_ptr.vmem [resolvable:$true] %s623
          %626 = dma.vmem_to_hbm [thread:$0]  %s624, 64, %s621, %s609
        $region48: #{generator_forward.11} parent=31 // pred_fallthru
          _
      $region32: #{generator_forward.11} parent=5 // pred_fallthru
        _
      %p627 = scmp.le.s32.totalorder 2, %s16
      // Predicated region
      $region49: #{generator_forward.11} parent=5 // pred_check
        %p628 = pneg %p627
      $region50: #{generator_forward.11} parent=5 // pred_check_branch
        %630 = sbr.rel (%p628) target = $region52
      $region51: #{generator_forward.11} parent=5 // pred_region
        %s631 = ssub.s32 %s16, 2
        // Predicated region
        $region53: #{generator_forward.11} parent=51 // pred_check
          %p632 = pneg %p113
        $region54: #{generator_forward.11} parent=51 // pred_check_branch
          %634 = sbr.rel (%p632) target = $region56
        $region55: #{generator_forward.11} parent=51 // pred_region
          %s635 = sand.u32 %s98, 1
          %s636 = scalar_lea.sflag [#allocation4], %s635
          %s637 = sand.u32 %s98, 1
          %s638 = smul.addr %s637, 4
          %s639 = scalar_lea.vmem [#allocation8], %s638
          %640 = dma.done %s636, 64
        $region56: #{generator_forward.11} parent=51 // pred_fallthru
          _
      $region52: #{generator_forward.11} parent=5 // pred_fallthru
        _
    $region6: #{generator_forward.11} parent=1 // loop_footer
      %s20 = sadd.s32 1, %s16
    $region7: #{generator_forward.11} parent=1 // loop_footer_branch
      %15 = sbr.rel target = $region3
    $region8: #{generator_forward.11} parent=1 // loop_exit
      _
    %641 = vsyncpa [#allocation3], 1
    %s642 = scalar_lea.sflag [#allocation3], 1
    %643 = vsyncpa %s642, 1
    %644 = vsyncpa [#allocation6], 1
    %645 = vsyncpa [#allocation4], 1
    %s646 = scalar_lea.sflag [#allocation4], 1
    %647 = vsyncpa %s646, 1

// kernel: generator_forward.13
$region0: #{generator_forward.13}
  #allocation0 [shape = 'u32[]', space=smem, size = 0x4, offset = 0x4, fixed_abs, tag = 'smem constant byte address 0x4 - core index']
  #allocation1 [shape = 'u32[144,128]{1,0:T(1,128)}', space=vmem, size = 0x12000, scoped, tag = 'internal scratch']
  %s0 = inlined_call_operand.hbm [shape: bf16[2,16,128], index: 0, kind: input, shape index: {}]
  %s1 = inlined_call_operand.hbm [shape: bf16[7,128,128], index: 1, kind: input, shape index: {}]
  %s2 = inlined_call_operand.hbm [shape: f32[1,128], index: 2, kind: input, shape index: {}]
  %s3 = inlined_call_operand.hbm [shape: bf16[2,16,128], index: 3, kind: output, shape index: {}]
  %s4 = sld [smem:[#allocation0]]
  $region57: #{generator_forward.13} parent=0
    _
  %s6 = ssub.s32 1, %s4
  %s7 = scalar_select 0, %s6, %s4
  $region1: #{generator_forward.13} parent=0
    #allocation2 [shape = 'u8[8192]{0}', space=vmem, size = 0x2000, scoped, tag = 'input window, operand 0']
    #allocation3 [shape = 's32[2]{0}', space=sflag, size = 0x8, scoped, tag = 'scoped memory for generator_forward.13']
    #allocation4 [shape = 's32[2]{0}', space=sflag, size = 0x8, scoped, tag = 'scoped memory for generator_forward.13']
    #allocation5 [shape = 'u8[229376]{0}', space=vmem, size = 0x38000, scoped, tag = 'input window, operand 1, single buffered']
    #allocation6 [shape = 's32[1]{0}', space=sflag, size = 0x4, scoped, tag = 'scoped memory for generator_forward.13']
    #allocation7 [shape = 'u8[512]{0}', space=vmem, size = 0x400, scoped, tag = 'input window, operand 2, single buffered']
    #allocation8 [shape = 'u8[8192]{0}', space=vmem, size = 0x2000, scoped, tag = 'output window, operand 0']
    %8 = vsyncpa [#allocation3], 0
    %s9 = scalar_lea.sflag [#allocation3], 1
    %10 = vsyncpa %s9, 0
    %11 = vsyncpa [#allocation6], 0
    %12 = vsyncpa [#allocation4], 0
    %s13 = scalar_lea.sflag [#allocation4], 1
    %14 = vsyncpa %s13, 0
    loop: start=0, step=1, limit=4
    $region2: #{generator_forward.13} parent=1 // loop_pre_header
      _
    $region3: #{generator_forward.13} parent=1 // loop_header
      %s16 = sphi 0, %s20
      %p17 = scmp.ge.s32.totalorder %s16, 4
      %s26 = sphi 0, %s28
      %s29 = sphi 0, %s26
      %s30 = sphi 0, %s29
      %s46 = sphi 0, %s30
      %s50 = sphi 0, %s50
      %s52 = sphi 0, %s50
      %s53 = sphi 0, %s52
      %s67 = sphi 0, %s53
      %s71 = sphi 0, %s71
      %s73 = sphi 0, %s71
      %s74 = sphi 0, %s73
      %s88 = sphi 0, %s74
      %s94 = sphi 0, %s96
      %s97 = sphi 0, %s94
      %s98 = sphi 0, %s97
      %s114 = sphi 0, %s98
    $region4: #{generator_forward.13} parent=1 // loop_header_branch
      %19 = sbr.rel (%p17) target = $region8
    $region5: #{generator_forward.13} parent=1 // loop_body
      %s21 = ssub.s32 %s16, 1
      %s22 = ssub.s32 %s16, 2
      %s23 = sadd.s32 %s16, 1
      %s24 = ssub.s32 %s16, %s23
      %p25 = scmp.eq.s32.totalorder %s24, 0
      %s27 = sadd.s32 %s26, 1
      %s28 = scalar_select %p25, %s26, %s27
      %p31 = pneg %p25
      %p32 = scmp.eq.s32.totalorder %s16, 1
      %p33 = por %p31, %p32
      %p34 = scmp.ne.s32.totalorder %s26, %s29
      %p35 = scmp.eq.s32.totalorder %s16, 0
      %p36 = por %p34, %p35
      %p37 = scmp.ne.s32.totalorder %s26, %s29
      %p38 = scmp.eq.s32.totalorder %s21, 1
      %p39 = por %p37, %p38
      %p40 = scmp.ne.s32.totalorder %s29, %s30
      %p41 = scmp.eq.s32.totalorder %s21, 0
      %p42 = por %p40, %p41
      %p43 = scmp.ne.s32.totalorder %s29, %s30
      %p44 = scmp.eq.s32.totalorder %s22, 1
      %p45 = por %p43, %p44
      %p47 = scmp.ne.s32.totalorder %s30, %s46
      %p48 = scmp.eq.s32.totalorder %s22, 0
      %p49 = por %p47, %p48
      %s51 = sadd.s32 %s50, 1
      %p54 = scmp.eq.s32.totalorder %s16, 1
      %p55 = scmp.ne.s32.totalorder %s50, %s52
      %p56 = scmp.eq.s32.totalorder %s16, 0
      %p57 = por %p55, %p56
      %p58 = scmp.ne.s32.totalorder %s50, %s52
      %p59 = scmp.eq.s32.totalorder %s21, 1
      %p60 = por %p58, %p59
      %p61 = scmp.ne.s32.totalorder %s52, %s53
      %p62 = scmp.eq.s32.totalorder %s21, 0
      %p63 = por %p61, %p62
      %p64 = scmp.ne.s32.totalorder %s52, %s53
      %p65 = scmp.eq.s32.totalorder %s22, 1
      %p66 = por %p64, %p65
      %p68 = scmp.ne.s32.totalorder %s53, %s67
      %p69 = scmp.eq.s32.totalorder %s22, 0
      %p70 = por %p68, %p69
      %s72 = sadd.s32 %s71, 1
      %p75 = scmp.eq.s32.totalorder %s16, 1
      %p76 = scmp.ne.s32.totalorder %s71, %s73
      %p77 = scmp.eq.s32.totalorder %s16, 0
      %p78 = por %p76, %p77
      %p79 = scmp.ne.s32.totalorder %s71, %s73
      %p80 = scmp.eq.s32.totalorder %s21, 1
      %p81 = por %p79, %p80
      %p82 = scmp.ne.s32.totalorder %s73, %s74
      %p83 = scmp.eq.s32.totalorder %s21, 0
      %p84 = por %p82, %p83
      %p85 = scmp.ne.s32.totalorder %s73, %s74
      %p86 = scmp.eq.s32.totalorder %s22, 1
      %p87 = por %p85, %p86
      %p89 = scmp.ne.s32.totalorder %s74, %s88
      %p90 = scmp.eq.s32.totalorder %s22, 0
      %p91 = por %p89, %p90
      %s92 = ssub.s32 %s16, %s23
      %p93 = scmp.eq.s32.totalorder %s92, 0
      %s95 = sadd.s32 %s94, 1
      %s96 = scalar_select %p93, %s94, %s95
      %p99 = pneg %p93
      %p100 = scmp.eq.s32.totalorder %s16, 1
      %p101 = por %p99, %p100
      %p102 = scmp.ne.s32.totalorder %s94, %s97
      %p103 = scmp.eq.s32.totalorder %s16, 0
      %p104 = por %p102, %p103
      %p105 = scmp.ne.s32.totalorder %s94, %s97
      %p106 = scmp.eq.s32.totalorder %s21, 1
      %p107 = por %p105, %p106
      %p108 = scmp.ne.s32.totalorder %s97, %s98
      %p109 = scmp.eq.s32.totalorder %s21, 0
      %p110 = por %p108, %p109
      %p111 = scmp.ne.s32.totalorder %s97, %s98
      %p112 = scmp.eq.s32.totalorder %s22, 1
      %p113 = por %p111, %p112
      %p115 = scmp.ne.s32.totalorder %s98, %s114
      %p116 = scmp.eq.s32.totalorder %s22, 0
      %p117 = por %p115, %p116
      %p118 = scmp.le.s32.totalorder 1, %s16
      %p119 = scmp.lt.s32.totalorder %s16, 3
      %p120 = pnand %p118, %p119
      %p121 = pneg %p120
      // Predicated region
      $region9: #{generator_forward.13} parent=5 // pred_check
        _
      $region10: #{generator_forward.13} parent=5 // pred_check_branch
        %123 = sbr.rel (%p120) target = $region12
      $region11: #{generator_forward.13} parent=5 // pred_region
        %s124 = ssub.s32 %s16, 1
        // Predicated region
        $region13: #{generator_forward.13} parent=11 // pred_check
          %p125 = pneg %p63
        $region14: #{generator_forward.13} parent=11 // pred_check_branch
          %127 = sbr.rel (%p125) target = $region16
        $region15: #{generator_forward.13} parent=11 // pred_region
          %s129 = ssub.s32 7168, 7168
          %130 = vsyncadd [#allocation6], %s129
          %s131 = sshll.u32 [#allocation5], 4
          %s132 = int_to_ptr.vmem [resolvable:$true] %s131
          %137 = dma.hbm_to_vmem [thread:$0]  %s1, 7168, %s132, [#allocation6], 64, 64, 4
        $region16: #{generator_forward.13} parent=11 // pred_fallthru
          _
        // Predicated region
        $region17: #{generator_forward.13} parent=11 // pred_check
          %p138 = pneg %p84
        $region18: #{generator_forward.13} parent=11 // pred_check_branch
          %140 = sbr.rel (%p138) target = $region20
        $region19: #{generator_forward.13} parent=11 // pred_region
          %s142 = ssub.s32 16, 16
          %143 = vsyncadd [#allocation6], %s142
          %s145 = sshll.u32 [#allocation7], 4
          %s146 = int_to_ptr.vmem [resolvable:$true] %s145
          %148 = dma.hbm_to_vmem [thread:$0]  %s2, 16, %s146, [#allocation6]
        $region20: #{generator_forward.13} parent=11 // pred_fallthru
          _
      $region12: #{generator_forward.13} parent=5 // pred_fallthru
        _
      %p149 = scmp.lt.s32.totalorder %s16, 2
      // Predicated region
      $region21: #{generator_forward.13} parent=5 // pred_check
        %p150 = pneg %p149
      $region22: #{generator_forward.13} parent=5 // pred_check_branch
        %152 = sbr.rel (%p150) target = $region24
      $region23: #{generator_forward.13} parent=5 // pred_region
        // Predicated region
        $region25: #{generator_forward.13} parent=23 // pred_check
          %p153 = pneg %p36
        $region26: #{generator_forward.13} parent=23 // pred_check_branch
          %155 = sbr.rel (%p153) target = $region28
        $region27: #{generator_forward.13} parent=23 // pred_region
          %s156 = sand.u32 %s26, 1
          %s157 = scalar_lea.sflag [#allocation3], %s156
          %s158 = sand.u32 %s26, 1
          %s159 = smul.addr %s158, 8
          %s160 = scalar_lea.vmem [#allocation2], %s159
          %s162 = ssub.s32 128, 128
          %163 = vsyncadd %s157, %s162
          %s164 = smul.addr %s16, 2
          %s165 = smul.addr %s164, 64
          %s166 = scalar_lea.hbm %s0, %s165
          %s167 = sshll.u32 %s160, 4
          %s168 = int_to_ptr.vmem [resolvable:$true] %s167
          %173 = dma.hbm_to_vmem [thread:$0]  %s166, 128, %s168, %s157, 64, 64, 4
        $region28: #{generator_forward.13} parent=23 // pred_fallthru
          _
      $region24: #{generator_forward.13} parent=5 // pred_fallthru
        _
      %p174 = scmp.le.s32.totalorder 1, %s16
      %p175 = scmp.lt.s32.totalorder %s16, 3
      %p176 = pnand %p174, %p175
      %p177 = pneg %p176
      // Predicated region
      $region29: #{generator_forward.13} parent=5 // pred_check
        _
      $region30: #{generator_forward.13} parent=5 // pred_check_branch
        %179 = sbr.rel (%p176) target = $region32
      $region31: #{generator_forward.13} parent=5 // pred_region
        %s180 = ssub.s32 %s16, 1
        %s181 = sand.u32 %s29, 1
        %s182 = scalar_lea.sflag [#allocation3], %s181
        %s183 = sand.u32 %s29, 1
        %s184 = smul.addr %s183, 8
        %s185 = scalar_lea.vmem [#allocation2], %s184
        // Predicated region
        $region33: #{generator_forward.13} parent=31 // pred_check
          %p186 = pneg %p42
        $region34: #{generator_forward.13} parent=31 // pred_check_branch
          %188 = sbr.rel (%p186) target = $region36
        $region35: #{generator_forward.13} parent=31 // pred_region
          %189 = dma.done %s182, 128
        $region36: #{generator_forward.13} parent=31 // pred_fallthru
          _
        // Predicated region
        $region37: #{generator_forward.13} parent=31 // pred_check
          %p190 = pneg %p63
        $region38: #{generator_forward.13} parent=31 // pred_check_branch
          %192 = sbr.rel (%p190) target = $region40
        $region39: #{generator_forward.13} parent=31 // pred_region
          %193 = dma.done [#allocation6], 7168
        $region40: #{generator_forward.13} parent=31 // pred_fallthru
          _
        // Predicated region
        $region41: #{generator_forward.13} parent=31 // pred_check
          %p194 = pneg %p84
        $region42: #{generator_forward.13} parent=31 // pred_check_branch
          %196 = sbr.rel (%p194) target = $region44
        $region43: #{generator_forward.13} parent=31 // pred_region
          %197 = dma.done [#allocation6], 16
        $region44: #{generator_forward.13} parent=31 // pred_fallthru
          _
        %s198 = sand.u32 %s29, 1
        %s199 = scalar_lea.sflag [#allocation3], %s198
        %s200 = sand.u32 %s29, 1
        %s201 = smul.addr %s200, 8
        %s202 = scalar_lea.vmem [#allocation2], %s201
        %p203 = pneg %p42
        %p204 = pneg %p39
        %p205 = pneg %p63
        %p206 = pneg %p60
        %p207 = pneg %p84
        %p208 = pneg %p81
        %p209 = pneg %p110
        %p210 = pneg %p107
        %s211 = sand.u32 %s97, 1
        %s212 = scalar_lea.sflag [#allocation4], %s211
        %s213 = sand.u32 %s97, 1
        %s214 = smul.addr %s213, 8
        %s215 = scalar_lea.vmem [#allocation8], %s214
        %v217 = vld [vmem:[%s185] sm:$0xf]
        %v218 = vld [vmem:[%s185 + $0x4] sm:$0xf]
        %v220 = vunpack.c.l.b16 %v217
        %v221 = vpack.c.b16 %v220, %v220
        %v223 = vshrl.u32 %v221, 16
        %v225 = vrot.slane %v223, 1
        %v227 = vshll.u32 %v221, 16
        %v229 = vrot.slane %v227, 1
        %v231 = vrot.slane %v223, 7
        %v233 = vunpack.c.l.b16 %v218
        %v234 = vpack.c.b16 %v233, %v220
        %v236 = vshrl.u32 %v234, 16
        %v238 = vrot.slane %v236, 6
        %v239 = vshll.u32 %v234, 16
        %v241 = vrot.slane %v239, 7
        %v242 = vor.u32 %v238, %v241
        %v244 = vpack.c.b16 %v233, %v233
        %v246 = vshll.u32 %v244, 16
        %v248 = vrot.slane %v246, 2
        %v250 = vshrl.u32 %v244, 16
        %vm253 = vcmask 1040384
        %vm254 = vsmask.f32 256
        %vm255 = vmand %vm253, %vm254
        %v256 = vsel %vm255, %v225, %v229
        %vm257 = vcmask 1040384
        %v260 = vsel %vm257, %v256, %v231
        %vm262 = vcmask 1041408
        %vm263 = vsmask.f32 1280
        %vm264 = vmand %vm262, %vm263
        %v265 = vsel %vm264, %v260, %v242
        %v266 = vsel %vm264, %v242, %v248
        %vm267 = vcmask 1041408
        %v270 = vsel %vm267, %v266, %v250
        %vm272 = vcmask 1042432
        %vm273 = vsmask.f32 2304
        %vm274 = vmand %vm272, %vm273
        %v275 = vsel %vm274, %v270, %v246
        %v276 = vld [vmem:[#allocation5] sm:$0xf]
        %v277 = vld [vmem:[#allocation5 + $0x4] sm:$0xf]
        %v278 = vld [vmem:[#allocation5 + $0x8] sm:$0xf]
        %v279 = vld [vmem:[#allocation5 + $0xc] sm:$0xf]
        %v280 = vld [vmem:[#allocation5 + $0x10] sm:$0xf]
        %v281 = vld [vmem:[#allocation5 + $0x14] sm:$0xf]
        %v282 = vld [vmem:[#allocation5 + $0x18] sm:$0xf]
        %v283 = vld [vmem:[#allocation5 + $0x1c] sm:$0xf]
        %v284 = vld [vmem:[#allocation5 + $0x20] sm:$0xf]
        %v285 = vld [vmem:[#allocation5 + $0x24] sm:$0xf]
        %v286 = vld [vmem:[#allocation5 + $0x28] sm:$0xf]
        %v287 = vld [vmem:[#allocation5 + $0x2c] sm:$0xf]
        %v288 = vld [vmem:[#allocation5 + $0x30] sm:$0xf]
        %v289 = vld [vmem:[#allocation5 + $0x34] sm:$0xf]
        %v290 = vld [vmem:[#allocation5 + $0x38] sm:$0xf]
        %v291 = vld [vmem:[#allocation5 + $0x3c] sm:$0xf]
        %s292 = scalar_lea.vmem [#allocation5], 64
        %v293 = vld [vmem:[%s292] sm:$0xf]
        %v294 = vld [vmem:[%s292 + $0x4] sm:$0xf]
        %v295 = vld [vmem:[%s292 + $0x8] sm:$0xf]
        %v296 = vld [vmem:[%s292 + $0xc] sm:$0xf]
        %v297 = vld [vmem:[%s292 + $0x10] sm:$0xf]
        %v298 = vld [vmem:[%s292 + $0x14] sm:$0xf]
        %v299 = vld [vmem:[%s292 + $0x18] sm:$0xf]
        %v300 = vld [vmem:[%s292 + $0x1c] sm:$0xf]
        %v301 = vld [vmem:[%s292 + $0x20] sm:$0xf]
        %v302 = vld [vmem:[%s292 + $0x24] sm:$0xf]
        %v303 = vld [vmem:[%s292 + $0x28] sm:$0xf]
        %v304 = vld [vmem:[%s292 + $0x2c] sm:$0xf]
        %v305 = vld [vmem:[%s292 + $0x30] sm:$0xf]
        %v306 = vld [vmem:[%s292 + $0x34] sm:$0xf]
        %v307 = vld [vmem:[%s292 + $0x38] sm:$0xf]
        %v308 = vld [vmem:[%s292 + $0x3c] sm:$0xf]
        %vm309 = vsmask.f32 7424
        %v311 = vshrl.u32 %v265, 16
        %v313 = vshll.u32 %v265, 16
        %v315 = vrot.slane %v313, 1
        %v316 = vor.u32 %v311, %v315
        %v318 = vshll.u32 %v275, 16
        %v320 = vrot.slane %v318, 1
        %v321 = vsel %vm309, %v316, %v320
        %v339 = vunpack.c.l.b16 %v293
        %v340 = vunpack.c.l.b16 %v294
        %v341 = vunpack.c.l.b16 %v295
        %v342 = vunpack.c.l.b16 %v296
        %v343 = vunpack.c.l.b16 %v297
        %v344 = vunpack.c.l.b16 %v298
        %v345 = vunpack.c.l.b16 %v299
        %v346 = vunpack.c.l.b16 %v300
        %v347 = vunpack.c.l.b16 %v301
        %v348 = vunpack.c.l.b16 %v302
        %v349 = vunpack.c.l.b16 %v303
        %v350 = vunpack.c.l.b16 %v304
        %v351 = vunpack.c.l.b16 %v305
        %v352 = vunpack.c.l.b16 %v306
        %v353 = vunpack.c.l.b16 %v307
        %v354 = vunpack.c.l.b16 %v308
        %v355 = vpack.c.b16 %v340, %v339
        %v356 = vpack.c.b16 %v342, %v341
        %v357 = vpack.c.b16 %v344, %v343
        %v358 = vpack.c.b16 %v346, %v345
        %v359 = vpack.c.b16 %v348, %v347
        %v360 = vpack.c.b16 %v350, %v349
        %v361 = vpack.c.b16 %v352, %v351
        %v362 = vpack.c.b16 %v354, %v353
        %371 = vmatprep.subr.bf16.mxu0 0
        %372 = vmatpush1.bf16.msra.mxu0 %v355
        %373 = vmatprep.subr.bf16.mxu0 0
        %374 = vmatpush1.bf16.msra.mxu0 %v356
        %375 = vmatprep.subr.bf16.mxu0 0
        %376 = vmatpush1.bf16.msra.mxu0 %v357
        %377 = vmatprep.subr.bf16.mxu0 0
        %378 = vmatpush1.bf16.msra.mxu0 %v358
        %379 = vmatprep.subr.bf16.mxu0 0
        %380 = vmatpush1.bf16.msra.mxu0 %v359
        %381 = vmatprep.subr.bf16.mxu0 0
        %382 = vmatpush1.bf16.msra.mxu0 %v360
        %383 = vmatprep.subr.bf16.mxu0 0
        %384 = vmatpush1.bf16.msra.mxu0 %v361
        %385 = vmatprep.subr.bf16.mxu0 0
        %386 = vmatpush1.bf16.msra.mxu0 %v362
        %387 = vmatprep.subr.bf16.mxu0 0
        %388 = vmatpush1.bf16.msra.mxu0 0
        %389 = vmatprep.subr.bf16.mxu0 0
        %390 = vmatpush1.bf16.msra.mxu0 0
        %391 = vmatprep.subr.bf16.mxu0 0
        %392 = vmatpush1.bf16.msra.mxu0 0
        %393 = vmatprep.subr.bf16.mxu0 0
        %394 = vmatpush1.bf16.msra.mxu0 0
        %395 = vmatprep.subr.bf16.mxu0 0
        %396 = vmatpush1.bf16.msra.mxu0 0
        %397 = vmatprep.subr.bf16.mxu0 0
        %398 = vmatpush1.bf16.msra.mxu0 0
        %399 = vmatprep.subr.bf16.mxu0 0
        %400 = vmatpush1.bf16.msra.mxu0 0
        %401 = vmatprep.subr.bf16.mxu0 0
        %402 = vmatpush1.bf16.msra.mxu0 0
        %403 = vmatprep.mubr.bf16.mxu0 0
        %404 = vmatmul.mubr.bf16.gmra.mrb[0].mxu0 %v321
        %v405 = vpop.f32.mrb[0].mxu0
        %v406 = vadd.f32 0.0, %v405
        %v407 = vpop.f32.mrb[0].mxu0
        %v408 = vpop.f32.mrb[0].mxu0
        %v409 = vadd.f32 0.0, %v408
        %v410 = vpop.f32.mrb[0].mxu0
        %411 = vdwg.mxu0
        %v428 = vunpack.c.l.b16 %v276
        %v429 = vunpack.c.l.b16 %v277
        %v430 = vunpack.c.l.b16 %v278
        %v431 = vunpack.c.l.b16 %v279
        %v432 = vunpack.c.l.b16 %v280
        %v433 = vunpack.c.l.b16 %v281
        %v434 = vunpack.c.l.b16 %v282
        %v435 = vunpack.c.l.b16 %v283
        %v436 = vunpack.c.l.b16 %v284
        %v437 = vunpack.c.l.b16 %v285
        %v438 = vunpack.c.l.b16 %v286
        %v439 = vunpack.c.l.b16 %v287
        %v440 = vunpack.c.l.b16 %v288
        %v441 = vunpack.c.l.b16 %v289
        %v442 = vunpack.c.l.b16 %v290
        %v443 = vunpack.c.l.b16 %v291
        %v444 = vpack.c.b16 %v429, %v428
        %v445 = vpack.c.b16 %v431, %v430
        %v446 = vpack.c.b16 %v433, %v432
        %v447 = vpack.c.b16 %v435, %v434
        %v448 = vpack.c.b16 %v437, %v436
        %v449 = vpack.c.b16 %v439, %v438
        %v450 = vpack.c.b16 %v441, %v440
        %v451 = vpack.c.b16 %v443, %v442
        %460 = vmatprep.subr.bf16.mxu0 0
        %461 = vmatpush1.bf16.msra.mxu0 %v444
        %462 = vmatprep.subr.bf16.mxu0 0
        %463 = vmatpush1.bf16.msra.mxu0 %v445
        %464 = vmatprep.subr.bf16.mxu0 0
        %465 = vmatpush1.bf16.msra.mxu0 %v446
        %466 = vmatprep.subr.bf16.mxu0 0
        %467 = vmatpush1.bf16.msra.mxu0 %v447
        %468 = vmatprep.subr.bf16.mxu0 0
        %469 = vmatpush1.bf16.msra.mxu0 %v448
        %470 = vmatprep.subr.bf16.mxu0 0
        %471 = vmatpush1.bf16.msra.mxu0 %v449
        %472 = vmatprep.subr.bf16.mxu0 0
        %473 = vmatpush1.bf16.msra.mxu0 %v450
        %474 = vmatprep.subr.bf16.mxu0 0
        %475 = vmatpush1.bf16.msra.mxu0 %v451
        %476 = vmatprep.subr.bf16.mxu0 0
        %477 = vmatpush1.bf16.msra.mxu0 0
        %478 = vmatprep.subr.bf16.mxu0 0
        %479 = vmatpush1.bf16.msra.mxu0 0
        %480 = vmatprep.subr.bf16.mxu0 0
        %481 = vmatpush1.bf16.msra.mxu0 0
        %482 = vmatprep.subr.bf16.mxu0 0
        %483 = vmatpush1.bf16.msra.mxu0 0
        %484 = vmatprep.subr.bf16.mxu0 0
        %485 = vmatpush1.bf16.msra.mxu0 0
        %486 = vmatprep.subr.bf16.mxu0 0
        %487 = vmatpush1.bf16.msra.mxu0 0
        %488 = vmatprep.subr.bf16.mxu0 0
        %489 = vmatpush1.bf16.msra.mxu0 0
        %490 = vmatprep.subr.bf16.mxu0 0
        %491 = vmatpush1.bf16.msra.mxu0 0
        %492 = vmatprep.mubr.bf16.mxu0 0
        %493 = vmatmul.mubr.bf16.gmra.mrb[0].mxu0 %v265
        %v494 = vpop.f32.mrb[0].mxu0
        %v495 = vadd.f32 %v406, %v494
        %v496 = vpop.f32.mrb[0].mxu0
        %v497 = vpop.f32.mrb[0].mxu0
        %v498 = vadd.f32 %v409, %v497
        %v499 = vpop.f32.mrb[0].mxu0
        %500 = vdwg.mxu0
        %s501 = scalar_lea.vmem [#allocation5], 128
        %v502 = vld [vmem:[%s501] sm:$0xf]
        %v503 = vld [vmem:[%s501 + $0x4] sm:$0xf]
        %v504 = vld [vmem:[%s501 + $0x8] sm:$0xf]
        %v505 = vld [vmem:[%s501 + $0xc] sm:$0xf]
        %v506 = vld [vmem:[%s501 + $0x10] sm:$0xf]
        %v507 = vld [vmem:[%s501 + $0x14] sm:$0xf]
        %v508 = vld [vmem:[%s501 + $0x18] sm:$0xf]
        %v509 = vld [vmem:[%s501 + $0x1c] sm:$0xf]
        %v510 = vld [vmem:[%s501 + $0x20] sm:$0xf]
        %v511 = vld [vmem:[%s501 + $0x24] sm:$0xf]
        %v512 = vld [vmem:[%s501 + $0x28] sm:$0xf]
        %v513 = vld [vmem:[%s501 + $0x2c] sm:$0xf]
        %v514 = vld [vmem:[%s501 + $0x30] sm:$0xf]
        %v515 = vld [vmem:[%s501 + $0x34] sm:$0xf]
        %v516 = vld [vmem:[%s501 + $0x38] sm:$0xf]
        %v517 = vld [vmem:[%s501 + $0x3c] sm:$0xf]
        %vm520 = vcmask 1046528
        %v521 = vrot.slane %v265, 1
        %v522 = vrot.slane %v275, 1
        %v523 = vsel %vm520, %v521, %v522
        %v541 = vunpack.c.l.b16 %v502
        %v542 = vunpack.c.l.b16 %v503
        %v543 = vunpack.c.l.b16 %v504
        %v544 = vunpack.c.l.b16 %v505
        %v545 = vunpack.c.l.b16 %v506
        %v546 = vunpack.c.l.b16 %v507
        %v547 = vunpack.c.l.b16 %v508
        %v548 = vunpack.c.l.b16 %v509
        %v549 = vunpack.c.l.b16 %v510
        %v550 = vunpack.c.l.b16 %v511
        %v551 = vunpack.c.l.b16 %v512
        %v552 = vunpack.c.l.b16 %v513
        %v553 = vunpack.c.l.b16 %v514
        %v554 = vunpack.c.l.b16 %v515
        %v555 = vunpack.c.l.b16 %v516
        %v556 = vunpack.c.l.b16 %v517
        %v557 = vpack.c.b16 %v542, %v541
        %v558 = vpack.c.b16 %v544, %v543
        %v559 = vpack.c.b16 %v546, %v545
        %v560 = vpack.c.b16 %v548, %v547
        %v561 = vpack.c.b16 %v550, %v549
        %v562 = vpack.c.b16 %v552, %v551
        %v563 = vpack.c.b16 %v554, %v553
        %v564 = vpack.c.b16 %v556, %v555
        %573 = vmatprep.subr.bf16.mxu0 0
        %574 = vmatpush1.bf16.msra.mxu0 %v557
        %575 = vmatprep.subr.bf16.mxu0 0
        %576 = vmatpush1.bf16.msra.mxu0 %v558
        %577 = vmatprep.subr.bf16.mxu0 0
        %578 = vmatpush1.bf16.msra.mxu0 %v559
        %579 = vmatprep.subr.bf16.mxu0 0
        %580 = vmatpush1.bf16.msra.mxu0 %v560
        %581 = vmatprep.subr.bf16.mxu0 0
        %582 = vmatpush1.bf16.msra.mxu0 %v561
        %583 = vmatprep.subr.bf16.mxu0 0
        %584 = vmatpush1.bf16.msra.mxu0 %v562
        %585 = vmatprep.subr.bf16.mxu0 0
        %586 = vmatpush1.bf16.msra.mxu0 %v563
        %587 = vmatprep.subr.bf16.mxu0 0
        %588 = vmatpush1.bf16.msra.mxu0 %v564
        %589 = vmatprep.subr.bf16.mxu0 0
        %590 = vmatpush1.bf16.msra.mxu0 0
        %591 = vmatprep.subr.bf16.mxu0 0
        %592 = vmatpush1.bf16.msra.mxu0 0
        %593 = vmatprep.subr.bf16.mxu0 0
        %594 = vmatpush1.bf16.msra.mxu0 0
        %595 = vmatprep.subr.bf16.mxu0 0
        %596 = vmatpush1.bf16.msra.mxu0 0
        %597 = vmatprep.subr.bf16.mxu0 0
        %598 = vmatpush1.bf16.msra.mxu0 0
        %599 = vmatprep.subr.bf16.mxu0 0
        %600 = vmatpush1.bf16.msra.mxu0 0
        %601 = vmatprep.subr.bf16.mxu0 0
        %602 = vmatpush1.bf16.msra.mxu0 0
        %603 = vmatprep.subr.bf16.mxu0 0
        %604 = vmatpush1.bf16.msra.mxu0 0
        %605 = vmatprep.mubr.bf16.mxu0 0
        %606 = vmatmul.mubr.bf16.gmra.mrb[0].mxu0 %v523
        %v607 = vpop.f32.mrb[0].mxu0
        %v608 = vadd.f32 0.0, %v607
        %v609 = vpop.f32.mrb[0].mxu0
        %v610 = vpop.f32.mrb[0].mxu0
        %v611 = vadd.f32 0.0, %v610
        %v612 = vpop.f32.mrb[0].mxu0
        %613 = vdwg.mxu0
        %v614 = vadd.f32 %v495, %v608
        %v615 = vadd.f32 %v498, %v611
        %s616 = scalar_lea.vmem [#allocation5], 192
        %v617 = vld [vmem:[%s616] sm:$0xf]
        %v618 = vld [vmem:[%s616 + $0x4] sm:$0xf]
        %v619 = vld [vmem:[%s616 + $0x8] sm:$0xf]
        %v620 = vld [vmem:[%s616 + $0xc] sm:$0xf]
        %v621 = vld [vmem:[%s616 + $0x10] sm:$0xf]
        %v622 = vld [vmem:[%s616 + $0x14] sm:$0xf]
        %v623 = vld [vmem:[%s616 + $0x18] sm:$0xf]
        %v624 = vld [vmem:[%s616 + $0x1c] sm:$0xf]
        %v625 = vld [vmem:[%s616 + $0x20] sm:$0xf]
        %v626 = vld [vmem:[%s616 + $0x24] sm:$0xf]
        %v627 = vld [vmem:[%s616 + $0x28] sm:$0xf]
        %v628 = vld [vmem:[%s616 + $0x2c] sm:$0xf]
        %v629 = vld [vmem:[%s616 + $0x30] sm:$0xf]
        %v630 = vld [vmem:[%s616 + $0x34] sm:$0xf]
        %v631 = vld [vmem:[%s616 + $0x38] sm:$0xf]
        %v632 = vld [vmem:[%s616 + $0x3c] sm:$0xf]
        %vm633 = vsmask.f32 6400
        %v634 = vrot.slane %v311, 1
        %v635 = vrot.slane %v313, 2
        %v636 = vor.u32 %v634, %v635
        %v637 = vshrl.u32 %v275, 16
        %v639 = vrot.slane %v637, 1
        %v640 = vrot.slane %v318, 2
        %v641 = vor.u32 %v639, %v640
        %v642 = vsel %vm633, %v636, %v641
        %v660 = vunpack.c.l.b16 %v617
        %v661 = vunpack.c.l.b16 %v618
        %v662 = vunpack.c.l.b16 %v619
        %v663 = vunpack.c.l.b16 %v620
        %v664 = vunpack.c.l.b16 %v621
        %v665 = vunpack.c.l.b16 %v622
        %v666 = vunpack.c.l.b16 %v623
        %v667 = vunpack.c.l.b16 %v624
        %v668 = vunpack.c.l.b16 %v625
        %v669 = vunpack.c.l.b16 %v626
        %v670 = vunpack.c.l.b16 %v627
        %v671 = vunpack.c.l.b16 %v628
        %v672 = vunpack.c.l.b16 %v629
        %v673 = vunpack.c.l.b16 %v630
        %v674 = vunpack.c.l.b16 %v631
        %v675 = vunpack.c.l.b16 %v632
        %v676 = vpack.c.b16 %v661, %v660
        %v677 = vpack.c.b16 %v663, %v662
        %v678 = vpack.c.b16 %v665, %v664
        %v679 = vpack.c.b16 %v667, %v666
        %v680 = vpack.c.b16 %v669, %v668
        %v681 = vpack.c.b16 %v671, %v670
        %v682 = vpack.c.b16 %v673, %v672
        %v683 = vpack.c.b16 %v675, %v674
        %692 = vmatprep.subr.bf16.mxu0 0
        %693 = vmatpush1.bf16.msra.mxu0 %v676
        %694 = vmatprep.subr.bf16.mxu0 0
        %695 = vmatpush1.bf16.msra.mxu0 %v677
        %696 = vmatprep.subr.bf16.mxu0 0
        %697 = vmatpush1.bf16.msra.mxu0 %v678
        %698 = vmatprep.subr.bf16.mxu0 0
        %699 = vmatpush1.bf16.msra.mxu0 %v679
        %700 = vmatprep.subr.bf16.mxu0 0
        %701 = vmatpush1.bf16.msra.mxu0 %v680
        %702 = vmatprep.subr.bf16.mxu0 0
        %703 = vmatpush1.bf16.msra.mxu0 %v681
        %704 = vmatprep.subr.bf16.mxu0 0
        %705 = vmatpush1.bf16.msra.mxu0 %v682
        %706 = vmatprep.subr.bf16.mxu0 0
        %707 = vmatpush1.bf16.msra.mxu0 %v683
        %708 = vmatprep.subr.bf16.mxu0 0
        %709 = vmatpush1.bf16.msra.mxu0 0
        %710 = vmatprep.subr.bf16.mxu0 0
        %711 = vmatpush1.bf16.msra.mxu0 0
        %712 = vmatprep.subr.bf16.mxu0 0
        %713 = vmatpush1.bf16.msra.mxu0 0
        %714 = vmatprep.subr.bf16.mxu0 0
        %715 = vmatpush1.bf16.msra.mxu0 0
        %716 = vmatprep.subr.bf16.mxu0 0
        %717 = vmatpush1.bf16.msra.mxu0 0
        %718 = vmatprep.subr.bf16.mxu0 0
        %719 = vmatpush1.bf16.msra.mxu0 0
        %720 = vmatprep.subr.bf16.mxu0 0
        %721 = vmatpush1.bf16.msra.mxu0 0
        %722 = vmatprep.subr.bf16.mxu0 0
        %723 = vmatpush1.bf16.msra.mxu0 0
        %724 = vmatprep.mubr.bf16.mxu0 0
        %725 = vmatmul.mubr.bf16.gmra.mrb[0].mxu0 %v642
        %v726 = vpop.f32.mrb[0].mxu0
        %v727 = vadd.f32 0.0, %v726
        %v728 = vpop.f32.mrb[0].mxu0
        %v729 = vpop.f32.mrb[0].mxu0
        %v730 = vadd.f32 0.0, %v729
        %v731 = vpop.f32.mrb[0].mxu0
        %732 = vdwg.mxu0
        %v733 = vadd.f32 %v614, %v727
        %v734 = vadd.f32 %v615, %v730
        %s735 = scalar_lea.vmem [#allocation5], 256
        %v736 = vld [vmem:[%s735] sm:$0xf]
        %v737 = vld [vmem:[%s735 + $0x4] sm:$0xf]
        %v738 = vld [vmem:[%s735 + $0x8] sm:$0xf]
        %v739 = vld [vmem:[%s735 + $0xc] sm:$0xf]
        %v740 = vld [vmem:[%s735 + $0x10] sm:$0xf]
        %v741 = vld [vmem:[%s735 + $0x14] sm:$0xf]
        %v742 = vld [vmem:[%s735 + $0x18] sm:$0xf]
        %v743 = vld [vmem:[%s735 + $0x1c] sm:$0xf]
        %v744 = vld [vmem:[%s735 + $0x20] sm:$0xf]
        %v745 = vld [vmem:[%s735 + $0x24] sm:$0xf]
        %v746 = vld [vmem:[%s735 + $0x28] sm:$0xf]
        %v747 = vld [vmem:[%s735 + $0x2c] sm:$0xf]
        %v748 = vld [vmem:[%s735 + $0x30] sm:$0xf]
        %v749 = vld [vmem:[%s735 + $0x34] sm:$0xf]
        %v750 = vld [vmem:[%s735 + $0x38] sm:$0xf]
        %v751 = vld [vmem:[%s735 + $0x3c] sm:$0xf]
        %vm752 = vcmask 1045504
        %v753 = vrot.slane %v265, 2
        %v754 = vrot.slane %v275, 2
        %v755 = vsel %vm752, %v753, %v754
        %v773 = vunpack.c.l.b16 %v736
        %v774 = vunpack.c.l.b16 %v737
        %v775 = vunpack.c.l.b16 %v738
        %v776 = vunpack.c.l.b16 %v739
        %v777 = vunpack.c.l.b16 %v740
        %v778 = vunpack.c.l.b16 %v741
        %v779 = vunpack.c.l.b16 %v742
        %v780 = vunpack.c.l.b16 %v743
        %v781 = vunpack.c.l.b16 %v744
        %v782 = vunpack.c.l.b16 %v745
        %v783 = vunpack.c.l.b16 %v746
        %v784 = vunpack.c.l.b16 %v747
        %v785 = vunpack.c.l.b16 %v748
        %v786 = vunpack.c.l.b16 %v749
        %v787 = vunpack.c.l.b16 %v750
        %v788 = vunpack.c.l.b16 %v751
        %v789 = vpack.c.b16 %v774, %v773
        %v790 = vpack.c.b16 %v776, %v775
        %v791 = vpack.c.b16 %v778, %v777
        %v792 = vpack.c.b16 %v780, %v779
        %v793 = vpack.c.b16 %v782, %v781
        %v794 = vpack.c.b16 %v784, %v783
        %v795 = vpack.c.b16 %v786, %v785
        %v796 = vpack.c.b16 %v788, %v787
        %805 = vmatprep.subr.bf16.mxu0 0
        %806 = vmatpush1.bf16.msra.mxu0 %v789
        %807 = vmatprep.subr.bf16.mxu0 0
        %808 = vmatpush1.bf16.msra.mxu0 %v790
        %809 = vmatprep.subr.bf16.mxu0 0
        %810 = vmatpush1.bf16.msra.mxu0 %v791
        %811 = vmatprep.subr.bf16.mxu0 0
        %812 = vmatpush1.bf16.msra.mxu0 %v792
        %813 = vmatprep.subr.bf16.mxu0 0
        %814 = vmatpush1.bf16.msra.mxu0 %v793
        %815 = vmatprep.subr.bf16.mxu0 0
        %816 = vmatpush1.bf16.msra.mxu0 %v794
        %817 = vmatprep.subr.bf16.mxu0 0
        %818 = vmatpush1.bf16.msra.mxu0 %v795
        %819 = vmatprep.subr.bf16.mxu0 0
        %820 = vmatpush1.bf16.msra.mxu0 %v796
        %821 = vmatprep.subr.bf16.mxu0 0
        %822 = vmatpush1.bf16.msra.mxu0 0
        %823 = vmatprep.subr.bf16.mxu0 0
        %824 = vmatpush1.bf16.msra.mxu0 0
        %825 = vmatprep.subr.bf16.mxu0 0
        %826 = vmatpush1.bf16.msra.mxu0 0
        %827 = vmatprep.subr.bf16.mxu0 0
        %828 = vmatpush1.bf16.msra.mxu0 0
        %829 = vmatprep.subr.bf16.mxu0 0
        %830 = vmatpush1.bf16.msra.mxu0 0
        %831 = vmatprep.subr.bf16.mxu0 0
        %832 = vmatpush1.bf16.msra.mxu0 0
        %833 = vmatprep.subr.bf16.mxu0 0
        %834 = vmatpush1.bf16.msra.mxu0 0
        %835 = vmatprep.subr.bf16.mxu0 0
        %836 = vmatpush1.bf16.msra.mxu0 0
        %837 = vmatprep.mubr.bf16.mxu0 0
        %838 = vmatmul.mubr.bf16.gmra.mrb[0].mxu0 %v755
        %v839 = vpop.f32.mrb[0].mxu0
        %v840 = vadd.f32 0.0, %v839
        %v841 = vpop.f32.mrb[0].mxu0
        %v842 = vpop.f32.mrb[0].mxu0
        %v843 = vadd.f32 0.0, %v842
        %v844 = vpop.f32.mrb[0].mxu0
        %845 = vdwg.mxu0
        %v846 = vadd.f32 %v733, %v840
        %v847 = vadd.f32 %v734, %v843
        %s848 = scalar_lea.vmem [#allocation5], 320
        %v849 = vld [vmem:[%s848] sm:$0xf]
        %v850 = vld [vmem:[%s848 + $0x4] sm:$0xf]
        %v851 = vld [vmem:[%s848 + $0x8] sm:$0xf]
        %v852 = vld [vmem:[%s848 + $0xc] sm:$0xf]
        %v853 = vld [vmem:[%s848 + $0x10] sm:$0xf]
        %v854 = vld [vmem:[%s848 + $0x14] sm:$0xf]
        %v855 = vld [vmem:[%s848 + $0x18] sm:$0xf]
        %v856 = vld [vmem:[%s848 + $0x1c] sm:$0xf]
        %v857 = vld [vmem:[%s848 + $0x20] sm:$0xf]
        %v858 = vld [vmem:[%s848 + $0x24] sm:$0xf]
        %v859 = vld [vmem:[%s848 + $0x28] sm:$0xf]
        %v860 = vld [vmem:[%s848 + $0x2c] sm:$0xf]
        %v861 = vld [vmem:[%s848 + $0x30] sm:$0xf]
        %v862 = vld [vmem:[%s848 + $0x34] sm:$0xf]
        %v863 = vld [vmem:[%s848 + $0x38] sm:$0xf]
        %v864 = vld [vmem:[%s848 + $0x3c] sm:$0xf]
        %vm865 = vsmask.f32 5376
        %v866 = vrot.slane %v311, 2
        %v867 = vrot.slane %v313, 3
        %v868 = vor.u32 %v866, %v867
        %v869 = vrot.slane %v637, 2
        %v870 = vrot.slane %v318, 3
        %v871 = vor.u32 %v869, %v870
        %v872 = vsel %vm865, %v868, %v871
        %v890 = vunpack.c.l.b16 %v849
        %v891 = vunpack.c.l.b16 %v850
        %v892 = vunpack.c.l.b16 %v851
        %v893 = vunpack.c.l.b16 %v852
        %v894 = vunpack.c.l.b16 %v853
        %v895 = vunpack.c.l.b16 %v854
        %v896 = vunpack.c.l.b16 %v855
        %v897 = vunpack.c.l.b16 %v856
        %v898 = vunpack.c.l.b16 %v857
        %v899 = vunpack.c.l.b16 %v858
        %v900 = vunpack.c.l.b16 %v859
        %v901 = vunpack.c.l.b16 %v860
        %v902 = vunpack.c.l.b16 %v861
        %v903 = vunpack.c.l.b16 %v862
        %v904 = vunpack.c.l.b16 %v863
        %v905 = vunpack.c.l.b16 %v864
        %v906 = vpack.c.b16 %v891, %v890
        %v907 = vpack.c.b16 %v893, %v892
        %v908 = vpack.c.b16 %v895, %v894
        %v909 = vpack.c.b16 %v897, %v896
        %v910 = vpack.c.b16 %v899, %v898
        %v911 = vpack.c.b16 %v901, %v900
        %v912 = vpack.c.b16 %v903, %v902
        %v913 = vpack.c.b16 %v905, %v904
        %922 = vmatprep.subr.bf16.mxu0 0
        %923 = vmatpush1.bf16.msra.mxu0 %v906
        %924 = vmatprep.subr.bf16.mxu0 0
        %925 = vmatpush1.bf16.msra.mxu0 %v907
        %926 = vmatprep.subr.bf16.mxu0 0
        %927 = vmatpush1.bf16.msra.mxu0 %v908
        %928 = vmatprep.subr.bf16.mxu0 0
        %929 = vmatpush1.bf16.msra.mxu0 %v909
        %930 = vmatprep.subr.bf16.mxu0 0
        %931 = vmatpush1.bf16.msra.mxu0 %v910
        %932 = vmatprep.subr.bf16.mxu0 0
        %933 = vmatpush1.bf16.msra.mxu0 %v911
        %934 = vmatprep.subr.bf16.mxu0 0
        %935 = vmatpush1.bf16.msra.mxu0 %v912
        %936 = vmatprep.subr.bf16.mxu0 0
        %937 = vmatpush1.bf16.msra.mxu0 %v913
        %938 = vmatprep.subr.bf16.mxu0 0
        %939 = vmatpush1.bf16.msra.mxu0 0
        %940 = vmatprep.subr.bf16.mxu0 0
        %941 = vmatpush1.bf16.msra.mxu0 0
        %942 = vmatprep.subr.bf16.mxu0 0
        %943 = vmatpush1.bf16.msra.mxu0 0
        %944 = vmatprep.subr.bf16.mxu0 0
        %945 = vmatpush1.bf16.msra.mxu0 0
        %946 = vmatprep.subr.bf16.mxu0 0
        %947 = vmatpush1.bf16.msra.mxu0 0
        %948 = vmatprep.subr.bf16.mxu0 0
        %949 = vmatpush1.bf16.msra.mxu0 0
        %950 = vmatprep.subr.bf16.mxu0 0
        %951 = vmatpush1.bf16.msra.mxu0 0
        %952 = vmatprep.subr.bf16.mxu0 0
        %953 = vmatpush1.bf16.msra.mxu0 0
        %954 = vmatprep.mubr.bf16.mxu0 0
        %955 = vmatmul.mubr.bf16.gmra.mrb[0].mxu0 %v872
        %v956 = vpop.f32.mrb[0].mxu0
        %v957 = vadd.f32 0.0, %v956
        %v958 = vpop.f32.mrb[0].mxu0
        %v959 = vpop.f32.mrb[0].mxu0
        %v960 = vadd.f32 0.0, %v959
        %v961 = vpop.f32.mrb[0].mxu0
        %962 = vdwg.mxu0
        %v963 = vadd.f32 %v846, %v957
        %v964 = vadd.f32 %v847, %v960
        %s965 = scalar_lea.vmem [#allocation5], 384
        %v966 = vld [vmem:[%s965] sm:$0xf]
        %v967 = vld [vmem:[%s965 + $0x4] sm:$0xf]
        %v968 = vld [vmem:[%s965 + $0x8] sm:$0xf]
        %v969 = vld [vmem:[%s965 + $0xc] sm:$0xf]
        %v970 = vld [vmem:[%s965 + $0x10] sm:$0xf]
        %v971 = vld [vmem:[%s965 + $0x14] sm:$0xf]
        %v972 = vld [vmem:[%s965 + $0x18] sm:$0xf]
        %v973 = vld [vmem:[%s965 + $0x1c] sm:$0xf]
        %v974 = vld [vmem:[%s965 + $0x20] sm:$0xf]
        %v975 = vld [vmem:[%s965 + $0x24] sm:$0xf]
        %v976 = vld [vmem:[%s965 + $0x28] sm:$0xf]
        %v977 = vld [vmem:[%s965 + $0x2c] sm:$0xf]
        %v978 = vld [vmem:[%s965 + $0x30] sm:$0xf]
        %v979 = vld [vmem:[%s965 + $0x34] sm:$0xf]
        %v980 = vld [vmem:[%s965 + $0x38] sm:$0xf]
        %v981 = vld [vmem:[%s965 + $0x3c] sm:$0xf]
        %vm982 = vcmask 1044480
        %v983 = vrot.slane %v265, 3
        %v984 = vrot.slane %v275, 3
        %v985 = vsel %vm982, %v983, %v984
        %v1003 = vunpack.c.l.b16 %v966
        %v1004 = vunpack.c.l.b16 %v967
        %v1005 = vunpack.c.l.b16 %v968
        %v1006 = vunpack.c.l.b16 %v969
        %v1007 = vunpack.c.l.b16 %v970
        %v1008 = vunpack.c.l.b16 %v971
        %v1009 = vunpack.c.l.b16 %v972
        %v1010 = vunpack.c.l.b16 %v973
        %v1011 = vunpack.c.l.b16 %v974
        %v1012 = vunpack.c.l.b16 %v975
        %v1013 = vunpack.c.l.b16 %v976
        %v1014 = vunpack.c.l.b16 %v977
        %v1015 = vunpack.c.l.b16 %v978
        %v1016 = vunpack.c.l.b16 %v979
        %v1017 = vunpack.c.l.b16 %v980
        %v1018 = vunpack.c.l.b16 %v981
        %v1019 = vpack.c.b16 %v1004, %v1003
        %v1020 = vpack.c.b16 %v1006, %v1005
        %v1021 = vpack.c.b16 %v1008, %v1007
        %v1022 = vpack.c.b16 %v1010, %v1009
        %v1023 = vpack.c.b16 %v1012, %v1011
        %v1024 = vpack.c.b16 %v1014, %v1013
        %v1025 = vpack.c.b16 %v1016, %v1015
        %v1026 = vpack.c.b16 %v1018, %v1017
        %1035 = vmatprep.subr.bf16.mxu0 0
        %1036 = vmatpush1.bf16.msra.mxu0 %v1019
        %1037 = vmatprep.subr.bf16.mxu0 0
        %1038 = vmatpush1.bf16.msra.mxu0 %v1020
        %1039 = vmatprep.subr.bf16.mxu0 0
        %1040 = vmatpush1.bf16.msra.mxu0 %v1021
        %1041 = vmatprep.subr.bf16.mxu0 0
        %1042 = vmatpush1.bf16.msra.mxu0 %v1022
        %1043 = vmatprep.subr.bf16.mxu0 0
        %1044 = vmatpush1.bf16.msra.mxu0 %v1023
        %1045 = vmatprep.subr.bf16.mxu0 0
        %1046 = vmatpush1.bf16.msra.mxu0 %v1024
        %1047 = vmatprep.subr.bf16.mxu0 0
        %1048 = vmatpush1.bf16.msra.mxu0 %v1025
        %1049 = vmatprep.subr.bf16.mxu0 0
        %1050 = vmatpush1.bf16.msra.mxu0 %v1026
        %1051 = vmatprep.subr.bf16.mxu0 0
        %1052 = vmatpush1.bf16.msra.mxu0 0
        %1053 = vmatprep.subr.bf16.mxu0 0
        %1054 = vmatpush1.bf16.msra.mxu0 0
        %1055 = vmatprep.subr.bf16.mxu0 0
        %1056 = vmatpush1.bf16.msra.mxu0 0
        %1057 = vmatprep.subr.bf16.mxu0 0
        %1058 = vmatpush1.bf16.msra.mxu0 0
        %1059 = vmatprep.subr.bf16.mxu0 0
        %1060 = vmatpush1.bf16.msra.mxu0 0
        %1061 = vmatprep.subr.bf16.mxu0 0
        %1062 = vmatpush1.bf16.msra.mxu0 0
        %1063 = vmatprep.subr.bf16.mxu0 0
        %1064 = vmatpush1.bf16.msra.mxu0 0
        %1065 = vmatprep.subr.bf16.mxu0 0
        %1066 = vmatpush1.bf16.msra.mxu0 0
        %1067 = vmatprep.mubr.bf16.mxu0 0
        %1068 = vmatmul.mubr.bf16.gmra.mrb[0].mxu0 %v985
        %v1069 = vpop.f32.mrb[0].mxu0
        %v1070 = vadd.f32 0.0, %v1069
        %v1071 = vpop.f32.mrb[0].mxu0
        %v1072 = vpop.f32.mrb[0].mxu0
        %v1073 = vadd.f32 0.0, %v1072
        %v1074 = vpop.f32.mrb[0].mxu0
        %1075 = vdwg.mxu0
        %v1076 = vadd.f32 %v963, %v1070
        %v1077 = vadd.f32 %v964, %v1073
        %v1078 = vld [vmem:[#allocation7] sm:$0x1]
        %v1080 = vlaneseq
        %v1081 = vshrl.u32 %v1080, 7
        %v1082 = vsub.s32 0, %v1081
        %v1083 = vrot.slane %v1078, %v1082
        %v1085 = vadd.f32 %v1076, %v1083
        %v1086 = vadd.f32 %v1077, %v1083
        %v1087 = vpack.c.bf16 %v1086, %v1085
        %v1089 = vunpack.c.l.b16 %v1087
        %v1090 = vunpack.c.h.b16 %v1087
        %v1091 = vpack.c.b16 %v1089, %v1089
        %v1092 = vpack.c.b16 %v1090, %v1090
        %1095 = vst [vmem:[%s215] sm:$0xf] %v1091
        %1096 = vst [vmem:[%s215 + $0x4] sm:$0xf] %v1092
        %s1097 = sand.u32 %s97, 1
        %s1098 = scalar_lea.sflag [#allocation4], %s1097
        %s1099 = sand.u32 %s97, 1
        %s1100 = smul.addr %s1099, 8
        %s1101 = scalar_lea.vmem [#allocation8], %s1100
        // Predicated region
        $region45: #{generator_forward.13} parent=31 // pred_check
          %p1102 = pneg %p107
        $region46: #{generator_forward.13} parent=31 // pred_check_branch
          %1104 = sbr.rel (%p1102) target = $region48
        $region47: #{generator_forward.13} parent=31 // pred_region
          %s1106 = ssub.s32 128, 128
          %1107 = vsyncadd %s1098, %s1106
          %s1108 = smul.addr %s21, 2
          %s1109 = smul.addr %s1108, 64
          %s1110 = scalar_lea.hbm %s3, %s1109
          %s1111 = sshll.u32 %s1101, 4
          %s1112 = int_to_ptr.vmem [resolvable:$true] %s1111
          %1117 = dma.vmem_to_hbm [thread:$0]  %s1112, 128, %s1110, %s1098, 64, 64, 4
        $region48: #{generator_forward.13} parent=31 // pred_fallthru
          _
      $region32: #{generator_forward.13} parent=5 // pred_fallthru
        _
      %p1118 = scmp.le.s32.totalorder 2, %s16
      // Predicated region
      $region49: #{generator_forward.13} parent=5 // pred_check
        %p1119 = pneg %p1118
      $region50: #{generator_forward.13} parent=5 // pred_check_branch
        %1121 = sbr.rel (%p1119) target = $region52
      $region51: #{generator_forward.13} parent=5 // pred_region
        %s1122 = ssub.s32 %s16, 2
        // Predicated region
        $region53: #{generator_forward.13} parent=51 // pred_check
          %p1123 = pneg %p113
        $region54: #{generator_forward.13} parent=51 // pred_check_branch
          %1125 = sbr.rel (%p1123) target = $region56
        $region55: #{generator_forward.13} parent=51 // pred_region
          %s1126 = sand.u32 %s98, 1
          %s1127 = scalar_lea.sflag [#allocation4], %s1126
          %s1128 = sand.u32 %s98, 1
          %s1129 = smul.addr %s1128, 8
          %s1130 = scalar_lea.vmem [#allocation8], %s1129
          %1131 = dma.done %s1127, 128
        $region56: #{generator_forward.13} parent=51 // pred_fallthru
          _
      $region52: #{generator_forward.13} parent=5 // pred_fallthru
        _
    $region6: #{generator_forward.13} parent=1 // loop_footer
      %s20 = sadd.s32 1, %s16
    $region7: #{generator_forward.13} parent=1 // loop_footer_branch
      %15 = sbr.rel target = $region3
    $region8: #{generator_forward.13} parent=1 // loop_exit
      _
    %1132 = vsyncpa [#allocation3], 1
    %s1133 = scalar_lea.sflag [#allocation3], 1
    %1134 = vsyncpa %s1133, 1
    %1135 = vsyncpa [#allocation6], 1
    %1136 = vsyncpa [#allocation4], 1
    %s1137 = scalar_lea.sflag [#allocation4], 1
    %1138 = vsyncpa %s1137, 1

</llo_original>
